<compile_context>
chip_gen: v6e
topology: v6e:2x2x1
jax: 0.10.0
libtpu: 0.0.40
codegen_flags: <defaults>
</compile_context>

<pallas_src>
import functools

import jax
import jax.numpy as jnp
import numpy as np
from jax.experimental import pallas as pl
from jax.experimental.pallas import tpu as pltpu


# ----------------------------------------------------------------------------
# Fused Pallas kernel: all "main" conv layers, VMEM resident.
# ----------------------------------------------------------------------------
def _fused_main_kernel(a_ref, *refs, num_layers, negative_slope):
    """refs = (rt_0, m_0, b_0, ..., rt_{L-1}, m_{L-1}, b_{L-1}, out_ref).

    Activation layout throughout: A[(c, n, w), h].
      rt_ref : (k, H_in, H_out)              bf16 0/1 row-gather matrices
      m_ref  : (k, Cout*N*Wout, Cin*N*Win)   bf16 column-gather (x) conv weights
      b_ref  : (Cout*N*Wout, 1)              f32 bias (broadcast over lanes)
    All matmuls are bf16 x bf16 -> f32 accumulation on the MXU.
    """
    assert len(refs) == 3 * num_layers + 1
    out_ref = refs[-1]

    a = a_ref[...]                                       # bf16 (C0*N*W0, H0)
    for layer in range(num_layers):
        rt_ref = refs[3 * layer]
        m_ref = refs[3 * layer + 1]
        b_ref = refs[3 * layer + 2]
        k = rt_ref.shape[0]

        acc = None
        for di in range(k):                              # static unroll (k = 4)
            # Row gather is an exact 0/1 selection -> bf16 round trip is lossless.
            p = jnp.dot(a, rt_ref[di],
                        preferred_element_type=jnp.float32).astype(jnp.bfloat16)
            t = jnp.dot(m_ref[di], p, preferred_element_type=jnp.float32)
            acc = t if acc is None else acc + t

        acc = acc + b_ref[...]                           # (R, 1) + (R, Ho)
        acc = jnp.where(acc >= 0, acc, negative_slope * acc)   # LeakyReLU(0.01)

        if layer + 1 < num_layers:
            a = acc.astype(jnp.bfloat16)                 # stays on-chip
        else:
            out_ref[...] = acc                           # single f32 store


def _full_block_spec(shape):
    ndim = len(shape)
    return pl.BlockSpec(tuple(shape), lambda i, _n=ndim: (0,) * _n)


# ----------------------------------------------------------------------------
# Wrapper-side precomputation of the per-layer GEMM operands
# ----------------------------------------------------------------------------
def _build_layer_operands(w_oihw, b, n_batch, h_in, w_in, stride, pad):
    """Returns (rt, m, b_exp, (c_out, h_out, w_out)) for one conv layer."""
    c_out, c_in, k, _ = w_oihw.shape
    h_out = (h_in + 2 * pad - k) // stride + 1
    w_out = (w_in + 2 * pad - k) // stride + 1

    # rt[di, h, ho] = 1  iff  h == stride*ho + di - pad  (OOB rows dropped ->
    # implicit zero padding).  Shape-only constant, built with numpy.
    rt = np.zeros((k, h_in, h_out), np.float32)
    ho = np.arange(h_out)
    for di in range(k):
        src = stride * ho + di - pad
        ok = (src >= 0) & (src < h_in)
        rt[di, src[ok], ho[ok]] = 1.0

    # sel[dj, wo, w] = 1  iff  w == stride*wo + dj - pad
    sel = np.zeros((k, w_out, w_in), np.float32)
    wo = np.arange(w_out)
    for dj in range(k):
        src = stride * wo + dj - pad
        ok = (src >= 0) & (src < w_in)
        sel[dj, wo[ok], src[ok]] = 1.0

    # M[di, (co,n,wo), (ci,n',w)] = sum_dj W[co,ci,di,dj] * sel[dj,wo,w] * I[n,n']
    # At most one dj contributes per (wo, w) pair, so this is the exact
    # im2col + weight operator for row-offset di.
    eye_n = np.eye(n_batch, dtype=np.float32)
    m = jnp.einsum("oiuv,vxw,nm->uonximw", w_oihw, sel, eye_n)
    m = m.reshape(k, c_out * n_batch * w_out, c_in * n_batch * w_in)

    if b is None:
        b_exp = jnp.zeros((c_out * n_batch * w_out, 1), jnp.float32)
    else:
        b_exp = jnp.repeat(b.astype(jnp.float32), n_batch * w_out).reshape(-1, 1)

    return (jnp.asarray(rt, jnp.bfloat16), m.astype(jnp.bfloat16), b_exp,
            (c_out, h_out, w_out))


# ----------------------------------------------------------------------------
# Forward pass (NCHW in; (N,1,Hf,Wf) + (N, c_dim) out, matching torch semantics)
# ----------------------------------------------------------------------------
def discriminator_deep_forward(params, x_nchw):
    n, c, h, w = x_nchw.shape

    # Cast to bf16 BEFORE any glue; layout A[(c, n, w), h] for the fused kernel.
    a0 = jnp.transpose(x_nchw.astype(jnp.bfloat16), (1, 0, 3, 2)).reshape(c * n * w, h)

    operands = [a0]
    cur_c, cur_h, cur_w = c, h, w
    for (w_l, b_l) in params["main"]:
        rt, m, b_exp, (cur_c, cur_h, cur_w) = _build_layer_operands(
            w_l, b_l, n, cur_h, cur_w, stride=2, pad=1)
        operands.extend([rt, m, b_exp])

    out_shape = (cur_c * n * cur_w, cur_h)
    kernel = functools.partial(_fused_main_kernel,
                               num_layers=len(params["main"]),
                               negative_slope=0.01)
    h_flat = pl.pallas_call(
        kernel,
        out_shape=jax.ShapeDtypeStruct(out_shape, jnp.float32),
        grid=(1,),                                    # single VMEM-resident program
        in_specs=[_full_block_spec(op.shape) for op in operands],
        out_specs=_full_block_spec(out_shape),
        compiler_params=pltpu.CompilerParams(dimension_semantics=("arbitrary",)),
    )(*operands)

    # ((c, n, wo), ho) -> NCHW for the heads (tiny: C*N*Ho*Wo floats).
    h_nchw = jnp.transpose(h_flat.reshape(cur_c, n, cur_w, cur_h), (1, 0, 3, 2))

    # Heads: ~10 KFLOP GEMMs each -> no Pallas launch (launch overhead dominates).
    w1, _ = params["conv1"]
    out_src = jax.lax.conv_general_dilated(
        h_nchw, w1, window_strides=(1, 1), padding=((1, 1), (1, 1)),
        dimension_numbers=("NCHW", "OIHW", "NCHW"),
        precision=jax.lax.Precision.HIGHEST)
    w2, _ = params["conv2"]
    out_cls = jnp.einsum("ncij,ocij->no", h_nchw, w2,
                         precision=jax.lax.Precision.HIGHEST)
    return out_src, out_cls


# ----------------------------------------------------------------------------
# Parameter init (deterministic, synthetic)
# ----------------------------------------------------------------------------
def _init_conv(key, cout, cin, k, bias=True):
    kw_, kb_ = jax.random.split(key)
    fan_in = cin * k * k
    w = jax.random.normal(kw_, (cout, cin, k, k), jnp.float32) / np.sqrt(fan_in)
    b = (jax.random.normal(kb_, (cout,), jnp.float32) * 0.01) if bias else None
    return w, b


def init_discriminator_deep(key, image_size=32, conv_dim=8, c_dim=5, repeat_num=3):
    keys = jax.random.split(key, repeat_num + 2)
    main = []
    main.append(_init_conv(keys[0], conv_dim, 3, 4, bias=True))       # 3 -> conv_dim
    curr = conv_dim
    for i in range(1, repeat_num - 1):
        main.append(_init_conv(keys[i], curr * 2, curr, 4, bias=True))
        curr *= 2
    main.append(_init_conv(keys[repeat_num - 1], curr, curr, 4, bias=True))
    ks = int(image_size / np.power(2, repeat_num))
    conv1 = _init_conv(keys[repeat_num], 1, curr, 3, bias=False)
    conv2 = _init_conv(keys[repeat_num + 1], c_dim, curr, ks, bias=False)
    return {"main": main, "conv1": conv1, "conv2": conv2}


# ----------------------------------------------------------------------------
# Pure-JAX reference (f32, HIGHEST precision) for correctness check
# ----------------------------------------------------------------------------
def _conv2d_ref(x_nchw, w_oihw, b, stride, pad):
    out = jax.lax.conv_general_dilated(
        x_nchw, w_oihw, window_strides=(stride, stride),
        padding=((pad, pad), (pad, pad)),
        dimension_numbers=("NCHW", "OIHW", "NCHW"),
        precision=jax.lax.Precision.HIGHEST)
    if b is not None:
        out = out + b.reshape(1, -1, 1, 1)
    return out


def _forward_ref(params, x_nchw):
    h = x_nchw
    for (w, b) in params["main"]:
        h = _conv2d_ref(h, w, b, 2, 1)
        h = jnp.where(h >= 0, h, 0.01 * h)
    out_src = _conv2d_ref(h, params["conv1"][0], None, 1, 1)
    out_cls = _conv2d_ref(h, params["conv2"][0], None, 1, 0)
    return out_src, out_cls.reshape(out_cls.shape[0], -1)


# ----------------------------------------------------------------------------
if __name__ == "__main__":
    key = jax.random.PRNGKey(0)
    k_param, k_x = jax.random.split(key)

    # Small config consistent with the module: 3 stride-2 convs halve 32 -> 4,
    # conv2 kernel_size = 32 / 2**3 = 4 reduces spatial to 1x1.
    batch, image_size, conv_dim, c_dim, repeat_num = 2, 32, 8, 5, 3
    params = init_discriminator_deep(k_param, image_size, conv_dim,
                                     c_dim, repeat_num)
    x = jax.random.normal(k_x, (batch, 3, image_size, image_size), jnp.float32)

    fwd = jax.jit(discriminator_deep_forward)
    out_src, out_cls = fwd(params, x)
    out_src = jax.block_until_ready(out_src)
    out_cls = jax.block_until_ready(out_cls)

    # Shape checks (match PyTorch semantics).
    hf = image_size // (2 ** repeat_num)
    assert out_src.shape == (batch, 1, hf, hf), out_src.shape
    assert out_cls.shape == (batch, c_dim), out_cls.shape

    # Numerical check against a pure-f32 HIGHEST-precision reference.  The
    # Pallas path feeds the MXU bf16 operands (f32 accumulation), so allow a
    # bf16-level tolerance across the 3-layer stack + heads.
    ref_src, ref_cls = _forward_ref(params, x)
    np.testing.assert_allclose(np.asarray(out_src), np.asarray(ref_src),
                               rtol=5e-2, atol=5e-2)
    np.testing.assert_allclose(np.asarray(out_cls), np.asarray(ref_cls),
                               rtol=5e-2, atol=5e-2)

    print("KERNEL_OK")
</pallas_src>

<mosaic_0001>
module attributes {stable_mosaic.version = 11 : i64} {
  func.func @_fused_main_kernel(%arg0: i32, %arg1: memref<192x32xbf16, #tpu.memory_space<vmem>>, %arg2: memref<4x32x16xbf16, #tpu.memory_space<vmem>>, %arg3: memref<4x256x192xbf16, #tpu.memory_space<vmem>>, %arg4: memref<256x1xf32, #tpu.memory_space<vmem>>, %arg5: memref<4x16x8xbf16, #tpu.memory_space<vmem>>, %arg6: memref<4x256x256xbf16, #tpu.memory_space<vmem>>, %arg7: memref<256x1xf32, #tpu.memory_space<vmem>>, %arg8: memref<4x8x4xbf16, #tpu.memory_space<vmem>>, %arg9: memref<4x128x256xbf16, #tpu.memory_space<vmem>>, %arg10: memref<128x1xf32, #tpu.memory_space<vmem>>, %arg11: memref<128x4xf32, #tpu.memory_space<vmem>>) attributes {dimension_semantics = [#tpu.dimension_semantics<arbitrary>], iteration_bounds = array<i64: 1>, scalar_prefetch = 0 : i64, scratch_operands = 0 : i64, tpu.core_type = #tpu.core_type<tc>, window_params = [{pipeline_mode = #tpu.pipeline_mode<synchronous>, transform_indices = @transform_0, window_bounds = array<i64: 192, 32>}, {pipeline_mode = #tpu.pipeline_mode<synchronous>, transform_indices = @transform_1, window_bounds = array<i64: 4, 32, 16>}, {pipeline_mode = #tpu.pipeline_mode<synchronous>, transform_indices = @transform_2, window_bounds = array<i64: 4, 256, 192>}, {pipeline_mode = #tpu.pipeline_mode<synchronous>, transform_indices = @transform_3, window_bounds = array<i64: 256, 1>}, {pipeline_mode = #tpu.pipeline_mode<synchronous>, transform_indices = @transform_4, window_bounds = array<i64: 4, 16, 8>}, {pipeline_mode = #tpu.pipeline_mode<synchronous>, transform_indices = @transform_5, window_bounds = array<i64: 4, 256, 256>}, {pipeline_mode = #tpu.pipeline_mode<synchronous>, transform_indices = @transform_6, window_bounds = array<i64: 256, 1>}, {pipeline_mode = #tpu.pipeline_mode<synchronous>, transform_indices = @transform_7, window_bounds = array<i64: 4, 8, 4>}, {pipeline_mode = #tpu.pipeline_mode<synchronous>, transform_indices = @transform_8, window_bounds = array<i64: 4, 128, 256>}, {pipeline_mode = #tpu.pipeline_mode<synchronous>, transform_indices = @transform_9, window_bounds = array<i64: 128, 1>}, {pipeline_mode = #tpu.pipeline_mode<synchronous>, transform_indices = @transform_10, window_bounds = array<i64: 128, 4>}]} {
    %c0 = arith.constant 0 : index
    %c0_0 = arith.constant 0 : index
    %0 = vector.load %arg1[%c0, %c0_0] : memref<192x32xbf16, #tpu.memory_space<vmem>>, vector<192x32xbf16>
    %c0_1 = arith.constant 0 : index
    %c0_2 = arith.constant 0 : index
    %c0_3 = arith.constant 0 : index
    %1 = vector.load %arg2[%c0_1, %c0_2, %c0_3] : memref<4x32x16xbf16, #tpu.memory_space<vmem>>, vector<1x32x16xbf16>
    %2 = vector.shape_cast %1 : vector<1x32x16xbf16> to vector<32x16xbf16>
    %cst = arith.constant dense<0.000000e+00> : vector<192x16xf32>
    %3 = tpu.matmul %0, %2, %cst {dimension_numbers = #tpu.dot_dimension_numbers<[1], [0], [0], [1], [0, 0, 1, 1], [], []>} : vector<192x32xbf16>, vector<32x16xbf16>, vector<192x16xf32> -> vector<192x16xf32>
    %4 = arith.truncf %3 : vector<192x16xf32> to vector<192x16xbf16>
    %c0_4 = arith.constant 0 : index
    %c0_5 = arith.constant 0 : index
    %c0_6 = arith.constant 0 : index
    %5 = vector.load %arg3[%c0_4, %c0_5, %c0_6] : memref<4x256x192xbf16, #tpu.memory_space<vmem>>, vector<1x256x192xbf16>
    %6 = vector.shape_cast %5 : vector<1x256x192xbf16> to vector<256x192xbf16>
    %cst_7 = arith.constant dense<0.000000e+00> : vector<256x16xf32>
    %7 = tpu.matmul %6, %4, %cst_7 {dimension_numbers = #tpu.dot_dimension_numbers<[1], [0], [0], [1], [0, 0, 1, 1], [], []>} : vector<256x192xbf16>, vector<192x16xbf16>, vector<256x16xf32> -> vector<256x16xf32>
    %c1 = arith.constant 1 : index
    %c0_8 = arith.constant 0 : index
    %c0_9 = arith.constant 0 : index
    %8 = vector.load %arg2[%c1, %c0_8, %c0_9] : memref<4x32x16xbf16, #tpu.memory_space<vmem>>, vector<1x32x16xbf16>
    %9 = vector.shape_cast %8 : vector<1x32x16xbf16> to vector<32x16xbf16>
    %cst_10 = arith.constant dense<0.000000e+00> : vector<192x16xf32>
    %10 = tpu.matmul %0, %9, %cst_10 {dimension_numbers = #tpu.dot_dimension_numbers<[1], [0], [0], [1], [0, 0, 1, 1], [], []>} : vector<192x32xbf16>, vector<32x16xbf16>, vector<192x16xf32> -> vector<192x16xf32>
    %11 = arith.truncf %10 : vector<192x16xf32> to vector<192x16xbf16>
    %c1_11 = arith.constant 1 : index
    %c0_12 = arith.constant 0 : index
    %c0_13 = arith.constant 0 : index
    %12 = vector.load %arg3[%c1_11, %c0_12, %c0_13] : memref<4x256x192xbf16, #tpu.memory_space<vmem>>, vector<1x256x192xbf16>
    %13 = vector.shape_cast %12 : vector<1x256x192xbf16> to vector<256x192xbf16>
    %cst_14 = arith.constant dense<0.000000e+00> : vector<256x16xf32>
    %14 = tpu.matmul %13, %11, %cst_14 {dimension_numbers = #tpu.dot_dimension_numbers<[1], [0], [0], [1], [0, 0, 1, 1], [], []>} : vector<256x192xbf16>, vector<192x16xbf16>, vector<256x16xf32> -> vector<256x16xf32>
    %15 = arith.addf %7, %14 : vector<256x16xf32>
    %c2 = arith.constant 2 : index
    %c0_15 = arith.constant 0 : index
    %c0_16 = arith.constant 0 : index
    %16 = vector.load %arg2[%c2, %c0_15, %c0_16] : memref<4x32x16xbf16, #tpu.memory_space<vmem>>, vector<1x32x16xbf16>
    %17 = vector.shape_cast %16 : vector<1x32x16xbf16> to vector<32x16xbf16>
    %cst_17 = arith.constant dense<0.000000e+00> : vector<192x16xf32>
    %18 = tpu.matmul %0, %17, %cst_17 {dimension_numbers = #tpu.dot_dimension_numbers<[1], [0], [0], [1], [0, 0, 1, 1], [], []>} : vector<192x32xbf16>, vector<32x16xbf16>, vector<192x16xf32> -> vector<192x16xf32>
    %19 = arith.truncf %18 : vector<192x16xf32> to vector<192x16xbf16>
    %c2_18 = arith.constant 2 : index
    %c0_19 = arith.constant 0 : index
    %c0_20 = arith.constant 0 : index
    %20 = vector.load %arg3[%c2_18, %c0_19, %c0_20] : memref<4x256x192xbf16, #tpu.memory_space<vmem>>, vector<1x256x192xbf16>
    %21 = vector.shape_cast %20 : vector<1x256x192xbf16> to vector<256x192xbf16>
    %cst_21 = arith.constant dense<0.000000e+00> : vector<256x16xf32>
    %22 = tpu.matmul %21, %19, %cst_21 {dimension_numbers = #tpu.dot_dimension_numbers<[1], [0], [0], [1], [0, 0, 1, 1], [], []>} : vector<256x192xbf16>, vector<192x16xbf16>, vector<256x16xf32> -> vector<256x16xf32>
    %23 = arith.addf %15, %22 : vector<256x16xf32>
    %c3 = arith.constant 3 : index
    %c0_22 = arith.constant 0 : index
    %c0_23 = arith.constant 0 : index
    %24 = vector.load %arg2[%c3, %c0_22, %c0_23] : memref<4x32x16xbf16, #tpu.memory_space<vmem>>, vector<1x32x16xbf16>
    %25 = vector.shape_cast %24 : vector<1x32x16xbf16> to vector<32x16xbf16>
    %cst_24 = arith.constant dense<0.000000e+00> : vector<192x16xf32>
    %26 = tpu.matmul %0, %25, %cst_24 {dimension_numbers = #tpu.dot_dimension_numbers<[1], [0], [0], [1], [0, 0, 1, 1], [], []>} : vector<192x32xbf16>, vector<32x16xbf16>, vector<192x16xf32> -> vector<192x16xf32>
    %27 = arith.truncf %26 : vector<192x16xf32> to vector<192x16xbf16>
    %c3_25 = arith.constant 3 : index
    %c0_26 = arith.constant 0 : index
    %c0_27 = arith.constant 0 : index
    %28 = vector.load %arg3[%c3_25, %c0_26, %c0_27] : memref<4x256x192xbf16, #tpu.memory_space<vmem>>, vector<1x256x192xbf16>
    %29 = vector.shape_cast %28 : vector<1x256x192xbf16> to vector<256x192xbf16>
    %cst_28 = arith.constant dense<0.000000e+00> : vector<256x16xf32>
    %30 = tpu.matmul %29, %27, %cst_28 {dimension_numbers = #tpu.dot_dimension_numbers<[1], [0], [0], [1], [0, 0, 1, 1], [], []>} : vector<256x192xbf16>, vector<192x16xbf16>, vector<256x16xf32> -> vector<256x16xf32>
    %31 = arith.addf %23, %30 : vector<256x16xf32>
    %c0_29 = arith.constant 0 : index
    %c0_30 = arith.constant 0 : index
    %32 = vector.load %arg4[%c0_29, %c0_30] : memref<256x1xf32, #tpu.memory_space<vmem>>, vector<256x1xf32>
    %33 = vector.broadcast %32 : vector<256x1xf32> to vector<256x16xf32>
    %34 = arith.addf %31, %33 : vector<256x16xf32>
    %cst_31 = arith.constant 0.000000e+00 : f32
    %35 = vector.broadcast %cst_31 : f32 to vector<256x16xf32>
    %36 = arith.cmpf oge, %34, %35 : vector<256x16xf32>
    %cst_32 = arith.constant 0.00999999977 : f32
    %37 = vector.broadcast %cst_32 : f32 to vector<256x16xf32>
    %38 = arith.mulf %37, %34 : vector<256x16xf32>
    %39 = arith.select %36, %34, %38 : vector<256x16xi1>, vector<256x16xf32>
    %40 = arith.truncf %39 : vector<256x16xf32> to vector<256x16xbf16>
    %c0_33 = arith.constant 0 : index
    %c0_34 = arith.constant 0 : index
    %c0_35 = arith.constant 0 : index
    %41 = vector.load %arg5[%c0_33, %c0_34, %c0_35] : memref<4x16x8xbf16, #tpu.memory_space<vmem>>, vector<1x16x8xbf16>
    %42 = vector.shape_cast %41 : vector<1x16x8xbf16> to vector<16x8xbf16>
    %cst_36 = arith.constant dense<0.000000e+00> : vector<256x8xf32>
    %43 = tpu.matmul %40, %42, %cst_36 {dimension_numbers = #tpu.dot_dimension_numbers<[1], [0], [0], [1], [0, 0, 1, 1], [], []>} : vector<256x16xbf16>, vector<16x8xbf16>, vector<256x8xf32> -> vector<256x8xf32>
    %44 = arith.truncf %43 : vector<256x8xf32> to vector<256x8xbf16>
    %c0_37 = arith.constant 0 : index
    %c0_38 = arith.constant 0 : index
    %c0_39 = arith.constant 0 : index
    %45 = vector.load %arg6[%c0_37, %c0_38, %c0_39] : memref<4x256x256xbf16, #tpu.memory_space<vmem>>, vector<1x256x256xbf16>
    %46 = vector.shape_cast %45 : vector<1x256x256xbf16> to vector<256x256xbf16>
    %cst_40 = arith.constant dense<0.000000e+00> : vector<256x8xf32>
    %47 = tpu.matmul %46, %44, %cst_40 {dimension_numbers = #tpu.dot_dimension_numbers<[1], [0], [0], [1], [0, 0, 1, 1], [], []>} : vector<256x256xbf16>, vector<256x8xbf16>, vector<256x8xf32> -> vector<256x8xf32>
    %c1_41 = arith.constant 1 : index
    %c0_42 = arith.constant 0 : index
    %c0_43 = arith.constant 0 : index
    %48 = vector.load %arg5[%c1_41, %c0_42, %c0_43] : memref<4x16x8xbf16, #tpu.memory_space<vmem>>, vector<1x16x8xbf16>
    %49 = vector.shape_cast %48 : vector<1x16x8xbf16> to vector<16x8xbf16>
    %cst_44 = arith.constant dense<0.000000e+00> : vector<256x8xf32>
    %50 = tpu.matmul %40, %49, %cst_44 {dimension_numbers = #tpu.dot_dimension_numbers<[1], [0], [0], [1], [0, 0, 1, 1], [], []>} : vector<256x16xbf16>, vector<16x8xbf16>, vector<256x8xf32> -> vector<256x8xf32>
    %51 = arith.truncf %50 : vector<256x8xf32> to vector<256x8xbf16>
    %c1_45 = arith.constant 1 : index
    %c0_46 = arith.constant 0 : index
    %c0_47 = arith.constant 0 : index
    %52 = vector.load %arg6[%c1_45, %c0_46, %c0_47] : memref<4x256x256xbf16, #tpu.memory_space<vmem>>, vector<1x256x256xbf16>
    %53 = vector.shape_cast %52 : vector<1x256x256xbf16> to vector<256x256xbf16>
    %cst_48 = arith.constant dense<0.000000e+00> : vector<256x8xf32>
    %54 = tpu.matmul %53, %51, %cst_48 {dimension_numbers = #tpu.dot_dimension_numbers<[1], [0], [0], [1], [0, 0, 1, 1], [], []>} : vector<256x256xbf16>, vector<256x8xbf16>, vector<256x8xf32> -> vector<256x8xf32>
    %55 = arith.addf %47, %54 : vector<256x8xf32>
    %c2_49 = arith.constant 2 : index
    %c0_50 = arith.constant 0 : index
    %c0_51 = arith.constant 0 : index
    %56 = vector.load %arg5[%c2_49, %c0_50, %c0_51] : memref<4x16x8xbf16, #tpu.memory_space<vmem>>, vector<1x16x8xbf16>
    %57 = vector.shape_cast %56 : vector<1x16x8xbf16> to vector<16x8xbf16>
    %cst_52 = arith.constant dense<0.000000e+00> : vector<256x8xf32>
    %58 = tpu.matmul %40, %57, %cst_52 {dimension_numbers = #tpu.dot_dimension_numbers<[1], [0], [0], [1], [0, 0, 1, 1], [], []>} : vector<256x16xbf16>, vector<16x8xbf16>, vector<256x8xf32> -> vector<256x8xf32>
    %59 = arith.truncf %58 : vector<256x8xf32> to vector<256x8xbf16>
    %c2_53 = arith.constant 2 : index
    %c0_54 = arith.constant 0 : index
    %c0_55 = arith.constant 0 : index
    %60 = vector.load %arg6[%c2_53, %c0_54, %c0_55] : memref<4x256x256xbf16, #tpu.memory_space<vmem>>, vector<1x256x256xbf16>
    %61 = vector.shape_cast %60 : vector<1x256x256xbf16> to vector<256x256xbf16>
    %cst_56 = arith.constant dense<0.000000e+00> : vector<256x8xf32>
    %62 = tpu.matmul %61, %59, %cst_56 {dimension_numbers = #tpu.dot_dimension_numbers<[1], [0], [0], [1], [0, 0, 1, 1], [], []>} : vector<256x256xbf16>, vector<256x8xbf16>, vector<256x8xf32> -> vector<256x8xf32>
    %63 = arith.addf %55, %62 : vector<256x8xf32>
    %c3_57 = arith.constant 3 : index
    %c0_58 = arith.constant 0 : index
    %c0_59 = arith.constant 0 : index
    %64 = vector.load %arg5[%c3_57, %c0_58, %c0_59] : memref<4x16x8xbf16, #tpu.memory_space<vmem>>, vector<1x16x8xbf16>
    %65 = vector.shape_cast %64 : vector<1x16x8xbf16> to vector<16x8xbf16>
    %cst_60 = arith.constant dense<0.000000e+00> : vector<256x8xf32>
    %66 = tpu.matmul %40, %65, %cst_60 {dimension_numbers = #tpu.dot_dimension_numbers<[1], [0], [0], [1], [0, 0, 1, 1], [], []>} : vector<256x16xbf16>, vector<16x8xbf16>, vector<256x8xf32> -> vector<256x8xf32>
    %67 = arith.truncf %66 : vector<256x8xf32> to vector<256x8xbf16>
    %c3_61 = arith.constant 3 : index
    %c0_62 = arith.constant 0 : index
    %c0_63 = arith.constant 0 : index
    %68 = vector.load %arg6[%c3_61, %c0_62, %c0_63] : memref<4x256x256xbf16, #tpu.memory_space<vmem>>, vector<1x256x256xbf16>
    %69 = vector.shape_cast %68 : vector<1x256x256xbf16> to vector<256x256xbf16>
    %cst_64 = arith.constant dense<0.000000e+00> : vector<256x8xf32>
    %70 = tpu.matmul %69, %67, %cst_64 {dimension_numbers = #tpu.dot_dimension_numbers<[1], [0], [0], [1], [0, 0, 1, 1], [], []>} : vector<256x256xbf16>, vector<256x8xbf16>, vector<256x8xf32> -> vector<256x8xf32>
    %71 = arith.addf %63, %70 : vector<256x8xf32>
    %c0_65 = arith.constant 0 : index
    %c0_66 = arith.constant 0 : index
    %72 = vector.load %arg7[%c0_65, %c0_66] : memref<256x1xf32, #tpu.memory_space<vmem>>, vector<256x1xf32>
    %73 = vector.broadcast %72 : vector<256x1xf32> to vector<256x8xf32>
    %74 = arith.addf %71, %73 : vector<256x8xf32>
    %cst_67 = arith.constant 0.000000e+00 : f32
    %75 = vector.broadcast %cst_67 : f32 to vector<256x8xf32>
    %76 = arith.cmpf oge, %74, %75 : vector<256x8xf32>
    %cst_68 = arith.constant 0.00999999977 : f32
    %77 = vector.broadcast %cst_68 : f32 to vector<256x8xf32>
    %78 = arith.mulf %77, %74 : vector<256x8xf32>
    %79 = arith.select %76, %74, %78 : vector<256x8xi1>, vector<256x8xf32>
    %80 = arith.truncf %79 : vector<256x8xf32> to vector<256x8xbf16>
    %c0_69 = arith.constant 0 : index
    %c0_70 = arith.constant 0 : index
    %c0_71 = arith.constant 0 : index
    %81 = vector.load %arg8[%c0_69, %c0_70, %c0_71] : memref<4x8x4xbf16, #tpu.memory_space<vmem>>, vector<1x8x4xbf16>
    %82 = vector.shape_cast %81 : vector<1x8x4xbf16> to vector<8x4xbf16>
    %cst_72 = arith.constant dense<0.000000e+00> : vector<256x4xf32>
    %83 = tpu.matmul %80, %82, %cst_72 {dimension_numbers = #tpu.dot_dimension_numbers<[1], [0], [0], [1], [0, 0, 1, 1], [], []>} : vector<256x8xbf16>, vector<8x4xbf16>, vector<256x4xf32> -> vector<256x4xf32>
    %84 = arith.truncf %83 : vector<256x4xf32> to vector<256x4xbf16>
    %c0_73 = arith.constant 0 : index
    %c0_74 = arith.constant 0 : index
    %c0_75 = arith.constant 0 : index
    %85 = vector.load %arg9[%c0_73, %c0_74, %c0_75] : memref<4x128x256xbf16, #tpu.memory_space<vmem>>, vector<1x128x256xbf16>
    %86 = vector.shape_cast %85 : vector<1x128x256xbf16> to vector<128x256xbf16>
    %cst_76 = arith.constant dense<0.000000e+00> : vector<128x4xf32>
    %87 = tpu.matmul %86, %84, %cst_76 {dimension_numbers = #tpu.dot_dimension_numbers<[1], [0], [0], [1], [0, 0, 1, 1], [], []>} : vector<128x256xbf16>, vector<256x4xbf16>, vector<128x4xf32> -> vector<128x4xf32>
    %c1_77 = arith.constant 1 : index
    %c0_78 = arith.constant 0 : index
    %c0_79 = arith.constant 0 : index
    %88 = vector.load %arg8[%c1_77, %c0_78, %c0_79] : memref<4x8x4xbf16, #tpu.memory_space<vmem>>, vector<1x8x4xbf16>
    %89 = vector.shape_cast %88 : vector<1x8x4xbf16> to vector<8x4xbf16>
    %cst_80 = arith.constant dense<0.000000e+00> : vector<256x4xf32>
    %90 = tpu.matmul %80, %89, %cst_80 {dimension_numbers = #tpu.dot_dimension_numbers<[1], [0], [0], [1], [0, 0, 1, 1], [], []>} : vector<256x8xbf16>, vector<8x4xbf16>, vector<256x4xf32> -> vector<256x4xf32>
    %91 = arith.truncf %90 : vector<256x4xf32> to vector<256x4xbf16>
    %c1_81 = arith.constant 1 : index
    %c0_82 = arith.constant 0 : index
    %c0_83 = arith.constant 0 : index
    %92 = vector.load %arg9[%c1_81, %c0_82, %c0_83] : memref<4x128x256xbf16, #tpu.memory_space<vmem>>, vector<1x128x256xbf16>
    %93 = vector.shape_cast %92 : vector<1x128x256xbf16> to vector<128x256xbf16>
    %cst_84 = arith.constant dense<0.000000e+00> : vector<128x4xf32>
    %94 = tpu.matmul %93, %91, %cst_84 {dimension_numbers = #tpu.dot_dimension_numbers<[1], [0], [0], [1], [0, 0, 1, 1], [], []>} : vector<128x256xbf16>, vector<256x4xbf16>, vector<128x4xf32> -> vector<128x4xf32>
    %95 = arith.addf %87, %94 : vector<128x4xf32>
    %c2_85 = arith.constant 2 : index
    %c0_86 = arith.constant 0 : index
    %c0_87 = arith.constant 0 : index
    %96 = vector.load %arg8[%c2_85, %c0_86, %c0_87] : memref<4x8x4xbf16, #tpu.memory_space<vmem>>, vector<1x8x4xbf16>
    %97 = vector.shape_cast %96 : vector<1x8x4xbf16> to vector<8x4xbf16>
    %cst_88 = arith.constant dense<0.000000e+00> : vector<256x4xf32>
    %98 = tpu.matmul %80, %97, %cst_88 {dimension_numbers = #tpu.dot_dimension_numbers<[1], [0], [0], [1], [0, 0, 1, 1], [], []>} : vector<256x8xbf16>, vector<8x4xbf16>, vector<256x4xf32> -> vector<256x4xf32>
    %99 = arith.truncf %98 : vector<256x4xf32> to vector<256x4xbf16>
    %c2_89 = arith.constant 2 : index
    %c0_90 = arith.constant 0 : index
    %c0_91 = arith.constant 0 : index
    %100 = vector.load %arg9[%c2_89, %c0_90, %c0_91] : memref<4x128x256xbf16, #tpu.memory_space<vmem>>, vector<1x128x256xbf16>
    %101 = vector.shape_cast %100 : vector<1x128x256xbf16> to vector<128x256xbf16>
    %cst_92 = arith.constant dense<0.000000e+00> : vector<128x4xf32>
    %102 = tpu.matmul %101, %99, %cst_92 {dimension_numbers = #tpu.dot_dimension_numbers<[1], [0], [0], [1], [0, 0, 1, 1], [], []>} : vector<128x256xbf16>, vector<256x4xbf16>, vector<128x4xf32> -> vector<128x4xf32>
    %103 = arith.addf %95, %102 : vector<128x4xf32>
    %c3_93 = arith.constant 3 : index
    %c0_94 = arith.constant 0 : index
    %c0_95 = arith.constant 0 : index
    %104 = vector.load %arg8[%c3_93, %c0_94, %c0_95] : memref<4x8x4xbf16, #tpu.memory_space<vmem>>, vector<1x8x4xbf16>
    %105 = vector.shape_cast %104 : vector<1x8x4xbf16> to vector<8x4xbf16>
    %cst_96 = arith.constant dense<0.000000e+00> : vector<256x4xf32>
    %106 = tpu.matmul %80, %105, %cst_96 {dimension_numbers = #tpu.dot_dimension_numbers<[1], [0], [0], [1], [0, 0, 1, 1], [], []>} : vector<256x8xbf16>, vector<8x4xbf16>, vector<256x4xf32> -> vector<256x4xf32>
    %107 = arith.truncf %106 : vector<256x4xf32> to vector<256x4xbf16>
    %c3_97 = arith.constant 3 : index
    %c0_98 = arith.constant 0 : index
    %c0_99 = arith.constant 0 : index
    %108 = vector.load %arg9[%c3_97, %c0_98, %c0_99] : memref<4x128x256xbf16, #tpu.memory_space<vmem>>, vector<1x128x256xbf16>
    %109 = vector.shape_cast %108 : vector<1x128x256xbf16> to vector<128x256xbf16>
    %cst_100 = arith.constant dense<0.000000e+00> : vector<128x4xf32>
    %110 = tpu.matmul %109, %107, %cst_100 {dimension_numbers = #tpu.dot_dimension_numbers<[1], [0], [0], [1], [0, 0, 1, 1], [], []>} : vector<128x256xbf16>, vector<256x4xbf16>, vector<128x4xf32> -> vector<128x4xf32>
    %111 = arith.addf %103, %110 : vector<128x4xf32>
    %c0_101 = arith.constant 0 : index
    %c0_102 = arith.constant 0 : index
    %112 = vector.load %arg10[%c0_101, %c0_102] : memref<128x1xf32, #tpu.memory_space<vmem>>, vector<128x1xf32>
    %113 = vector.broadcast %112 : vector<128x1xf32> to vector<128x4xf32>
    %114 = arith.addf %111, %113 : vector<128x4xf32>
    %cst_103 = arith.constant 0.000000e+00 : f32
    %115 = vector.broadcast %cst_103 : f32 to vector<128x4xf32>
    %116 = arith.cmpf oge, %114, %115 : vector<128x4xf32>
    %cst_104 = arith.constant 0.00999999977 : f32
    %117 = vector.broadcast %cst_104 : f32 to vector<128x4xf32>
    %118 = arith.mulf %117, %114 : vector<128x4xf32>
    %119 = arith.select %116, %114, %118 : vector<128x4xi1>, vector<128x4xf32>
    %c0_105 = arith.constant 0 : index
    %c0_106 = arith.constant 0 : index
    %120 = vector.load %arg11[%c0_105, %c0_106] : memref<128x4xf32, #tpu.memory_space<vmem>>, vector<128x4xf32>
    tpu.vector_store %arg11[%c0_105, %c0_106], %119 {strides = array<i32>} : memref<128x4xf32, #tpu.memory_space<vmem>>, vector<128x4xf32>,
    return
  }
  func.func @transform_0(%arg0: i32) -> (i32, i32) {
    %c0_i32 = arith.constant 0 : i32
    %c0_i32_0 = arith.constant 0 : i32
    %c0_i32_1 = arith.constant 0 : i32
    return %c0_i32, %c0_i32_0 : i32, i32
  }
  func.func @transform_1(%arg0: i32) -> (i32, i32, i32) {
    %c0_i32 = arith.constant 0 : i32
    %c0_i32_0 = arith.constant 0 : i32
    %c0_i32_1 = arith.constant 0 : i32
    %c0_i32_2 = arith.constant 0 : i32
    return %c0_i32, %c0_i32_0, %c0_i32_1 : i32, i32, i32
  }
  func.func @transform_2(%arg0: i32) -> (i32, i32, i32) {
    %c0_i32 = arith.constant 0 : i32
    %c0_i32_0 = arith.constant 0 : i32
    %c0_i32_1 = arith.constant 0 : i32
    %c0_i32_2 = arith.constant 0 : i32
    return %c0_i32, %c0_i32_0, %c0_i32_1 : i32, i32, i32
  }
  func.func @transform_3(%arg0: i32) -> (i32, i32) {
    %c0_i32 = arith.constant 0 : i32
    %c0_i32_0 = arith.constant 0 : i32
    %c0_i32_1 = arith.constant 0 : i32
    return %c0_i32, %c0_i32_0 : i32, i32
  }
  func.func @transform_4(%arg0: i32) -> (i32, i32, i32) {
    %c0_i32 = arith.constant 0 : i32
    %c0_i32_0 = arith.constant 0 : i32
    %c0_i32_1 = arith.constant 0 : i32
    %c0_i32_2 = arith.constant 0 : i32
    return %c0_i32, %c0_i32_0, %c0_i32_1 : i32, i32, i32
  }
  func.func @transform_5(%arg0: i32) -> (i32, i32, i32) {
    %c0_i32 = arith.constant 0 : i32
    %c0_i32_0 = arith.constant 0 : i32
    %c0_i32_1 = arith.constant 0 : i32
    %c0_i32_2 = arith.constant 0 : i32
    return %c0_i32, %c0_i32_0, %c0_i32_1 : i32, i32, i32
  }
  func.func @transform_6(%arg0: i32) -> (i32, i32) {
    %c0_i32 = arith.constant 0 : i32
    %c0_i32_0 = arith.constant 0 : i32
    %c0_i32_1 = arith.constant 0 : i32
    return %c0_i32, %c0_i32_0 : i32, i32
  }
  func.func @transform_7(%arg0: i32) -> (i32, i32, i32) {
    %c0_i32 = arith.constant 0 : i32
    %c0_i32_0 = arith.constant 0 : i32
    %c0_i32_1 = arith.constant 0 : i32
    %c0_i32_2 = arith.constant 0 : i32
    return %c0_i32, %c0_i32_0, %c0_i32_1 : i32, i32, i32
  }
  func.func @transform_8(%arg0: i32) -> (i32, i32, i32) {
    %c0_i32 = arith.constant 0 : i32
    %c0_i32_0 = arith.constant 0 : i32
    %c0_i32_1 = arith.constant 0 : i32
    %c0_i32_2 = arith.constant 0 : i32
    return %c0_i32, %c0_i32_0, %c0_i32_1 : i32, i32, i32
  }
  func.func @transform_9(%arg0: i32) -> (i32, i32) {
    %c0_i32 = arith.constant 0 : i32
    %c0_i32_0 = arith.constant 0 : i32
    %c0_i32_1 = arith.constant 0 : i32
    return %c0_i32, %c0_i32_0 : i32, i32
  }
  func.func @transform_10(%arg0: i32) -> (i32, i32) {
    %c0_i32 = arith.constant 0 : i32
    %c0_i32_0 = arith.constant 0 : i32
    %c0_i32_1 = arith.constant 0 : i32
    return %c0_i32, %c0_i32_0 : i32, i32
  }
}

</mosaic_0001>

<llo_original>
// kernel: discriminator_deep_forward.1
$region0: #{discriminator_deep_forward.1}
  #allocation0 [shape = 'u32[]', space=smem, size = 0x4, offset = 0x4, fixed_abs, tag = 'smem constant byte address 0x4 - core index']
  #allocation1 [shape = 'u32[144,128]{1,0:T(1,128)}', space=vmem, size = 0x12000, scoped, tag = 'internal scratch']
  %s0 = inlined_call_operand.vmem [shape: bf16[192,32], index: 0, kind: input, shape index: {}]
  %s1 = inlined_call_operand.vmem [shape: bf16[4,32,16], index: 1, kind: input, shape index: {}]
  %s2 = inlined_call_operand.vmem [shape: bf16[4,256,192], index: 2, kind: input, shape index: {}]
  %s3 = inlined_call_operand.vmem [shape: f32[256,1], index: 3, kind: input, shape index: {}]
  %s4 = inlined_call_operand.vmem [shape: bf16[4,16,8], index: 4, kind: input, shape index: {}]
  %s5 = inlined_call_operand.vmem [shape: bf16[4,256,256], index: 5, kind: input, shape index: {}]
  %s6 = inlined_call_operand.vmem [shape: f32[256,1], index: 6, kind: input, shape index: {}]
  %s7 = inlined_call_operand.vmem [shape: bf16[4,8,4], index: 7, kind: input, shape index: {}]
  %s8 = inlined_call_operand.vmem [shape: bf16[4,128,256], index: 8, kind: input, shape index: {}]
  %s9 = inlined_call_operand.vmem [shape: f32[128,1], index: 9, kind: input, shape index: {}]
  %s10 = inlined_call_operand.vmem [shape: f32[128,4], index: 10, kind: output, shape index: {}]
  %s11 = sld [smem:[#allocation0]]
  $region50: #{discriminator_deep_forward.1} parent=0
    _
  %s13 = ssub.s32 1, %s11
  %s14 = scalar_select 0, %s13, %s11
  // Predicated region
  $region2: #{discriminator_deep_forward.1} parent=0 // pred_check
    _
  $region3: #{discriminator_deep_forward.1} parent=0 // pred_check_branch
    %16 = sbr.rel (0) target = $region5
  $region4: #{discriminator_deep_forward.1} parent=0 // pred_region
    _
  $region5: #{discriminator_deep_forward.1} parent=0 // pred_fallthru
    _
  // Predicated region
  $region6: #{discriminator_deep_forward.1} parent=0 // pred_check
    _
  $region7: #{discriminator_deep_forward.1} parent=0 // pred_check_branch
    %18 = sbr.rel (0) target = $region9
  $region8: #{discriminator_deep_forward.1} parent=0 // pred_region
    _
  $region9: #{discriminator_deep_forward.1} parent=0 // pred_fallthru
    _
  // Predicated region
  $region10: #{discriminator_deep_forward.1} parent=0 // pred_check
    _
  $region11: #{discriminator_deep_forward.1} parent=0 // pred_check_branch
    %20 = sbr.rel (0) target = $region13
  $region12: #{discriminator_deep_forward.1} parent=0 // pred_region
    _
  $region13: #{discriminator_deep_forward.1} parent=0 // pred_fallthru
    _
  // Predicated region
  $region14: #{discriminator_deep_forward.1} parent=0 // pred_check
    _
  $region15: #{discriminator_deep_forward.1} parent=0 // pred_check_branch
    %22 = sbr.rel (0) target = $region17
  $region16: #{discriminator_deep_forward.1} parent=0 // pred_region
    _
  $region17: #{discriminator_deep_forward.1} parent=0 // pred_fallthru
    _
  // Predicated region
  $region18: #{discriminator_deep_forward.1} parent=0 // pred_check
    _
  $region19: #{discriminator_deep_forward.1} parent=0 // pred_check_branch
    %24 = sbr.rel (0) target = $region21
  $region20: #{discriminator_deep_forward.1} parent=0 // pred_region
    _
  $region21: #{discriminator_deep_forward.1} parent=0 // pred_fallthru
    _
  // Predicated region
  $region22: #{discriminator_deep_forward.1} parent=0 // pred_check
    _
  $region23: #{discriminator_deep_forward.1} parent=0 // pred_check_branch
    %26 = sbr.rel (0) target = $region25
  $region24: #{discriminator_deep_forward.1} parent=0 // pred_region
    _
  $region25: #{discriminator_deep_forward.1} parent=0 // pred_fallthru
    _
  // Predicated region
  $region26: #{discriminator_deep_forward.1} parent=0 // pred_check
    _
  $region27: #{discriminator_deep_forward.1} parent=0 // pred_check_branch
    %28 = sbr.rel (0) target = $region29
  $region28: #{discriminator_deep_forward.1} parent=0 // pred_region
    _
  $region29: #{discriminator_deep_forward.1} parent=0 // pred_fallthru
    _
  // Predicated region
  $region30: #{discriminator_deep_forward.1} parent=0 // pred_check
    _
  $region31: #{discriminator_deep_forward.1} parent=0 // pred_check_branch
    %30 = sbr.rel (0) target = $region33
  $region32: #{discriminator_deep_forward.1} parent=0 // pred_region
    _
  $region33: #{discriminator_deep_forward.1} parent=0 // pred_fallthru
    _
  // Predicated region
  $region34: #{discriminator_deep_forward.1} parent=0 // pred_check
    _
  $region35: #{discriminator_deep_forward.1} parent=0 // pred_check_branch
    %32 = sbr.rel (0) target = $region37
  $region36: #{discriminator_deep_forward.1} parent=0 // pred_region
    _
  $region37: #{discriminator_deep_forward.1} parent=0 // pred_fallthru
    _
  // Predicated region
  $region38: #{discriminator_deep_forward.1} parent=0 // pred_check
    _
  $region39: #{discriminator_deep_forward.1} parent=0 // pred_check_branch
    %34 = sbr.rel (0) target = $region41
  $region40: #{discriminator_deep_forward.1} parent=0 // pred_region
    _
  $region41: #{discriminator_deep_forward.1} parent=0 // pred_fallthru
    _
  %v36 = vld [vmem:[%s0] sm:$0xf]
  %v37 = vld [vmem:[%s0 + $0x4] sm:$0xf]
  %v38 = vld [vmem:[%s0 + $0x8] sm:$0xf]
  %v39 = vld [vmem:[%s0 + $0xc] sm:$0xf]
  %v40 = vld [vmem:[%s0 + $0x10] sm:$0xf]
  %v41 = vld [vmem:[%s0 + $0x14] sm:$0xf]
  %v42 = vld [vmem:[%s0 + $0x18] sm:$0xf]
  %v43 = vld [vmem:[%s0 + $0x1c] sm:$0xf]
  %v44 = vld [vmem:[%s0 + $0x20] sm:$0xf]
  %v45 = vld [vmem:[%s0 + $0x24] sm:$0xf]
  %v46 = vld [vmem:[%s0 + $0x28] sm:$0xf]
  %v47 = vld [vmem:[%s0 + $0x2c] sm:$0xf]
  %v48 = vld [vmem:[%s0 + $0x30] sm:$0xf]
  %v49 = vld [vmem:[%s0 + $0x34] sm:$0xf]
  %v50 = vld [vmem:[%s0 + $0x38] sm:$0xf]
  %v51 = vld [vmem:[%s0 + $0x3c] sm:$0xf]
  %v52 = vld [vmem:[%s0 + $0x40] sm:$0xf]
  %v53 = vld [vmem:[%s0 + $0x44] sm:$0xf]
  %v54 = vld [vmem:[%s0 + $0x48] sm:$0xf]
  %v55 = vld [vmem:[%s0 + $0x4c] sm:$0xf]
  %v56 = vld [vmem:[%s0 + $0x50] sm:$0xf]
  %v57 = vld [vmem:[%s0 + $0x54] sm:$0xf]
  %v58 = vld [vmem:[%s0 + $0x58] sm:$0xf]
  %v59 = vld [vmem:[%s0 + $0x5c] sm:$0xf]
  %v60 = vld [vmem:[%s1] sm:$0xf]
  %v61 = vld [vmem:[%s1 + $0x4] sm:$0xf]
  %v62 = vld [vmem:[%s1 + $0x8] sm:$0xf]
  %v63 = vld [vmem:[%s1 + $0xc] sm:$0xf]
  %v88 = vunpack.c.l.b16 %v36
  %v89 = vunpack.c.l.b16 %v37
  %v90 = vunpack.c.l.b16 %v38
  %v91 = vunpack.c.l.b16 %v39
  %v92 = vunpack.c.l.b16 %v40
  %v93 = vunpack.c.l.b16 %v41
  %v94 = vunpack.c.l.b16 %v42
  %v95 = vunpack.c.l.b16 %v43
  %v96 = vunpack.c.l.b16 %v44
  %v97 = vunpack.c.l.b16 %v45
  %v98 = vunpack.c.l.b16 %v46
  %v99 = vunpack.c.l.b16 %v47
  %v100 = vunpack.c.l.b16 %v48
  %v101 = vunpack.c.l.b16 %v49
  %v102 = vunpack.c.l.b16 %v50
  %v103 = vunpack.c.l.b16 %v51
  %v104 = vunpack.c.l.b16 %v52
  %v105 = vunpack.c.l.b16 %v53
  %v106 = vunpack.c.l.b16 %v54
  %v107 = vunpack.c.l.b16 %v55
  %v108 = vunpack.c.l.b16 %v56
  %v109 = vunpack.c.l.b16 %v57
  %v110 = vunpack.c.l.b16 %v58
  %v111 = vunpack.c.l.b16 %v59
  %v112 = vpack.c.b16 %v89, %v88
  %v113 = vpack.c.b16 %v91, %v90
  %v114 = vpack.c.b16 %v93, %v92
  %v115 = vpack.c.b16 %v95, %v94
  %v116 = vpack.c.b16 %v97, %v96
  %v117 = vpack.c.b16 %v99, %v98
  %v118 = vpack.c.b16 %v101, %v100
  %v119 = vpack.c.b16 %v103, %v102
  %v120 = vpack.c.b16 %v105, %v104
  %v121 = vpack.c.b16 %v107, %v106
  %v122 = vpack.c.b16 %v109, %v108
  %v123 = vpack.c.b16 %v111, %v110
  %v128 = vunpack.c.l.b16 %v60
  %v129 = vunpack.c.l.b16 %v61
  %v130 = vunpack.c.l.b16 %v62
  %v131 = vunpack.c.l.b16 %v63
  %v132 = vpack.c.b16 %v129, %v128
  %v133 = vpack.c.b16 %v131, %v130
  %vm136 = vcmask 261120
  %v138 = vsel %vm136, %v112, 0
  %v141 = vsel %vm136, %v113, 0
  %v144 = vsel %vm136, %v114, 0
  %v147 = vsel %vm136, %v115, 0
  %v150 = vsel %vm136, %v116, 0
  %v153 = vsel %vm136, %v117, 0
  %v156 = vsel %vm136, %v118, 0
  %v159 = vsel %vm136, %v119, 0
  %v162 = vsel %vm136, %v120, 0
  %v165 = vsel %vm136, %v121, 0
  %v168 = vsel %vm136, %v122, 0
  %v171 = vsel %vm136, %v123, 0
  %173 = vmatprep.subr.bf16.mxu0 0
  %174 = vmatpush1.bf16.msra.mxu0 0
  %175 = vmatprep.subr.bf16.mxu0 0
  %176 = vmatpush1.bf16.msra.mxu0 0
  %177 = vmatprep.subr.bf16.mxu0 0
  %178 = vmatpush1.bf16.msra.mxu0 0
  %179 = vmatprep.subr.bf16.mxu0 0
  %180 = vmatpush1.bf16.msra.mxu0 0
  %181 = vmatprep.subr.bf16.mxu0 0
  %182 = vmatpush1.bf16.msra.mxu0 0
  %183 = vmatprep.subr.bf16.mxu0 0
  %184 = vmatpush1.bf16.msra.mxu0 0
  %185 = vmatprep.subr.bf16.mxu0 0
  %186 = vmatpush1.bf16.msra.mxu0 %v133
  %187 = vmatprep.subr.bf16.mxu0 0
  %188 = vmatpush1.bf16.msra.mxu0 %v132
  %189 = vmatprep.subr.bf16.mxu0 0
  %190 = vmatpush2.bf16.msra.mxu0 0
  %191 = vmatprep.subr.bf16.mxu0 0
  %192 = vmatpush2.bf16.msra.mxu0 0
  %193 = vmatprep.subr.bf16.mxu0 0
  %194 = vmatpush2.bf16.msra.mxu0 0
  %195 = vmatprep.subr.bf16.mxu0 0
  %196 = vmatpush2.bf16.msra.mxu0 0
  %197 = vmatprep.subr.bf16.mxu0 0
  %198 = vmatpush2.bf16.msra.mxu0 0
  %199 = vmatprep.subr.bf16.mxu0 0
  %200 = vmatpush2.bf16.msra.mxu0 0
  %201 = vmatprep.subr.bf16.mxu0 0
  %202 = vmatpush2.bf16.msra.mxu0 0
  %203 = vmatprep.subr.bf16.mxu0 0
  %204 = vmatpush2.bf16.msra.mxu0 0
  %205 = vmatprep.mubr.bf16.mxu0 0
  %206 = vmatmul.mubr.bf16.gmra.mxu0 %v138
  %v207 = vpop.f32.mrf.mxu0
  %v208 = vadd.f32 0.0, %v207
  %v209 = vpop.f32.mrf.mxu0
  %v210 = vpop.f32.mrf.mxu0
  %v211 = vadd.f32 0.0, %v210
  %v212 = vpop.f32.mrf.mxu0
  %213 = vmatprep.mubr.bf16.mxu0 0
  %214 = vmatmul.mubr.bf16.gmra.mxu0 %v141
  %v215 = vpop.f32.mrf.mxu0
  %v216 = vadd.f32 0.0, %v215
  %v217 = vpop.f32.mrf.mxu0
  %v218 = vpop.f32.mrf.mxu0
  %v219 = vadd.f32 0.0, %v218
  %v220 = vpop.f32.mrf.mxu0
  %221 = vmatprep.mubr.bf16.mxu0 0
  %222 = vmatmul.mubr.bf16.gmra.mxu0 %v144
  %v223 = vpop.f32.mrf.mxu0
  %v224 = vadd.f32 0.0, %v223
  %v225 = vpop.f32.mrf.mxu0
  %v226 = vpop.f32.mrf.mxu0
  %v227 = vadd.f32 0.0, %v226
  %v228 = vpop.f32.mrf.mxu0
  %229 = vmatprep.mubr.bf16.mxu0 0
  %230 = vmatmul.mubr.bf16.gmra.mxu0 %v147
  %v231 = vpop.f32.mrf.mxu0
  %v232 = vadd.f32 0.0, %v231
  %v233 = vpop.f32.mrf.mxu0
  %v234 = vpop.f32.mrf.mxu0
  %v235 = vadd.f32 0.0, %v234
  %v236 = vpop.f32.mrf.mxu0
  %237 = vmatprep.mubr.bf16.mxu0 0
  %238 = vmatmul.mubr.bf16.gmra.mxu0 %v150
  %v239 = vpop.f32.mrf.mxu0
  %v240 = vadd.f32 0.0, %v239
  %v241 = vpop.f32.mrf.mxu0
  %v242 = vpop.f32.mrf.mxu0
  %v243 = vadd.f32 0.0, %v242
  %v244 = vpop.f32.mrf.mxu0
  %245 = vmatprep.mubr.bf16.mxu0 0
  %246 = vmatmul.mubr.bf16.gmra.mxu0 %v153
  %v247 = vpop.f32.mrf.mxu0
  %v248 = vadd.f32 0.0, %v247
  %v249 = vpop.f32.mrf.mxu0
  %v250 = vpop.f32.mrf.mxu0
  %v251 = vadd.f32 0.0, %v250
  %v252 = vpop.f32.mrf.mxu0
  %253 = vmatprep.mubr.bf16.mxu0 0
  %254 = vmatmul.mubr.bf16.gmra.mxu0 %v156
  %v255 = vpop.f32.mrf.mxu0
  %v256 = vadd.f32 0.0, %v255
  %v257 = vpop.f32.mrf.mxu0
  %v258 = vpop.f32.mrf.mxu0
  %v259 = vadd.f32 0.0, %v258
  %v260 = vpop.f32.mrf.mxu0
  %261 = vmatprep.mubr.bf16.mxu0 0
  %262 = vmatmul.mubr.bf16.gmra.mxu0 %v159
  %v263 = vpop.f32.mrf.mxu0
  %v264 = vadd.f32 0.0, %v263
  %v265 = vpop.f32.mrf.mxu0
  %v266 = vpop.f32.mrf.mxu0
  %v267 = vadd.f32 0.0, %v266
  %v268 = vpop.f32.mrf.mxu0
  %269 = vmatprep.mubr.bf16.mxu0 0
  %270 = vmatmul.mubr.bf16.gmra.mxu0 %v162
  %v271 = vpop.f32.mrf.mxu0
  %v272 = vadd.f32 0.0, %v271
  %v273 = vpop.f32.mrf.mxu0
  %v274 = vpop.f32.mrf.mxu0
  %v275 = vadd.f32 0.0, %v274
  %v276 = vpop.f32.mrf.mxu0
  %277 = vmatprep.mubr.bf16.mxu0 0
  %278 = vmatmul.mubr.bf16.gmra.mxu0 %v165
  %v279 = vpop.f32.mrf.mxu0
  %v280 = vadd.f32 0.0, %v279
  %v281 = vpop.f32.mrf.mxu0
  %v282 = vpop.f32.mrf.mxu0
  %v283 = vadd.f32 0.0, %v282
  %v284 = vpop.f32.mrf.mxu0
  %285 = vmatprep.mubr.bf16.mxu0 0
  %286 = vmatmul.mubr.bf16.gmra.mxu0 %v168
  %v287 = vpop.f32.mrf.mxu0
  %v288 = vadd.f32 0.0, %v287
  %v289 = vpop.f32.mrf.mxu0
  %v290 = vpop.f32.mrf.mxu0
  %v291 = vadd.f32 0.0, %v290
  %v292 = vpop.f32.mrf.mxu0
  %293 = vmatprep.mubr.bf16.mxu0 0
  %294 = vmatmul.mubr.bf16.gmra.mxu0 %v171
  %v295 = vpop.f32.mrf.mxu0
  %v296 = vadd.f32 0.0, %v295
  %v297 = vpop.f32.mrf.mxu0
  %v298 = vpop.f32.mrf.mxu0
  %v299 = vadd.f32 0.0, %v298
  %v300 = vpop.f32.mrf.mxu0
  %301 = vdwg.mxu0
  %v302 = vpack.c.bf16 %v211, %v208
  %v303 = vpack.c.bf16 %v219, %v216
  %v304 = vpack.c.bf16 %v227, %v224
  %v305 = vpack.c.bf16 %v235, %v232
  %v306 = vpack.c.bf16 %v243, %v240
  %v307 = vpack.c.bf16 %v251, %v248
  %v308 = vpack.c.bf16 %v259, %v256
  %v309 = vpack.c.bf16 %v267, %v264
  %v310 = vpack.c.bf16 %v275, %v272
  %v311 = vpack.c.bf16 %v283, %v280
  %v312 = vpack.c.bf16 %v291, %v288
  %v313 = vpack.c.bf16 %v299, %v296
  %v314 = vld [vmem:[%s2] sm:$0xff]
  %v315 = vld [vmem:[%s2 + $0x8] sm:$0xff]
  %v316 = vld [vmem:[%s2 + $0x10] sm:$0xff]
  %v317 = vld [vmem:[%s2 + $0x18] sm:$0xff]
  %v318 = vld [vmem:[%s2 + $0x20] sm:$0xff]
  %v319 = vld [vmem:[%s2 + $0x28] sm:$0xff]
  %v320 = vld [vmem:[%s2 + $0x30] sm:$0xff]
  %v321 = vld [vmem:[%s2 + $0x38] sm:$0xff]
  %v322 = vld [vmem:[%s2 + $0x40] sm:$0xff]
  %v323 = vld [vmem:[%s2 + $0x48] sm:$0xff]
  %v324 = vld [vmem:[%s2 + $0x50] sm:$0xff]
  %v325 = vld [vmem:[%s2 + $0x58] sm:$0xff]
  %v326 = vld [vmem:[%s2 + $0x60] sm:$0xff]
  %v327 = vld [vmem:[%s2 + $0x68] sm:$0xff]
  %v328 = vld [vmem:[%s2 + $0x70] sm:$0xff]
  %v329 = vld [vmem:[%s2 + $0x78] sm:$0xff]
  %v330 = vld [vmem:[%s2 + $0x80] sm:$0xff]
  %v331 = vld [vmem:[%s2 + $0x88] sm:$0xff]
  %v332 = vld [vmem:[%s2 + $0x90] sm:$0xff]
  %v333 = vld [vmem:[%s2 + $0x98] sm:$0xff]
  %v334 = vld [vmem:[%s2 + $0xa0] sm:$0xff]
  %v335 = vld [vmem:[%s2 + $0xa8] sm:$0xff]
  %v336 = vld [vmem:[%s2 + $0xb0] sm:$0xff]
  %v337 = vld [vmem:[%s2 + $0xb8] sm:$0xff]
  %v338 = vld [vmem:[%s2 + $0xc0] sm:$0xff]
  %v339 = vld [vmem:[%s2 + $0xc8] sm:$0xff]
  %v340 = vld [vmem:[%s2 + $0xd0] sm:$0xff]
  %v341 = vld [vmem:[%s2 + $0xd8] sm:$0xff]
  %v342 = vld [vmem:[%s2 + $0xe0] sm:$0xff]
  %v343 = vld [vmem:[%s2 + $0xe8] sm:$0xff]
  %v344 = vld [vmem:[%s2 + $0xf0] sm:$0xff]
  %v345 = vld [vmem:[%s2 + $0xf8] sm:$0xff]
  %s346 = scalar_lea.vmem %s1, 16
  %v347 = vld [vmem:[%s346] sm:$0xf]
  %v348 = vld [vmem:[%s346 + $0x4] sm:$0xf]
  %v349 = vld [vmem:[%s346 + $0x8] sm:$0xf]
  %v350 = vld [vmem:[%s346 + $0xc] sm:$0xf]
  %v355 = vunpack.c.l.b16 %v347
  %v356 = vunpack.c.l.b16 %v348
  %v357 = vunpack.c.l.b16 %v349
  %v358 = vunpack.c.l.b16 %v350
  %v359 = vpack.c.b16 %v356, %v355
  %v360 = vpack.c.b16 %v358, %v357
  %363 = vmatprep.subr.bf16.mxu0 0
  %364 = vmatpush1.bf16.msra.mxu0 0
  %365 = vmatprep.subr.bf16.mxu0 0
  %366 = vmatpush1.bf16.msra.mxu0 0
  %367 = vmatprep.subr.bf16.mxu0 0
  %368 = vmatpush1.bf16.msra.mxu0 0
  %369 = vmatprep.subr.bf16.mxu0 0
  %370 = vmatpush1.bf16.msra.mxu0 0
  %371 = vmatprep.subr.bf16.mxu0 0
  %372 = vmatpush1.bf16.msra.mxu0 0
  %373 = vmatprep.subr.bf16.mxu0 0
  %374 = vmatpush1.bf16.msra.mxu0 0
  %375 = vmatprep.subr.bf16.mxu0 0
  %376 = vmatpush1.bf16.msra.mxu0 %v360
  %377 = vmatprep.subr.bf16.mxu0 0
  %378 = vmatpush1.bf16.msra.mxu0 %v359
  %379 = vmatprep.subr.bf16.mxu0 0
  %380 = vmatpush2.bf16.msra.mxu0 0
  %381 = vmatprep.subr.bf16.mxu0 0
  %382 = vmatpush2.bf16.msra.mxu0 0
  %383 = vmatprep.subr.bf16.mxu0 0
  %384 = vmatpush2.bf16.msra.mxu0 0
  %385 = vmatprep.subr.bf16.mxu0 0
  %386 = vmatpush2.bf16.msra.mxu0 0
  %387 = vmatprep.subr.bf16.mxu0 0
  %388 = vmatpush2.bf16.msra.mxu0 0
  %389 = vmatprep.subr.bf16.mxu0 0
  %390 = vmatpush2.bf16.msra.mxu0 0
  %391 = vmatprep.subr.bf16.mxu0 0
  %392 = vmatpush2.bf16.msra.mxu0 0
  %393 = vmatprep.subr.bf16.mxu0 0
  %394 = vmatpush2.bf16.msra.mxu0 0
  %395 = vmatprep.mubr.bf16.mxu0 0
  %396 = vmatmul.mubr.bf16.gmra.mxu0 %v138
  %v397 = vpop.f32.mrf.mxu0
  %v398 = vadd.f32 0.0, %v397
  %v399 = vpop.f32.mrf.mxu0
  %v400 = vpop.f32.mrf.mxu0
  %v401 = vadd.f32 0.0, %v400
  %v402 = vpop.f32.mrf.mxu0
  %403 = vmatprep.mubr.bf16.mxu0 0
  %404 = vmatmul.mubr.bf16.gmra.mxu0 %v141
  %v405 = vpop.f32.mrf.mxu0
  %v406 = vadd.f32 0.0, %v405
  %v407 = vpop.f32.mrf.mxu0
  %v408 = vpop.f32.mrf.mxu0
  %v409 = vadd.f32 0.0, %v408
  %v410 = vpop.f32.mrf.mxu0
  %411 = vmatprep.mubr.bf16.mxu0 0
  %412 = vmatmul.mubr.bf16.gmra.mxu0 %v144
  %v413 = vpop.f32.mrf.mxu0
  %v414 = vadd.f32 0.0, %v413
  %v415 = vpop.f32.mrf.mxu0
  %v416 = vpop.f32.mrf.mxu0
  %v417 = vadd.f32 0.0, %v416
  %v418 = vpop.f32.mrf.mxu0
  %419 = vmatprep.mubr.bf16.mxu0 0
  %420 = vmatmul.mubr.bf16.gmra.mxu0 %v147
  %v421 = vpop.f32.mrf.mxu0
  %v422 = vadd.f32 0.0, %v421
  %v423 = vpop.f32.mrf.mxu0
  %v424 = vpop.f32.mrf.mxu0
  %v425 = vadd.f32 0.0, %v424
  %v426 = vpop.f32.mrf.mxu0
  %427 = vmatprep.mubr.bf16.mxu0 0
  %428 = vmatmul.mubr.bf16.gmra.mxu0 %v150
  %v429 = vpop.f32.mrf.mxu0
  %v430 = vadd.f32 0.0, %v429
  %v431 = vpop.f32.mrf.mxu0
  %v432 = vpop.f32.mrf.mxu0
  %v433 = vadd.f32 0.0, %v432
  %v434 = vpop.f32.mrf.mxu0
  %435 = vmatprep.mubr.bf16.mxu0 0
  %436 = vmatmul.mubr.bf16.gmra.mxu0 %v153
  %v437 = vpop.f32.mrf.mxu0
  %v438 = vadd.f32 0.0, %v437
  %v439 = vpop.f32.mrf.mxu0
  %v440 = vpop.f32.mrf.mxu0
  %v441 = vadd.f32 0.0, %v440
  %v442 = vpop.f32.mrf.mxu0
  %443 = vmatprep.mubr.bf16.mxu0 0
  %444 = vmatmul.mubr.bf16.gmra.mxu0 %v156
  %v445 = vpop.f32.mrf.mxu0
  %v446 = vadd.f32 0.0, %v445
  %v447 = vpop.f32.mrf.mxu0
  %v448 = vpop.f32.mrf.mxu0
  %v449 = vadd.f32 0.0, %v448
  %v450 = vpop.f32.mrf.mxu0
  %451 = vmatprep.mubr.bf16.mxu0 0
  %452 = vmatmul.mubr.bf16.gmra.mxu0 %v159
  %v453 = vpop.f32.mrf.mxu0
  %v454 = vadd.f32 0.0, %v453
  %v455 = vpop.f32.mrf.mxu0
  %v456 = vpop.f32.mrf.mxu0
  %v457 = vadd.f32 0.0, %v456
  %v458 = vpop.f32.mrf.mxu0
  %459 = vmatprep.mubr.bf16.mxu0 0
  %460 = vmatmul.mubr.bf16.gmra.mxu0 %v162
  %v461 = vpop.f32.mrf.mxu0
  %v462 = vadd.f32 0.0, %v461
  %v463 = vpop.f32.mrf.mxu0
  %v464 = vpop.f32.mrf.mxu0
  %v465 = vadd.f32 0.0, %v464
  %v466 = vpop.f32.mrf.mxu0
  %467 = vmatprep.mubr.bf16.mxu0 0
  %468 = vmatmul.mubr.bf16.gmra.mxu0 %v165
  %v469 = vpop.f32.mrf.mxu0
  %v470 = vadd.f32 0.0, %v469
  %v471 = vpop.f32.mrf.mxu0
  %v472 = vpop.f32.mrf.mxu0
  %v473 = vadd.f32 0.0, %v472
  %v474 = vpop.f32.mrf.mxu0
  %475 = vmatprep.mubr.bf16.mxu0 0
  %476 = vmatmul.mubr.bf16.gmra.mxu0 %v168
  %v477 = vpop.f32.mrf.mxu0
  %v478 = vadd.f32 0.0, %v477
  %v479 = vpop.f32.mrf.mxu0
  %v480 = vpop.f32.mrf.mxu0
  %v481 = vadd.f32 0.0, %v480
  %v482 = vpop.f32.mrf.mxu0
  %483 = vmatprep.mubr.bf16.mxu0 0
  %484 = vmatmul.mubr.bf16.gmra.mxu0 %v171
  %v485 = vpop.f32.mrf.mxu0
  %v486 = vadd.f32 0.0, %v485
  %v487 = vpop.f32.mrf.mxu0
  %v488 = vpop.f32.mrf.mxu0
  %v489 = vadd.f32 0.0, %v488
  %v490 = vpop.f32.mrf.mxu0
  %491 = vdwg.mxu0
  %v492 = vpack.c.bf16 %v401, %v398
  %v493 = vpack.c.bf16 %v409, %v406
  %v494 = vpack.c.bf16 %v417, %v414
  %v495 = vpack.c.bf16 %v425, %v422
  %v496 = vpack.c.bf16 %v433, %v430
  %v497 = vpack.c.bf16 %v441, %v438
  %v498 = vpack.c.bf16 %v449, %v446
  %v499 = vpack.c.bf16 %v457, %v454
  %v500 = vpack.c.bf16 %v465, %v462
  %v501 = vpack.c.bf16 %v473, %v470
  %v502 = vpack.c.bf16 %v481, %v478
  %v503 = vpack.c.bf16 %v489, %v486
  %s504 = scalar_lea.vmem %s2, 256
  %v505 = vld [vmem:[%s504] sm:$0xff]
  %v506 = vld [vmem:[%s504 + $0x8] sm:$0xff]
  %v507 = vld [vmem:[%s504 + $0x10] sm:$0xff]
  %v508 = vld [vmem:[%s504 + $0x18] sm:$0xff]
  %v509 = vld [vmem:[%s504 + $0x20] sm:$0xff]
  %v510 = vld [vmem:[%s504 + $0x28] sm:$0xff]
  %v511 = vld [vmem:[%s504 + $0x30] sm:$0xff]
  %v512 = vld [vmem:[%s504 + $0x38] sm:$0xff]
  %v513 = vld [vmem:[%s504 + $0x40] sm:$0xff]
  %v514 = vld [vmem:[%s504 + $0x48] sm:$0xff]
  %v515 = vld [vmem:[%s504 + $0x50] sm:$0xff]
  %v516 = vld [vmem:[%s504 + $0x58] sm:$0xff]
  %v517 = vld [vmem:[%s504 + $0x60] sm:$0xff]
  %v518 = vld [vmem:[%s504 + $0x68] sm:$0xff]
  %v519 = vld [vmem:[%s504 + $0x70] sm:$0xff]
  %v520 = vld [vmem:[%s504 + $0x78] sm:$0xff]
  %v521 = vld [vmem:[%s504 + $0x80] sm:$0xff]
  %v522 = vld [vmem:[%s504 + $0x88] sm:$0xff]
  %v523 = vld [vmem:[%s504 + $0x90] sm:$0xff]
  %v524 = vld [vmem:[%s504 + $0x98] sm:$0xff]
  %v525 = vld [vmem:[%s504 + $0xa0] sm:$0xff]
  %v526 = vld [vmem:[%s504 + $0xa8] sm:$0xff]
  %v527 = vld [vmem:[%s504 + $0xb0] sm:$0xff]
  %v528 = vld [vmem:[%s504 + $0xb8] sm:$0xff]
  %v529 = vld [vmem:[%s504 + $0xc0] sm:$0xff]
  %v530 = vld [vmem:[%s504 + $0xc8] sm:$0xff]
  %v531 = vld [vmem:[%s504 + $0xd0] sm:$0xff]
  %v532 = vld [vmem:[%s504 + $0xd8] sm:$0xff]
  %v533 = vld [vmem:[%s504 + $0xe0] sm:$0xff]
  %v534 = vld [vmem:[%s504 + $0xe8] sm:$0xff]
  %v535 = vld [vmem:[%s504 + $0xf0] sm:$0xff]
  %v536 = vld [vmem:[%s504 + $0xf8] sm:$0xff]
  %v569 = vunpack.c.l.b16 %v505
  %v570 = vunpack.c.h.b16 %v505
  %v571 = vunpack.c.l.b16 %v506
  %v572 = vunpack.c.h.b16 %v506
  %v573 = vunpack.c.l.b16 %v507
  %v574 = vunpack.c.h.b16 %v507
  %v575 = vunpack.c.l.b16 %v508
  %v576 = vunpack.c.h.b16 %v508
  %v577 = vunpack.c.l.b16 %v509
  %v578 = vunpack.c.h.b16 %v509
  %v579 = vunpack.c.l.b16 %v510
  %v580 = vunpack.c.h.b16 %v510
  %v581 = vunpack.c.l.b16 %v511
  %v582 = vunpack.c.h.b16 %v511
  %v583 = vunpack.c.l.b16 %v512
  %v584 = vunpack.c.h.b16 %v512
  %v585 = vunpack.c.l.b16 %v513
  %v586 = vunpack.c.h.b16 %v513
  %v587 = vunpack.c.l.b16 %v514
  %v588 = vunpack.c.h.b16 %v514
  %v589 = vunpack.c.l.b16 %v515
  %v590 = vunpack.c.h.b16 %v515
  %v591 = vunpack.c.l.b16 %v516
  %v592 = vunpack.c.h.b16 %v516
  %v593 = vunpack.c.l.b16 %v517
  %v594 = vunpack.c.h.b16 %v517
  %v595 = vunpack.c.l.b16 %v518
  %v596 = vunpack.c.h.b16 %v518
  %v597 = vunpack.c.l.b16 %v519
  %v598 = vunpack.c.h.b16 %v519
  %v599 = vunpack.c.l.b16 %v520
  %v600 = vunpack.c.h.b16 %v520
  %v601 = vunpack.c.l.b16 %v521
  %v602 = vunpack.c.h.b16 %v521
  %v603 = vunpack.c.l.b16 %v522
  %v604 = vunpack.c.h.b16 %v522
  %v605 = vunpack.c.l.b16 %v523
  %v606 = vunpack.c.h.b16 %v523
  %v607 = vunpack.c.l.b16 %v524
  %v608 = vunpack.c.h.b16 %v524
  %v609 = vunpack.c.l.b16 %v525
  %v610 = vunpack.c.h.b16 %v525
  %v611 = vunpack.c.l.b16 %v526
  %v612 = vunpack.c.h.b16 %v526
  %v613 = vunpack.c.l.b16 %v527
  %v614 = vunpack.c.h.b16 %v527
  %v615 = vunpack.c.l.b16 %v528
  %v616 = vunpack.c.h.b16 %v528
  %v617 = vunpack.c.l.b16 %v529
  %v618 = vunpack.c.h.b16 %v529
  %v619 = vunpack.c.l.b16 %v530
  %v620 = vunpack.c.h.b16 %v530
  %v621 = vunpack.c.l.b16 %v531
  %v622 = vunpack.c.h.b16 %v531
  %v623 = vunpack.c.l.b16 %v532
  %v624 = vunpack.c.h.b16 %v532
  %v625 = vunpack.c.l.b16 %v533
  %v626 = vunpack.c.h.b16 %v533
  %v627 = vunpack.c.l.b16 %v534
  %v628 = vunpack.c.h.b16 %v534
  %v629 = vunpack.c.l.b16 %v535
  %v630 = vunpack.c.h.b16 %v535
  %v631 = vunpack.c.l.b16 %v536
  %v632 = vunpack.c.h.b16 %v536
  %v633 = vpack.c.b16 %v571, %v569
  %v634 = vpack.c.b16 %v572, %v570
  %v635 = vpack.c.b16 %v575, %v573
  %v636 = vpack.c.b16 %v576, %v574
  %v637 = vpack.c.b16 %v579, %v577
  %v638 = vpack.c.b16 %v580, %v578
  %v639 = vpack.c.b16 %v583, %v581
  %v640 = vpack.c.b16 %v584, %v582
  %v641 = vpack.c.b16 %v587, %v585
  %v642 = vpack.c.b16 %v588, %v586
  %v643 = vpack.c.b16 %v591, %v589
  %v644 = vpack.c.b16 %v592, %v590
  %v645 = vpack.c.b16 %v595, %v593
  %v646 = vpack.c.b16 %v596, %v594
  %v647 = vpack.c.b16 %v599, %v597
  %v648 = vpack.c.b16 %v600, %v598
  %v649 = vpack.c.b16 %v603, %v601
  %v650 = vpack.c.b16 %v604, %v602
  %v651 = vpack.c.b16 %v607, %v605
  %v652 = vpack.c.b16 %v608, %v606
  %v653 = vpack.c.b16 %v611, %v609
  %v654 = vpack.c.b16 %v612, %v610
  %v655 = vpack.c.b16 %v615, %v613
  %v656 = vpack.c.b16 %v616, %v614
  %v657 = vpack.c.b16 %v619, %v617
  %v658 = vpack.c.b16 %v620, %v618
  %v659 = vpack.c.b16 %v623, %v621
  %v660 = vpack.c.b16 %v624, %v622
  %v661 = vpack.c.b16 %v627, %v625
  %v662 = vpack.c.b16 %v628, %v626
  %v663 = vpack.c.b16 %v631, %v629
  %v664 = vpack.c.b16 %v632, %v630
  %vm681 = vcmask 523264
  %v683 = vsel %vm681, %v634, 0
  %v686 = vsel %vm681, %v636, 0
  %v689 = vsel %vm681, %v638, 0
  %v692 = vsel %vm681, %v640, 0
  %v695 = vsel %vm681, %v642, 0
  %v698 = vsel %vm681, %v644, 0
  %v701 = vsel %vm681, %v646, 0
  %v704 = vsel %vm681, %v648, 0
  %v707 = vsel %vm681, %v650, 0
  %v710 = vsel %vm681, %v652, 0
  %v713 = vsel %vm681, %v654, 0
  %v716 = vsel %vm681, %v656, 0
  %v719 = vsel %vm681, %v658, 0
  %v722 = vsel %vm681, %v660, 0
  %v725 = vsel %vm681, %v662, 0
  %v728 = vsel %vm681, %v664, 0
  %730 = vmatprep.subr.bf16.mxu0 0
  %731 = vmatpush1.bf16.msra.mxu0 %v499
  %732 = vmatprep.subr.bf16.mxu0 0
  %733 = vmatpush1.bf16.msra.mxu0 %v498
  %734 = vmatprep.subr.bf16.mxu0 0
  %735 = vmatpush1.bf16.msra.mxu0 %v497
  %736 = vmatprep.subr.bf16.mxu0 0
  %737 = vmatpush1.bf16.msra.mxu0 %v496
  %738 = vmatprep.subr.bf16.mxu0 0
  %739 = vmatpush1.bf16.msra.mxu0 %v495
  %740 = vmatprep.subr.bf16.mxu0 0
  %741 = vmatpush1.bf16.msra.mxu0 %v494
  %742 = vmatprep.subr.bf16.mxu0 0
  %743 = vmatpush1.bf16.msra.mxu0 %v493
  %744 = vmatprep.subr.bf16.mxu0 0
  %745 = vmatpush1.bf16.msra.mxu0 %v492
  %746 = vmatprep.subr.bf16.mxu0 0
  %747 = vmatpush2.bf16.msra.mxu0 0
  %748 = vmatprep.subr.bf16.mxu0 0
  %749 = vmatpush2.bf16.msra.mxu0 0
  %750 = vmatprep.subr.bf16.mxu0 0
  %751 = vmatpush2.bf16.msra.mxu0 0
  %752 = vmatprep.subr.bf16.mxu0 0
  %753 = vmatpush2.bf16.msra.mxu0 0
  %754 = vmatprep.subr.bf16.mxu0 0
  %755 = vmatpush2.bf16.msra.mxu0 %v503
  %756 = vmatprep.subr.bf16.mxu0 0
  %757 = vmatpush2.bf16.msra.mxu0 %v502
  %758 = vmatprep.subr.bf16.mxu0 0
  %759 = vmatpush2.bf16.msra.mxu0 %v501
  %760 = vmatprep.subr.bf16.mxu0 0
  %761 = vmatpush2.bf16.msra.mxu0 %v500
  %762 = vmatprep.mubr.bf16.mxu0 %v683
  %763 = vmatmul.mubr.bf16.gmra.mxu0 %v633
  %v764 = vpop.f32.mrf.mxu0
  %v765 = vadd.f32 0.0, %v764
  %v766 = vpop.f32.mrf.mxu0
  %v767 = vpop.f32.mrf.mxu0
  %v768 = vadd.f32 0.0, %v767
  %v769 = vpop.f32.mrf.mxu0
  %770 = vmatprep.mubr.bf16.mxu0 %v686
  %771 = vmatmul.mubr.bf16.gmra.mxu0 %v635
  %v772 = vpop.f32.mrf.mxu0
  %v773 = vadd.f32 0.0, %v772
  %v774 = vpop.f32.mrf.mxu0
  %v775 = vpop.f32.mrf.mxu0
  %v776 = vadd.f32 0.0, %v775
  %v777 = vpop.f32.mrf.mxu0
  %778 = vmatprep.mubr.bf16.mxu0 %v689
  %779 = vmatmul.mubr.bf16.gmra.mxu0 %v637
  %v780 = vpop.f32.mrf.mxu0
  %v781 = vadd.f32 0.0, %v780
  %v782 = vpop.f32.mrf.mxu0
  %v783 = vpop.f32.mrf.mxu0
  %v784 = vadd.f32 0.0, %v783
  %v785 = vpop.f32.mrf.mxu0
  %786 = vmatprep.mubr.bf16.mxu0 %v692
  %787 = vmatmul.mubr.bf16.gmra.mxu0 %v639
  %v788 = vpop.f32.mrf.mxu0
  %v789 = vadd.f32 0.0, %v788
  %v790 = vpop.f32.mrf.mxu0
  %v791 = vpop.f32.mrf.mxu0
  %v792 = vadd.f32 0.0, %v791
  %v793 = vpop.f32.mrf.mxu0
  %794 = vmatprep.mubr.bf16.mxu0 %v695
  %795 = vmatmul.mubr.bf16.gmra.mxu0 %v641
  %v796 = vpop.f32.mrf.mxu0
  %v797 = vadd.f32 0.0, %v796
  %v798 = vpop.f32.mrf.mxu0
  %v799 = vpop.f32.mrf.mxu0
  %v800 = vadd.f32 0.0, %v799
  %v801 = vpop.f32.mrf.mxu0
  %802 = vmatprep.mubr.bf16.mxu0 %v698
  %803 = vmatmul.mubr.bf16.gmra.mxu0 %v643
  %v804 = vpop.f32.mrf.mxu0
  %v805 = vadd.f32 0.0, %v804
  %v806 = vpop.f32.mrf.mxu0
  %v807 = vpop.f32.mrf.mxu0
  %v808 = vadd.f32 0.0, %v807
  %v809 = vpop.f32.mrf.mxu0
  %810 = vmatprep.mubr.bf16.mxu0 %v701
  %811 = vmatmul.mubr.bf16.gmra.mxu0 %v645
  %v812 = vpop.f32.mrf.mxu0
  %v813 = vadd.f32 0.0, %v812
  %v814 = vpop.f32.mrf.mxu0
  %v815 = vpop.f32.mrf.mxu0
  %v816 = vadd.f32 0.0, %v815
  %v817 = vpop.f32.mrf.mxu0
  %818 = vmatprep.mubr.bf16.mxu0 %v704
  %819 = vmatmul.mubr.bf16.gmra.mxu0 %v647
  %v820 = vpop.f32.mrf.mxu0
  %v821 = vadd.f32 0.0, %v820
  %v822 = vpop.f32.mrf.mxu0
  %v823 = vpop.f32.mrf.mxu0
  %v824 = vadd.f32 0.0, %v823
  %v825 = vpop.f32.mrf.mxu0
  %826 = vmatprep.mubr.bf16.mxu0 %v707
  %827 = vmatmul.mubr.bf16.gmra.mxu0 %v649
  %v828 = vpop.f32.mrf.mxu0
  %v829 = vadd.f32 0.0, %v828
  %v830 = vpop.f32.mrf.mxu0
  %v831 = vpop.f32.mrf.mxu0
  %v832 = vadd.f32 0.0, %v831
  %v833 = vpop.f32.mrf.mxu0
  %834 = vmatprep.mubr.bf16.mxu0 %v710
  %835 = vmatmul.mubr.bf16.gmra.mxu0 %v651
  %v836 = vpop.f32.mrf.mxu0
  %v837 = vadd.f32 0.0, %v836
  %v838 = vpop.f32.mrf.mxu0
  %v839 = vpop.f32.mrf.mxu0
  %v840 = vadd.f32 0.0, %v839
  %v841 = vpop.f32.mrf.mxu0
  %842 = vmatprep.mubr.bf16.mxu0 %v713
  %843 = vmatmul.mubr.bf16.gmra.mxu0 %v653
  %v844 = vpop.f32.mrf.mxu0
  %v845 = vadd.f32 0.0, %v844
  %v846 = vpop.f32.mrf.mxu0
  %v847 = vpop.f32.mrf.mxu0
  %v848 = vadd.f32 0.0, %v847
  %v849 = vpop.f32.mrf.mxu0
  %850 = vmatprep.mubr.bf16.mxu0 %v716
  %851 = vmatmul.mubr.bf16.gmra.mxu0 %v655
  %v852 = vpop.f32.mrf.mxu0
  %v853 = vadd.f32 0.0, %v852
  %v854 = vpop.f32.mrf.mxu0
  %v855 = vpop.f32.mrf.mxu0
  %v856 = vadd.f32 0.0, %v855
  %v857 = vpop.f32.mrf.mxu0
  %858 = vmatprep.mubr.bf16.mxu0 %v719
  %859 = vmatmul.mubr.bf16.gmra.mxu0 %v657
  %v860 = vpop.f32.mrf.mxu0
  %v861 = vadd.f32 0.0, %v860
  %v862 = vpop.f32.mrf.mxu0
  %v863 = vpop.f32.mrf.mxu0
  %v864 = vadd.f32 0.0, %v863
  %v865 = vpop.f32.mrf.mxu0
  %866 = vmatprep.mubr.bf16.mxu0 %v722
  %867 = vmatmul.mubr.bf16.gmra.mxu0 %v659
  %v868 = vpop.f32.mrf.mxu0
  %v869 = vadd.f32 0.0, %v868
  %v870 = vpop.f32.mrf.mxu0
  %v871 = vpop.f32.mrf.mxu0
  %v872 = vadd.f32 0.0, %v871
  %v873 = vpop.f32.mrf.mxu0
  %874 = vmatprep.mubr.bf16.mxu0 %v725
  %875 = vmatmul.mubr.bf16.gmra.mxu0 %v661
  %v876 = vpop.f32.mrf.mxu0
  %v877 = vadd.f32 0.0, %v876
  %v878 = vpop.f32.mrf.mxu0
  %v879 = vpop.f32.mrf.mxu0
  %v880 = vadd.f32 0.0, %v879
  %v881 = vpop.f32.mrf.mxu0
  %882 = vmatprep.mubr.bf16.mxu0 %v728
  %883 = vmatmul.mubr.bf16.gmra.mxu0 %v663
  %v884 = vpop.f32.mrf.mxu0
  %v885 = vadd.f32 0.0, %v884
  %v886 = vpop.f32.mrf.mxu0
  %v887 = vpop.f32.mrf.mxu0
  %v888 = vadd.f32 0.0, %v887
  %v889 = vpop.f32.mrf.mxu0
  %890 = vdwg.mxu0
  %v923 = vunpack.c.l.b16 %v314
  %v924 = vunpack.c.h.b16 %v314
  %v925 = vunpack.c.l.b16 %v315
  %v926 = vunpack.c.h.b16 %v315
  %v927 = vunpack.c.l.b16 %v316
  %v928 = vunpack.c.h.b16 %v316
  %v929 = vunpack.c.l.b16 %v317
  %v930 = vunpack.c.h.b16 %v317
  %v931 = vunpack.c.l.b16 %v318
  %v932 = vunpack.c.h.b16 %v318
  %v933 = vunpack.c.l.b16 %v319
  %v934 = vunpack.c.h.b16 %v319
  %v935 = vunpack.c.l.b16 %v320
  %v936 = vunpack.c.h.b16 %v320
  %v937 = vunpack.c.l.b16 %v321
  %v938 = vunpack.c.h.b16 %v321
  %v939 = vunpack.c.l.b16 %v322
  %v940 = vunpack.c.h.b16 %v322
  %v941 = vunpack.c.l.b16 %v323
  %v942 = vunpack.c.h.b16 %v323
  %v943 = vunpack.c.l.b16 %v324
  %v944 = vunpack.c.h.b16 %v324
  %v945 = vunpack.c.l.b16 %v325
  %v946 = vunpack.c.h.b16 %v325
  %v947 = vunpack.c.l.b16 %v326
  %v948 = vunpack.c.h.b16 %v326
  %v949 = vunpack.c.l.b16 %v327
  %v950 = vunpack.c.h.b16 %v327
  %v951 = vunpack.c.l.b16 %v328
  %v952 = vunpack.c.h.b16 %v328
  %v953 = vunpack.c.l.b16 %v329
  %v954 = vunpack.c.h.b16 %v329
  %v955 = vunpack.c.l.b16 %v330
  %v956 = vunpack.c.h.b16 %v330
  %v957 = vunpack.c.l.b16 %v331
  %v958 = vunpack.c.h.b16 %v331
  %v959 = vunpack.c.l.b16 %v332
  %v960 = vunpack.c.h.b16 %v332
  %v961 = vunpack.c.l.b16 %v333
  %v962 = vunpack.c.h.b16 %v333
  %v963 = vunpack.c.l.b16 %v334
  %v964 = vunpack.c.h.b16 %v334
  %v965 = vunpack.c.l.b16 %v335
  %v966 = vunpack.c.h.b16 %v335
  %v967 = vunpack.c.l.b16 %v336
  %v968 = vunpack.c.h.b16 %v336
  %v969 = vunpack.c.l.b16 %v337
  %v970 = vunpack.c.h.b16 %v337
  %v971 = vunpack.c.l.b16 %v338
  %v972 = vunpack.c.h.b16 %v338
  %v973 = vunpack.c.l.b16 %v339
  %v974 = vunpack.c.h.b16 %v339
  %v975 = vunpack.c.l.b16 %v340
  %v976 = vunpack.c.h.b16 %v340
  %v977 = vunpack.c.l.b16 %v341
  %v978 = vunpack.c.h.b16 %v341
  %v979 = vunpack.c.l.b16 %v342
  %v980 = vunpack.c.h.b16 %v342
  %v981 = vunpack.c.l.b16 %v343
  %v982 = vunpack.c.h.b16 %v343
  %v983 = vunpack.c.l.b16 %v344
  %v984 = vunpack.c.h.b16 %v344
  %v985 = vunpack.c.l.b16 %v345
  %v986 = vunpack.c.h.b16 %v345
  %v987 = vpack.c.b16 %v925, %v923
  %v988 = vpack.c.b16 %v926, %v924
  %v989 = vpack.c.b16 %v929, %v927
  %v990 = vpack.c.b16 %v930, %v928
  %v991 = vpack.c.b16 %v933, %v931
  %v992 = vpack.c.b16 %v934, %v932
  %v993 = vpack.c.b16 %v937, %v935
  %v994 = vpack.c.b16 %v938, %v936
  %v995 = vpack.c.b16 %v941, %v939
  %v996 = vpack.c.b16 %v942, %v940
  %v997 = vpack.c.b16 %v945, %v943
  %v998 = vpack.c.b16 %v946, %v944
  %v999 = vpack.c.b16 %v949, %v947
  %v1000 = vpack.c.b16 %v950, %v948
  %v1001 = vpack.c.b16 %v953, %v951
  %v1002 = vpack.c.b16 %v954, %v952
  %v1003 = vpack.c.b16 %v957, %v955
  %v1004 = vpack.c.b16 %v958, %v956
  %v1005 = vpack.c.b16 %v961, %v959
  %v1006 = vpack.c.b16 %v962, %v960
  %v1007 = vpack.c.b16 %v965, %v963
  %v1008 = vpack.c.b16 %v966, %v964
  %v1009 = vpack.c.b16 %v969, %v967
  %v1010 = vpack.c.b16 %v970, %v968
  %v1011 = vpack.c.b16 %v973, %v971
  %v1012 = vpack.c.b16 %v974, %v972
  %v1013 = vpack.c.b16 %v977, %v975
  %v1014 = vpack.c.b16 %v978, %v976
  %v1015 = vpack.c.b16 %v981, %v979
  %v1016 = vpack.c.b16 %v982, %v980
  %v1017 = vpack.c.b16 %v985, %v983
  %v1018 = vpack.c.b16 %v986, %v984
  %v1036 = vsel %vm681, %v988, 0
  %v1039 = vsel %vm681, %v990, 0
  %v1042 = vsel %vm681, %v992, 0
  %v1045 = vsel %vm681, %v994, 0
  %v1048 = vsel %vm681, %v996, 0
  %v1051 = vsel %vm681, %v998, 0
  %v1054 = vsel %vm681, %v1000, 0
  %v1057 = vsel %vm681, %v1002, 0
  %v1060 = vsel %vm681, %v1004, 0
  %v1063 = vsel %vm681, %v1006, 0
  %v1066 = vsel %vm681, %v1008, 0
  %v1069 = vsel %vm681, %v1010, 0
  %v1072 = vsel %vm681, %v1012, 0
  %v1075 = vsel %vm681, %v1014, 0
  %v1078 = vsel %vm681, %v1016, 0
  %v1081 = vsel %vm681, %v1018, 0
  %1083 = vmatprep.subr.bf16.mxu0 0
  %1084 = vmatpush1.bf16.msra.mxu0 %v309
  %1085 = vmatprep.subr.bf16.mxu0 0
  %1086 = vmatpush1.bf16.msra.mxu0 %v308
  %1087 = vmatprep.subr.bf16.mxu0 0
  %1088 = vmatpush1.bf16.msra.mxu0 %v307
  %1089 = vmatprep.subr.bf16.mxu0 0
  %1090 = vmatpush1.bf16.msra.mxu0 %v306
  %1091 = vmatprep.subr.bf16.mxu0 0
  %1092 = vmatpush1.bf16.msra.mxu0 %v305
  %1093 = vmatprep.subr.bf16.mxu0 0
  %1094 = vmatpush1.bf16.msra.mxu0 %v304
  %1095 = vmatprep.subr.bf16.mxu0 0
  %1096 = vmatpush1.bf16.msra.mxu0 %v303
  %1097 = vmatprep.subr.bf16.mxu0 0
  %1098 = vmatpush1.bf16.msra.mxu0 %v302
  %1099 = vmatprep.subr.bf16.mxu0 0
  %1100 = vmatpush2.bf16.msra.mxu0 0
  %1101 = vmatprep.subr.bf16.mxu0 0
  %1102 = vmatpush2.bf16.msra.mxu0 0
  %1103 = vmatprep.subr.bf16.mxu0 0
  %1104 = vmatpush2.bf16.msra.mxu0 0
  %1105 = vmatprep.subr.bf16.mxu0 0
  %1106 = vmatpush2.bf16.msra.mxu0 0
  %1107 = vmatprep.subr.bf16.mxu0 0
  %1108 = vmatpush2.bf16.msra.mxu0 %v313
  %1109 = vmatprep.subr.bf16.mxu0 0
  %1110 = vmatpush2.bf16.msra.mxu0 %v312
  %1111 = vmatprep.subr.bf16.mxu0 0
  %1112 = vmatpush2.bf16.msra.mxu0 %v311
  %1113 = vmatprep.subr.bf16.mxu0 0
  %1114 = vmatpush2.bf16.msra.mxu0 %v310
  %1115 = vmatprep.mubr.bf16.mxu0 %v1036
  %1116 = vmatmul.mubr.bf16.gmra.mxu0 %v987
  %v1117 = vpop.f32.mrf.mxu0
  %v1118 = vadd.f32 %v765, %v1117
  %v1119 = vpop.f32.mrf.mxu0
  %v1120 = vpop.f32.mrf.mxu0
  %v1121 = vadd.f32 %v768, %v1120
  %v1122 = vpop.f32.mrf.mxu0
  %1123 = vmatprep.mubr.bf16.mxu0 %v1039
  %1124 = vmatmul.mubr.bf16.gmra.mxu0 %v989
  %v1125 = vpop.f32.mrf.mxu0
  %v1126 = vadd.f32 %v773, %v1125
  %v1127 = vpop.f32.mrf.mxu0
  %v1128 = vpop.f32.mrf.mxu0
  %v1129 = vadd.f32 %v776, %v1128
  %v1130 = vpop.f32.mrf.mxu0
  %1131 = vmatprep.mubr.bf16.mxu0 %v1042
  %1132 = vmatmul.mubr.bf16.gmra.mxu0 %v991
  %v1133 = vpop.f32.mrf.mxu0
  %v1134 = vadd.f32 %v781, %v1133
  %v1135 = vpop.f32.mrf.mxu0
  %v1136 = vpop.f32.mrf.mxu0
  %v1137 = vadd.f32 %v784, %v1136
  %v1138 = vpop.f32.mrf.mxu0
  %1139 = vmatprep.mubr.bf16.mxu0 %v1045
  %1140 = vmatmul.mubr.bf16.gmra.mxu0 %v993
  %v1141 = vpop.f32.mrf.mxu0
  %v1142 = vadd.f32 %v789, %v1141
  %v1143 = vpop.f32.mrf.mxu0
  %v1144 = vpop.f32.mrf.mxu0
  %v1145 = vadd.f32 %v792, %v1144
  %v1146 = vpop.f32.mrf.mxu0
  %1147 = vmatprep.mubr.bf16.mxu0 %v1048
  %1148 = vmatmul.mubr.bf16.gmra.mxu0 %v995
  %v1149 = vpop.f32.mrf.mxu0
  %v1150 = vadd.f32 %v797, %v1149
  %v1151 = vpop.f32.mrf.mxu0
  %v1152 = vpop.f32.mrf.mxu0
  %v1153 = vadd.f32 %v800, %v1152
  %v1154 = vpop.f32.mrf.mxu0
  %1155 = vmatprep.mubr.bf16.mxu0 %v1051
  %1156 = vmatmul.mubr.bf16.gmra.mxu0 %v997
  %v1157 = vpop.f32.mrf.mxu0
  %v1158 = vadd.f32 %v805, %v1157
  %v1159 = vpop.f32.mrf.mxu0
  %v1160 = vpop.f32.mrf.mxu0
  %v1161 = vadd.f32 %v808, %v1160
  %v1162 = vpop.f32.mrf.mxu0
  %1163 = vmatprep.mubr.bf16.mxu0 %v1054
  %1164 = vmatmul.mubr.bf16.gmra.mxu0 %v999
  %v1165 = vpop.f32.mrf.mxu0
  %v1166 = vadd.f32 %v813, %v1165
  %v1167 = vpop.f32.mrf.mxu0
  %v1168 = vpop.f32.mrf.mxu0
  %v1169 = vadd.f32 %v816, %v1168
  %v1170 = vpop.f32.mrf.mxu0
  %1171 = vmatprep.mubr.bf16.mxu0 %v1057
  %1172 = vmatmul.mubr.bf16.gmra.mxu0 %v1001
  %v1173 = vpop.f32.mrf.mxu0
  %v1174 = vadd.f32 %v821, %v1173
  %v1175 = vpop.f32.mrf.mxu0
  %v1176 = vpop.f32.mrf.mxu0
  %v1177 = vadd.f32 %v824, %v1176
  %v1178 = vpop.f32.mrf.mxu0
  %1179 = vmatprep.mubr.bf16.mxu0 %v1060
  %1180 = vmatmul.mubr.bf16.gmra.mxu0 %v1003
  %v1181 = vpop.f32.mrf.mxu0
  %v1182 = vadd.f32 %v829, %v1181
  %v1183 = vpop.f32.mrf.mxu0
  %v1184 = vpop.f32.mrf.mxu0
  %v1185 = vadd.f32 %v832, %v1184
  %v1186 = vpop.f32.mrf.mxu0
  %1187 = vmatprep.mubr.bf16.mxu0 %v1063
  %1188 = vmatmul.mubr.bf16.gmra.mxu0 %v1005
  %v1189 = vpop.f32.mrf.mxu0
  %v1190 = vadd.f32 %v837, %v1189
  %v1191 = vpop.f32.mrf.mxu0
  %v1192 = vpop.f32.mrf.mxu0
  %v1193 = vadd.f32 %v840, %v1192
  %v1194 = vpop.f32.mrf.mxu0
  %1195 = vmatprep.mubr.bf16.mxu0 %v1066
  %1196 = vmatmul.mubr.bf16.gmra.mxu0 %v1007
  %v1197 = vpop.f32.mrf.mxu0
  %v1198 = vadd.f32 %v845, %v1197
  %v1199 = vpop.f32.mrf.mxu0
  %v1200 = vpop.f32.mrf.mxu0
  %v1201 = vadd.f32 %v848, %v1200
  %v1202 = vpop.f32.mrf.mxu0
  %1203 = vmatprep.mubr.bf16.mxu0 %v1069
  %1204 = vmatmul.mubr.bf16.gmra.mxu0 %v1009
  %v1205 = vpop.f32.mrf.mxu0
  %v1206 = vadd.f32 %v853, %v1205
  %v1207 = vpop.f32.mrf.mxu0
  %v1208 = vpop.f32.mrf.mxu0
  %v1209 = vadd.f32 %v856, %v1208
  %v1210 = vpop.f32.mrf.mxu0
  %1211 = vmatprep.mubr.bf16.mxu0 %v1072
  %1212 = vmatmul.mubr.bf16.gmra.mxu0 %v1011
  %v1213 = vpop.f32.mrf.mxu0
  %v1214 = vadd.f32 %v861, %v1213
  %v1215 = vpop.f32.mrf.mxu0
  %v1216 = vpop.f32.mrf.mxu0
  %v1217 = vadd.f32 %v864, %v1216
  %v1218 = vpop.f32.mrf.mxu0
  %1219 = vmatprep.mubr.bf16.mxu0 %v1075
  %1220 = vmatmul.mubr.bf16.gmra.mxu0 %v1013
  %v1221 = vpop.f32.mrf.mxu0
  %v1222 = vadd.f32 %v869, %v1221
  %v1223 = vpop.f32.mrf.mxu0
  %v1224 = vpop.f32.mrf.mxu0
  %v1225 = vadd.f32 %v872, %v1224
  %v1226 = vpop.f32.mrf.mxu0
  %1227 = vmatprep.mubr.bf16.mxu0 %v1078
  %1228 = vmatmul.mubr.bf16.gmra.mxu0 %v1015
  %v1229 = vpop.f32.mrf.mxu0
  %v1230 = vadd.f32 %v877, %v1229
  %v1231 = vpop.f32.mrf.mxu0
  %v1232 = vpop.f32.mrf.mxu0
  %v1233 = vadd.f32 %v880, %v1232
  %v1234 = vpop.f32.mrf.mxu0
  %1235 = vmatprep.mubr.bf16.mxu0 %v1081
  %1236 = vmatmul.mubr.bf16.gmra.mxu0 %v1017
  %v1237 = vpop.f32.mrf.mxu0
  %v1238 = vadd.f32 %v885, %v1237
  %v1239 = vpop.f32.mrf.mxu0
  %v1240 = vpop.f32.mrf.mxu0
  %v1241 = vadd.f32 %v888, %v1240
  %v1242 = vpop.f32.mrf.mxu0
  %1243 = vdwg.mxu0
  %s1244 = scalar_lea.vmem %s1, 32
  %v1245 = vld [vmem:[%s1244] sm:$0xf]
  %v1246 = vld [vmem:[%s1244 + $0x4] sm:$0xf]
  %v1247 = vld [vmem:[%s1244 + $0x8] sm:$0xf]
  %v1248 = vld [vmem:[%s1244 + $0xc] sm:$0xf]
  %v1253 = vunpack.c.l.b16 %v1245
  %v1254 = vunpack.c.l.b16 %v1246
  %v1255 = vunpack.c.l.b16 %v1247
  %v1256 = vunpack.c.l.b16 %v1248
  %v1257 = vpack.c.b16 %v1254, %v1253
  %v1258 = vpack.c.b16 %v1256, %v1255
  %1261 = vmatprep.subr.bf16.mxu0 0
  %1262 = vmatpush1.bf16.msra.mxu0 0
  %1263 = vmatprep.subr.bf16.mxu0 0
  %1264 = vmatpush1.bf16.msra.mxu0 0
  %1265 = vmatprep.subr.bf16.mxu0 0
  %1266 = vmatpush1.bf16.msra.mxu0 0
  %1267 = vmatprep.subr.bf16.mxu0 0
  %1268 = vmatpush1.bf16.msra.mxu0 0
  %1269 = vmatprep.subr.bf16.mxu0 0
  %1270 = vmatpush1.bf16.msra.mxu0 0
  %1271 = vmatprep.subr.bf16.mxu0 0
  %1272 = vmatpush1.bf16.msra.mxu0 0
  %1273 = vmatprep.subr.bf16.mxu0 0
  %1274 = vmatpush1.bf16.msra.mxu0 %v1258
  %1275 = vmatprep.subr.bf16.mxu0 0
  %1276 = vmatpush1.bf16.msra.mxu0 %v1257
  %1277 = vmatprep.subr.bf16.mxu0 0
  %1278 = vmatpush2.bf16.msra.mxu0 0
  %1279 = vmatprep.subr.bf16.mxu0 0
  %1280 = vmatpush2.bf16.msra.mxu0 0
  %1281 = vmatprep.subr.bf16.mxu0 0
  %1282 = vmatpush2.bf16.msra.mxu0 0
  %1283 = vmatprep.subr.bf16.mxu0 0
  %1284 = vmatpush2.bf16.msra.mxu0 0
  %1285 = vmatprep.subr.bf16.mxu0 0
  %1286 = vmatpush2.bf16.msra.mxu0 0
  %1287 = vmatprep.subr.bf16.mxu0 0
  %1288 = vmatpush2.bf16.msra.mxu0 0
  %1289 = vmatprep.subr.bf16.mxu0 0
  %1290 = vmatpush2.bf16.msra.mxu0 0
  %1291 = vmatprep.subr.bf16.mxu0 0
  %1292 = vmatpush2.bf16.msra.mxu0 0
  %1293 = vmatprep.mubr.bf16.mxu0 0
  %1294 = vmatmul.mubr.bf16.gmra.mxu0 %v138
  %v1295 = vpop.f32.mrf.mxu0
  %v1296 = vadd.f32 0.0, %v1295
  %v1297 = vpop.f32.mrf.mxu0
  %v1298 = vpop.f32.mrf.mxu0
  %v1299 = vadd.f32 0.0, %v1298
  %v1300 = vpop.f32.mrf.mxu0
  %1301 = vmatprep.mubr.bf16.mxu0 0
  %1302 = vmatmul.mubr.bf16.gmra.mxu0 %v141
  %v1303 = vpop.f32.mrf.mxu0
  %v1304 = vadd.f32 0.0, %v1303
  %v1305 = vpop.f32.mrf.mxu0
  %v1306 = vpop.f32.mrf.mxu0
  %v1307 = vadd.f32 0.0, %v1306
  %v1308 = vpop.f32.mrf.mxu0
  %1309 = vmatprep.mubr.bf16.mxu0 0
  %1310 = vmatmul.mubr.bf16.gmra.mxu0 %v144
  %v1311 = vpop.f32.mrf.mxu0
  %v1312 = vadd.f32 0.0, %v1311
  %v1313 = vpop.f32.mrf.mxu0
  %v1314 = vpop.f32.mrf.mxu0
  %v1315 = vadd.f32 0.0, %v1314
  %v1316 = vpop.f32.mrf.mxu0
  %1317 = vmatprep.mubr.bf16.mxu0 0
  %1318 = vmatmul.mubr.bf16.gmra.mxu0 %v147
  %v1319 = vpop.f32.mrf.mxu0
  %v1320 = vadd.f32 0.0, %v1319
  %v1321 = vpop.f32.mrf.mxu0
  %v1322 = vpop.f32.mrf.mxu0
  %v1323 = vadd.f32 0.0, %v1322
  %v1324 = vpop.f32.mrf.mxu0
  %1325 = vmatprep.mubr.bf16.mxu0 0
  %1326 = vmatmul.mubr.bf16.gmra.mxu0 %v150
  %v1327 = vpop.f32.mrf.mxu0
  %v1328 = vadd.f32 0.0, %v1327
  %v1329 = vpop.f32.mrf.mxu0
  %v1330 = vpop.f32.mrf.mxu0
  %v1331 = vadd.f32 0.0, %v1330
  %v1332 = vpop.f32.mrf.mxu0
  %1333 = vmatprep.mubr.bf16.mxu0 0
  %1334 = vmatmul.mubr.bf16.gmra.mxu0 %v153
  %v1335 = vpop.f32.mrf.mxu0
  %v1336 = vadd.f32 0.0, %v1335
  %v1337 = vpop.f32.mrf.mxu0
  %v1338 = vpop.f32.mrf.mxu0
  %v1339 = vadd.f32 0.0, %v1338
  %v1340 = vpop.f32.mrf.mxu0
  %1341 = vmatprep.mubr.bf16.mxu0 0
  %1342 = vmatmul.mubr.bf16.gmra.mxu0 %v156
  %v1343 = vpop.f32.mrf.mxu0
  %v1344 = vadd.f32 0.0, %v1343
  %v1345 = vpop.f32.mrf.mxu0
  %v1346 = vpop.f32.mrf.mxu0
  %v1347 = vadd.f32 0.0, %v1346
  %v1348 = vpop.f32.mrf.mxu0
  %1349 = vmatprep.mubr.bf16.mxu0 0
  %1350 = vmatmul.mubr.bf16.gmra.mxu0 %v159
  %v1351 = vpop.f32.mrf.mxu0
  %v1352 = vadd.f32 0.0, %v1351
  %v1353 = vpop.f32.mrf.mxu0
  %v1354 = vpop.f32.mrf.mxu0
  %v1355 = vadd.f32 0.0, %v1354
  %v1356 = vpop.f32.mrf.mxu0
  %1357 = vmatprep.mubr.bf16.mxu0 0
  %1358 = vmatmul.mubr.bf16.gmra.mxu0 %v162
  %v1359 = vpop.f32.mrf.mxu0
  %v1360 = vadd.f32 0.0, %v1359
  %v1361 = vpop.f32.mrf.mxu0
  %v1362 = vpop.f32.mrf.mxu0
  %v1363 = vadd.f32 0.0, %v1362
  %v1364 = vpop.f32.mrf.mxu0
  %1365 = vmatprep.mubr.bf16.mxu0 0
  %1366 = vmatmul.mubr.bf16.gmra.mxu0 %v165
  %v1367 = vpop.f32.mrf.mxu0
  %v1368 = vadd.f32 0.0, %v1367
  %v1369 = vpop.f32.mrf.mxu0
  %v1370 = vpop.f32.mrf.mxu0
  %v1371 = vadd.f32 0.0, %v1370
  %v1372 = vpop.f32.mrf.mxu0
  %1373 = vmatprep.mubr.bf16.mxu0 0
  %1374 = vmatmul.mubr.bf16.gmra.mxu0 %v168
  %v1375 = vpop.f32.mrf.mxu0
  %v1376 = vadd.f32 0.0, %v1375
  %v1377 = vpop.f32.mrf.mxu0
  %v1378 = vpop.f32.mrf.mxu0
  %v1379 = vadd.f32 0.0, %v1378
  %v1380 = vpop.f32.mrf.mxu0
  %1381 = vmatprep.mubr.bf16.mxu0 0
  %1382 = vmatmul.mubr.bf16.gmra.mxu0 %v171
  %v1383 = vpop.f32.mrf.mxu0
  %v1384 = vadd.f32 0.0, %v1383
  %v1385 = vpop.f32.mrf.mxu0
  %v1386 = vpop.f32.mrf.mxu0
  %v1387 = vadd.f32 0.0, %v1386
  %v1388 = vpop.f32.mrf.mxu0
  %1389 = vdwg.mxu0
  %v1390 = vpack.c.bf16 %v1299, %v1296
  %v1391 = vpack.c.bf16 %v1307, %v1304
  %v1392 = vpack.c.bf16 %v1315, %v1312
  %v1393 = vpack.c.bf16 %v1323, %v1320
  %v1394 = vpack.c.bf16 %v1331, %v1328
  %v1395 = vpack.c.bf16 %v1339, %v1336
  %v1396 = vpack.c.bf16 %v1347, %v1344
  %v1397 = vpack.c.bf16 %v1355, %v1352
  %v1398 = vpack.c.bf16 %v1363, %v1360
  %v1399 = vpack.c.bf16 %v1371, %v1368
  %v1400 = vpack.c.bf16 %v1379, %v1376
  %v1401 = vpack.c.bf16 %v1387, %v1384
  %s1402 = scalar_lea.vmem %s2, 512
  %v1403 = vld [vmem:[%s1402] sm:$0xff]
  %v1404 = vld [vmem:[%s1402 + $0x8] sm:$0xff]
  %v1405 = vld [vmem:[%s1402 + $0x10] sm:$0xff]
  %v1406 = vld [vmem:[%s1402 + $0x18] sm:$0xff]
  %v1407 = vld [vmem:[%s1402 + $0x20] sm:$0xff]
  %v1408 = vld [vmem:[%s1402 + $0x28] sm:$0xff]
  %v1409 = vld [vmem:[%s1402 + $0x30] sm:$0xff]
  %v1410 = vld [vmem:[%s1402 + $0x38] sm:$0xff]
  %v1411 = vld [vmem:[%s1402 + $0x40] sm:$0xff]
  %v1412 = vld [vmem:[%s1402 + $0x48] sm:$0xff]
  %v1413 = vld [vmem:[%s1402 + $0x50] sm:$0xff]
  %v1414 = vld [vmem:[%s1402 + $0x58] sm:$0xff]
  %v1415 = vld [vmem:[%s1402 + $0x60] sm:$0xff]
  %v1416 = vld [vmem:[%s1402 + $0x68] sm:$0xff]
  %v1417 = vld [vmem:[%s1402 + $0x70] sm:$0xff]
  %v1418 = vld [vmem:[%s1402 + $0x78] sm:$0xff]
  %v1419 = vld [vmem:[%s1402 + $0x80] sm:$0xff]
  %v1420 = vld [vmem:[%s1402 + $0x88] sm:$0xff]
  %v1421 = vld [vmem:[%s1402 + $0x90] sm:$0xff]
  %v1422 = vld [vmem:[%s1402 + $0x98] sm:$0xff]
  %v1423 = vld [vmem:[%s1402 + $0xa0] sm:$0xff]
  %v1424 = vld [vmem:[%s1402 + $0xa8] sm:$0xff]
  %v1425 = vld [vmem:[%s1402 + $0xb0] sm:$0xff]
  %v1426 = vld [vmem:[%s1402 + $0xb8] sm:$0xff]
  %v1427 = vld [vmem:[%s1402 + $0xc0] sm:$0xff]
  %v1428 = vld [vmem:[%s1402 + $0xc8] sm:$0xff]
  %v1429 = vld [vmem:[%s1402 + $0xd0] sm:$0xff]
  %v1430 = vld [vmem:[%s1402 + $0xd8] sm:$0xff]
  %v1431 = vld [vmem:[%s1402 + $0xe0] sm:$0xff]
  %v1432 = vld [vmem:[%s1402 + $0xe8] sm:$0xff]
  %v1433 = vld [vmem:[%s1402 + $0xf0] sm:$0xff]
  %v1434 = vld [vmem:[%s1402 + $0xf8] sm:$0xff]
  %v1467 = vunpack.c.l.b16 %v1403
  %v1468 = vunpack.c.h.b16 %v1403
  %v1469 = vunpack.c.l.b16 %v1404
  %v1470 = vunpack.c.h.b16 %v1404
  %v1471 = vunpack.c.l.b16 %v1405
  %v1472 = vunpack.c.h.b16 %v1405
  %v1473 = vunpack.c.l.b16 %v1406
  %v1474 = vunpack.c.h.b16 %v1406
  %v1475 = vunpack.c.l.b16 %v1407
  %v1476 = vunpack.c.h.b16 %v1407
  %v1477 = vunpack.c.l.b16 %v1408
  %v1478 = vunpack.c.h.b16 %v1408
  %v1479 = vunpack.c.l.b16 %v1409
  %v1480 = vunpack.c.h.b16 %v1409
  %v1481 = vunpack.c.l.b16 %v1410
  %v1482 = vunpack.c.h.b16 %v1410
  %v1483 = vunpack.c.l.b16 %v1411
  %v1484 = vunpack.c.h.b16 %v1411
  %v1485 = vunpack.c.l.b16 %v1412
  %v1486 = vunpack.c.h.b16 %v1412
  %v1487 = vunpack.c.l.b16 %v1413
  %v1488 = vunpack.c.h.b16 %v1413
  %v1489 = vunpack.c.l.b16 %v1414
  %v1490 = vunpack.c.h.b16 %v1414
  %v1491 = vunpack.c.l.b16 %v1415
  %v1492 = vunpack.c.h.b16 %v1415
  %v1493 = vunpack.c.l.b16 %v1416
  %v1494 = vunpack.c.h.b16 %v1416
  %v1495 = vunpack.c.l.b16 %v1417
  %v1496 = vunpack.c.h.b16 %v1417
  %v1497 = vunpack.c.l.b16 %v1418
  %v1498 = vunpack.c.h.b16 %v1418
  %v1499 = vunpack.c.l.b16 %v1419
  %v1500 = vunpack.c.h.b16 %v1419
  %v1501 = vunpack.c.l.b16 %v1420
  %v1502 = vunpack.c.h.b16 %v1420
  %v1503 = vunpack.c.l.b16 %v1421
  %v1504 = vunpack.c.h.b16 %v1421
  %v1505 = vunpack.c.l.b16 %v1422
  %v1506 = vunpack.c.h.b16 %v1422
  %v1507 = vunpack.c.l.b16 %v1423
  %v1508 = vunpack.c.h.b16 %v1423
  %v1509 = vunpack.c.l.b16 %v1424
  %v1510 = vunpack.c.h.b16 %v1424
  %v1511 = vunpack.c.l.b16 %v1425
  %v1512 = vunpack.c.h.b16 %v1425
  %v1513 = vunpack.c.l.b16 %v1426
  %v1514 = vunpack.c.h.b16 %v1426
  %v1515 = vunpack.c.l.b16 %v1427
  %v1516 = vunpack.c.h.b16 %v1427
  %v1517 = vunpack.c.l.b16 %v1428
  %v1518 = vunpack.c.h.b16 %v1428
  %v1519 = vunpack.c.l.b16 %v1429
  %v1520 = vunpack.c.h.b16 %v1429
  %v1521 = vunpack.c.l.b16 %v1430
  %v1522 = vunpack.c.h.b16 %v1430
  %v1523 = vunpack.c.l.b16 %v1431
  %v1524 = vunpack.c.h.b16 %v1431
  %v1525 = vunpack.c.l.b16 %v1432
  %v1526 = vunpack.c.h.b16 %v1432
  %v1527 = vunpack.c.l.b16 %v1433
  %v1528 = vunpack.c.h.b16 %v1433
  %v1529 = vunpack.c.l.b16 %v1434
  %v1530 = vunpack.c.h.b16 %v1434
  %v1531 = vpack.c.b16 %v1469, %v1467
  %v1532 = vpack.c.b16 %v1470, %v1468
  %v1533 = vpack.c.b16 %v1473, %v1471
  %v1534 = vpack.c.b16 %v1474, %v1472
  %v1535 = vpack.c.b16 %v1477, %v1475
  %v1536 = vpack.c.b16 %v1478, %v1476
  %v1537 = vpack.c.b16 %v1481, %v1479
  %v1538 = vpack.c.b16 %v1482, %v1480
  %v1539 = vpack.c.b16 %v1485, %v1483
  %v1540 = vpack.c.b16 %v1486, %v1484
  %v1541 = vpack.c.b16 %v1489, %v1487
  %v1542 = vpack.c.b16 %v1490, %v1488
  %v1543 = vpack.c.b16 %v1493, %v1491
  %v1544 = vpack.c.b16 %v1494, %v1492
  %v1545 = vpack.c.b16 %v1497, %v1495
  %v1546 = vpack.c.b16 %v1498, %v1496
  %v1547 = vpack.c.b16 %v1501, %v1499
  %v1548 = vpack.c.b16 %v1502, %v1500
  %v1549 = vpack.c.b16 %v1505, %v1503
  %v1550 = vpack.c.b16 %v1506, %v1504
  %v1551 = vpack.c.b16 %v1509, %v1507
  %v1552 = vpack.c.b16 %v1510, %v1508
  %v1553 = vpack.c.b16 %v1513, %v1511
  %v1554 = vpack.c.b16 %v1514, %v1512
  %v1555 = vpack.c.b16 %v1517, %v1515
  %v1556 = vpack.c.b16 %v1518, %v1516
  %v1557 = vpack.c.b16 %v1521, %v1519
  %v1558 = vpack.c.b16 %v1522, %v1520
  %v1559 = vpack.c.b16 %v1525, %v1523
  %v1560 = vpack.c.b16 %v1526, %v1524
  %v1561 = vpack.c.b16 %v1529, %v1527
  %v1562 = vpack.c.b16 %v1530, %v1528
  %v1580 = vsel %vm681, %v1532, 0
  %v1583 = vsel %vm681, %v1534, 0
  %v1586 = vsel %vm681, %v1536, 0
  %v1589 = vsel %vm681, %v1538, 0
  %v1592 = vsel %vm681, %v1540, 0
  %v1595 = vsel %vm681, %v1542, 0
  %v1598 = vsel %vm681, %v1544, 0
  %v1601 = vsel %vm681, %v1546, 0
  %v1604 = vsel %vm681, %v1548, 0
  %v1607 = vsel %vm681, %v1550, 0
  %v1610 = vsel %vm681, %v1552, 0
  %v1613 = vsel %vm681, %v1554, 0
  %v1616 = vsel %vm681, %v1556, 0
  %v1619 = vsel %vm681, %v1558, 0
  %v1622 = vsel %vm681, %v1560, 0
  %v1625 = vsel %vm681, %v1562, 0
  %1627 = vmatprep.subr.bf16.mxu0 0
  %1628 = vmatpush1.bf16.msra.mxu0 %v1397
  %1629 = vmatprep.subr.bf16.mxu0 0
  %1630 = vmatpush1.bf16.msra.mxu0 %v1396
  %1631 = vmatprep.subr.bf16.mxu0 0
  %1632 = vmatpush1.bf16.msra.mxu0 %v1395
  %1633 = vmatprep.subr.bf16.mxu0 0
  %1634 = vmatpush1.bf16.msra.mxu0 %v1394
  %1635 = vmatprep.subr.bf16.mxu0 0
  %1636 = vmatpush1.bf16.msra.mxu0 %v1393
  %1637 = vmatprep.subr.bf16.mxu0 0
  %1638 = vmatpush1.bf16.msra.mxu0 %v1392
  %1639 = vmatprep.subr.bf16.mxu0 0
  %1640 = vmatpush1.bf16.msra.mxu0 %v1391
  %1641 = vmatprep.subr.bf16.mxu0 0
  %1642 = vmatpush1.bf16.msra.mxu0 %v1390
  %1643 = vmatprep.subr.bf16.mxu0 0
  %1644 = vmatpush2.bf16.msra.mxu0 0
  %1645 = vmatprep.subr.bf16.mxu0 0
  %1646 = vmatpush2.bf16.msra.mxu0 0
  %1647 = vmatprep.subr.bf16.mxu0 0
  %1648 = vmatpush2.bf16.msra.mxu0 0
  %1649 = vmatprep.subr.bf16.mxu0 0
  %1650 = vmatpush2.bf16.msra.mxu0 0
  %1651 = vmatprep.subr.bf16.mxu0 0
  %1652 = vmatpush2.bf16.msra.mxu0 %v1401
  %1653 = vmatprep.subr.bf16.mxu0 0
  %1654 = vmatpush2.bf16.msra.mxu0 %v1400
  %1655 = vmatprep.subr.bf16.mxu0 0
  %1656 = vmatpush2.bf16.msra.mxu0 %v1399
  %1657 = vmatprep.subr.bf16.mxu0 0
  %1658 = vmatpush2.bf16.msra.mxu0 %v1398
  %1659 = vmatprep.mubr.bf16.mxu0 %v1580
  %1660 = vmatmul.mubr.bf16.gmra.mxu0 %v1531
  %v1661 = vpop.f32.mrf.mxu0
  %v1662 = vadd.f32 0.0, %v1661
  %v1663 = vpop.f32.mrf.mxu0
  %v1664 = vpop.f32.mrf.mxu0
  %v1665 = vadd.f32 0.0, %v1664
  %v1666 = vpop.f32.mrf.mxu0
  %1667 = vmatprep.mubr.bf16.mxu0 %v1583
  %1668 = vmatmul.mubr.bf16.gmra.mxu0 %v1533
  %v1669 = vpop.f32.mrf.mxu0
  %v1670 = vadd.f32 0.0, %v1669
  %v1671 = vpop.f32.mrf.mxu0
  %v1672 = vpop.f32.mrf.mxu0
  %v1673 = vadd.f32 0.0, %v1672
  %v1674 = vpop.f32.mrf.mxu0
  %1675 = vmatprep.mubr.bf16.mxu0 %v1586
  %1676 = vmatmul.mubr.bf16.gmra.mxu0 %v1535
  %v1677 = vpop.f32.mrf.mxu0
  %v1678 = vadd.f32 0.0, %v1677
  %v1679 = vpop.f32.mrf.mxu0
  %v1680 = vpop.f32.mrf.mxu0
  %v1681 = vadd.f32 0.0, %v1680
  %v1682 = vpop.f32.mrf.mxu0
  %1683 = vmatprep.mubr.bf16.mxu0 %v1589
  %1684 = vmatmul.mubr.bf16.gmra.mxu0 %v1537
  %v1685 = vpop.f32.mrf.mxu0
  %v1686 = vadd.f32 0.0, %v1685
  %v1687 = vpop.f32.mrf.mxu0
  %v1688 = vpop.f32.mrf.mxu0
  %v1689 = vadd.f32 0.0, %v1688
  %v1690 = vpop.f32.mrf.mxu0
  %1691 = vmatprep.mubr.bf16.mxu0 %v1592
  %1692 = vmatmul.mubr.bf16.gmra.mxu0 %v1539
  %v1693 = vpop.f32.mrf.mxu0
  %v1694 = vadd.f32 0.0, %v1693
  %v1695 = vpop.f32.mrf.mxu0
  %v1696 = vpop.f32.mrf.mxu0
  %v1697 = vadd.f32 0.0, %v1696
  %v1698 = vpop.f32.mrf.mxu0
  %1699 = vmatprep.mubr.bf16.mxu0 %v1595
  %1700 = vmatmul.mubr.bf16.gmra.mxu0 %v1541
  %v1701 = vpop.f32.mrf.mxu0
  %v1702 = vadd.f32 0.0, %v1701
  %v1703 = vpop.f32.mrf.mxu0
  %v1704 = vpop.f32.mrf.mxu0
  %v1705 = vadd.f32 0.0, %v1704
  %v1706 = vpop.f32.mrf.mxu0
  %1707 = vmatprep.mubr.bf16.mxu0 %v1598
  %1708 = vmatmul.mubr.bf16.gmra.mxu0 %v1543
  %v1709 = vpop.f32.mrf.mxu0
  %v1710 = vadd.f32 0.0, %v1709
  %v1711 = vpop.f32.mrf.mxu0
  %v1712 = vpop.f32.mrf.mxu0
  %v1713 = vadd.f32 0.0, %v1712
  %v1714 = vpop.f32.mrf.mxu0
  %1715 = vmatprep.mubr.bf16.mxu0 %v1601
  %1716 = vmatmul.mubr.bf16.gmra.mxu0 %v1545
  %v1717 = vpop.f32.mrf.mxu0
  %v1718 = vadd.f32 0.0, %v1717
  %v1719 = vpop.f32.mrf.mxu0
  %v1720 = vpop.f32.mrf.mxu0
  %v1721 = vadd.f32 0.0, %v1720
  %v1722 = vpop.f32.mrf.mxu0
  %1723 = vmatprep.mubr.bf16.mxu0 %v1604
  %1724 = vmatmul.mubr.bf16.gmra.mxu0 %v1547
  %v1725 = vpop.f32.mrf.mxu0
  %v1726 = vadd.f32 0.0, %v1725
  %v1727 = vpop.f32.mrf.mxu0
  %v1728 = vpop.f32.mrf.mxu0
  %v1729 = vadd.f32 0.0, %v1728
  %v1730 = vpop.f32.mrf.mxu0
  %1731 = vmatprep.mubr.bf16.mxu0 %v1607
  %1732 = vmatmul.mubr.bf16.gmra.mxu0 %v1549
  %v1733 = vpop.f32.mrf.mxu0
  %v1734 = vadd.f32 0.0, %v1733
  %v1735 = vpop.f32.mrf.mxu0
  %v1736 = vpop.f32.mrf.mxu0
  %v1737 = vadd.f32 0.0, %v1736
  %v1738 = vpop.f32.mrf.mxu0
  %1739 = vmatprep.mubr.bf16.mxu0 %v1610
  %1740 = vmatmul.mubr.bf16.gmra.mxu0 %v1551
  %v1741 = vpop.f32.mrf.mxu0
  %v1742 = vadd.f32 0.0, %v1741
  %v1743 = vpop.f32.mrf.mxu0
  %v1744 = vpop.f32.mrf.mxu0
  %v1745 = vadd.f32 0.0, %v1744
  %v1746 = vpop.f32.mrf.mxu0
  %1747 = vmatprep.mubr.bf16.mxu0 %v1613
  %1748 = vmatmul.mubr.bf16.gmra.mxu0 %v1553
  %v1749 = vpop.f32.mrf.mxu0
  %v1750 = vadd.f32 0.0, %v1749
  %v1751 = vpop.f32.mrf.mxu0
  %v1752 = vpop.f32.mrf.mxu0
  %v1753 = vadd.f32 0.0, %v1752
  %v1754 = vpop.f32.mrf.mxu0
  %1755 = vmatprep.mubr.bf16.mxu0 %v1616
  %1756 = vmatmul.mubr.bf16.gmra.mxu0 %v1555
  %v1757 = vpop.f32.mrf.mxu0
  %v1758 = vadd.f32 0.0, %v1757
  %v1759 = vpop.f32.mrf.mxu0
  %v1760 = vpop.f32.mrf.mxu0
  %v1761 = vadd.f32 0.0, %v1760
  %v1762 = vpop.f32.mrf.mxu0
  %1763 = vmatprep.mubr.bf16.mxu0 %v1619
  %1764 = vmatmul.mubr.bf16.gmra.mxu0 %v1557
  %v1765 = vpop.f32.mrf.mxu0
  %v1766 = vadd.f32 0.0, %v1765
  %v1767 = vpop.f32.mrf.mxu0
  %v1768 = vpop.f32.mrf.mxu0
  %v1769 = vadd.f32 0.0, %v1768
  %v1770 = vpop.f32.mrf.mxu0
  %1771 = vmatprep.mubr.bf16.mxu0 %v1622
  %1772 = vmatmul.mubr.bf16.gmra.mxu0 %v1559
  %v1773 = vpop.f32.mrf.mxu0
  %v1774 = vadd.f32 0.0, %v1773
  %v1775 = vpop.f32.mrf.mxu0
  %v1776 = vpop.f32.mrf.mxu0
  %v1777 = vadd.f32 0.0, %v1776
  %v1778 = vpop.f32.mrf.mxu0
  %1779 = vmatprep.mubr.bf16.mxu0 %v1625
  %1780 = vmatmul.mubr.bf16.gmra.mxu0 %v1561
  %v1781 = vpop.f32.mrf.mxu0
  %v1782 = vadd.f32 0.0, %v1781
  %v1783 = vpop.f32.mrf.mxu0
  %v1784 = vpop.f32.mrf.mxu0
  %v1785 = vadd.f32 0.0, %v1784
  %v1786 = vpop.f32.mrf.mxu0
  %1787 = vdwg.mxu0
  %v1788 = vadd.f32 %v1118, %v1662
  %v1789 = vadd.f32 %v1121, %v1665
  %v1790 = vadd.f32 %v1126, %v1670
  %v1791 = vadd.f32 %v1129, %v1673
  %v1792 = vadd.f32 %v1134, %v1678
  %v1793 = vadd.f32 %v1137, %v1681
  %v1794 = vadd.f32 %v1142, %v1686
  %v1795 = vadd.f32 %v1145, %v1689
  %v1796 = vadd.f32 %v1150, %v1694
  %v1797 = vadd.f32 %v1153, %v1697
  %v1798 = vadd.f32 %v1158, %v1702
  %v1799 = vadd.f32 %v1161, %v1705
  %v1800 = vadd.f32 %v1166, %v1710
  %v1801 = vadd.f32 %v1169, %v1713
  %v1802 = vadd.f32 %v1174, %v1718
  %v1803 = vadd.f32 %v1177, %v1721
  %v1804 = vadd.f32 %v1182, %v1726
  %v1805 = vadd.f32 %v1185, %v1729
  %v1806 = vadd.f32 %v1190, %v1734
  %v1807 = vadd.f32 %v1193, %v1737
  %v1808 = vadd.f32 %v1198, %v1742
  %v1809 = vadd.f32 %v1201, %v1745
  %v1810 = vadd.f32 %v1206, %v1750
  %v1811 = vadd.f32 %v1209, %v1753
  %v1812 = vadd.f32 %v1214, %v1758
  %v1813 = vadd.f32 %v1217, %v1761
  %v1814 = vadd.f32 %v1222, %v1766
  %v1815 = vadd.f32 %v1225, %v1769
  %v1816 = vadd.f32 %v1230, %v1774
  %v1817 = vadd.f32 %v1233, %v1777
  %v1818 = vadd.f32 %v1238, %v1782
  %v1819 = vadd.f32 %v1241, %v1785
  %s1820 = scalar_lea.vmem %s1, 48
  %v1821 = vld [vmem:[%s1820] sm:$0xf]
  %v1822 = vld [vmem:[%s1820 + $0x4] sm:$0xf]
  %v1823 = vld [vmem:[%s1820 + $0x8] sm:$0xf]
  %v1824 = vld [vmem:[%s1820 + $0xc] sm:$0xf]
  %v1829 = vunpack.c.l.b16 %v1821
  %v1830 = vunpack.c.l.b16 %v1822
  %v1831 = vunpack.c.l.b16 %v1823
  %v1832 = vunpack.c.l.b16 %v1824
  %v1833 = vpack.c.b16 %v1830, %v1829
  %v1834 = vpack.c.b16 %v1832, %v1831
  %1837 = vmatprep.subr.bf16.mxu0 0
  %1838 = vmatpush1.bf16.msra.mxu0 0
  %1839 = vmatprep.subr.bf16.mxu0 0
  %1840 = vmatpush1.bf16.msra.mxu0 0
  %1841 = vmatprep.subr.bf16.mxu0 0
  %1842 = vmatpush1.bf16.msra.mxu0 0
  %1843 = vmatprep.subr.bf16.mxu0 0
  %1844 = vmatpush1.bf16.msra.mxu0 0
  %1845 = vmatprep.subr.bf16.mxu0 0
  %1846 = vmatpush1.bf16.msra.mxu0 0
  %1847 = vmatprep.subr.bf16.mxu0 0
  %1848 = vmatpush1.bf16.msra.mxu0 0
  %1849 = vmatprep.subr.bf16.mxu0 0
  %1850 = vmatpush1.bf16.msra.mxu0 %v1834
  %1851 = vmatprep.subr.bf16.mxu0 0
  %1852 = vmatpush1.bf16.msra.mxu0 %v1833
  %1853 = vmatprep.subr.bf16.mxu0 0
  %1854 = vmatpush2.bf16.msra.mxu0 0
  %1855 = vmatprep.subr.bf16.mxu0 0
  %1856 = vmatpush2.bf16.msra.mxu0 0
  %1857 = vmatprep.subr.bf16.mxu0 0
  %1858 = vmatpush2.bf16.msra.mxu0 0
  %1859 = vmatprep.subr.bf16.mxu0 0
  %1860 = vmatpush2.bf16.msra.mxu0 0
  %1861 = vmatprep.subr.bf16.mxu0 0
  %1862 = vmatpush2.bf16.msra.mxu0 0
  %1863 = vmatprep.subr.bf16.mxu0 0
  %1864 = vmatpush2.bf16.msra.mxu0 0
  %1865 = vmatprep.subr.bf16.mxu0 0
  %1866 = vmatpush2.bf16.msra.mxu0 0
  %1867 = vmatprep.subr.bf16.mxu0 0
  %1868 = vmatpush2.bf16.msra.mxu0 0
  %1869 = vmatprep.mubr.bf16.mxu0 0
  %1870 = vmatmul.mubr.bf16.gmra.mxu0 %v138
  %v1871 = vpop.f32.mrf.mxu0
  %v1872 = vadd.f32 0.0, %v1871
  %v1873 = vpop.f32.mrf.mxu0
  %v1874 = vpop.f32.mrf.mxu0
  %v1875 = vadd.f32 0.0, %v1874
  %v1876 = vpop.f32.mrf.mxu0
  %1877 = vmatprep.mubr.bf16.mxu0 0
  %1878 = vmatmul.mubr.bf16.gmra.mxu0 %v141
  %v1879 = vpop.f32.mrf.mxu0
  %v1880 = vadd.f32 0.0, %v1879
  %v1881 = vpop.f32.mrf.mxu0
  %v1882 = vpop.f32.mrf.mxu0
  %v1883 = vadd.f32 0.0, %v1882
  %v1884 = vpop.f32.mrf.mxu0
  %1885 = vmatprep.mubr.bf16.mxu0 0
  %1886 = vmatmul.mubr.bf16.gmra.mxu0 %v144
  %v1887 = vpop.f32.mrf.mxu0
  %v1888 = vadd.f32 0.0, %v1887
  %v1889 = vpop.f32.mrf.mxu0
  %v1890 = vpop.f32.mrf.mxu0
  %v1891 = vadd.f32 0.0, %v1890
  %v1892 = vpop.f32.mrf.mxu0
  %1893 = vmatprep.mubr.bf16.mxu0 0
  %1894 = vmatmul.mubr.bf16.gmra.mxu0 %v147
  %v1895 = vpop.f32.mrf.mxu0
  %v1896 = vadd.f32 0.0, %v1895
  %v1897 = vpop.f32.mrf.mxu0
  %v1898 = vpop.f32.mrf.mxu0
  %v1899 = vadd.f32 0.0, %v1898
  %v1900 = vpop.f32.mrf.mxu0
  %1901 = vmatprep.mubr.bf16.mxu0 0
  %1902 = vmatmul.mubr.bf16.gmra.mxu0 %v150
  %v1903 = vpop.f32.mrf.mxu0
  %v1904 = vadd.f32 0.0, %v1903
  %v1905 = vpop.f32.mrf.mxu0
  %v1906 = vpop.f32.mrf.mxu0
  %v1907 = vadd.f32 0.0, %v1906
  %v1908 = vpop.f32.mrf.mxu0
  %1909 = vmatprep.mubr.bf16.mxu0 0
  %1910 = vmatmul.mubr.bf16.gmra.mxu0 %v153
  %v1911 = vpop.f32.mrf.mxu0
  %v1912 = vadd.f32 0.0, %v1911
  %v1913 = vpop.f32.mrf.mxu0
  %v1914 = vpop.f32.mrf.mxu0
  %v1915 = vadd.f32 0.0, %v1914
  %v1916 = vpop.f32.mrf.mxu0
  %1917 = vmatprep.mubr.bf16.mxu0 0
  %1918 = vmatmul.mubr.bf16.gmra.mxu0 %v156
  %v1919 = vpop.f32.mrf.mxu0
  %v1920 = vadd.f32 0.0, %v1919
  %v1921 = vpop.f32.mrf.mxu0
  %v1922 = vpop.f32.mrf.mxu0
  %v1923 = vadd.f32 0.0, %v1922
  %v1924 = vpop.f32.mrf.mxu0
  %1925 = vmatprep.mubr.bf16.mxu0 0
  %1926 = vmatmul.mubr.bf16.gmra.mxu0 %v159
  %v1927 = vpop.f32.mrf.mxu0
  %v1928 = vadd.f32 0.0, %v1927
  %v1929 = vpop.f32.mrf.mxu0
  %v1930 = vpop.f32.mrf.mxu0
  %v1931 = vadd.f32 0.0, %v1930
  %v1932 = vpop.f32.mrf.mxu0
  %1933 = vmatprep.mubr.bf16.mxu0 0
  %1934 = vmatmul.mubr.bf16.gmra.mxu0 %v162
  %v1935 = vpop.f32.mrf.mxu0
  %v1936 = vadd.f32 0.0, %v1935
  %v1937 = vpop.f32.mrf.mxu0
  %v1938 = vpop.f32.mrf.mxu0
  %v1939 = vadd.f32 0.0, %v1938
  %v1940 = vpop.f32.mrf.mxu0
  %1941 = vmatprep.mubr.bf16.mxu0 0
  %1942 = vmatmul.mubr.bf16.gmra.mxu0 %v165
  %v1943 = vpop.f32.mrf.mxu0
  %v1944 = vadd.f32 0.0, %v1943
  %v1945 = vpop.f32.mrf.mxu0
  %v1946 = vpop.f32.mrf.mxu0
  %v1947 = vadd.f32 0.0, %v1946
  %v1948 = vpop.f32.mrf.mxu0
  %1949 = vmatprep.mubr.bf16.mxu0 0
  %1950 = vmatmul.mubr.bf16.gmra.mxu0 %v168
  %v1951 = vpop.f32.mrf.mxu0
  %v1952 = vadd.f32 0.0, %v1951
  %v1953 = vpop.f32.mrf.mxu0
  %v1954 = vpop.f32.mrf.mxu0
  %v1955 = vadd.f32 0.0, %v1954
  %v1956 = vpop.f32.mrf.mxu0
  %1957 = vmatprep.mubr.bf16.mxu0 0
  %1958 = vmatmul.mubr.bf16.gmra.mxu0 %v171
  %v1959 = vpop.f32.mrf.mxu0
  %v1960 = vadd.f32 0.0, %v1959
  %v1961 = vpop.f32.mrf.mxu0
  %v1962 = vpop.f32.mrf.mxu0
  %v1963 = vadd.f32 0.0, %v1962
  %v1964 = vpop.f32.mrf.mxu0
  %1965 = vdwg.mxu0
  %v1966 = vpack.c.bf16 %v1875, %v1872
  %v1967 = vpack.c.bf16 %v1883, %v1880
  %v1968 = vpack.c.bf16 %v1891, %v1888
  %v1969 = vpack.c.bf16 %v1899, %v1896
  %v1970 = vpack.c.bf16 %v1907, %v1904
  %v1971 = vpack.c.bf16 %v1915, %v1912
  %v1972 = vpack.c.bf16 %v1923, %v1920
  %v1973 = vpack.c.bf16 %v1931, %v1928
  %v1974 = vpack.c.bf16 %v1939, %v1936
  %v1975 = vpack.c.bf16 %v1947, %v1944
  %v1976 = vpack.c.bf16 %v1955, %v1952
  %v1977 = vpack.c.bf16 %v1963, %v1960
  %s1978 = scalar_lea.vmem %s2, 768
  %v1979 = vld [vmem:[%s1978] sm:$0xff]
  %v1980 = vld [vmem:[%s1978 + $0x8] sm:$0xff]
  %v1981 = vld [vmem:[%s1978 + $0x10] sm:$0xff]
  %v1982 = vld [vmem:[%s1978 + $0x18] sm:$0xff]
  %v1983 = vld [vmem:[%s1978 + $0x20] sm:$0xff]
  %v1984 = vld [vmem:[%s1978 + $0x28] sm:$0xff]
  %v1985 = vld [vmem:[%s1978 + $0x30] sm:$0xff]
  %v1986 = vld [vmem:[%s1978 + $0x38] sm:$0xff]
  %v1987 = vld [vmem:[%s1978 + $0x40] sm:$0xff]
  %v1988 = vld [vmem:[%s1978 + $0x48] sm:$0xff]
  %v1989 = vld [vmem:[%s1978 + $0x50] sm:$0xff]
  %v1990 = vld [vmem:[%s1978 + $0x58] sm:$0xff]
  %v1991 = vld [vmem:[%s1978 + $0x60] sm:$0xff]
  %v1992 = vld [vmem:[%s1978 + $0x68] sm:$0xff]
  %v1993 = vld [vmem:[%s1978 + $0x70] sm:$0xff]
  %v1994 = vld [vmem:[%s1978 + $0x78] sm:$0xff]
  %v1995 = vld [vmem:[%s1978 + $0x80] sm:$0xff]
  %v1996 = vld [vmem:[%s1978 + $0x88] sm:$0xff]
  %v1997 = vld [vmem:[%s1978 + $0x90] sm:$0xff]
  %v1998 = vld [vmem:[%s1978 + $0x98] sm:$0xff]
  %v1999 = vld [vmem:[%s1978 + $0xa0] sm:$0xff]
  %v2000 = vld [vmem:[%s1978 + $0xa8] sm:$0xff]
  %v2001 = vld [vmem:[%s1978 + $0xb0] sm:$0xff]
  %v2002 = vld [vmem:[%s1978 + $0xb8] sm:$0xff]
  %v2003 = vld [vmem:[%s1978 + $0xc0] sm:$0xff]
  %v2004 = vld [vmem:[%s1978 + $0xc8] sm:$0xff]
  %v2005 = vld [vmem:[%s1978 + $0xd0] sm:$0xff]
  %v2006 = vld [vmem:[%s1978 + $0xd8] sm:$0xff]
  %v2007 = vld [vmem:[%s1978 + $0xe0] sm:$0xff]
  %v2008 = vld [vmem:[%s1978 + $0xe8] sm:$0xff]
  %v2009 = vld [vmem:[%s1978 + $0xf0] sm:$0xff]
  %v2010 = vld [vmem:[%s1978 + $0xf8] sm:$0xff]
  %v2043 = vunpack.c.l.b16 %v1979
  %v2044 = vunpack.c.h.b16 %v1979
  %v2045 = vunpack.c.l.b16 %v1980
  %v2046 = vunpack.c.h.b16 %v1980
  %v2047 = vunpack.c.l.b16 %v1981
  %v2048 = vunpack.c.h.b16 %v1981
  %v2049 = vunpack.c.l.b16 %v1982
  %v2050 = vunpack.c.h.b16 %v1982
  %v2051 = vunpack.c.l.b16 %v1983
  %v2052 = vunpack.c.h.b16 %v1983
  %v2053 = vunpack.c.l.b16 %v1984
  %v2054 = vunpack.c.h.b16 %v1984
  %v2055 = vunpack.c.l.b16 %v1985
  %v2056 = vunpack.c.h.b16 %v1985
  %v2057 = vunpack.c.l.b16 %v1986
  %v2058 = vunpack.c.h.b16 %v1986
  %v2059 = vunpack.c.l.b16 %v1987
  %v2060 = vunpack.c.h.b16 %v1987
  %v2061 = vunpack.c.l.b16 %v1988
  %v2062 = vunpack.c.h.b16 %v1988
  %v2063 = vunpack.c.l.b16 %v1989
  %v2064 = vunpack.c.h.b16 %v1989
  %v2065 = vunpack.c.l.b16 %v1990
  %v2066 = vunpack.c.h.b16 %v1990
  %v2067 = vunpack.c.l.b16 %v1991
  %v2068 = vunpack.c.h.b16 %v1991
  %v2069 = vunpack.c.l.b16 %v1992
  %v2070 = vunpack.c.h.b16 %v1992
  %v2071 = vunpack.c.l.b16 %v1993
  %v2072 = vunpack.c.h.b16 %v1993
  %v2073 = vunpack.c.l.b16 %v1994
  %v2074 = vunpack.c.h.b16 %v1994
  %v2075 = vunpack.c.l.b16 %v1995
  %v2076 = vunpack.c.h.b16 %v1995
  %v2077 = vunpack.c.l.b16 %v1996
  %v2078 = vunpack.c.h.b16 %v1996
  %v2079 = vunpack.c.l.b16 %v1997
  %v2080 = vunpack.c.h.b16 %v1997
  %v2081 = vunpack.c.l.b16 %v1998
  %v2082 = vunpack.c.h.b16 %v1998
  %v2083 = vunpack.c.l.b16 %v1999
  %v2084 = vunpack.c.h.b16 %v1999
  %v2085 = vunpack.c.l.b16 %v2000
  %v2086 = vunpack.c.h.b16 %v2000
  %v2087 = vunpack.c.l.b16 %v2001
  %v2088 = vunpack.c.h.b16 %v2001
  %v2089 = vunpack.c.l.b16 %v2002
  %v2090 = vunpack.c.h.b16 %v2002
  %v2091 = vunpack.c.l.b16 %v2003
  %v2092 = vunpack.c.h.b16 %v2003
  %v2093 = vunpack.c.l.b16 %v2004
  %v2094 = vunpack.c.h.b16 %v2004
  %v2095 = vunpack.c.l.b16 %v2005
  %v2096 = vunpack.c.h.b16 %v2005
  %v2097 = vunpack.c.l.b16 %v2006
  %v2098 = vunpack.c.h.b16 %v2006
  %v2099 = vunpack.c.l.b16 %v2007
  %v2100 = vunpack.c.h.b16 %v2007
  %v2101 = vunpack.c.l.b16 %v2008
  %v2102 = vunpack.c.h.b16 %v2008
  %v2103 = vunpack.c.l.b16 %v2009
  %v2104 = vunpack.c.h.b16 %v2009
  %v2105 = vunpack.c.l.b16 %v2010
  %v2106 = vunpack.c.h.b16 %v2010
  %v2107 = vpack.c.b16 %v2045, %v2043
  %v2108 = vpack.c.b16 %v2046, %v2044
  %v2109 = vpack.c.b16 %v2049, %v2047
  %v2110 = vpack.c.b16 %v2050, %v2048
  %v2111 = vpack.c.b16 %v2053, %v2051
  %v2112 = vpack.c.b16 %v2054, %v2052
  %v2113 = vpack.c.b16 %v2057, %v2055
  %v2114 = vpack.c.b16 %v2058, %v2056
  %v2115 = vpack.c.b16 %v2061, %v2059
  %v2116 = vpack.c.b16 %v2062, %v2060
  %v2117 = vpack.c.b16 %v2065, %v2063
  %v2118 = vpack.c.b16 %v2066, %v2064
  %v2119 = vpack.c.b16 %v2069, %v2067
  %v2120 = vpack.c.b16 %v2070, %v2068
  %v2121 = vpack.c.b16 %v2073, %v2071
  %v2122 = vpack.c.b16 %v2074, %v2072
  %v2123 = vpack.c.b16 %v2077, %v2075
  %v2124 = vpack.c.b16 %v2078, %v2076
  %v2125 = vpack.c.b16 %v2081, %v2079
  %v2126 = vpack.c.b16 %v2082, %v2080
  %v2127 = vpack.c.b16 %v2085, %v2083
  %v2128 = vpack.c.b16 %v2086, %v2084
  %v2129 = vpack.c.b16 %v2089, %v2087
  %v2130 = vpack.c.b16 %v2090, %v2088
  %v2131 = vpack.c.b16 %v2093, %v2091
  %v2132 = vpack.c.b16 %v2094, %v2092
  %v2133 = vpack.c.b16 %v2097, %v2095
  %v2134 = vpack.c.b16 %v2098, %v2096
  %v2135 = vpack.c.b16 %v2101, %v2099
  %v2136 = vpack.c.b16 %v2102, %v2100
  %v2137 = vpack.c.b16 %v2105, %v2103
  %v2138 = vpack.c.b16 %v2106, %v2104
  %v2156 = vsel %vm681, %v2108, 0
  %v2159 = vsel %vm681, %v2110, 0
  %v2162 = vsel %vm681, %v2112, 0
  %v2165 = vsel %vm681, %v2114, 0
  %v2168 = vsel %vm681, %v2116, 0
  %v2171 = vsel %vm681, %v2118, 0
  %v2174 = vsel %vm681, %v2120, 0
  %v2177 = vsel %vm681, %v2122, 0
  %v2180 = vsel %vm681, %v2124, 0
  %v2183 = vsel %vm681, %v2126, 0
  %v2186 = vsel %vm681, %v2128, 0
  %v2189 = vsel %vm681, %v2130, 0
  %v2192 = vsel %vm681, %v2132, 0
  %v2195 = vsel %vm681, %v2134, 0
  %v2198 = vsel %vm681, %v2136, 0
  %v2201 = vsel %vm681, %v2138, 0
  %2203 = vmatprep.subr.bf16.mxu0 0
  %2204 = vmatpush1.bf16.msra.mxu0 %v1973
  %2205 = vmatprep.subr.bf16.mxu0 0
  %2206 = vmatpush1.bf16.msra.mxu0 %v1972
  %2207 = vmatprep.subr.bf16.mxu0 0
  %2208 = vmatpush1.bf16.msra.mxu0 %v1971
  %2209 = vmatprep.subr.bf16.mxu0 0
  %2210 = vmatpush1.bf16.msra.mxu0 %v1970
  %2211 = vmatprep.subr.bf16.mxu0 0
  %2212 = vmatpush1.bf16.msra.mxu0 %v1969
  %2213 = vmatprep.subr.bf16.mxu0 0
  %2214 = vmatpush1.bf16.msra.mxu0 %v1968
  %2215 = vmatprep.subr.bf16.mxu0 0
  %2216 = vmatpush1.bf16.msra.mxu0 %v1967
  %2217 = vmatprep.subr.bf16.mxu0 0
  %2218 = vmatpush1.bf16.msra.mxu0 %v1966
  %2219 = vmatprep.subr.bf16.mxu0 0
  %2220 = vmatpush2.bf16.msra.mxu0 0
  %2221 = vmatprep.subr.bf16.mxu0 0
  %2222 = vmatpush2.bf16.msra.mxu0 0
  %2223 = vmatprep.subr.bf16.mxu0 0
  %2224 = vmatpush2.bf16.msra.mxu0 0
  %2225 = vmatprep.subr.bf16.mxu0 0
  %2226 = vmatpush2.bf16.msra.mxu0 0
  %2227 = vmatprep.subr.bf16.mxu0 0
  %2228 = vmatpush2.bf16.msra.mxu0 %v1977
  %2229 = vmatprep.subr.bf16.mxu0 0
  %2230 = vmatpush2.bf16.msra.mxu0 %v1976
  %2231 = vmatprep.subr.bf16.mxu0 0
  %2232 = vmatpush2.bf16.msra.mxu0 %v1975
  %2233 = vmatprep.subr.bf16.mxu0 0
  %2234 = vmatpush2.bf16.msra.mxu0 %v1974
  %2235 = vmatprep.mubr.bf16.mxu0 %v2156
  %2236 = vmatmul.mubr.bf16.gmra.mxu0 %v2107
  %v2237 = vpop.f32.mrf.mxu0
  %v2238 = vadd.f32 0.0, %v2237
  %v2239 = vpop.f32.mrf.mxu0
  %v2240 = vpop.f32.mrf.mxu0
  %v2241 = vadd.f32 0.0, %v2240
  %v2242 = vpop.f32.mrf.mxu0
  %2243 = vmatprep.mubr.bf16.mxu0 %v2159
  %2244 = vmatmul.mubr.bf16.gmra.mxu0 %v2109
  %v2245 = vpop.f32.mrf.mxu0
  %v2246 = vadd.f32 0.0, %v2245
  %v2247 = vpop.f32.mrf.mxu0
  %v2248 = vpop.f32.mrf.mxu0
  %v2249 = vadd.f32 0.0, %v2248
  %v2250 = vpop.f32.mrf.mxu0
  %2251 = vmatprep.mubr.bf16.mxu0 %v2162
  %2252 = vmatmul.mubr.bf16.gmra.mxu0 %v2111
  %v2253 = vpop.f32.mrf.mxu0
  %v2254 = vadd.f32 0.0, %v2253
  %v2255 = vpop.f32.mrf.mxu0
  %v2256 = vpop.f32.mrf.mxu0
  %v2257 = vadd.f32 0.0, %v2256
  %v2258 = vpop.f32.mrf.mxu0
  %2259 = vmatprep.mubr.bf16.mxu0 %v2165
  %2260 = vmatmul.mubr.bf16.gmra.mxu0 %v2113
  %v2261 = vpop.f32.mrf.mxu0
  %v2262 = vadd.f32 0.0, %v2261
  %v2263 = vpop.f32.mrf.mxu0
  %v2264 = vpop.f32.mrf.mxu0
  %v2265 = vadd.f32 0.0, %v2264
  %v2266 = vpop.f32.mrf.mxu0
  %2267 = vmatprep.mubr.bf16.mxu0 %v2168
  %2268 = vmatmul.mubr.bf16.gmra.mxu0 %v2115
  %v2269 = vpop.f32.mrf.mxu0
  %v2270 = vadd.f32 0.0, %v2269
  %v2271 = vpop.f32.mrf.mxu0
  %v2272 = vpop.f32.mrf.mxu0
  %v2273 = vadd.f32 0.0, %v2272
  %v2274 = vpop.f32.mrf.mxu0
  %2275 = vmatprep.mubr.bf16.mxu0 %v2171
  %2276 = vmatmul.mubr.bf16.gmra.mxu0 %v2117
  %v2277 = vpop.f32.mrf.mxu0
  %v2278 = vadd.f32 0.0, %v2277
  %v2279 = vpop.f32.mrf.mxu0
  %v2280 = vpop.f32.mrf.mxu0
  %v2281 = vadd.f32 0.0, %v2280
  %v2282 = vpop.f32.mrf.mxu0
  %2283 = vmatprep.mubr.bf16.mxu0 %v2174
  %2284 = vmatmul.mubr.bf16.gmra.mxu0 %v2119
  %v2285 = vpop.f32.mrf.mxu0
  %v2286 = vadd.f32 0.0, %v2285
  %v2287 = vpop.f32.mrf.mxu0
  %v2288 = vpop.f32.mrf.mxu0
  %v2289 = vadd.f32 0.0, %v2288
  %v2290 = vpop.f32.mrf.mxu0
  %2291 = vmatprep.mubr.bf16.mxu0 %v2177
  %2292 = vmatmul.mubr.bf16.gmra.mxu0 %v2121
  %v2293 = vpop.f32.mrf.mxu0
  %v2294 = vadd.f32 0.0, %v2293
  %v2295 = vpop.f32.mrf.mxu0
  %v2296 = vpop.f32.mrf.mxu0
  %v2297 = vadd.f32 0.0, %v2296
  %v2298 = vpop.f32.mrf.mxu0
  %2299 = vmatprep.mubr.bf16.mxu0 %v2180
  %2300 = vmatmul.mubr.bf16.gmra.mxu0 %v2123
  %v2301 = vpop.f32.mrf.mxu0
  %v2302 = vadd.f32 0.0, %v2301
  %v2303 = vpop.f32.mrf.mxu0
  %v2304 = vpop.f32.mrf.mxu0
  %v2305 = vadd.f32 0.0, %v2304
  %v2306 = vpop.f32.mrf.mxu0
  %2307 = vmatprep.mubr.bf16.mxu0 %v2183
  %2308 = vmatmul.mubr.bf16.gmra.mxu0 %v2125
  %v2309 = vpop.f32.mrf.mxu0
  %v2310 = vadd.f32 0.0, %v2309
  %v2311 = vpop.f32.mrf.mxu0
  %v2312 = vpop.f32.mrf.mxu0
  %v2313 = vadd.f32 0.0, %v2312
  %v2314 = vpop.f32.mrf.mxu0
  %2315 = vmatprep.mubr.bf16.mxu0 %v2186
  %2316 = vmatmul.mubr.bf16.gmra.mxu0 %v2127
  %v2317 = vpop.f32.mrf.mxu0
  %v2318 = vadd.f32 0.0, %v2317
  %v2319 = vpop.f32.mrf.mxu0
  %v2320 = vpop.f32.mrf.mxu0
  %v2321 = vadd.f32 0.0, %v2320
  %v2322 = vpop.f32.mrf.mxu0
  %2323 = vmatprep.mubr.bf16.mxu0 %v2189
  %2324 = vmatmul.mubr.bf16.gmra.mxu0 %v2129
  %v2325 = vpop.f32.mrf.mxu0
  %v2326 = vadd.f32 0.0, %v2325
  %v2327 = vpop.f32.mrf.mxu0
  %v2328 = vpop.f32.mrf.mxu0
  %v2329 = vadd.f32 0.0, %v2328
  %v2330 = vpop.f32.mrf.mxu0
  %2331 = vmatprep.mubr.bf16.mxu0 %v2192
  %2332 = vmatmul.mubr.bf16.gmra.mxu0 %v2131
  %v2333 = vpop.f32.mrf.mxu0
  %v2334 = vadd.f32 0.0, %v2333
  %v2335 = vpop.f32.mrf.mxu0
  %v2336 = vpop.f32.mrf.mxu0
  %v2337 = vadd.f32 0.0, %v2336
  %v2338 = vpop.f32.mrf.mxu0
  %2339 = vmatprep.mubr.bf16.mxu0 %v2195
  %2340 = vmatmul.mubr.bf16.gmra.mxu0 %v2133
  %v2341 = vpop.f32.mrf.mxu0
  %v2342 = vadd.f32 0.0, %v2341
  %v2343 = vpop.f32.mrf.mxu0
  %v2344 = vpop.f32.mrf.mxu0
  %v2345 = vadd.f32 0.0, %v2344
  %v2346 = vpop.f32.mrf.mxu0
  %2347 = vmatprep.mubr.bf16.mxu0 %v2198
  %2348 = vmatmul.mubr.bf16.gmra.mxu0 %v2135
  %v2349 = vpop.f32.mrf.mxu0
  %v2350 = vadd.f32 0.0, %v2349
  %v2351 = vpop.f32.mrf.mxu0
  %v2352 = vpop.f32.mrf.mxu0
  %v2353 = vadd.f32 0.0, %v2352
  %v2354 = vpop.f32.mrf.mxu0
  %2355 = vmatprep.mubr.bf16.mxu0 %v2201
  %2356 = vmatmul.mubr.bf16.gmra.mxu0 %v2137
  %v2357 = vpop.f32.mrf.mxu0
  %v2358 = vadd.f32 0.0, %v2357
  %v2359 = vpop.f32.mrf.mxu0
  %v2360 = vpop.f32.mrf.mxu0
  %v2361 = vadd.f32 0.0, %v2360
  %v2362 = vpop.f32.mrf.mxu0
  %2363 = vdwg.mxu0
  %v2364 = vadd.f32 %v1788, %v2238
  %v2365 = vadd.f32 %v1789, %v2241
  %v2366 = vadd.f32 %v1790, %v2246
  %v2367 = vadd.f32 %v1791, %v2249
  %v2368 = vadd.f32 %v1792, %v2254
  %v2369 = vadd.f32 %v1793, %v2257
  %v2370 = vadd.f32 %v1794, %v2262
  %v2371 = vadd.f32 %v1795, %v2265
  %v2372 = vadd.f32 %v1796, %v2270
  %v2373 = vadd.f32 %v1797, %v2273
  %v2374 = vadd.f32 %v1798, %v2278
  %v2375 = vadd.f32 %v1799, %v2281
  %v2376 = vadd.f32 %v1800, %v2286
  %v2377 = vadd.f32 %v1801, %v2289
  %v2378 = vadd.f32 %v1802, %v2294
  %v2379 = vadd.f32 %v1803, %v2297
  %v2380 = vadd.f32 %v1804, %v2302
  %v2381 = vadd.f32 %v1805, %v2305
  %v2382 = vadd.f32 %v1806, %v2310
  %v2383 = vadd.f32 %v1807, %v2313
  %v2384 = vadd.f32 %v1808, %v2318
  %v2385 = vadd.f32 %v1809, %v2321
  %v2386 = vadd.f32 %v1810, %v2326
  %v2387 = vadd.f32 %v1811, %v2329
  %v2388 = vadd.f32 %v1812, %v2334
  %v2389 = vadd.f32 %v1813, %v2337
  %v2390 = vadd.f32 %v1814, %v2342
  %v2391 = vadd.f32 %v1815, %v2345
  %v2392 = vadd.f32 %v1816, %v2350
  %v2393 = vadd.f32 %v1817, %v2353
  %v2394 = vadd.f32 %v1818, %v2358
  %v2395 = vadd.f32 %v1819, %v2361
  %v2396 = vld [vmem:[%s3] sm:$0xff]
  %v2397 = vld [vmem:[%s3 + $0x8] sm:$0xff]
  %v2398 = vld [vmem:[%s3 + $0x10] sm:$0xff]
  %v2399 = vld [vmem:[%s3 + $0x18] sm:$0xff]
  %v2400 = vld [vmem:[%s3 + $0x20] sm:$0xff]
  %v2401 = vld [vmem:[%s3 + $0x28] sm:$0xff]
  %v2402 = vld [vmem:[%s3 + $0x30] sm:$0xff]
  %v2403 = vld [vmem:[%s3 + $0x38] sm:$0xff]
  %v2404 = vld [vmem:[%s3 + $0x40] sm:$0xff]
  %v2405 = vld [vmem:[%s3 + $0x48] sm:$0xff]
  %v2406 = vld [vmem:[%s3 + $0x50] sm:$0xff]
  %v2407 = vld [vmem:[%s3 + $0x58] sm:$0xff]
  %v2408 = vld [vmem:[%s3 + $0x60] sm:$0xff]
  %v2409 = vld [vmem:[%s3 + $0x68] sm:$0xff]
  %v2410 = vld [vmem:[%s3 + $0x70] sm:$0xff]
  %v2411 = vld [vmem:[%s3 + $0x78] sm:$0xff]
  %v2412 = vld [vmem:[%s3 + $0x80] sm:$0xff]
  %v2413 = vld [vmem:[%s3 + $0x88] sm:$0xff]
  %v2414 = vld [vmem:[%s3 + $0x90] sm:$0xff]
  %v2415 = vld [vmem:[%s3 + $0x98] sm:$0xff]
  %v2416 = vld [vmem:[%s3 + $0xa0] sm:$0xff]
  %v2417 = vld [vmem:[%s3 + $0xa8] sm:$0xff]
  %v2418 = vld [vmem:[%s3 + $0xb0] sm:$0xff]
  %v2419 = vld [vmem:[%s3 + $0xb8] sm:$0xff]
  %v2420 = vld [vmem:[%s3 + $0xc0] sm:$0xff]
  %v2421 = vld [vmem:[%s3 + $0xc8] sm:$0xff]
  %v2422 = vld [vmem:[%s3 + $0xd0] sm:$0xff]
  %v2423 = vld [vmem:[%s3 + $0xd8] sm:$0xff]
  %v2424 = vld [vmem:[%s3 + $0xe0] sm:$0xff]
  %v2425 = vld [vmem:[%s3 + $0xe8] sm:$0xff]
  %v2426 = vld [vmem:[%s3 + $0xf0] sm:$0xff]
  %v2427 = vld [vmem:[%s3 + $0xf8] sm:$0xff]
  %2429 = vset.pattern.permute.xlu0 0
  %2430 = vperm.xlu0 %2429, %v2396
  %v2431 = vpop.permute.xlu0 %2430
  %2434 = vset.pattern.permute.xlu0 0
  %2435 = vperm.xlu0 %2434, %v2397
  %v2436 = vpop.permute.xlu0 %2435
  %2439 = vset.pattern.permute.xlu0 0
  %2440 = vperm.xlu0 %2439, %v2398
  %v2441 = vpop.permute.xlu0 %2440
  %2444 = vset.pattern.permute.xlu0 0
  %2445 = vperm.xlu0 %2444, %v2399
  %v2446 = vpop.permute.xlu0 %2445
  %2449 = vset.pattern.permute.xlu0 0
  %2450 = vperm.xlu0 %2449, %v2400
  %v2451 = vpop.permute.xlu0 %2450
  %2454 = vset.pattern.permute.xlu0 0
  %2455 = vperm.xlu0 %2454, %v2401
  %v2456 = vpop.permute.xlu0 %2455
  %2459 = vset.pattern.permute.xlu0 0
  %2460 = vperm.xlu0 %2459, %v2402
  %v2461 = vpop.permute.xlu0 %2460
  %2464 = vset.pattern.permute.xlu0 0
  %2465 = vperm.xlu0 %2464, %v2403
  %v2466 = vpop.permute.xlu0 %2465
  %2469 = vset.pattern.permute.xlu0 0
  %2470 = vperm.xlu0 %2469, %v2404
  %v2471 = vpop.permute.xlu0 %2470
  %2474 = vset.pattern.permute.xlu0 0
  %2475 = vperm.xlu0 %2474, %v2405
  %v2476 = vpop.permute.xlu0 %2475
  %2479 = vset.pattern.permute.xlu0 0
  %2480 = vperm.xlu0 %2479, %v2406
  %v2481 = vpop.permute.xlu0 %2480
  %2484 = vset.pattern.permute.xlu0 0
  %2485 = vperm.xlu0 %2484, %v2407
  %v2486 = vpop.permute.xlu0 %2485
  %2489 = vset.pattern.permute.xlu0 0
  %2490 = vperm.xlu0 %2489, %v2408
  %v2491 = vpop.permute.xlu0 %2490
  %2494 = vset.pattern.permute.xlu0 0
  %2495 = vperm.xlu0 %2494, %v2409
  %v2496 = vpop.permute.xlu0 %2495
  %2499 = vset.pattern.permute.xlu0 0
  %2500 = vperm.xlu0 %2499, %v2410
  %v2501 = vpop.permute.xlu0 %2500
  %2504 = vset.pattern.permute.xlu0 0
  %2505 = vperm.xlu0 %2504, %v2411
  %v2506 = vpop.permute.xlu0 %2505
  %2509 = vset.pattern.permute.xlu0 0
  %2510 = vperm.xlu0 %2509, %v2412
  %v2511 = vpop.permute.xlu0 %2510
  %2514 = vset.pattern.permute.xlu0 0
  %2515 = vperm.xlu0 %2514, %v2413
  %v2516 = vpop.permute.xlu0 %2515
  %2519 = vset.pattern.permute.xlu0 0
  %2520 = vperm.xlu0 %2519, %v2414
  %v2521 = vpop.permute.xlu0 %2520
  %2524 = vset.pattern.permute.xlu0 0
  %2525 = vperm.xlu0 %2524, %v2415
  %v2526 = vpop.permute.xlu0 %2525
  %2529 = vset.pattern.permute.xlu0 0
  %2530 = vperm.xlu0 %2529, %v2416
  %v2531 = vpop.permute.xlu0 %2530
  %2534 = vset.pattern.permute.xlu0 0
  %2535 = vperm.xlu0 %2534, %v2417
  %v2536 = vpop.permute.xlu0 %2535
  %2539 = vset.pattern.permute.xlu0 0
  %2540 = vperm.xlu0 %2539, %v2418
  %v2541 = vpop.permute.xlu0 %2540
  %2544 = vset.pattern.permute.xlu0 0
  %2545 = vperm.xlu0 %2544, %v2419
  %v2546 = vpop.permute.xlu0 %2545
  %2549 = vset.pattern.permute.xlu0 0
  %2550 = vperm.xlu0 %2549, %v2420
  %v2551 = vpop.permute.xlu0 %2550
  %2554 = vset.pattern.permute.xlu0 0
  %2555 = vperm.xlu0 %2554, %v2421
  %v2556 = vpop.permute.xlu0 %2555
  %2559 = vset.pattern.permute.xlu0 0
  %2560 = vperm.xlu0 %2559, %v2422
  %v2561 = vpop.permute.xlu0 %2560
  %2564 = vset.pattern.permute.xlu0 0
  %2565 = vperm.xlu0 %2564, %v2423
  %v2566 = vpop.permute.xlu0 %2565
  %2569 = vset.pattern.permute.xlu0 0
  %2570 = vperm.xlu0 %2569, %v2424
  %v2571 = vpop.permute.xlu0 %2570
  %2574 = vset.pattern.permute.xlu0 0
  %2575 = vperm.xlu0 %2574, %v2425
  %v2576 = vpop.permute.xlu0 %2575
  %2579 = vset.pattern.permute.xlu0 0
  %2580 = vperm.xlu0 %2579, %v2426
  %v2581 = vpop.permute.xlu0 %2580
  %2584 = vset.pattern.permute.xlu0 0
  %2585 = vperm.xlu0 %2584, %v2427
  %v2586 = vpop.permute.xlu0 %2585
  %v2588 = vadd.f32 %v2364, %v2431
  %v2589 = vadd.f32 %v2365, %v2436
  %v2590 = vadd.f32 %v2366, %v2441
  %v2591 = vadd.f32 %v2367, %v2446
  %v2592 = vadd.f32 %v2368, %v2451
  %v2593 = vadd.f32 %v2369, %v2456
  %v2594 = vadd.f32 %v2370, %v2461
  %v2595 = vadd.f32 %v2371, %v2466
  %v2596 = vadd.f32 %v2372, %v2471
  %v2597 = vadd.f32 %v2373, %v2476
  %v2598 = vadd.f32 %v2374, %v2481
  %v2599 = vadd.f32 %v2375, %v2486
  %v2600 = vadd.f32 %v2376, %v2491
  %v2601 = vadd.f32 %v2377, %v2496
  %v2602 = vadd.f32 %v2378, %v2501
  %v2603 = vadd.f32 %v2379, %v2506
  %v2604 = vadd.f32 %v2380, %v2511
  %v2605 = vadd.f32 %v2381, %v2516
  %v2606 = vadd.f32 %v2382, %v2521
  %v2607 = vadd.f32 %v2383, %v2526
  %v2608 = vadd.f32 %v2384, %v2531
  %v2609 = vadd.f32 %v2385, %v2536
  %v2610 = vadd.f32 %v2386, %v2541
  %v2611 = vadd.f32 %v2387, %v2546
  %v2612 = vadd.f32 %v2388, %v2551
  %v2613 = vadd.f32 %v2389, %v2556
  %v2614 = vadd.f32 %v2390, %v2561
  %v2615 = vadd.f32 %v2391, %v2566
  %v2616 = vadd.f32 %v2392, %v2571
  %v2617 = vadd.f32 %v2393, %v2576
  %v2618 = vadd.f32 %v2394, %v2581
  %v2619 = vadd.f32 %v2395, %v2586
  %vm2620 = vcmp.ge.f32.partialorder %v2588, 0.0
  %vm2621 = vcmp.ge.f32.partialorder %v2589, 0.0
  %vm2622 = vcmp.ge.f32.partialorder %v2590, 0.0
  %vm2623 = vcmp.ge.f32.partialorder %v2591, 0.0
  %vm2624 = vcmp.ge.f32.partialorder %v2592, 0.0
  %vm2625 = vcmp.ge.f32.partialorder %v2593, 0.0
  %vm2626 = vcmp.ge.f32.partialorder %v2594, 0.0
  %vm2627 = vcmp.ge.f32.partialorder %v2595, 0.0
  %vm2628 = vcmp.ge.f32.partialorder %v2596, 0.0
  %vm2629 = vcmp.ge.f32.partialorder %v2597, 0.0
  %vm2630 = vcmp.ge.f32.partialorder %v2598, 0.0
  %vm2631 = vcmp.ge.f32.partialorder %v2599, 0.0
  %vm2632 = vcmp.ge.f32.partialorder %v2600, 0.0
  %vm2633 = vcmp.ge.f32.partialorder %v2601, 0.0
  %vm2634 = vcmp.ge.f32.partialorder %v2602, 0.0
  %vm2635 = vcmp.ge.f32.partialorder %v2603, 0.0
  %vm2636 = vcmp.ge.f32.partialorder %v2604, 0.0
  %vm2637 = vcmp.ge.f32.partialorder %v2605, 0.0
  %vm2638 = vcmp.ge.f32.partialorder %v2606, 0.0
  %vm2639 = vcmp.ge.f32.partialorder %v2607, 0.0
  %vm2640 = vcmp.ge.f32.partialorder %v2608, 0.0
  %vm2641 = vcmp.ge.f32.partialorder %v2609, 0.0
  %vm2642 = vcmp.ge.f32.partialorder %v2610, 0.0
  %vm2643 = vcmp.ge.f32.partialorder %v2611, 0.0
  %vm2644 = vcmp.ge.f32.partialorder %v2612, 0.0
  %vm2645 = vcmp.ge.f32.partialorder %v2613, 0.0
  %vm2646 = vcmp.ge.f32.partialorder %v2614, 0.0
  %vm2647 = vcmp.ge.f32.partialorder %v2615, 0.0
  %vm2648 = vcmp.ge.f32.partialorder %v2616, 0.0
  %vm2649 = vcmp.ge.f32.partialorder %v2617, 0.0
  %vm2650 = vcmp.ge.f32.partialorder %v2618, 0.0
  %vm2651 = vcmp.ge.f32.partialorder %v2619, 0.0
  %v2652 = vmul.f32 %v2588, 0.01
  %v2653 = vmul.f32 %v2589, 0.01
  %v2654 = vmul.f32 %v2590, 0.01
  %v2655 = vmul.f32 %v2591, 0.01
  %v2656 = vmul.f32 %v2592, 0.01
  %v2657 = vmul.f32 %v2593, 0.01
  %v2658 = vmul.f32 %v2594, 0.01
  %v2659 = vmul.f32 %v2595, 0.01
  %v2660 = vmul.f32 %v2596, 0.01
  %v2661 = vmul.f32 %v2597, 0.01
  %v2662 = vmul.f32 %v2598, 0.01
  %v2663 = vmul.f32 %v2599, 0.01
  %v2664 = vmul.f32 %v2600, 0.01
  %v2665 = vmul.f32 %v2601, 0.01
  %v2666 = vmul.f32 %v2602, 0.01
  %v2667 = vmul.f32 %v2603, 0.01
  %v2668 = vmul.f32 %v2604, 0.01
  %v2669 = vmul.f32 %v2605, 0.01
  %v2670 = vmul.f32 %v2606, 0.01
  %v2671 = vmul.f32 %v2607, 0.01
  %v2672 = vmul.f32 %v2608, 0.01
  %v2673 = vmul.f32 %v2609, 0.01
  %v2674 = vmul.f32 %v2610, 0.01
  %v2675 = vmul.f32 %v2611, 0.01
  %v2676 = vmul.f32 %v2612, 0.01
  %v2677 = vmul.f32 %v2613, 0.01
  %v2678 = vmul.f32 %v2614, 0.01
  %v2679 = vmul.f32 %v2615, 0.01
  %v2680 = vmul.f32 %v2616, 0.01
  %v2681 = vmul.f32 %v2617, 0.01
  %v2682 = vmul.f32 %v2618, 0.01
  %v2683 = vmul.f32 %v2619, 0.01
  %v2684 = vsel %vm2620, %v2588, %v2652
  %v2685 = vsel %vm2621, %v2589, %v2653
  %v2686 = vsel %vm2622, %v2590, %v2654
  %v2687 = vsel %vm2623, %v2591, %v2655
  %v2688 = vsel %vm2624, %v2592, %v2656
  %v2689 = vsel %vm2625, %v2593, %v2657
  %v2690 = vsel %vm2626, %v2594, %v2658
  %v2691 = vsel %vm2627, %v2595, %v2659
  %v2692 = vsel %vm2628, %v2596, %v2660
  %v2693 = vsel %vm2629, %v2597, %v2661
  %v2694 = vsel %vm2630, %v2598, %v2662
  %v2695 = vsel %vm2631, %v2599, %v2663
  %v2696 = vsel %vm2632, %v2600, %v2664
  %v2697 = vsel %vm2633, %v2601, %v2665
  %v2698 = vsel %vm2634, %v2602, %v2666
  %v2699 = vsel %vm2635, %v2603, %v2667
  %v2700 = vsel %vm2636, %v2604, %v2668
  %v2701 = vsel %vm2637, %v2605, %v2669
  %v2702 = vsel %vm2638, %v2606, %v2670
  %v2703 = vsel %vm2639, %v2607, %v2671
  %v2704 = vsel %vm2640, %v2608, %v2672
  %v2705 = vsel %vm2641, %v2609, %v2673
  %v2706 = vsel %vm2642, %v2610, %v2674
  %v2707 = vsel %vm2643, %v2611, %v2675
  %v2708 = vsel %vm2644, %v2612, %v2676
  %v2709 = vsel %vm2645, %v2613, %v2677
  %v2710 = vsel %vm2646, %v2614, %v2678
  %v2711 = vsel %vm2647, %v2615, %v2679
  %v2712 = vsel %vm2648, %v2616, %v2680
  %v2713 = vsel %vm2649, %v2617, %v2681
  %v2714 = vsel %vm2650, %v2618, %v2682
  %v2715 = vsel %vm2651, %v2619, %v2683
  %v2716 = vpack.c.bf16 %v2685, %v2684
  %v2717 = vpack.c.bf16 %v2687, %v2686
  %v2718 = vpack.c.bf16 %v2689, %v2688
  %v2719 = vpack.c.bf16 %v2691, %v2690
  %v2720 = vpack.c.bf16 %v2693, %v2692
  %v2721 = vpack.c.bf16 %v2695, %v2694
  %v2722 = vpack.c.bf16 %v2697, %v2696
  %v2723 = vpack.c.bf16 %v2699, %v2698
  %v2724 = vpack.c.bf16 %v2701, %v2700
  %v2725 = vpack.c.bf16 %v2703, %v2702
  %v2726 = vpack.c.bf16 %v2705, %v2704
  %v2727 = vpack.c.bf16 %v2707, %v2706
  %v2728 = vpack.c.bf16 %v2709, %v2708
  %v2729 = vpack.c.bf16 %v2711, %v2710
  %v2730 = vpack.c.bf16 %v2713, %v2712
  %v2731 = vpack.c.bf16 %v2715, %v2714
  %v2732 = vld [vmem:[%s4] sm:$0xf]
  %v2733 = vld [vmem:[%s4 + $0x4] sm:$0xf]
  %v2736 = vunpack.c.l.b16 %v2732
  %v2737 = vunpack.c.l.b16 %v2733
  %v2738 = vpack.c.b16 %v2737, %v2736
  %vm2740 = vcmask 130048
  %v2742 = vsel %vm2740, %v2716, 0
  %v2745 = vsel %vm2740, %v2717, 0
  %v2748 = vsel %vm2740, %v2718, 0
  %v2751 = vsel %vm2740, %v2719, 0
  %v2754 = vsel %vm2740, %v2720, 0
  %v2757 = vsel %vm2740, %v2721, 0
  %v2760 = vsel %vm2740, %v2722, 0
  %v2763 = vsel %vm2740, %v2723, 0
  %v2766 = vsel %vm2740, %v2724, 0
  %v2769 = vsel %vm2740, %v2725, 0
  %v2772 = vsel %vm2740, %v2726, 0
  %v2775 = vsel %vm2740, %v2727, 0
  %v2778 = vsel %vm2740, %v2728, 0
  %v2781 = vsel %vm2740, %v2729, 0
  %v2784 = vsel %vm2740, %v2730, 0
  %v2787 = vsel %vm2740, %v2731, 0
  %2789 = vmatprep.subr.bf16.mxu0 0
  %2790 = vmatpush1.bf16.msra.mxu0 0
  %2791 = vmatprep.subr.bf16.mxu0 0
  %2792 = vmatpush1.bf16.msra.mxu0 0
  %2793 = vmatprep.subr.bf16.mxu0 0
  %2794 = vmatpush1.bf16.msra.mxu0 0
  %2795 = vmatprep.subr.bf16.mxu0 0
  %2796 = vmatpush1.bf16.msra.mxu0 0
  %2797 = vmatprep.subr.bf16.mxu0 0
  %2798 = vmatpush1.bf16.msra.mxu0 0
  %2799 = vmatprep.subr.bf16.mxu0 0
  %2800 = vmatpush1.bf16.msra.mxu0 0
  %2801 = vmatprep.subr.bf16.mxu0 0
  %2802 = vmatpush1.bf16.msra.mxu0 0
  %2803 = vmatprep.subr.bf16.mxu0 0
  %2804 = vmatpush1.bf16.msra.mxu0 %v2738
  %2805 = vmatprep.subr.bf16.mxu0 0
  %2806 = vmatpush2.bf16.msra.mxu0 0
  %2807 = vmatprep.subr.bf16.mxu0 0
  %2808 = vmatpush2.bf16.msra.mxu0 0
  %2809 = vmatprep.subr.bf16.mxu0 0
  %2810 = vmatpush2.bf16.msra.mxu0 0
  %2811 = vmatprep.subr.bf16.mxu0 0
  %2812 = vmatpush2.bf16.msra.mxu0 0
  %2813 = vmatprep.subr.bf16.mxu0 0
  %2814 = vmatpush2.bf16.msra.mxu0 0
  %2815 = vmatprep.subr.bf16.mxu0 0
  %2816 = vmatpush2.bf16.msra.mxu0 0
  %2817 = vmatprep.subr.bf16.mxu0 0
  %2818 = vmatpush2.bf16.msra.mxu0 0
  %2819 = vmatprep.subr.bf16.mxu0 0
  %2820 = vmatpush2.bf16.msra.mxu0 0
  %2821 = vmatprep.mubr.bf16.mxu0 0
  %2822 = vmatmul.mubr.bf16.gmra.mxu0 %v2742
  %v2823 = vpop.f32.mrf.mxu0
  %v2824 = vadd.f32 0.0, %v2823
  %v2825 = vpop.f32.mrf.mxu0
  %v2826 = vpop.f32.mrf.mxu0
  %v2827 = vadd.f32 0.0, %v2826
  %v2828 = vpop.f32.mrf.mxu0
  %2829 = vmatprep.mubr.bf16.mxu0 0
  %2830 = vmatmul.mubr.bf16.gmra.mxu0 %v2745
  %v2831 = vpop.f32.mrf.mxu0
  %v2832 = vadd.f32 0.0, %v2831
  %v2833 = vpop.f32.mrf.mxu0
  %v2834 = vpop.f32.mrf.mxu0
  %v2835 = vadd.f32 0.0, %v2834
  %v2836 = vpop.f32.mrf.mxu0
  %2837 = vmatprep.mubr.bf16.mxu0 0
  %2838 = vmatmul.mubr.bf16.gmra.mxu0 %v2748
  %v2839 = vpop.f32.mrf.mxu0
  %v2840 = vadd.f32 0.0, %v2839
  %v2841 = vpop.f32.mrf.mxu0
  %v2842 = vpop.f32.mrf.mxu0
  %v2843 = vadd.f32 0.0, %v2842
  %v2844 = vpop.f32.mrf.mxu0
  %2845 = vmatprep.mubr.bf16.mxu0 0
  %2846 = vmatmul.mubr.bf16.gmra.mxu0 %v2751
  %v2847 = vpop.f32.mrf.mxu0
  %v2848 = vadd.f32 0.0, %v2847
  %v2849 = vpop.f32.mrf.mxu0
  %v2850 = vpop.f32.mrf.mxu0
  %v2851 = vadd.f32 0.0, %v2850
  %v2852 = vpop.f32.mrf.mxu0
  %2853 = vmatprep.mubr.bf16.mxu0 0
  %2854 = vmatmul.mubr.bf16.gmra.mxu0 %v2754
  %v2855 = vpop.f32.mrf.mxu0
  %v2856 = vadd.f32 0.0, %v2855
  %v2857 = vpop.f32.mrf.mxu0
  %v2858 = vpop.f32.mrf.mxu0
  %v2859 = vadd.f32 0.0, %v2858
  %v2860 = vpop.f32.mrf.mxu0
  %2861 = vmatprep.mubr.bf16.mxu0 0
  %2862 = vmatmul.mubr.bf16.gmra.mxu0 %v2757
  %v2863 = vpop.f32.mrf.mxu0
  %v2864 = vadd.f32 0.0, %v2863
  %v2865 = vpop.f32.mrf.mxu0
  %v2866 = vpop.f32.mrf.mxu0
  %v2867 = vadd.f32 0.0, %v2866
  %v2868 = vpop.f32.mrf.mxu0
  %2869 = vmatprep.mubr.bf16.mxu0 0
  %2870 = vmatmul.mubr.bf16.gmra.mxu0 %v2760
  %v2871 = vpop.f32.mrf.mxu0
  %v2872 = vadd.f32 0.0, %v2871
  %v2873 = vpop.f32.mrf.mxu0
  %v2874 = vpop.f32.mrf.mxu0
  %v2875 = vadd.f32 0.0, %v2874
  %v2876 = vpop.f32.mrf.mxu0
  %2877 = vmatprep.mubr.bf16.mxu0 0
  %2878 = vmatmul.mubr.bf16.gmra.mxu0 %v2763
  %v2879 = vpop.f32.mrf.mxu0
  %v2880 = vadd.f32 0.0, %v2879
  %v2881 = vpop.f32.mrf.mxu0
  %v2882 = vpop.f32.mrf.mxu0
  %v2883 = vadd.f32 0.0, %v2882
  %v2884 = vpop.f32.mrf.mxu0
  %2885 = vmatprep.mubr.bf16.mxu0 0
  %2886 = vmatmul.mubr.bf16.gmra.mxu0 %v2766
  %v2887 = vpop.f32.mrf.mxu0
  %v2888 = vadd.f32 0.0, %v2887
  %v2889 = vpop.f32.mrf.mxu0
  %v2890 = vpop.f32.mrf.mxu0
  %v2891 = vadd.f32 0.0, %v2890
  %v2892 = vpop.f32.mrf.mxu0
  %2893 = vmatprep.mubr.bf16.mxu0 0
  %2894 = vmatmul.mubr.bf16.gmra.mxu0 %v2769
  %v2895 = vpop.f32.mrf.mxu0
  %v2896 = vadd.f32 0.0, %v2895
  %v2897 = vpop.f32.mrf.mxu0
  %v2898 = vpop.f32.mrf.mxu0
  %v2899 = vadd.f32 0.0, %v2898
  %v2900 = vpop.f32.mrf.mxu0
  %2901 = vmatprep.mubr.bf16.mxu0 0
  %2902 = vmatmul.mubr.bf16.gmra.mxu0 %v2772
  %v2903 = vpop.f32.mrf.mxu0
  %v2904 = vadd.f32 0.0, %v2903
  %v2905 = vpop.f32.mrf.mxu0
  %v2906 = vpop.f32.mrf.mxu0
  %v2907 = vadd.f32 0.0, %v2906
  %v2908 = vpop.f32.mrf.mxu0
  %2909 = vmatprep.mubr.bf16.mxu0 0
  %2910 = vmatmul.mubr.bf16.gmra.mxu0 %v2775
  %v2911 = vpop.f32.mrf.mxu0
  %v2912 = vadd.f32 0.0, %v2911
  %v2913 = vpop.f32.mrf.mxu0
  %v2914 = vpop.f32.mrf.mxu0
  %v2915 = vadd.f32 0.0, %v2914
  %v2916 = vpop.f32.mrf.mxu0
  %2917 = vmatprep.mubr.bf16.mxu0 0
  %2918 = vmatmul.mubr.bf16.gmra.mxu0 %v2778
  %v2919 = vpop.f32.mrf.mxu0
  %v2920 = vadd.f32 0.0, %v2919
  %v2921 = vpop.f32.mrf.mxu0
  %v2922 = vpop.f32.mrf.mxu0
  %v2923 = vadd.f32 0.0, %v2922
  %v2924 = vpop.f32.mrf.mxu0
  %2925 = vmatprep.mubr.bf16.mxu0 0
  %2926 = vmatmul.mubr.bf16.gmra.mxu0 %v2781
  %v2927 = vpop.f32.mrf.mxu0
  %v2928 = vadd.f32 0.0, %v2927
  %v2929 = vpop.f32.mrf.mxu0
  %v2930 = vpop.f32.mrf.mxu0
  %v2931 = vadd.f32 0.0, %v2930
  %v2932 = vpop.f32.mrf.mxu0
  %2933 = vmatprep.mubr.bf16.mxu0 0
  %2934 = vmatmul.mubr.bf16.gmra.mxu0 %v2784
  %v2935 = vpop.f32.mrf.mxu0
  %v2936 = vadd.f32 0.0, %v2935
  %v2937 = vpop.f32.mrf.mxu0
  %v2938 = vpop.f32.mrf.mxu0
  %v2939 = vadd.f32 0.0, %v2938
  %v2940 = vpop.f32.mrf.mxu0
  %2941 = vmatprep.mubr.bf16.mxu0 0
  %2942 = vmatmul.mubr.bf16.gmra.mxu0 %v2787
  %v2943 = vpop.f32.mrf.mxu0
  %v2944 = vadd.f32 0.0, %v2943
  %v2945 = vpop.f32.mrf.mxu0
  %v2946 = vpop.f32.mrf.mxu0
  %v2947 = vadd.f32 0.0, %v2946
  %v2948 = vpop.f32.mrf.mxu0
  %2949 = vdwg.mxu0
  %v2950 = vpack.c.bf16 %v2827, %v2824
  %v2951 = vpack.c.bf16 %v2835, %v2832
  %v2952 = vpack.c.bf16 %v2843, %v2840
  %v2953 = vpack.c.bf16 %v2851, %v2848
  %v2954 = vpack.c.bf16 %v2859, %v2856
  %v2955 = vpack.c.bf16 %v2867, %v2864
  %v2956 = vpack.c.bf16 %v2875, %v2872
  %v2957 = vpack.c.bf16 %v2883, %v2880
  %v2958 = vpack.c.bf16 %v2891, %v2888
  %v2959 = vpack.c.bf16 %v2899, %v2896
  %v2960 = vpack.c.bf16 %v2907, %v2904
  %v2961 = vpack.c.bf16 %v2915, %v2912
  %v2962 = vpack.c.bf16 %v2923, %v2920
  %v2963 = vpack.c.bf16 %v2931, %v2928
  %v2964 = vpack.c.bf16 %v2939, %v2936
  %v2965 = vpack.c.bf16 %v2947, %v2944
  %v2966 = vld [vmem:[%s5] sm:$0xff]
  %v2967 = vld [vmem:[%s5 + $0x8] sm:$0xff]
  %v2968 = vld [vmem:[%s5 + $0x10] sm:$0xff]
  %v2969 = vld [vmem:[%s5 + $0x18] sm:$0xff]
  %v2970 = vld [vmem:[%s5 + $0x20] sm:$0xff]
  %v2971 = vld [vmem:[%s5 + $0x28] sm:$0xff]
  %v2972 = vld [vmem:[%s5 + $0x30] sm:$0xff]
  %v2973 = vld [vmem:[%s5 + $0x38] sm:$0xff]
  %v2974 = vld [vmem:[%s5 + $0x40] sm:$0xff]
  %v2975 = vld [vmem:[%s5 + $0x48] sm:$0xff]
  %v2976 = vld [vmem:[%s5 + $0x50] sm:$0xff]
  %v2977 = vld [vmem:[%s5 + $0x58] sm:$0xff]
  %v2978 = vld [vmem:[%s5 + $0x60] sm:$0xff]
  %v2979 = vld [vmem:[%s5 + $0x68] sm:$0xff]
  %v2980 = vld [vmem:[%s5 + $0x70] sm:$0xff]
  %v2981 = vld [vmem:[%s5 + $0x78] sm:$0xff]
  %v2982 = vld [vmem:[%s5 + $0x80] sm:$0xff]
  %v2983 = vld [vmem:[%s5 + $0x88] sm:$0xff]
  %v2984 = vld [vmem:[%s5 + $0x90] sm:$0xff]
  %v2985 = vld [vmem:[%s5 + $0x98] sm:$0xff]
  %v2986 = vld [vmem:[%s5 + $0xa0] sm:$0xff]
  %v2987 = vld [vmem:[%s5 + $0xa8] sm:$0xff]
  %v2988 = vld [vmem:[%s5 + $0xb0] sm:$0xff]
  %v2989 = vld [vmem:[%s5 + $0xb8] sm:$0xff]
  %v2990 = vld [vmem:[%s5 + $0xc0] sm:$0xff]
  %v2991 = vld [vmem:[%s5 + $0xc8] sm:$0xff]
  %v2992 = vld [vmem:[%s5 + $0xd0] sm:$0xff]
  %v2993 = vld [vmem:[%s5 + $0xd8] sm:$0xff]
  %v2994 = vld [vmem:[%s5 + $0xe0] sm:$0xff]
  %v2995 = vld [vmem:[%s5 + $0xe8] sm:$0xff]
  %v2996 = vld [vmem:[%s5 + $0xf0] sm:$0xff]
  %v2997 = vld [vmem:[%s5 + $0xf8] sm:$0xff]
  %s2998 = scalar_lea.vmem %s4, 8
  %v2999 = vld [vmem:[%s2998] sm:$0xf]
  %v3000 = vld [vmem:[%s2998 + $0x4] sm:$0xf]
  %v3003 = vunpack.c.l.b16 %v2999
  %v3004 = vunpack.c.l.b16 %v3000
  %v3005 = vpack.c.b16 %v3004, %v3003
  %3007 = vmatprep.subr.bf16.mxu0 0
  %3008 = vmatpush1.bf16.msra.mxu0 0
  %3009 = vmatprep.subr.bf16.mxu0 0
  %3010 = vmatpush1.bf16.msra.mxu0 0
  %3011 = vmatprep.subr.bf16.mxu0 0
  %3012 = vmatpush1.bf16.msra.mxu0 0
  %3013 = vmatprep.subr.bf16.mxu0 0
  %3014 = vmatpush1.bf16.msra.mxu0 0
  %3015 = vmatprep.subr.bf16.mxu0 0
  %3016 = vmatpush1.bf16.msra.mxu0 0
  %3017 = vmatprep.subr.bf16.mxu0 0
  %3018 = vmatpush1.bf16.msra.mxu0 0
  %3019 = vmatprep.subr.bf16.mxu0 0
  %3020 = vmatpush1.bf16.msra.mxu0 0
  %3021 = vmatprep.subr.bf16.mxu0 0
  %3022 = vmatpush1.bf16.msra.mxu0 %v3005
  %3023 = vmatprep.subr.bf16.mxu0 0
  %3024 = vmatpush2.bf16.msra.mxu0 0
  %3025 = vmatprep.subr.bf16.mxu0 0
  %3026 = vmatpush2.bf16.msra.mxu0 0
  %3027 = vmatprep.subr.bf16.mxu0 0
  %3028 = vmatpush2.bf16.msra.mxu0 0
  %3029 = vmatprep.subr.bf16.mxu0 0
  %3030 = vmatpush2.bf16.msra.mxu0 0
  %3031 = vmatprep.subr.bf16.mxu0 0
  %3032 = vmatpush2.bf16.msra.mxu0 0
  %3033 = vmatprep.subr.bf16.mxu0 0
  %3034 = vmatpush2.bf16.msra.mxu0 0
  %3035 = vmatprep.subr.bf16.mxu0 0
  %3036 = vmatpush2.bf16.msra.mxu0 0
  %3037 = vmatprep.subr.bf16.mxu0 0
  %3038 = vmatpush2.bf16.msra.mxu0 0
  %3039 = vmatprep.mubr.bf16.mxu0 0
  %3040 = vmatmul.mubr.bf16.gmra.mxu0 %v2742
  %v3041 = vpop.f32.mrf.mxu0
  %v3042 = vadd.f32 0.0, %v3041
  %v3043 = vpop.f32.mrf.mxu0
  %v3044 = vpop.f32.mrf.mxu0
  %v3045 = vadd.f32 0.0, %v3044
  %v3046 = vpop.f32.mrf.mxu0
  %3047 = vmatprep.mubr.bf16.mxu0 0
  %3048 = vmatmul.mubr.bf16.gmra.mxu0 %v2745
  %v3049 = vpop.f32.mrf.mxu0
  %v3050 = vadd.f32 0.0, %v3049
  %v3051 = vpop.f32.mrf.mxu0
  %v3052 = vpop.f32.mrf.mxu0
  %v3053 = vadd.f32 0.0, %v3052
  %v3054 = vpop.f32.mrf.mxu0
  %3055 = vmatprep.mubr.bf16.mxu0 0
  %3056 = vmatmul.mubr.bf16.gmra.mxu0 %v2748
  %v3057 = vpop.f32.mrf.mxu0
  %v3058 = vadd.f32 0.0, %v3057
  %v3059 = vpop.f32.mrf.mxu0
  %v3060 = vpop.f32.mrf.mxu0
  %v3061 = vadd.f32 0.0, %v3060
  %v3062 = vpop.f32.mrf.mxu0
  %3063 = vmatprep.mubr.bf16.mxu0 0
  %3064 = vmatmul.mubr.bf16.gmra.mxu0 %v2751
  %v3065 = vpop.f32.mrf.mxu0
  %v3066 = vadd.f32 0.0, %v3065
  %v3067 = vpop.f32.mrf.mxu0
  %v3068 = vpop.f32.mrf.mxu0
  %v3069 = vadd.f32 0.0, %v3068
  %v3070 = vpop.f32.mrf.mxu0
  %3071 = vmatprep.mubr.bf16.mxu0 0
  %3072 = vmatmul.mubr.bf16.gmra.mxu0 %v2754
  %v3073 = vpop.f32.mrf.mxu0
  %v3074 = vadd.f32 0.0, %v3073
  %v3075 = vpop.f32.mrf.mxu0
  %v3076 = vpop.f32.mrf.mxu0
  %v3077 = vadd.f32 0.0, %v3076
  %v3078 = vpop.f32.mrf.mxu0
  %3079 = vmatprep.mubr.bf16.mxu0 0
  %3080 = vmatmul.mubr.bf16.gmra.mxu0 %v2757
  %v3081 = vpop.f32.mrf.mxu0
  %v3082 = vadd.f32 0.0, %v3081
  %v3083 = vpop.f32.mrf.mxu0
  %v3084 = vpop.f32.mrf.mxu0
  %v3085 = vadd.f32 0.0, %v3084
  %v3086 = vpop.f32.mrf.mxu0
  %3087 = vmatprep.mubr.bf16.mxu0 0
  %3088 = vmatmul.mubr.bf16.gmra.mxu0 %v2760
  %v3089 = vpop.f32.mrf.mxu0
  %v3090 = vadd.f32 0.0, %v3089
  %v3091 = vpop.f32.mrf.mxu0
  %v3092 = vpop.f32.mrf.mxu0
  %v3093 = vadd.f32 0.0, %v3092
  %v3094 = vpop.f32.mrf.mxu0
  %3095 = vmatprep.mubr.bf16.mxu0 0
  %3096 = vmatmul.mubr.bf16.gmra.mxu0 %v2763
  %v3097 = vpop.f32.mrf.mxu0
  %v3098 = vadd.f32 0.0, %v3097
  %v3099 = vpop.f32.mrf.mxu0
  %v3100 = vpop.f32.mrf.mxu0
  %v3101 = vadd.f32 0.0, %v3100
  %v3102 = vpop.f32.mrf.mxu0
  %3103 = vmatprep.mubr.bf16.mxu0 0
  %3104 = vmatmul.mubr.bf16.gmra.mxu0 %v2766
  %v3105 = vpop.f32.mrf.mxu0
  %v3106 = vadd.f32 0.0, %v3105
  %v3107 = vpop.f32.mrf.mxu0
  %v3108 = vpop.f32.mrf.mxu0
  %v3109 = vadd.f32 0.0, %v3108
  %v3110 = vpop.f32.mrf.mxu0
  %3111 = vmatprep.mubr.bf16.mxu0 0
  %3112 = vmatmul.mubr.bf16.gmra.mxu0 %v2769
  %v3113 = vpop.f32.mrf.mxu0
  %v3114 = vadd.f32 0.0, %v3113
  %v3115 = vpop.f32.mrf.mxu0
  %v3116 = vpop.f32.mrf.mxu0
  %v3117 = vadd.f32 0.0, %v3116
  %v3118 = vpop.f32.mrf.mxu0
  %3119 = vmatprep.mubr.bf16.mxu0 0
  %3120 = vmatmul.mubr.bf16.gmra.mxu0 %v2772
  %v3121 = vpop.f32.mrf.mxu0
  %v3122 = vadd.f32 0.0, %v3121
  %v3123 = vpop.f32.mrf.mxu0
  %v3124 = vpop.f32.mrf.mxu0
  %v3125 = vadd.f32 0.0, %v3124
  %v3126 = vpop.f32.mrf.mxu0
  %3127 = vmatprep.mubr.bf16.mxu0 0
  %3128 = vmatmul.mubr.bf16.gmra.mxu0 %v2775
  %v3129 = vpop.f32.mrf.mxu0
  %v3130 = vadd.f32 0.0, %v3129
  %v3131 = vpop.f32.mrf.mxu0
  %v3132 = vpop.f32.mrf.mxu0
  %v3133 = vadd.f32 0.0, %v3132
  %v3134 = vpop.f32.mrf.mxu0
  %3135 = vmatprep.mubr.bf16.mxu0 0
  %3136 = vmatmul.mubr.bf16.gmra.mxu0 %v2778
  %v3137 = vpop.f32.mrf.mxu0
  %v3138 = vadd.f32 0.0, %v3137
  %v3139 = vpop.f32.mrf.mxu0
  %v3140 = vpop.f32.mrf.mxu0
  %v3141 = vadd.f32 0.0, %v3140
  %v3142 = vpop.f32.mrf.mxu0
  %3143 = vmatprep.mubr.bf16.mxu0 0
  %3144 = vmatmul.mubr.bf16.gmra.mxu0 %v2781
  %v3145 = vpop.f32.mrf.mxu0
  %v3146 = vadd.f32 0.0, %v3145
  %v3147 = vpop.f32.mrf.mxu0
  %v3148 = vpop.f32.mrf.mxu0
  %v3149 = vadd.f32 0.0, %v3148
  %v3150 = vpop.f32.mrf.mxu0
  %3151 = vmatprep.mubr.bf16.mxu0 0
  %3152 = vmatmul.mubr.bf16.gmra.mxu0 %v2784
  %v3153 = vpop.f32.mrf.mxu0
  %v3154 = vadd.f32 0.0, %v3153
  %v3155 = vpop.f32.mrf.mxu0
  %v3156 = vpop.f32.mrf.mxu0
  %v3157 = vadd.f32 0.0, %v3156
  %v3158 = vpop.f32.mrf.mxu0
  %3159 = vmatprep.mubr.bf16.mxu0 0
  %3160 = vmatmul.mubr.bf16.gmra.mxu0 %v2787
  %v3161 = vpop.f32.mrf.mxu0
  %v3162 = vadd.f32 0.0, %v3161
  %v3163 = vpop.f32.mrf.mxu0
  %v3164 = vpop.f32.mrf.mxu0
  %v3165 = vadd.f32 0.0, %v3164
  %v3166 = vpop.f32.mrf.mxu0
  %3167 = vdwg.mxu0
  %v3168 = vpack.c.bf16 %v3045, %v3042
  %v3169 = vpack.c.bf16 %v3053, %v3050
  %v3170 = vpack.c.bf16 %v3061, %v3058
  %v3171 = vpack.c.bf16 %v3069, %v3066
  %v3172 = vpack.c.bf16 %v3077, %v3074
  %v3173 = vpack.c.bf16 %v3085, %v3082
  %v3174 = vpack.c.bf16 %v3093, %v3090
  %v3175 = vpack.c.bf16 %v3101, %v3098
  %v3176 = vpack.c.bf16 %v3109, %v3106
  %v3177 = vpack.c.bf16 %v3117, %v3114
  %v3178 = vpack.c.bf16 %v3125, %v3122
  %v3179 = vpack.c.bf16 %v3133, %v3130
  %v3180 = vpack.c.bf16 %v3141, %v3138
  %v3181 = vpack.c.bf16 %v3149, %v3146
  %v3182 = vpack.c.bf16 %v3157, %v3154
  %v3183 = vpack.c.bf16 %v3165, %v3162
  %s3184 = scalar_lea.vmem %s5, 256
  %v3185 = vld [vmem:[%s3184] sm:$0xff]
  %v3186 = vld [vmem:[%s3184 + $0x8] sm:$0xff]
  %v3187 = vld [vmem:[%s3184 + $0x10] sm:$0xff]
  %v3188 = vld [vmem:[%s3184 + $0x18] sm:$0xff]
  %v3189 = vld [vmem:[%s3184 + $0x20] sm:$0xff]
  %v3190 = vld [vmem:[%s3184 + $0x28] sm:$0xff]
  %v3191 = vld [vmem:[%s3184 + $0x30] sm:$0xff]
  %v3192 = vld [vmem:[%s3184 + $0x38] sm:$0xff]
  %v3193 = vld [vmem:[%s3184 + $0x40] sm:$0xff]
  %v3194 = vld [vmem:[%s3184 + $0x48] sm:$0xff]
  %v3195 = vld [vmem:[%s3184 + $0x50] sm:$0xff]
  %v3196 = vld [vmem:[%s3184 + $0x58] sm:$0xff]
  %v3197 = vld [vmem:[%s3184 + $0x60] sm:$0xff]
  %v3198 = vld [vmem:[%s3184 + $0x68] sm:$0xff]
  %v3199 = vld [vmem:[%s3184 + $0x70] sm:$0xff]
  %v3200 = vld [vmem:[%s3184 + $0x78] sm:$0xff]
  %v3201 = vld [vmem:[%s3184 + $0x80] sm:$0xff]
  %v3202 = vld [vmem:[%s3184 + $0x88] sm:$0xff]
  %v3203 = vld [vmem:[%s3184 + $0x90] sm:$0xff]
  %v3204 = vld [vmem:[%s3184 + $0x98] sm:$0xff]
  %v3205 = vld [vmem:[%s3184 + $0xa0] sm:$0xff]
  %v3206 = vld [vmem:[%s3184 + $0xa8] sm:$0xff]
  %v3207 = vld [vmem:[%s3184 + $0xb0] sm:$0xff]
  %v3208 = vld [vmem:[%s3184 + $0xb8] sm:$0xff]
  %v3209 = vld [vmem:[%s3184 + $0xc0] sm:$0xff]
  %v3210 = vld [vmem:[%s3184 + $0xc8] sm:$0xff]
  %v3211 = vld [vmem:[%s3184 + $0xd0] sm:$0xff]
  %v3212 = vld [vmem:[%s3184 + $0xd8] sm:$0xff]
  %v3213 = vld [vmem:[%s3184 + $0xe0] sm:$0xff]
  %v3214 = vld [vmem:[%s3184 + $0xe8] sm:$0xff]
  %v3215 = vld [vmem:[%s3184 + $0xf0] sm:$0xff]
  %v3216 = vld [vmem:[%s3184 + $0xf8] sm:$0xff]
  %v3249 = vunpack.c.l.b16 %v3185
  %v3250 = vunpack.c.h.b16 %v3185
  %v3251 = vunpack.c.l.b16 %v3186
  %v3252 = vunpack.c.h.b16 %v3186
  %v3253 = vunpack.c.l.b16 %v3187
  %v3254 = vunpack.c.h.b16 %v3187
  %v3255 = vunpack.c.l.b16 %v3188
  %v3256 = vunpack.c.h.b16 %v3188
  %v3257 = vunpack.c.l.b16 %v3189
  %v3258 = vunpack.c.h.b16 %v3189
  %v3259 = vunpack.c.l.b16 %v3190
  %v3260 = vunpack.c.h.b16 %v3190
  %v3261 = vunpack.c.l.b16 %v3191
  %v3262 = vunpack.c.h.b16 %v3191
  %v3263 = vunpack.c.l.b16 %v3192
  %v3264 = vunpack.c.h.b16 %v3192
  %v3265 = vunpack.c.l.b16 %v3193
  %v3266 = vunpack.c.h.b16 %v3193
  %v3267 = vunpack.c.l.b16 %v3194
  %v3268 = vunpack.c.h.b16 %v3194
  %v3269 = vunpack.c.l.b16 %v3195
  %v3270 = vunpack.c.h.b16 %v3195
  %v3271 = vunpack.c.l.b16 %v3196
  %v3272 = vunpack.c.h.b16 %v3196
  %v3273 = vunpack.c.l.b16 %v3197
  %v3274 = vunpack.c.h.b16 %v3197
  %v3275 = vunpack.c.l.b16 %v3198
  %v3276 = vunpack.c.h.b16 %v3198
  %v3277 = vunpack.c.l.b16 %v3199
  %v3278 = vunpack.c.h.b16 %v3199
  %v3279 = vunpack.c.l.b16 %v3200
  %v3280 = vunpack.c.h.b16 %v3200
  %v3281 = vunpack.c.l.b16 %v3201
  %v3282 = vunpack.c.h.b16 %v3201
  %v3283 = vunpack.c.l.b16 %v3202
  %v3284 = vunpack.c.h.b16 %v3202
  %v3285 = vunpack.c.l.b16 %v3203
  %v3286 = vunpack.c.h.b16 %v3203
  %v3287 = vunpack.c.l.b16 %v3204
  %v3288 = vunpack.c.h.b16 %v3204
  %v3289 = vunpack.c.l.b16 %v3205
  %v3290 = vunpack.c.h.b16 %v3205
  %v3291 = vunpack.c.l.b16 %v3206
  %v3292 = vunpack.c.h.b16 %v3206
  %v3293 = vunpack.c.l.b16 %v3207
  %v3294 = vunpack.c.h.b16 %v3207
  %v3295 = vunpack.c.l.b16 %v3208
  %v3296 = vunpack.c.h.b16 %v3208
  %v3297 = vunpack.c.l.b16 %v3209
  %v3298 = vunpack.c.h.b16 %v3209
  %v3299 = vunpack.c.l.b16 %v3210
  %v3300 = vunpack.c.h.b16 %v3210
  %v3301 = vunpack.c.l.b16 %v3211
  %v3302 = vunpack.c.h.b16 %v3211
  %v3303 = vunpack.c.l.b16 %v3212
  %v3304 = vunpack.c.h.b16 %v3212
  %v3305 = vunpack.c.l.b16 %v3213
  %v3306 = vunpack.c.h.b16 %v3213
  %v3307 = vunpack.c.l.b16 %v3214
  %v3308 = vunpack.c.h.b16 %v3214
  %v3309 = vunpack.c.l.b16 %v3215
  %v3310 = vunpack.c.h.b16 %v3215
  %v3311 = vunpack.c.l.b16 %v3216
  %v3312 = vunpack.c.h.b16 %v3216
  %v3313 = vpack.c.b16 %v3251, %v3249
  %v3314 = vpack.c.b16 %v3252, %v3250
  %v3315 = vpack.c.b16 %v3255, %v3253
  %v3316 = vpack.c.b16 %v3256, %v3254
  %v3317 = vpack.c.b16 %v3259, %v3257
  %v3318 = vpack.c.b16 %v3260, %v3258
  %v3319 = vpack.c.b16 %v3263, %v3261
  %v3320 = vpack.c.b16 %v3264, %v3262
  %v3321 = vpack.c.b16 %v3267, %v3265
  %v3322 = vpack.c.b16 %v3268, %v3266
  %v3323 = vpack.c.b16 %v3271, %v3269
  %v3324 = vpack.c.b16 %v3272, %v3270
  %v3325 = vpack.c.b16 %v3275, %v3273
  %v3326 = vpack.c.b16 %v3276, %v3274
  %v3327 = vpack.c.b16 %v3279, %v3277
  %v3328 = vpack.c.b16 %v3280, %v3278
  %v3329 = vpack.c.b16 %v3283, %v3281
  %v3330 = vpack.c.b16 %v3284, %v3282
  %v3331 = vpack.c.b16 %v3287, %v3285
  %v3332 = vpack.c.b16 %v3288, %v3286
  %v3333 = vpack.c.b16 %v3291, %v3289
  %v3334 = vpack.c.b16 %v3292, %v3290
  %v3335 = vpack.c.b16 %v3295, %v3293
  %v3336 = vpack.c.b16 %v3296, %v3294
  %v3337 = vpack.c.b16 %v3299, %v3297
  %v3338 = vpack.c.b16 %v3300, %v3298
  %v3339 = vpack.c.b16 %v3303, %v3301
  %v3340 = vpack.c.b16 %v3304, %v3302
  %v3341 = vpack.c.b16 %v3307, %v3305
  %v3342 = vpack.c.b16 %v3308, %v3306
  %v3343 = vpack.c.b16 %v3311, %v3309
  %v3344 = vpack.c.b16 %v3312, %v3310
  %3377 = vmatprep.subr.bf16.mxu0 0
  %3378 = vmatpush1.bf16.msra.mxu0 %v3175
  %3379 = vmatprep.subr.bf16.mxu0 0
  %3380 = vmatpush1.bf16.msra.mxu0 %v3174
  %3381 = vmatprep.subr.bf16.mxu0 0
  %3382 = vmatpush1.bf16.msra.mxu0 %v3173
  %3383 = vmatprep.subr.bf16.mxu0 0
  %3384 = vmatpush1.bf16.msra.mxu0 %v3172
  %3385 = vmatprep.subr.bf16.mxu0 0
  %3386 = vmatpush1.bf16.msra.mxu0 %v3171
  %3387 = vmatprep.subr.bf16.mxu0 0
  %3388 = vmatpush1.bf16.msra.mxu0 %v3170
  %3389 = vmatprep.subr.bf16.mxu0 0
  %3390 = vmatpush1.bf16.msra.mxu0 %v3169
  %3391 = vmatprep.subr.bf16.mxu0 0
  %3392 = vmatpush1.bf16.msra.mxu0 %v3168
  %3393 = vmatprep.subr.bf16.mxu0 0
  %3394 = vmatpush2.bf16.msra.mxu0 %v3183
  %3395 = vmatprep.subr.bf16.mxu0 0
  %3396 = vmatpush2.bf16.msra.mxu0 %v3182
  %3397 = vmatprep.subr.bf16.mxu0 0
  %3398 = vmatpush2.bf16.msra.mxu0 %v3181
  %3399 = vmatprep.subr.bf16.mxu0 0
  %3400 = vmatpush2.bf16.msra.mxu0 %v3180
  %3401 = vmatprep.subr.bf16.mxu0 0
  %3402 = vmatpush2.bf16.msra.mxu0 %v3179
  %3403 = vmatprep.subr.bf16.mxu0 0
  %3404 = vmatpush2.bf16.msra.mxu0 %v3178
  %3405 = vmatprep.subr.bf16.mxu0 0
  %3406 = vmatpush2.bf16.msra.mxu0 %v3177
  %3407 = vmatprep.subr.bf16.mxu0 0
  %3408 = vmatpush2.bf16.msra.mxu0 %v3176
  %3409 = vmatprep.mubr.bf16.mxu0 %v3314
  %3410 = vmatmul.mubr.bf16.gmra.mxu0 %v3313
  %v3411 = vpop.f32.mrf.mxu0
  %v3412 = vadd.f32 0.0, %v3411
  %v3413 = vpop.f32.mrf.mxu0
  %v3414 = vpop.f32.mrf.mxu0
  %v3415 = vadd.f32 0.0, %v3414
  %v3416 = vpop.f32.mrf.mxu0
  %3417 = vmatprep.mubr.bf16.mxu0 %v3316
  %3418 = vmatmul.mubr.bf16.gmra.mxu0 %v3315
  %v3419 = vpop.f32.mrf.mxu0
  %v3420 = vadd.f32 0.0, %v3419
  %v3421 = vpop.f32.mrf.mxu0
  %v3422 = vpop.f32.mrf.mxu0
  %v3423 = vadd.f32 0.0, %v3422
  %v3424 = vpop.f32.mrf.mxu0
  %3425 = vmatprep.mubr.bf16.mxu0 %v3318
  %3426 = vmatmul.mubr.bf16.gmra.mxu0 %v3317
  %v3427 = vpop.f32.mrf.mxu0
  %v3428 = vadd.f32 0.0, %v3427
  %v3429 = vpop.f32.mrf.mxu0
  %v3430 = vpop.f32.mrf.mxu0
  %v3431 = vadd.f32 0.0, %v3430
  %v3432 = vpop.f32.mrf.mxu0
  %3433 = vmatprep.mubr.bf16.mxu0 %v3320
  %3434 = vmatmul.mubr.bf16.gmra.mxu0 %v3319
  %v3435 = vpop.f32.mrf.mxu0
  %v3436 = vadd.f32 0.0, %v3435
  %v3437 = vpop.f32.mrf.mxu0
  %v3438 = vpop.f32.mrf.mxu0
  %v3439 = vadd.f32 0.0, %v3438
  %v3440 = vpop.f32.mrf.mxu0
  %3441 = vmatprep.mubr.bf16.mxu0 %v3322
  %3442 = vmatmul.mubr.bf16.gmra.mxu0 %v3321
  %v3443 = vpop.f32.mrf.mxu0
  %v3444 = vadd.f32 0.0, %v3443
  %v3445 = vpop.f32.mrf.mxu0
  %v3446 = vpop.f32.mrf.mxu0
  %v3447 = vadd.f32 0.0, %v3446
  %v3448 = vpop.f32.mrf.mxu0
  %3449 = vmatprep.mubr.bf16.mxu0 %v3324
  %3450 = vmatmul.mubr.bf16.gmra.mxu0 %v3323
  %v3451 = vpop.f32.mrf.mxu0
  %v3452 = vadd.f32 0.0, %v3451
  %v3453 = vpop.f32.mrf.mxu0
  %v3454 = vpop.f32.mrf.mxu0
  %v3455 = vadd.f32 0.0, %v3454
  %v3456 = vpop.f32.mrf.mxu0
  %3457 = vmatprep.mubr.bf16.mxu0 %v3326
  %3458 = vmatmul.mubr.bf16.gmra.mxu0 %v3325
  %v3459 = vpop.f32.mrf.mxu0
  %v3460 = vadd.f32 0.0, %v3459
  %v3461 = vpop.f32.mrf.mxu0
  %v3462 = vpop.f32.mrf.mxu0
  %v3463 = vadd.f32 0.0, %v3462
  %v3464 = vpop.f32.mrf.mxu0
  %3465 = vmatprep.mubr.bf16.mxu0 %v3328
  %3466 = vmatmul.mubr.bf16.gmra.mxu0 %v3327
  %v3467 = vpop.f32.mrf.mxu0
  %v3468 = vadd.f32 0.0, %v3467
  %v3469 = vpop.f32.mrf.mxu0
  %v3470 = vpop.f32.mrf.mxu0
  %v3471 = vadd.f32 0.0, %v3470
  %v3472 = vpop.f32.mrf.mxu0
  %3473 = vmatprep.mubr.bf16.mxu0 %v3330
  %3474 = vmatmul.mubr.bf16.gmra.mxu0 %v3329
  %v3475 = vpop.f32.mrf.mxu0
  %v3476 = vadd.f32 0.0, %v3475
  %v3477 = vpop.f32.mrf.mxu0
  %v3478 = vpop.f32.mrf.mxu0
  %v3479 = vadd.f32 0.0, %v3478
  %v3480 = vpop.f32.mrf.mxu0
  %3481 = vmatprep.mubr.bf16.mxu0 %v3332
  %3482 = vmatmul.mubr.bf16.gmra.mxu0 %v3331
  %v3483 = vpop.f32.mrf.mxu0
  %v3484 = vadd.f32 0.0, %v3483
  %v3485 = vpop.f32.mrf.mxu0
  %v3486 = vpop.f32.mrf.mxu0
  %v3487 = vadd.f32 0.0, %v3486
  %v3488 = vpop.f32.mrf.mxu0
  %3489 = vmatprep.mubr.bf16.mxu0 %v3334
  %3490 = vmatmul.mubr.bf16.gmra.mxu0 %v3333
  %v3491 = vpop.f32.mrf.mxu0
  %v3492 = vadd.f32 0.0, %v3491
  %v3493 = vpop.f32.mrf.mxu0
  %v3494 = vpop.f32.mrf.mxu0
  %v3495 = vadd.f32 0.0, %v3494
  %v3496 = vpop.f32.mrf.mxu0
  %3497 = vmatprep.mubr.bf16.mxu0 %v3336
  %3498 = vmatmul.mubr.bf16.gmra.mxu0 %v3335
  %v3499 = vpop.f32.mrf.mxu0
  %v3500 = vadd.f32 0.0, %v3499
  %v3501 = vpop.f32.mrf.mxu0
  %v3502 = vpop.f32.mrf.mxu0
  %v3503 = vadd.f32 0.0, %v3502
  %v3504 = vpop.f32.mrf.mxu0
  %3505 = vmatprep.mubr.bf16.mxu0 %v3338
  %3506 = vmatmul.mubr.bf16.gmra.mxu0 %v3337
  %v3507 = vpop.f32.mrf.mxu0
  %v3508 = vadd.f32 0.0, %v3507
  %v3509 = vpop.f32.mrf.mxu0
  %v3510 = vpop.f32.mrf.mxu0
  %v3511 = vadd.f32 0.0, %v3510
  %v3512 = vpop.f32.mrf.mxu0
  %3513 = vmatprep.mubr.bf16.mxu0 %v3340
  %3514 = vmatmul.mubr.bf16.gmra.mxu0 %v3339
  %v3515 = vpop.f32.mrf.mxu0
  %v3516 = vadd.f32 0.0, %v3515
  %v3517 = vpop.f32.mrf.mxu0
  %v3518 = vpop.f32.mrf.mxu0
  %v3519 = vadd.f32 0.0, %v3518
  %v3520 = vpop.f32.mrf.mxu0
  %3521 = vmatprep.mubr.bf16.mxu0 %v3342
  %3522 = vmatmul.mubr.bf16.gmra.mxu0 %v3341
  %v3523 = vpop.f32.mrf.mxu0
  %v3524 = vadd.f32 0.0, %v3523
  %v3525 = vpop.f32.mrf.mxu0
  %v3526 = vpop.f32.mrf.mxu0
  %v3527 = vadd.f32 0.0, %v3526
  %v3528 = vpop.f32.mrf.mxu0
  %3529 = vmatprep.mubr.bf16.mxu0 %v3344
  %3530 = vmatmul.mubr.bf16.gmra.mxu0 %v3343
  %v3531 = vpop.f32.mrf.mxu0
  %v3532 = vadd.f32 0.0, %v3531
  %v3533 = vpop.f32.mrf.mxu0
  %v3534 = vpop.f32.mrf.mxu0
  %v3535 = vadd.f32 0.0, %v3534
  %v3536 = vpop.f32.mrf.mxu0
  %3537 = vdwg.mxu0
  %v3570 = vunpack.c.l.b16 %v2966
  %v3571 = vunpack.c.h.b16 %v2966
  %v3572 = vunpack.c.l.b16 %v2967
  %v3573 = vunpack.c.h.b16 %v2967
  %v3574 = vunpack.c.l.b16 %v2968
  %v3575 = vunpack.c.h.b16 %v2968
  %v3576 = vunpack.c.l.b16 %v2969
  %v3577 = vunpack.c.h.b16 %v2969
  %v3578 = vunpack.c.l.b16 %v2970
  %v3579 = vunpack.c.h.b16 %v2970
  %v3580 = vunpack.c.l.b16 %v2971
  %v3581 = vunpack.c.h.b16 %v2971
  %v3582 = vunpack.c.l.b16 %v2972
  %v3583 = vunpack.c.h.b16 %v2972
  %v3584 = vunpack.c.l.b16 %v2973
  %v3585 = vunpack.c.h.b16 %v2973
  %v3586 = vunpack.c.l.b16 %v2974
  %v3587 = vunpack.c.h.b16 %v2974
  %v3588 = vunpack.c.l.b16 %v2975
  %v3589 = vunpack.c.h.b16 %v2975
  %v3590 = vunpack.c.l.b16 %v2976
  %v3591 = vunpack.c.h.b16 %v2976
  %v3592 = vunpack.c.l.b16 %v2977
  %v3593 = vunpack.c.h.b16 %v2977
  %v3594 = vunpack.c.l.b16 %v2978
  %v3595 = vunpack.c.h.b16 %v2978
  %v3596 = vunpack.c.l.b16 %v2979
  %v3597 = vunpack.c.h.b16 %v2979
  %v3598 = vunpack.c.l.b16 %v2980
  %v3599 = vunpack.c.h.b16 %v2980
  %v3600 = vunpack.c.l.b16 %v2981
  %v3601 = vunpack.c.h.b16 %v2981
  %v3602 = vunpack.c.l.b16 %v2982
  %v3603 = vunpack.c.h.b16 %v2982
  %v3604 = vunpack.c.l.b16 %v2983
  %v3605 = vunpack.c.h.b16 %v2983
  %v3606 = vunpack.c.l.b16 %v2984
  %v3607 = vunpack.c.h.b16 %v2984
  %v3608 = vunpack.c.l.b16 %v2985
  %v3609 = vunpack.c.h.b16 %v2985
  %v3610 = vunpack.c.l.b16 %v2986
  %v3611 = vunpack.c.h.b16 %v2986
  %v3612 = vunpack.c.l.b16 %v2987
  %v3613 = vunpack.c.h.b16 %v2987
  %v3614 = vunpack.c.l.b16 %v2988
  %v3615 = vunpack.c.h.b16 %v2988
  %v3616 = vunpack.c.l.b16 %v2989
  %v3617 = vunpack.c.h.b16 %v2989
  %v3618 = vunpack.c.l.b16 %v2990
  %v3619 = vunpack.c.h.b16 %v2990
  %v3620 = vunpack.c.l.b16 %v2991
  %v3621 = vunpack.c.h.b16 %v2991
  %v3622 = vunpack.c.l.b16 %v2992
  %v3623 = vunpack.c.h.b16 %v2992
  %v3624 = vunpack.c.l.b16 %v2993
  %v3625 = vunpack.c.h.b16 %v2993
  %v3626 = vunpack.c.l.b16 %v2994
  %v3627 = vunpack.c.h.b16 %v2994
  %v3628 = vunpack.c.l.b16 %v2995
  %v3629 = vunpack.c.h.b16 %v2995
  %v3630 = vunpack.c.l.b16 %v2996
  %v3631 = vunpack.c.h.b16 %v2996
  %v3632 = vunpack.c.l.b16 %v2997
  %v3633 = vunpack.c.h.b16 %v2997
  %v3634 = vpack.c.b16 %v3572, %v3570
  %v3635 = vpack.c.b16 %v3573, %v3571
  %v3636 = vpack.c.b16 %v3576, %v3574
  %v3637 = vpack.c.b16 %v3577, %v3575
  %v3638 = vpack.c.b16 %v3580, %v3578
  %v3639 = vpack.c.b16 %v3581, %v3579
  %v3640 = vpack.c.b16 %v3584, %v3582
  %v3641 = vpack.c.b16 %v3585, %v3583
  %v3642 = vpack.c.b16 %v3588, %v3586
  %v3643 = vpack.c.b16 %v3589, %v3587
  %v3644 = vpack.c.b16 %v3592, %v3590
  %v3645 = vpack.c.b16 %v3593, %v3591
  %v3646 = vpack.c.b16 %v3596, %v3594
  %v3647 = vpack.c.b16 %v3597, %v3595
  %v3648 = vpack.c.b16 %v3600, %v3598
  %v3649 = vpack.c.b16 %v3601, %v3599
  %v3650 = vpack.c.b16 %v3604, %v3602
  %v3651 = vpack.c.b16 %v3605, %v3603
  %v3652 = vpack.c.b16 %v3608, %v3606
  %v3653 = vpack.c.b16 %v3609, %v3607
  %v3654 = vpack.c.b16 %v3612, %v3610
  %v3655 = vpack.c.b16 %v3613, %v3611
  %v3656 = vpack.c.b16 %v3616, %v3614
  %v3657 = vpack.c.b16 %v3617, %v3615
  %v3658 = vpack.c.b16 %v3620, %v3618
  %v3659 = vpack.c.b16 %v3621, %v3619
  %v3660 = vpack.c.b16 %v3624, %v3622
  %v3661 = vpack.c.b16 %v3625, %v3623
  %v3662 = vpack.c.b16 %v3628, %v3626
  %v3663 = vpack.c.b16 %v3629, %v3627
  %v3664 = vpack.c.b16 %v3632, %v3630
  %v3665 = vpack.c.b16 %v3633, %v3631
  %3698 = vmatprep.subr.bf16.mxu0 0
  %3699 = vmatpush1.bf16.msra.mxu0 %v2957
  %3700 = vmatprep.subr.bf16.mxu0 0
  %3701 = vmatpush1.bf16.msra.mxu0 %v2956
  %3702 = vmatprep.subr.bf16.mxu0 0
  %3703 = vmatpush1.bf16.msra.mxu0 %v2955
  %3704 = vmatprep.subr.bf16.mxu0 0
  %3705 = vmatpush1.bf16.msra.mxu0 %v2954
  %3706 = vmatprep.subr.bf16.mxu0 0
  %3707 = vmatpush1.bf16.msra.mxu0 %v2953
  %3708 = vmatprep.subr.bf16.mxu0 0
  %3709 = vmatpush1.bf16.msra.mxu0 %v2952
  %3710 = vmatprep.subr.bf16.mxu0 0
  %3711 = vmatpush1.bf16.msra.mxu0 %v2951
  %3712 = vmatprep.subr.bf16.mxu0 0
  %3713 = vmatpush1.bf16.msra.mxu0 %v2950
  %3714 = vmatprep.subr.bf16.mxu0 0
  %3715 = vmatpush2.bf16.msra.mxu0 %v2965
  %3716 = vmatprep.subr.bf16.mxu0 0
  %3717 = vmatpush2.bf16.msra.mxu0 %v2964
  %3718 = vmatprep.subr.bf16.mxu0 0
  %3719 = vmatpush2.bf16.msra.mxu0 %v2963
  %3720 = vmatprep.subr.bf16.mxu0 0
  %3721 = vmatpush2.bf16.msra.mxu0 %v2962
  %3722 = vmatprep.subr.bf16.mxu0 0
  %3723 = vmatpush2.bf16.msra.mxu0 %v2961
  %3724 = vmatprep.subr.bf16.mxu0 0
  %3725 = vmatpush2.bf16.msra.mxu0 %v2960
  %3726 = vmatprep.subr.bf16.mxu0 0
  %3727 = vmatpush2.bf16.msra.mxu0 %v2959
  %3728 = vmatprep.subr.bf16.mxu0 0
  %3729 = vmatpush2.bf16.msra.mxu0 %v2958
  %3730 = vmatprep.mubr.bf16.mxu0 %v3635
  %3731 = vmatmul.mubr.bf16.gmra.mxu0 %v3634
  %v3732 = vpop.f32.mrf.mxu0
  %v3733 = vadd.f32 %v3412, %v3732
  %v3734 = vpop.f32.mrf.mxu0
  %v3735 = vpop.f32.mrf.mxu0
  %v3736 = vadd.f32 %v3415, %v3735
  %v3737 = vpop.f32.mrf.mxu0
  %3738 = vmatprep.mubr.bf16.mxu0 %v3637
  %3739 = vmatmul.mubr.bf16.gmra.mxu0 %v3636
  %v3740 = vpop.f32.mrf.mxu0
  %v3741 = vadd.f32 %v3420, %v3740
  %v3742 = vpop.f32.mrf.mxu0
  %v3743 = vpop.f32.mrf.mxu0
  %v3744 = vadd.f32 %v3423, %v3743
  %v3745 = vpop.f32.mrf.mxu0
  %3746 = vmatprep.mubr.bf16.mxu0 %v3639
  %3747 = vmatmul.mubr.bf16.gmra.mxu0 %v3638
  %v3748 = vpop.f32.mrf.mxu0
  %v3749 = vadd.f32 %v3428, %v3748
  %v3750 = vpop.f32.mrf.mxu0
  %v3751 = vpop.f32.mrf.mxu0
  %v3752 = vadd.f32 %v3431, %v3751
  %v3753 = vpop.f32.mrf.mxu0
  %3754 = vmatprep.mubr.bf16.mxu0 %v3641
  %3755 = vmatmul.mubr.bf16.gmra.mxu0 %v3640
  %v3756 = vpop.f32.mrf.mxu0
  %v3757 = vadd.f32 %v3436, %v3756
  %v3758 = vpop.f32.mrf.mxu0
  %v3759 = vpop.f32.mrf.mxu0
  %v3760 = vadd.f32 %v3439, %v3759
  %v3761 = vpop.f32.mrf.mxu0
  %3762 = vmatprep.mubr.bf16.mxu0 %v3643
  %3763 = vmatmul.mubr.bf16.gmra.mxu0 %v3642
  %v3764 = vpop.f32.mrf.mxu0
  %v3765 = vadd.f32 %v3444, %v3764
  %v3766 = vpop.f32.mrf.mxu0
  %v3767 = vpop.f32.mrf.mxu0
  %v3768 = vadd.f32 %v3447, %v3767
  %v3769 = vpop.f32.mrf.mxu0
  %3770 = vmatprep.mubr.bf16.mxu0 %v3645
  %3771 = vmatmul.mubr.bf16.gmra.mxu0 %v3644
  %v3772 = vpop.f32.mrf.mxu0
  %v3773 = vadd.f32 %v3452, %v3772
  %v3774 = vpop.f32.mrf.mxu0
  %v3775 = vpop.f32.mrf.mxu0
  %v3776 = vadd.f32 %v3455, %v3775
  %v3777 = vpop.f32.mrf.mxu0
  %3778 = vmatprep.mubr.bf16.mxu0 %v3647
  %3779 = vmatmul.mubr.bf16.gmra.mxu0 %v3646
  %v3780 = vpop.f32.mrf.mxu0
  %v3781 = vadd.f32 %v3460, %v3780
  %v3782 = vpop.f32.mrf.mxu0
  %v3783 = vpop.f32.mrf.mxu0
  %v3784 = vadd.f32 %v3463, %v3783
  %v3785 = vpop.f32.mrf.mxu0
  %3786 = vmatprep.mubr.bf16.mxu0 %v3649
  %3787 = vmatmul.mubr.bf16.gmra.mxu0 %v3648
  %v3788 = vpop.f32.mrf.mxu0
  %v3789 = vadd.f32 %v3468, %v3788
  %v3790 = vpop.f32.mrf.mxu0
  %v3791 = vpop.f32.mrf.mxu0
  %v3792 = vadd.f32 %v3471, %v3791
  %v3793 = vpop.f32.mrf.mxu0
  %3794 = vmatprep.mubr.bf16.mxu0 %v3651
  %3795 = vmatmul.mubr.bf16.gmra.mxu0 %v3650
  %v3796 = vpop.f32.mrf.mxu0
  %v3797 = vadd.f32 %v3476, %v3796
  %v3798 = vpop.f32.mrf.mxu0
  %v3799 = vpop.f32.mrf.mxu0
  %v3800 = vadd.f32 %v3479, %v3799
  %v3801 = vpop.f32.mrf.mxu0
  %3802 = vmatprep.mubr.bf16.mxu0 %v3653
  %3803 = vmatmul.mubr.bf16.gmra.mxu0 %v3652
  %v3804 = vpop.f32.mrf.mxu0
  %v3805 = vadd.f32 %v3484, %v3804
  %v3806 = vpop.f32.mrf.mxu0
  %v3807 = vpop.f32.mrf.mxu0
  %v3808 = vadd.f32 %v3487, %v3807
  %v3809 = vpop.f32.mrf.mxu0
  %3810 = vmatprep.mubr.bf16.mxu0 %v3655
  %3811 = vmatmul.mubr.bf16.gmra.mxu0 %v3654
  %v3812 = vpop.f32.mrf.mxu0
  %v3813 = vadd.f32 %v3492, %v3812
  %v3814 = vpop.f32.mrf.mxu0
  %v3815 = vpop.f32.mrf.mxu0
  %v3816 = vadd.f32 %v3495, %v3815
  %v3817 = vpop.f32.mrf.mxu0
  %3818 = vmatprep.mubr.bf16.mxu0 %v3657
  %3819 = vmatmul.mubr.bf16.gmra.mxu0 %v3656
  %v3820 = vpop.f32.mrf.mxu0
  %v3821 = vadd.f32 %v3500, %v3820
  %v3822 = vpop.f32.mrf.mxu0
  %v3823 = vpop.f32.mrf.mxu0
  %v3824 = vadd.f32 %v3503, %v3823
  %v3825 = vpop.f32.mrf.mxu0
  %3826 = vmatprep.mubr.bf16.mxu0 %v3659
  %3827 = vmatmul.mubr.bf16.gmra.mxu0 %v3658
  %v3828 = vpop.f32.mrf.mxu0
  %v3829 = vadd.f32 %v3508, %v3828
  %v3830 = vpop.f32.mrf.mxu0
  %v3831 = vpop.f32.mrf.mxu0
  %v3832 = vadd.f32 %v3511, %v3831
  %v3833 = vpop.f32.mrf.mxu0
  %3834 = vmatprep.mubr.bf16.mxu0 %v3661
  %3835 = vmatmul.mubr.bf16.gmra.mxu0 %v3660
  %v3836 = vpop.f32.mrf.mxu0
  %v3837 = vadd.f32 %v3516, %v3836
  %v3838 = vpop.f32.mrf.mxu0
  %v3839 = vpop.f32.mrf.mxu0
  %v3840 = vadd.f32 %v3519, %v3839
  %v3841 = vpop.f32.mrf.mxu0
  %3842 = vmatprep.mubr.bf16.mxu0 %v3663
  %3843 = vmatmul.mubr.bf16.gmra.mxu0 %v3662
  %v3844 = vpop.f32.mrf.mxu0
  %v3845 = vadd.f32 %v3524, %v3844
  %v3846 = vpop.f32.mrf.mxu0
  %v3847 = vpop.f32.mrf.mxu0
  %v3848 = vadd.f32 %v3527, %v3847
  %v3849 = vpop.f32.mrf.mxu0
  %3850 = vmatprep.mubr.bf16.mxu0 %v3665
  %3851 = vmatmul.mubr.bf16.gmra.mxu0 %v3664
  %v3852 = vpop.f32.mrf.mxu0
  %v3853 = vadd.f32 %v3532, %v3852
  %v3854 = vpop.f32.mrf.mxu0
  %v3855 = vpop.f32.mrf.mxu0
  %v3856 = vadd.f32 %v3535, %v3855
  %v3857 = vpop.f32.mrf.mxu0
  %3858 = vdwg.mxu0
  %s3859 = scalar_lea.vmem %s4, 16
  %v3860 = vld [vmem:[%s3859] sm:$0xf]
  %v3861 = vld [vmem:[%s3859 + $0x4] sm:$0xf]
  %v3864 = vunpack.c.l.b16 %v3860
  %v3865 = vunpack.c.l.b16 %v3861
  %v3866 = vpack.c.b16 %v3865, %v3864
  %3868 = vmatprep.subr.bf16.mxu0 0
  %3869 = vmatpush1.bf16.msra.mxu0 0
  %3870 = vmatprep.subr.bf16.mxu0 0
  %3871 = vmatpush1.bf16.msra.mxu0 0
  %3872 = vmatprep.subr.bf16.mxu0 0
  %3873 = vmatpush1.bf16.msra.mxu0 0
  %3874 = vmatprep.subr.bf16.mxu0 0
  %3875 = vmatpush1.bf16.msra.mxu0 0
  %3876 = vmatprep.subr.bf16.mxu0 0
  %3877 = vmatpush1.bf16.msra.mxu0 0
  %3878 = vmatprep.subr.bf16.mxu0 0
  %3879 = vmatpush1.bf16.msra.mxu0 0
  %3880 = vmatprep.subr.bf16.mxu0 0
  %3881 = vmatpush1.bf16.msra.mxu0 0
  %3882 = vmatprep.subr.bf16.mxu0 0
  %3883 = vmatpush1.bf16.msra.mxu0 %v3866
  %3884 = vmatprep.subr.bf16.mxu0 0
  %3885 = vmatpush2.bf16.msra.mxu0 0
  %3886 = vmatprep.subr.bf16.mxu0 0
  %3887 = vmatpush2.bf16.msra.mxu0 0
  %3888 = vmatprep.subr.bf16.mxu0 0
  %3889 = vmatpush2.bf16.msra.mxu0 0
  %3890 = vmatprep.subr.bf16.mxu0 0
  %3891 = vmatpush2.bf16.msra.mxu0 0
  %3892 = vmatprep.subr.bf16.mxu0 0
  %3893 = vmatpush2.bf16.msra.mxu0 0
  %3894 = vmatprep.subr.bf16.mxu0 0
  %3895 = vmatpush2.bf16.msra.mxu0 0
  %3896 = vmatprep.subr.bf16.mxu0 0
  %3897 = vmatpush2.bf16.msra.mxu0 0
  %3898 = vmatprep.subr.bf16.mxu0 0
  %3899 = vmatpush2.bf16.msra.mxu0 0
  %3900 = vmatprep.mubr.bf16.mxu0 0
  %3901 = vmatmul.mubr.bf16.gmra.mxu0 %v2742
  %v3902 = vpop.f32.mrf.mxu0
  %v3903 = vadd.f32 0.0, %v3902
  %v3904 = vpop.f32.mrf.mxu0
  %v3905 = vpop.f32.mrf.mxu0
  %v3906 = vadd.f32 0.0, %v3905
  %v3907 = vpop.f32.mrf.mxu0
  %3908 = vmatprep.mubr.bf16.mxu0 0
  %3909 = vmatmul.mubr.bf16.gmra.mxu0 %v2745
  %v3910 = vpop.f32.mrf.mxu0
  %v3911 = vadd.f32 0.0, %v3910
  %v3912 = vpop.f32.mrf.mxu0
  %v3913 = vpop.f32.mrf.mxu0
  %v3914 = vadd.f32 0.0, %v3913
  %v3915 = vpop.f32.mrf.mxu0
  %3916 = vmatprep.mubr.bf16.mxu0 0
  %3917 = vmatmul.mubr.bf16.gmra.mxu0 %v2748
  %v3918 = vpop.f32.mrf.mxu0
  %v3919 = vadd.f32 0.0, %v3918
  %v3920 = vpop.f32.mrf.mxu0
  %v3921 = vpop.f32.mrf.mxu0
  %v3922 = vadd.f32 0.0, %v3921
  %v3923 = vpop.f32.mrf.mxu0
  %3924 = vmatprep.mubr.bf16.mxu0 0
  %3925 = vmatmul.mubr.bf16.gmra.mxu0 %v2751
  %v3926 = vpop.f32.mrf.mxu0
  %v3927 = vadd.f32 0.0, %v3926
  %v3928 = vpop.f32.mrf.mxu0
  %v3929 = vpop.f32.mrf.mxu0
  %v3930 = vadd.f32 0.0, %v3929
  %v3931 = vpop.f32.mrf.mxu0
  %3932 = vmatprep.mubr.bf16.mxu0 0
  %3933 = vmatmul.mubr.bf16.gmra.mxu0 %v2754
  %v3934 = vpop.f32.mrf.mxu0
  %v3935 = vadd.f32 0.0, %v3934
  %v3936 = vpop.f32.mrf.mxu0
  %v3937 = vpop.f32.mrf.mxu0
  %v3938 = vadd.f32 0.0, %v3937
  %v3939 = vpop.f32.mrf.mxu0
  %3940 = vmatprep.mubr.bf16.mxu0 0
  %3941 = vmatmul.mubr.bf16.gmra.mxu0 %v2757
  %v3942 = vpop.f32.mrf.mxu0
  %v3943 = vadd.f32 0.0, %v3942
  %v3944 = vpop.f32.mrf.mxu0
  %v3945 = vpop.f32.mrf.mxu0
  %v3946 = vadd.f32 0.0, %v3945
  %v3947 = vpop.f32.mrf.mxu0
  %3948 = vmatprep.mubr.bf16.mxu0 0
  %3949 = vmatmul.mubr.bf16.gmra.mxu0 %v2760
  %v3950 = vpop.f32.mrf.mxu0
  %v3951 = vadd.f32 0.0, %v3950
  %v3952 = vpop.f32.mrf.mxu0
  %v3953 = vpop.f32.mrf.mxu0
  %v3954 = vadd.f32 0.0, %v3953
  %v3955 = vpop.f32.mrf.mxu0
  %3956 = vmatprep.mubr.bf16.mxu0 0
  %3957 = vmatmul.mubr.bf16.gmra.mxu0 %v2763
  %v3958 = vpop.f32.mrf.mxu0
  %v3959 = vadd.f32 0.0, %v3958
  %v3960 = vpop.f32.mrf.mxu0
  %v3961 = vpop.f32.mrf.mxu0
  %v3962 = vadd.f32 0.0, %v3961
  %v3963 = vpop.f32.mrf.mxu0
  %3964 = vmatprep.mubr.bf16.mxu0 0
  %3965 = vmatmul.mubr.bf16.gmra.mxu0 %v2766
  %v3966 = vpop.f32.mrf.mxu0
  %v3967 = vadd.f32 0.0, %v3966
  %v3968 = vpop.f32.mrf.mxu0
  %v3969 = vpop.f32.mrf.mxu0
  %v3970 = vadd.f32 0.0, %v3969
  %v3971 = vpop.f32.mrf.mxu0
  %3972 = vmatprep.mubr.bf16.mxu0 0
  %3973 = vmatmul.mubr.bf16.gmra.mxu0 %v2769
  %v3974 = vpop.f32.mrf.mxu0
  %v3975 = vadd.f32 0.0, %v3974
  %v3976 = vpop.f32.mrf.mxu0
  %v3977 = vpop.f32.mrf.mxu0
  %v3978 = vadd.f32 0.0, %v3977
  %v3979 = vpop.f32.mrf.mxu0
  %3980 = vmatprep.mubr.bf16.mxu0 0
  %3981 = vmatmul.mubr.bf16.gmra.mxu0 %v2772
  %v3982 = vpop.f32.mrf.mxu0
  %v3983 = vadd.f32 0.0, %v3982
  %v3984 = vpop.f32.mrf.mxu0
  %v3985 = vpop.f32.mrf.mxu0
  %v3986 = vadd.f32 0.0, %v3985
  %v3987 = vpop.f32.mrf.mxu0
  %3988 = vmatprep.mubr.bf16.mxu0 0
  %3989 = vmatmul.mubr.bf16.gmra.mxu0 %v2775
  %v3990 = vpop.f32.mrf.mxu0
  %v3991 = vadd.f32 0.0, %v3990
  %v3992 = vpop.f32.mrf.mxu0
  %v3993 = vpop.f32.mrf.mxu0
  %v3994 = vadd.f32 0.0, %v3993
  %v3995 = vpop.f32.mrf.mxu0
  %3996 = vmatprep.mubr.bf16.mxu0 0
  %3997 = vmatmul.mubr.bf16.gmra.mxu0 %v2778
  %v3998 = vpop.f32.mrf.mxu0
  %v3999 = vadd.f32 0.0, %v3998
  %v4000 = vpop.f32.mrf.mxu0
  %v4001 = vpop.f32.mrf.mxu0
  %v4002 = vadd.f32 0.0, %v4001
  %v4003 = vpop.f32.mrf.mxu0
  %4004 = vmatprep.mubr.bf16.mxu0 0
  %4005 = vmatmul.mubr.bf16.gmra.mxu0 %v2781
  %v4006 = vpop.f32.mrf.mxu0
  %v4007 = vadd.f32 0.0, %v4006
  %v4008 = vpop.f32.mrf.mxu0
  %v4009 = vpop.f32.mrf.mxu0
  %v4010 = vadd.f32 0.0, %v4009
  %v4011 = vpop.f32.mrf.mxu0
  %4012 = vmatprep.mubr.bf16.mxu0 0
  %4013 = vmatmul.mubr.bf16.gmra.mxu0 %v2784
  %v4014 = vpop.f32.mrf.mxu0
  %v4015 = vadd.f32 0.0, %v4014
  %v4016 = vpop.f32.mrf.mxu0
  %v4017 = vpop.f32.mrf.mxu0
  %v4018 = vadd.f32 0.0, %v4017
  %v4019 = vpop.f32.mrf.mxu0
  %4020 = vmatprep.mubr.bf16.mxu0 0
  %4021 = vmatmul.mubr.bf16.gmra.mxu0 %v2787
  %v4022 = vpop.f32.mrf.mxu0
  %v4023 = vadd.f32 0.0, %v4022
  %v4024 = vpop.f32.mrf.mxu0
  %v4025 = vpop.f32.mrf.mxu0
  %v4026 = vadd.f32 0.0, %v4025
  %v4027 = vpop.f32.mrf.mxu0
  %4028 = vdwg.mxu0
  %v4029 = vpack.c.bf16 %v3906, %v3903
  %v4030 = vpack.c.bf16 %v3914, %v3911
  %v4031 = vpack.c.bf16 %v3922, %v3919
  %v4032 = vpack.c.bf16 %v3930, %v3927
  %v4033 = vpack.c.bf16 %v3938, %v3935
  %v4034 = vpack.c.bf16 %v3946, %v3943
  %v4035 = vpack.c.bf16 %v3954, %v3951
  %v4036 = vpack.c.bf16 %v3962, %v3959
  %v4037 = vpack.c.bf16 %v3970, %v3967
  %v4038 = vpack.c.bf16 %v3978, %v3975
  %v4039 = vpack.c.bf16 %v3986, %v3983
  %v4040 = vpack.c.bf16 %v3994, %v3991
  %v4041 = vpack.c.bf16 %v4002, %v3999
  %v4042 = vpack.c.bf16 %v4010, %v4007
  %v4043 = vpack.c.bf16 %v4018, %v4015
  %v4044 = vpack.c.bf16 %v4026, %v4023
  %s4045 = scalar_lea.vmem %s5, 512
  %v4046 = vld [vmem:[%s4045] sm:$0xff]
  %v4047 = vld [vmem:[%s4045 + $0x8] sm:$0xff]
  %v4048 = vld [vmem:[%s4045 + $0x10] sm:$0xff]
  %v4049 = vld [vmem:[%s4045 + $0x18] sm:$0xff]
  %v4050 = vld [vmem:[%s4045 + $0x20] sm:$0xff]
  %v4051 = vld [vmem:[%s4045 + $0x28] sm:$0xff]
  %v4052 = vld [vmem:[%s4045 + $0x30] sm:$0xff]
  %v4053 = vld [vmem:[%s4045 + $0x38] sm:$0xff]
  %v4054 = vld [vmem:[%s4045 + $0x40] sm:$0xff]
  %v4055 = vld [vmem:[%s4045 + $0x48] sm:$0xff]
  %v4056 = vld [vmem:[%s4045 + $0x50] sm:$0xff]
  %v4057 = vld [vmem:[%s4045 + $0x58] sm:$0xff]
  %v4058 = vld [vmem:[%s4045 + $0x60] sm:$0xff]
  %v4059 = vld [vmem:[%s4045 + $0x68] sm:$0xff]
  %v4060 = vld [vmem:[%s4045 + $0x70] sm:$0xff]
  %v4061 = vld [vmem:[%s4045 + $0x78] sm:$0xff]
  %v4062 = vld [vmem:[%s4045 + $0x80] sm:$0xff]
  %v4063 = vld [vmem:[%s4045 + $0x88] sm:$0xff]
  %v4064 = vld [vmem:[%s4045 + $0x90] sm:$0xff]
  %v4065 = vld [vmem:[%s4045 + $0x98] sm:$0xff]
  %v4066 = vld [vmem:[%s4045 + $0xa0] sm:$0xff]
  %v4067 = vld [vmem:[%s4045 + $0xa8] sm:$0xff]
  %v4068 = vld [vmem:[%s4045 + $0xb0] sm:$0xff]
  %v4069 = vld [vmem:[%s4045 + $0xb8] sm:$0xff]
  %v4070 = vld [vmem:[%s4045 + $0xc0] sm:$0xff]
  %v4071 = vld [vmem:[%s4045 + $0xc8] sm:$0xff]
  %v4072 = vld [vmem:[%s4045 + $0xd0] sm:$0xff]
  %v4073 = vld [vmem:[%s4045 + $0xd8] sm:$0xff]
  %v4074 = vld [vmem:[%s4045 + $0xe0] sm:$0xff]
  %v4075 = vld [vmem:[%s4045 + $0xe8] sm:$0xff]
  %v4076 = vld [vmem:[%s4045 + $0xf0] sm:$0xff]
  %v4077 = vld [vmem:[%s4045 + $0xf8] sm:$0xff]
  %v4110 = vunpack.c.l.b16 %v4046
  %v4111 = vunpack.c.h.b16 %v4046
  %v4112 = vunpack.c.l.b16 %v4047
  %v4113 = vunpack.c.h.b16 %v4047
  %v4114 = vunpack.c.l.b16 %v4048
  %v4115 = vunpack.c.h.b16 %v4048
  %v4116 = vunpack.c.l.b16 %v4049
  %v4117 = vunpack.c.h.b16 %v4049
  %v4118 = vunpack.c.l.b16 %v4050
  %v4119 = vunpack.c.h.b16 %v4050
  %v4120 = vunpack.c.l.b16 %v4051
  %v4121 = vunpack.c.h.b16 %v4051
  %v4122 = vunpack.c.l.b16 %v4052
  %v4123 = vunpack.c.h.b16 %v4052
  %v4124 = vunpack.c.l.b16 %v4053
  %v4125 = vunpack.c.h.b16 %v4053
  %v4126 = vunpack.c.l.b16 %v4054
  %v4127 = vunpack.c.h.b16 %v4054
  %v4128 = vunpack.c.l.b16 %v4055
  %v4129 = vunpack.c.h.b16 %v4055
  %v4130 = vunpack.c.l.b16 %v4056
  %v4131 = vunpack.c.h.b16 %v4056
  %v4132 = vunpack.c.l.b16 %v4057
  %v4133 = vunpack.c.h.b16 %v4057
  %v4134 = vunpack.c.l.b16 %v4058
  %v4135 = vunpack.c.h.b16 %v4058
  %v4136 = vunpack.c.l.b16 %v4059
  %v4137 = vunpack.c.h.b16 %v4059
  %v4138 = vunpack.c.l.b16 %v4060
  %v4139 = vunpack.c.h.b16 %v4060
  %v4140 = vunpack.c.l.b16 %v4061
  %v4141 = vunpack.c.h.b16 %v4061
  %v4142 = vunpack.c.l.b16 %v4062
  %v4143 = vunpack.c.h.b16 %v4062
  %v4144 = vunpack.c.l.b16 %v4063
  %v4145 = vunpack.c.h.b16 %v4063
  %v4146 = vunpack.c.l.b16 %v4064
  %v4147 = vunpack.c.h.b16 %v4064
  %v4148 = vunpack.c.l.b16 %v4065
  %v4149 = vunpack.c.h.b16 %v4065
  %v4150 = vunpack.c.l.b16 %v4066
  %v4151 = vunpack.c.h.b16 %v4066
  %v4152 = vunpack.c.l.b16 %v4067
  %v4153 = vunpack.c.h.b16 %v4067
  %v4154 = vunpack.c.l.b16 %v4068
  %v4155 = vunpack.c.h.b16 %v4068
  %v4156 = vunpack.c.l.b16 %v4069
  %v4157 = vunpack.c.h.b16 %v4069
  %v4158 = vunpack.c.l.b16 %v4070
  %v4159 = vunpack.c.h.b16 %v4070
  %v4160 = vunpack.c.l.b16 %v4071
  %v4161 = vunpack.c.h.b16 %v4071
  %v4162 = vunpack.c.l.b16 %v4072
  %v4163 = vunpack.c.h.b16 %v4072
  %v4164 = vunpack.c.l.b16 %v4073
  %v4165 = vunpack.c.h.b16 %v4073
  %v4166 = vunpack.c.l.b16 %v4074
  %v4167 = vunpack.c.h.b16 %v4074
  %v4168 = vunpack.c.l.b16 %v4075
  %v4169 = vunpack.c.h.b16 %v4075
  %v4170 = vunpack.c.l.b16 %v4076
  %v4171 = vunpack.c.h.b16 %v4076
  %v4172 = vunpack.c.l.b16 %v4077
  %v4173 = vunpack.c.h.b16 %v4077
  %v4174 = vpack.c.b16 %v4112, %v4110
  %v4175 = vpack.c.b16 %v4113, %v4111
  %v4176 = vpack.c.b16 %v4116, %v4114
  %v4177 = vpack.c.b16 %v4117, %v4115
  %v4178 = vpack.c.b16 %v4120, %v4118
  %v4179 = vpack.c.b16 %v4121, %v4119
  %v4180 = vpack.c.b16 %v4124, %v4122
  %v4181 = vpack.c.b16 %v4125, %v4123
  %v4182 = vpack.c.b16 %v4128, %v4126
  %v4183 = vpack.c.b16 %v4129, %v4127
  %v4184 = vpack.c.b16 %v4132, %v4130
  %v4185 = vpack.c.b16 %v4133, %v4131
  %v4186 = vpack.c.b16 %v4136, %v4134
  %v4187 = vpack.c.b16 %v4137, %v4135
  %v4188 = vpack.c.b16 %v4140, %v4138
  %v4189 = vpack.c.b16 %v4141, %v4139
  %v4190 = vpack.c.b16 %v4144, %v4142
  %v4191 = vpack.c.b16 %v4145, %v4143
  %v4192 = vpack.c.b16 %v4148, %v4146
  %v4193 = vpack.c.b16 %v4149, %v4147
  %v4194 = vpack.c.b16 %v4152, %v4150
  %v4195 = vpack.c.b16 %v4153, %v4151
  %v4196 = vpack.c.b16 %v4156, %v4154
  %v4197 = vpack.c.b16 %v4157, %v4155
  %v4198 = vpack.c.b16 %v4160, %v4158
  %v4199 = vpack.c.b16 %v4161, %v4159
  %v4200 = vpack.c.b16 %v4164, %v4162
  %v4201 = vpack.c.b16 %v4165, %v4163
  %v4202 = vpack.c.b16 %v4168, %v4166
  %v4203 = vpack.c.b16 %v4169, %v4167
  %v4204 = vpack.c.b16 %v4172, %v4170
  %v4205 = vpack.c.b16 %v4173, %v4171
  %4238 = vmatprep.subr.bf16.mxu0 0
  %4239 = vmatpush1.bf16.msra.mxu0 %v4036
  %4240 = vmatprep.subr.bf16.mxu0 0
  %4241 = vmatpush1.bf16.msra.mxu0 %v4035
  %4242 = vmatprep.subr.bf16.mxu0 0
  %4243 = vmatpush1.bf16.msra.mxu0 %v4034
  %4244 = vmatprep.subr.bf16.mxu0 0
  %4245 = vmatpush1.bf16.msra.mxu0 %v4033
  %4246 = vmatprep.subr.bf16.mxu0 0
  %4247 = vmatpush1.bf16.msra.mxu0 %v4032
  %4248 = vmatprep.subr.bf16.mxu0 0
  %4249 = vmatpush1.bf16.msra.mxu0 %v4031
  %4250 = vmatprep.subr.bf16.mxu0 0
  %4251 = vmatpush1.bf16.msra.mxu0 %v4030
  %4252 = vmatprep.subr.bf16.mxu0 0
  %4253 = vmatpush1.bf16.msra.mxu0 %v4029
  %4254 = vmatprep.subr.bf16.mxu0 0
  %4255 = vmatpush2.bf16.msra.mxu0 %v4044
  %4256 = vmatprep.subr.bf16.mxu0 0
  %4257 = vmatpush2.bf16.msra.mxu0 %v4043
  %4258 = vmatprep.subr.bf16.mxu0 0
  %4259 = vmatpush2.bf16.msra.mxu0 %v4042
  %4260 = vmatprep.subr.bf16.mxu0 0
  %4261 = vmatpush2.bf16.msra.mxu0 %v4041
  %4262 = vmatprep.subr.bf16.mxu0 0
  %4263 = vmatpush2.bf16.msra.mxu0 %v4040
  %4264 = vmatprep.subr.bf16.mxu0 0
  %4265 = vmatpush2.bf16.msra.mxu0 %v4039
  %4266 = vmatprep.subr.bf16.mxu0 0
  %4267 = vmatpush2.bf16.msra.mxu0 %v4038
  %4268 = vmatprep.subr.bf16.mxu0 0
  %4269 = vmatpush2.bf16.msra.mxu0 %v4037
  %4270 = vmatprep.mubr.bf16.mxu0 %v4175
  %4271 = vmatmul.mubr.bf16.gmra.mxu0 %v4174
  %v4272 = vpop.f32.mrf.mxu0
  %v4273 = vadd.f32 0.0, %v4272
  %v4274 = vpop.f32.mrf.mxu0
  %v4275 = vpop.f32.mrf.mxu0
  %v4276 = vadd.f32 0.0, %v4275
  %v4277 = vpop.f32.mrf.mxu0
  %4278 = vmatprep.mubr.bf16.mxu0 %v4177
  %4279 = vmatmul.mubr.bf16.gmra.mxu0 %v4176
  %v4280 = vpop.f32.mrf.mxu0
  %v4281 = vadd.f32 0.0, %v4280
  %v4282 = vpop.f32.mrf.mxu0
  %v4283 = vpop.f32.mrf.mxu0
  %v4284 = vadd.f32 0.0, %v4283
  %v4285 = vpop.f32.mrf.mxu0
  %4286 = vmatprep.mubr.bf16.mxu0 %v4179
  %4287 = vmatmul.mubr.bf16.gmra.mxu0 %v4178
  %v4288 = vpop.f32.mrf.mxu0
  %v4289 = vadd.f32 0.0, %v4288
  %v4290 = vpop.f32.mrf.mxu0
  %v4291 = vpop.f32.mrf.mxu0
  %v4292 = vadd.f32 0.0, %v4291
  %v4293 = vpop.f32.mrf.mxu0
  %4294 = vmatprep.mubr.bf16.mxu0 %v4181
  %4295 = vmatmul.mubr.bf16.gmra.mxu0 %v4180
  %v4296 = vpop.f32.mrf.mxu0
  %v4297 = vadd.f32 0.0, %v4296
  %v4298 = vpop.f32.mrf.mxu0
  %v4299 = vpop.f32.mrf.mxu0
  %v4300 = vadd.f32 0.0, %v4299
  %v4301 = vpop.f32.mrf.mxu0
  %4302 = vmatprep.mubr.bf16.mxu0 %v4183
  %4303 = vmatmul.mubr.bf16.gmra.mxu0 %v4182
  %v4304 = vpop.f32.mrf.mxu0
  %v4305 = vadd.f32 0.0, %v4304
  %v4306 = vpop.f32.mrf.mxu0
  %v4307 = vpop.f32.mrf.mxu0
  %v4308 = vadd.f32 0.0, %v4307
  %v4309 = vpop.f32.mrf.mxu0
  %4310 = vmatprep.mubr.bf16.mxu0 %v4185
  %4311 = vmatmul.mubr.bf16.gmra.mxu0 %v4184
  %v4312 = vpop.f32.mrf.mxu0
  %v4313 = vadd.f32 0.0, %v4312
  %v4314 = vpop.f32.mrf.mxu0
  %v4315 = vpop.f32.mrf.mxu0
  %v4316 = vadd.f32 0.0, %v4315
  %v4317 = vpop.f32.mrf.mxu0
  %4318 = vmatprep.mubr.bf16.mxu0 %v4187
  %4319 = vmatmul.mubr.bf16.gmra.mxu0 %v4186
  %v4320 = vpop.f32.mrf.mxu0
  %v4321 = vadd.f32 0.0, %v4320
  %v4322 = vpop.f32.mrf.mxu0
  %v4323 = vpop.f32.mrf.mxu0
  %v4324 = vadd.f32 0.0, %v4323
  %v4325 = vpop.f32.mrf.mxu0
  %4326 = vmatprep.mubr.bf16.mxu0 %v4189
  %4327 = vmatmul.mubr.bf16.gmra.mxu0 %v4188
  %v4328 = vpop.f32.mrf.mxu0
  %v4329 = vadd.f32 0.0, %v4328
  %v4330 = vpop.f32.mrf.mxu0
  %v4331 = vpop.f32.mrf.mxu0
  %v4332 = vadd.f32 0.0, %v4331
  %v4333 = vpop.f32.mrf.mxu0
  %4334 = vmatprep.mubr.bf16.mxu0 %v4191
  %4335 = vmatmul.mubr.bf16.gmra.mxu0 %v4190
  %v4336 = vpop.f32.mrf.mxu0
  %v4337 = vadd.f32 0.0, %v4336
  %v4338 = vpop.f32.mrf.mxu0
  %v4339 = vpop.f32.mrf.mxu0
  %v4340 = vadd.f32 0.0, %v4339
  %v4341 = vpop.f32.mrf.mxu0
  %4342 = vmatprep.mubr.bf16.mxu0 %v4193
  %4343 = vmatmul.mubr.bf16.gmra.mxu0 %v4192
  %v4344 = vpop.f32.mrf.mxu0
  %v4345 = vadd.f32 0.0, %v4344
  %v4346 = vpop.f32.mrf.mxu0
  %v4347 = vpop.f32.mrf.mxu0
  %v4348 = vadd.f32 0.0, %v4347
  %v4349 = vpop.f32.mrf.mxu0
  %4350 = vmatprep.mubr.bf16.mxu0 %v4195
  %4351 = vmatmul.mubr.bf16.gmra.mxu0 %v4194
  %v4352 = vpop.f32.mrf.mxu0
  %v4353 = vadd.f32 0.0, %v4352
  %v4354 = vpop.f32.mrf.mxu0
  %v4355 = vpop.f32.mrf.mxu0
  %v4356 = vadd.f32 0.0, %v4355
  %v4357 = vpop.f32.mrf.mxu0
  %4358 = vmatprep.mubr.bf16.mxu0 %v4197
  %4359 = vmatmul.mubr.bf16.gmra.mxu0 %v4196
  %v4360 = vpop.f32.mrf.mxu0
  %v4361 = vadd.f32 0.0, %v4360
  %v4362 = vpop.f32.mrf.mxu0
  %v4363 = vpop.f32.mrf.mxu0
  %v4364 = vadd.f32 0.0, %v4363
  %v4365 = vpop.f32.mrf.mxu0
  %4366 = vmatprep.mubr.bf16.mxu0 %v4199
  %4367 = vmatmul.mubr.bf16.gmra.mxu0 %v4198
  %v4368 = vpop.f32.mrf.mxu0
  %v4369 = vadd.f32 0.0, %v4368
  %v4370 = vpop.f32.mrf.mxu0
  %v4371 = vpop.f32.mrf.mxu0
  %v4372 = vadd.f32 0.0, %v4371
  %v4373 = vpop.f32.mrf.mxu0
  %4374 = vmatprep.mubr.bf16.mxu0 %v4201
  %4375 = vmatmul.mubr.bf16.gmra.mxu0 %v4200
  %v4376 = vpop.f32.mrf.mxu0
  %v4377 = vadd.f32 0.0, %v4376
  %v4378 = vpop.f32.mrf.mxu0
  %v4379 = vpop.f32.mrf.mxu0
  %v4380 = vadd.f32 0.0, %v4379
  %v4381 = vpop.f32.mrf.mxu0
  %4382 = vmatprep.mubr.bf16.mxu0 %v4203
  %4383 = vmatmul.mubr.bf16.gmra.mxu0 %v4202
  %v4384 = vpop.f32.mrf.mxu0
  %v4385 = vadd.f32 0.0, %v4384
  %v4386 = vpop.f32.mrf.mxu0
  %v4387 = vpop.f32.mrf.mxu0
  %v4388 = vadd.f32 0.0, %v4387
  %v4389 = vpop.f32.mrf.mxu0
  %4390 = vmatprep.mubr.bf16.mxu0 %v4205
  %4391 = vmatmul.mubr.bf16.gmra.mxu0 %v4204
  %v4392 = vpop.f32.mrf.mxu0
  %v4393 = vadd.f32 0.0, %v4392
  %v4394 = vpop.f32.mrf.mxu0
  %v4395 = vpop.f32.mrf.mxu0
  %v4396 = vadd.f32 0.0, %v4395
  %v4397 = vpop.f32.mrf.mxu0
  %4398 = vdwg.mxu0
  %v4399 = vadd.f32 %v3733, %v4273
  %v4400 = vadd.f32 %v3736, %v4276
  %v4401 = vadd.f32 %v3741, %v4281
  %v4402 = vadd.f32 %v3744, %v4284
  %v4403 = vadd.f32 %v3749, %v4289
  %v4404 = vadd.f32 %v3752, %v4292
  %v4405 = vadd.f32 %v3757, %v4297
  %v4406 = vadd.f32 %v3760, %v4300
  %v4407 = vadd.f32 %v3765, %v4305
  %v4408 = vadd.f32 %v3768, %v4308
  %v4409 = vadd.f32 %v3773, %v4313
  %v4410 = vadd.f32 %v3776, %v4316
  %v4411 = vadd.f32 %v3781, %v4321
  %v4412 = vadd.f32 %v3784, %v4324
  %v4413 = vadd.f32 %v3789, %v4329
  %v4414 = vadd.f32 %v3792, %v4332
  %v4415 = vadd.f32 %v3797, %v4337
  %v4416 = vadd.f32 %v3800, %v4340
  %v4417 = vadd.f32 %v3805, %v4345
  %v4418 = vadd.f32 %v3808, %v4348
  %v4419 = vadd.f32 %v3813, %v4353
  %v4420 = vadd.f32 %v3816, %v4356
  %v4421 = vadd.f32 %v3821, %v4361
  %v4422 = vadd.f32 %v3824, %v4364
  %v4423 = vadd.f32 %v3829, %v4369
  %v4424 = vadd.f32 %v3832, %v4372
  %v4425 = vadd.f32 %v3837, %v4377
  %v4426 = vadd.f32 %v3840, %v4380
  %v4427 = vadd.f32 %v3845, %v4385
  %v4428 = vadd.f32 %v3848, %v4388
  %v4429 = vadd.f32 %v3853, %v4393
  %v4430 = vadd.f32 %v3856, %v4396
  %s4431 = scalar_lea.vmem %s4, 24
  %v4432 = vld [vmem:[%s4431] sm:$0xf]
  %v4433 = vld [vmem:[%s4431 + $0x4] sm:$0xf]
  %v4436 = vunpack.c.l.b16 %v4432
  %v4437 = vunpack.c.l.b16 %v4433
  %v4438 = vpack.c.b16 %v4437, %v4436
  %4440 = vmatprep.subr.bf16.mxu0 0
  %4441 = vmatpush1.bf16.msra.mxu0 0
  %4442 = vmatprep.subr.bf16.mxu0 0
  %4443 = vmatpush1.bf16.msra.mxu0 0
  %4444 = vmatprep.subr.bf16.mxu0 0
  %4445 = vmatpush1.bf16.msra.mxu0 0
  %4446 = vmatprep.subr.bf16.mxu0 0
  %4447 = vmatpush1.bf16.msra.mxu0 0
  %4448 = vmatprep.subr.bf16.mxu0 0
  %4449 = vmatpush1.bf16.msra.mxu0 0
  %4450 = vmatprep.subr.bf16.mxu0 0
  %4451 = vmatpush1.bf16.msra.mxu0 0
  %4452 = vmatprep.subr.bf16.mxu0 0
  %4453 = vmatpush1.bf16.msra.mxu0 0
  %4454 = vmatprep.subr.bf16.mxu0 0
  %4455 = vmatpush1.bf16.msra.mxu0 %v4438
  %4456 = vmatprep.subr.bf16.mxu0 0
  %4457 = vmatpush2.bf16.msra.mxu0 0
  %4458 = vmatprep.subr.bf16.mxu0 0
  %4459 = vmatpush2.bf16.msra.mxu0 0
  %4460 = vmatprep.subr.bf16.mxu0 0
  %4461 = vmatpush2.bf16.msra.mxu0 0
  %4462 = vmatprep.subr.bf16.mxu0 0
  %4463 = vmatpush2.bf16.msra.mxu0 0
  %4464 = vmatprep.subr.bf16.mxu0 0
  %4465 = vmatpush2.bf16.msra.mxu0 0
  %4466 = vmatprep.subr.bf16.mxu0 0
  %4467 = vmatpush2.bf16.msra.mxu0 0
  %4468 = vmatprep.subr.bf16.mxu0 0
  %4469 = vmatpush2.bf16.msra.mxu0 0
  %4470 = vmatprep.subr.bf16.mxu0 0
  %4471 = vmatpush2.bf16.msra.mxu0 0
  %4472 = vmatprep.mubr.bf16.mxu0 0
  %4473 = vmatmul.mubr.bf16.gmra.mxu0 %v2742
  %v4474 = vpop.f32.mrf.mxu0
  %v4475 = vadd.f32 0.0, %v4474
  %v4476 = vpop.f32.mrf.mxu0
  %v4477 = vpop.f32.mrf.mxu0
  %v4478 = vadd.f32 0.0, %v4477
  %v4479 = vpop.f32.mrf.mxu0
  %4480 = vmatprep.mubr.bf16.mxu0 0
  %4481 = vmatmul.mubr.bf16.gmra.mxu0 %v2745
  %v4482 = vpop.f32.mrf.mxu0
  %v4483 = vadd.f32 0.0, %v4482
  %v4484 = vpop.f32.mrf.mxu0
  %v4485 = vpop.f32.mrf.mxu0
  %v4486 = vadd.f32 0.0, %v4485
  %v4487 = vpop.f32.mrf.mxu0
  %4488 = vmatprep.mubr.bf16.mxu0 0
  %4489 = vmatmul.mubr.bf16.gmra.mxu0 %v2748
  %v4490 = vpop.f32.mrf.mxu0
  %v4491 = vadd.f32 0.0, %v4490
  %v4492 = vpop.f32.mrf.mxu0
  %v4493 = vpop.f32.mrf.mxu0
  %v4494 = vadd.f32 0.0, %v4493
  %v4495 = vpop.f32.mrf.mxu0
  %4496 = vmatprep.mubr.bf16.mxu0 0
  %4497 = vmatmul.mubr.bf16.gmra.mxu0 %v2751
  %v4498 = vpop.f32.mrf.mxu0
  %v4499 = vadd.f32 0.0, %v4498
  %v4500 = vpop.f32.mrf.mxu0
  %v4501 = vpop.f32.mrf.mxu0
  %v4502 = vadd.f32 0.0, %v4501
  %v4503 = vpop.f32.mrf.mxu0
  %4504 = vmatprep.mubr.bf16.mxu0 0
  %4505 = vmatmul.mubr.bf16.gmra.mxu0 %v2754
  %v4506 = vpop.f32.mrf.mxu0
  %v4507 = vadd.f32 0.0, %v4506
  %v4508 = vpop.f32.mrf.mxu0
  %v4509 = vpop.f32.mrf.mxu0
  %v4510 = vadd.f32 0.0, %v4509
  %v4511 = vpop.f32.mrf.mxu0
  %4512 = vmatprep.mubr.bf16.mxu0 0
  %4513 = vmatmul.mubr.bf16.gmra.mxu0 %v2757
  %v4514 = vpop.f32.mrf.mxu0
  %v4515 = vadd.f32 0.0, %v4514
  %v4516 = vpop.f32.mrf.mxu0
  %v4517 = vpop.f32.mrf.mxu0
  %v4518 = vadd.f32 0.0, %v4517
  %v4519 = vpop.f32.mrf.mxu0
  %4520 = vmatprep.mubr.bf16.mxu0 0
  %4521 = vmatmul.mubr.bf16.gmra.mxu0 %v2760
  %v4522 = vpop.f32.mrf.mxu0
  %v4523 = vadd.f32 0.0, %v4522
  %v4524 = vpop.f32.mrf.mxu0
  %v4525 = vpop.f32.mrf.mxu0
  %v4526 = vadd.f32 0.0, %v4525
  %v4527 = vpop.f32.mrf.mxu0
  %4528 = vmatprep.mubr.bf16.mxu0 0
  %4529 = vmatmul.mubr.bf16.gmra.mxu0 %v2763
  %v4530 = vpop.f32.mrf.mxu0
  %v4531 = vadd.f32 0.0, %v4530
  %v4532 = vpop.f32.mrf.mxu0
  %v4533 = vpop.f32.mrf.mxu0
  %v4534 = vadd.f32 0.0, %v4533
  %v4535 = vpop.f32.mrf.mxu0
  %4536 = vmatprep.mubr.bf16.mxu0 0
  %4537 = vmatmul.mubr.bf16.gmra.mxu0 %v2766
  %v4538 = vpop.f32.mrf.mxu0
  %v4539 = vadd.f32 0.0, %v4538
  %v4540 = vpop.f32.mrf.mxu0
  %v4541 = vpop.f32.mrf.mxu0
  %v4542 = vadd.f32 0.0, %v4541
  %v4543 = vpop.f32.mrf.mxu0
  %4544 = vmatprep.mubr.bf16.mxu0 0
  %4545 = vmatmul.mubr.bf16.gmra.mxu0 %v2769
  %v4546 = vpop.f32.mrf.mxu0
  %v4547 = vadd.f32 0.0, %v4546
  %v4548 = vpop.f32.mrf.mxu0
  %v4549 = vpop.f32.mrf.mxu0
  %v4550 = vadd.f32 0.0, %v4549
  %v4551 = vpop.f32.mrf.mxu0
  %4552 = vmatprep.mubr.bf16.mxu0 0
  %4553 = vmatmul.mubr.bf16.gmra.mxu0 %v2772
  %v4554 = vpop.f32.mrf.mxu0
  %v4555 = vadd.f32 0.0, %v4554
  %v4556 = vpop.f32.mrf.mxu0
  %v4557 = vpop.f32.mrf.mxu0
  %v4558 = vadd.f32 0.0, %v4557
  %v4559 = vpop.f32.mrf.mxu0
  %4560 = vmatprep.mubr.bf16.mxu0 0
  %4561 = vmatmul.mubr.bf16.gmra.mxu0 %v2775
  %v4562 = vpop.f32.mrf.mxu0
  %v4563 = vadd.f32 0.0, %v4562
  %v4564 = vpop.f32.mrf.mxu0
  %v4565 = vpop.f32.mrf.mxu0
  %v4566 = vadd.f32 0.0, %v4565
  %v4567 = vpop.f32.mrf.mxu0
  %4568 = vmatprep.mubr.bf16.mxu0 0
  %4569 = vmatmul.mubr.bf16.gmra.mxu0 %v2778
  %v4570 = vpop.f32.mrf.mxu0
  %v4571 = vadd.f32 0.0, %v4570
  %v4572 = vpop.f32.mrf.mxu0
  %v4573 = vpop.f32.mrf.mxu0
  %v4574 = vadd.f32 0.0, %v4573
  %v4575 = vpop.f32.mrf.mxu0
  %4576 = vmatprep.mubr.bf16.mxu0 0
  %4577 = vmatmul.mubr.bf16.gmra.mxu0 %v2781
  %v4578 = vpop.f32.mrf.mxu0
  %v4579 = vadd.f32 0.0, %v4578
  %v4580 = vpop.f32.mrf.mxu0
  %v4581 = vpop.f32.mrf.mxu0
  %v4582 = vadd.f32 0.0, %v4581
  %v4583 = vpop.f32.mrf.mxu0
  %4584 = vmatprep.mubr.bf16.mxu0 0
  %4585 = vmatmul.mubr.bf16.gmra.mxu0 %v2784
  %v4586 = vpop.f32.mrf.mxu0
  %v4587 = vadd.f32 0.0, %v4586
  %v4588 = vpop.f32.mrf.mxu0
  %v4589 = vpop.f32.mrf.mxu0
  %v4590 = vadd.f32 0.0, %v4589
  %v4591 = vpop.f32.mrf.mxu0
  %4592 = vmatprep.mubr.bf16.mxu0 0
  %4593 = vmatmul.mubr.bf16.gmra.mxu0 %v2787
  %v4594 = vpop.f32.mrf.mxu0
  %v4595 = vadd.f32 0.0, %v4594
  %v4596 = vpop.f32.mrf.mxu0
  %v4597 = vpop.f32.mrf.mxu0
  %v4598 = vadd.f32 0.0, %v4597
  %v4599 = vpop.f32.mrf.mxu0
  %4600 = vdwg.mxu0
  %v4601 = vpack.c.bf16 %v4478, %v4475
  %v4602 = vpack.c.bf16 %v4486, %v4483
  %v4603 = vpack.c.bf16 %v4494, %v4491
  %v4604 = vpack.c.bf16 %v4502, %v4499
  %v4605 = vpack.c.bf16 %v4510, %v4507
  %v4606 = vpack.c.bf16 %v4518, %v4515
  %v4607 = vpack.c.bf16 %v4526, %v4523
  %v4608 = vpack.c.bf16 %v4534, %v4531
  %v4609 = vpack.c.bf16 %v4542, %v4539
  %v4610 = vpack.c.bf16 %v4550, %v4547
  %v4611 = vpack.c.bf16 %v4558, %v4555
  %v4612 = vpack.c.bf16 %v4566, %v4563
  %v4613 = vpack.c.bf16 %v4574, %v4571
  %v4614 = vpack.c.bf16 %v4582, %v4579
  %v4615 = vpack.c.bf16 %v4590, %v4587
  %v4616 = vpack.c.bf16 %v4598, %v4595
  %s4617 = scalar_lea.vmem %s5, 768
  %v4618 = vld [vmem:[%s4617] sm:$0xff]
  %v4619 = vld [vmem:[%s4617 + $0x8] sm:$0xff]
  %v4620 = vld [vmem:[%s4617 + $0x10] sm:$0xff]
  %v4621 = vld [vmem:[%s4617 + $0x18] sm:$0xff]
  %v4622 = vld [vmem:[%s4617 + $0x20] sm:$0xff]
  %v4623 = vld [vmem:[%s4617 + $0x28] sm:$0xff]
  %v4624 = vld [vmem:[%s4617 + $0x30] sm:$0xff]
  %v4625 = vld [vmem:[%s4617 + $0x38] sm:$0xff]
  %v4626 = vld [vmem:[%s4617 + $0x40] sm:$0xff]
  %v4627 = vld [vmem:[%s4617 + $0x48] sm:$0xff]
  %v4628 = vld [vmem:[%s4617 + $0x50] sm:$0xff]
  %v4629 = vld [vmem:[%s4617 + $0x58] sm:$0xff]
  %v4630 = vld [vmem:[%s4617 + $0x60] sm:$0xff]
  %v4631 = vld [vmem:[%s4617 + $0x68] sm:$0xff]
  %v4632 = vld [vmem:[%s4617 + $0x70] sm:$0xff]
  %v4633 = vld [vmem:[%s4617 + $0x78] sm:$0xff]
  %v4634 = vld [vmem:[%s4617 + $0x80] sm:$0xff]
  %v4635 = vld [vmem:[%s4617 + $0x88] sm:$0xff]
  %v4636 = vld [vmem:[%s4617 + $0x90] sm:$0xff]
  %v4637 = vld [vmem:[%s4617 + $0x98] sm:$0xff]
  %v4638 = vld [vmem:[%s4617 + $0xa0] sm:$0xff]
  %v4639 = vld [vmem:[%s4617 + $0xa8] sm:$0xff]
  %v4640 = vld [vmem:[%s4617 + $0xb0] sm:$0xff]
  %v4641 = vld [vmem:[%s4617 + $0xb8] sm:$0xff]
  %v4642 = vld [vmem:[%s4617 + $0xc0] sm:$0xff]
  %v4643 = vld [vmem:[%s4617 + $0xc8] sm:$0xff]
  %v4644 = vld [vmem:[%s4617 + $0xd0] sm:$0xff]
  %v4645 = vld [vmem:[%s4617 + $0xd8] sm:$0xff]
  %v4646 = vld [vmem:[%s4617 + $0xe0] sm:$0xff]
  %v4647 = vld [vmem:[%s4617 + $0xe8] sm:$0xff]
  %v4648 = vld [vmem:[%s4617 + $0xf0] sm:$0xff]
  %v4649 = vld [vmem:[%s4617 + $0xf8] sm:$0xff]
  %v4682 = vunpack.c.l.b16 %v4618
  %v4683 = vunpack.c.h.b16 %v4618
  %v4684 = vunpack.c.l.b16 %v4619
  %v4685 = vunpack.c.h.b16 %v4619
  %v4686 = vunpack.c.l.b16 %v4620
  %v4687 = vunpack.c.h.b16 %v4620
  %v4688 = vunpack.c.l.b16 %v4621
  %v4689 = vunpack.c.h.b16 %v4621
  %v4690 = vunpack.c.l.b16 %v4622
  %v4691 = vunpack.c.h.b16 %v4622
  %v4692 = vunpack.c.l.b16 %v4623
  %v4693 = vunpack.c.h.b16 %v4623
  %v4694 = vunpack.c.l.b16 %v4624
  %v4695 = vunpack.c.h.b16 %v4624
  %v4696 = vunpack.c.l.b16 %v4625
  %v4697 = vunpack.c.h.b16 %v4625
  %v4698 = vunpack.c.l.b16 %v4626
  %v4699 = vunpack.c.h.b16 %v4626
  %v4700 = vunpack.c.l.b16 %v4627
  %v4701 = vunpack.c.h.b16 %v4627
  %v4702 = vunpack.c.l.b16 %v4628
  %v4703 = vunpack.c.h.b16 %v4628
  %v4704 = vunpack.c.l.b16 %v4629
  %v4705 = vunpack.c.h.b16 %v4629
  %v4706 = vunpack.c.l.b16 %v4630
  %v4707 = vunpack.c.h.b16 %v4630
  %v4708 = vunpack.c.l.b16 %v4631
  %v4709 = vunpack.c.h.b16 %v4631
  %v4710 = vunpack.c.l.b16 %v4632
  %v4711 = vunpack.c.h.b16 %v4632
  %v4712 = vunpack.c.l.b16 %v4633
  %v4713 = vunpack.c.h.b16 %v4633
  %v4714 = vunpack.c.l.b16 %v4634
  %v4715 = vunpack.c.h.b16 %v4634
  %v4716 = vunpack.c.l.b16 %v4635
  %v4717 = vunpack.c.h.b16 %v4635
  %v4718 = vunpack.c.l.b16 %v4636
  %v4719 = vunpack.c.h.b16 %v4636
  %v4720 = vunpack.c.l.b16 %v4637
  %v4721 = vunpack.c.h.b16 %v4637
  %v4722 = vunpack.c.l.b16 %v4638
  %v4723 = vunpack.c.h.b16 %v4638
  %v4724 = vunpack.c.l.b16 %v4639
  %v4725 = vunpack.c.h.b16 %v4639
  %v4726 = vunpack.c.l.b16 %v4640
  %v4727 = vunpack.c.h.b16 %v4640
  %v4728 = vunpack.c.l.b16 %v4641
  %v4729 = vunpack.c.h.b16 %v4641
  %v4730 = vunpack.c.l.b16 %v4642
  %v4731 = vunpack.c.h.b16 %v4642
  %v4732 = vunpack.c.l.b16 %v4643
  %v4733 = vunpack.c.h.b16 %v4643
  %v4734 = vunpack.c.l.b16 %v4644
  %v4735 = vunpack.c.h.b16 %v4644
  %v4736 = vunpack.c.l.b16 %v4645
  %v4737 = vunpack.c.h.b16 %v4645
  %v4738 = vunpack.c.l.b16 %v4646
  %v4739 = vunpack.c.h.b16 %v4646
  %v4740 = vunpack.c.l.b16 %v4647
  %v4741 = vunpack.c.h.b16 %v4647
  %v4742 = vunpack.c.l.b16 %v4648
  %v4743 = vunpack.c.h.b16 %v4648
  %v4744 = vunpack.c.l.b16 %v4649
  %v4745 = vunpack.c.h.b16 %v4649
  %v4746 = vpack.c.b16 %v4684, %v4682
  %v4747 = vpack.c.b16 %v4685, %v4683
  %v4748 = vpack.c.b16 %v4688, %v4686
  %v4749 = vpack.c.b16 %v4689, %v4687
  %v4750 = vpack.c.b16 %v4692, %v4690
  %v4751 = vpack.c.b16 %v4693, %v4691
  %v4752 = vpack.c.b16 %v4696, %v4694
  %v4753 = vpack.c.b16 %v4697, %v4695
  %v4754 = vpack.c.b16 %v4700, %v4698
  %v4755 = vpack.c.b16 %v4701, %v4699
  %v4756 = vpack.c.b16 %v4704, %v4702
  %v4757 = vpack.c.b16 %v4705, %v4703
  %v4758 = vpack.c.b16 %v4708, %v4706
  %v4759 = vpack.c.b16 %v4709, %v4707
  %v4760 = vpack.c.b16 %v4712, %v4710
  %v4761 = vpack.c.b16 %v4713, %v4711
  %v4762 = vpack.c.b16 %v4716, %v4714
  %v4763 = vpack.c.b16 %v4717, %v4715
  %v4764 = vpack.c.b16 %v4720, %v4718
  %v4765 = vpack.c.b16 %v4721, %v4719
  %v4766 = vpack.c.b16 %v4724, %v4722
  %v4767 = vpack.c.b16 %v4725, %v4723
  %v4768 = vpack.c.b16 %v4728, %v4726
  %v4769 = vpack.c.b16 %v4729, %v4727
  %v4770 = vpack.c.b16 %v4732, %v4730
  %v4771 = vpack.c.b16 %v4733, %v4731
  %v4772 = vpack.c.b16 %v4736, %v4734
  %v4773 = vpack.c.b16 %v4737, %v4735
  %v4774 = vpack.c.b16 %v4740, %v4738
  %v4775 = vpack.c.b16 %v4741, %v4739
  %v4776 = vpack.c.b16 %v4744, %v4742
  %v4777 = vpack.c.b16 %v4745, %v4743
  %4810 = vmatprep.subr.bf16.mxu0 0
  %4811 = vmatpush1.bf16.msra.mxu0 %v4608
  %4812 = vmatprep.subr.bf16.mxu0 0
  %4813 = vmatpush1.bf16.msra.mxu0 %v4607
  %4814 = vmatprep.subr.bf16.mxu0 0
  %4815 = vmatpush1.bf16.msra.mxu0 %v4606
  %4816 = vmatprep.subr.bf16.mxu0 0
  %4817 = vmatpush1.bf16.msra.mxu0 %v4605
  %4818 = vmatprep.subr.bf16.mxu0 0
  %4819 = vmatpush1.bf16.msra.mxu0 %v4604
  %4820 = vmatprep.subr.bf16.mxu0 0
  %4821 = vmatpush1.bf16.msra.mxu0 %v4603
  %4822 = vmatprep.subr.bf16.mxu0 0
  %4823 = vmatpush1.bf16.msra.mxu0 %v4602
  %4824 = vmatprep.subr.bf16.mxu0 0
  %4825 = vmatpush1.bf16.msra.mxu0 %v4601
  %4826 = vmatprep.subr.bf16.mxu0 0
  %4827 = vmatpush2.bf16.msra.mxu0 %v4616
  %4828 = vmatprep.subr.bf16.mxu0 0
  %4829 = vmatpush2.bf16.msra.mxu0 %v4615
  %4830 = vmatprep.subr.bf16.mxu0 0
  %4831 = vmatpush2.bf16.msra.mxu0 %v4614
  %4832 = vmatprep.subr.bf16.mxu0 0
  %4833 = vmatpush2.bf16.msra.mxu0 %v4613
  %4834 = vmatprep.subr.bf16.mxu0 0
  %4835 = vmatpush2.bf16.msra.mxu0 %v4612
  %4836 = vmatprep.subr.bf16.mxu0 0
  %4837 = vmatpush2.bf16.msra.mxu0 %v4611
  %4838 = vmatprep.subr.bf16.mxu0 0
  %4839 = vmatpush2.bf16.msra.mxu0 %v4610
  %4840 = vmatprep.subr.bf16.mxu0 0
  %4841 = vmatpush2.bf16.msra.mxu0 %v4609
  %4842 = vmatprep.mubr.bf16.mxu0 %v4747
  %4843 = vmatmul.mubr.bf16.gmra.mxu0 %v4746
  %v4844 = vpop.f32.mrf.mxu0
  %v4845 = vadd.f32 0.0, %v4844
  %v4846 = vpop.f32.mrf.mxu0
  %v4847 = vpop.f32.mrf.mxu0
  %v4848 = vadd.f32 0.0, %v4847
  %v4849 = vpop.f32.mrf.mxu0
  %4850 = vmatprep.mubr.bf16.mxu0 %v4749
  %4851 = vmatmul.mubr.bf16.gmra.mxu0 %v4748
  %v4852 = vpop.f32.mrf.mxu0
  %v4853 = vadd.f32 0.0, %v4852
  %v4854 = vpop.f32.mrf.mxu0
  %v4855 = vpop.f32.mrf.mxu0
  %v4856 = vadd.f32 0.0, %v4855
  %v4857 = vpop.f32.mrf.mxu0
  %4858 = vmatprep.mubr.bf16.mxu0 %v4751
  %4859 = vmatmul.mubr.bf16.gmra.mxu0 %v4750
  %v4860 = vpop.f32.mrf.mxu0
  %v4861 = vadd.f32 0.0, %v4860
  %v4862 = vpop.f32.mrf.mxu0
  %v4863 = vpop.f32.mrf.mxu0
  %v4864 = vadd.f32 0.0, %v4863
  %v4865 = vpop.f32.mrf.mxu0
  %4866 = vmatprep.mubr.bf16.mxu0 %v4753
  %4867 = vmatmul.mubr.bf16.gmra.mxu0 %v4752
  %v4868 = vpop.f32.mrf.mxu0
  %v4869 = vadd.f32 0.0, %v4868
  %v4870 = vpop.f32.mrf.mxu0
  %v4871 = vpop.f32.mrf.mxu0
  %v4872 = vadd.f32 0.0, %v4871
  %v4873 = vpop.f32.mrf.mxu0
  %4874 = vmatprep.mubr.bf16.mxu0 %v4755
  %4875 = vmatmul.mubr.bf16.gmra.mxu0 %v4754
  %v4876 = vpop.f32.mrf.mxu0
  %v4877 = vadd.f32 0.0, %v4876
  %v4878 = vpop.f32.mrf.mxu0
  %v4879 = vpop.f32.mrf.mxu0
  %v4880 = vadd.f32 0.0, %v4879
  %v4881 = vpop.f32.mrf.mxu0
  %4882 = vmatprep.mubr.bf16.mxu0 %v4757
  %4883 = vmatmul.mubr.bf16.gmra.mxu0 %v4756
  %v4884 = vpop.f32.mrf.mxu0
  %v4885 = vadd.f32 0.0, %v4884
  %v4886 = vpop.f32.mrf.mxu0
  %v4887 = vpop.f32.mrf.mxu0
  %v4888 = vadd.f32 0.0, %v4887
  %v4889 = vpop.f32.mrf.mxu0
  %4890 = vmatprep.mubr.bf16.mxu0 %v4759
  %4891 = vmatmul.mubr.bf16.gmra.mxu0 %v4758
  %v4892 = vpop.f32.mrf.mxu0
  %v4893 = vadd.f32 0.0, %v4892
  %v4894 = vpop.f32.mrf.mxu0
  %v4895 = vpop.f32.mrf.mxu0
  %v4896 = vadd.f32 0.0, %v4895
  %v4897 = vpop.f32.mrf.mxu0
  %4898 = vmatprep.mubr.bf16.mxu0 %v4761
  %4899 = vmatmul.mubr.bf16.gmra.mxu0 %v4760
  %v4900 = vpop.f32.mrf.mxu0
  %v4901 = vadd.f32 0.0, %v4900
  %v4902 = vpop.f32.mrf.mxu0
  %v4903 = vpop.f32.mrf.mxu0
  %v4904 = vadd.f32 0.0, %v4903
  %v4905 = vpop.f32.mrf.mxu0
  %4906 = vmatprep.mubr.bf16.mxu0 %v4763
  %4907 = vmatmul.mubr.bf16.gmra.mxu0 %v4762
  %v4908 = vpop.f32.mrf.mxu0
  %v4909 = vadd.f32 0.0, %v4908
  %v4910 = vpop.f32.mrf.mxu0
  %v4911 = vpop.f32.mrf.mxu0
  %v4912 = vadd.f32 0.0, %v4911
  %v4913 = vpop.f32.mrf.mxu0
  %4914 = vmatprep.mubr.bf16.mxu0 %v4765
  %4915 = vmatmul.mubr.bf16.gmra.mxu0 %v4764
  %v4916 = vpop.f32.mrf.mxu0
  %v4917 = vadd.f32 0.0, %v4916
  %v4918 = vpop.f32.mrf.mxu0
  %v4919 = vpop.f32.mrf.mxu0
  %v4920 = vadd.f32 0.0, %v4919
  %v4921 = vpop.f32.mrf.mxu0
  %4922 = vmatprep.mubr.bf16.mxu0 %v4767
  %4923 = vmatmul.mubr.bf16.gmra.mxu0 %v4766
  %v4924 = vpop.f32.mrf.mxu0
  %v4925 = vadd.f32 0.0, %v4924
  %v4926 = vpop.f32.mrf.mxu0
  %v4927 = vpop.f32.mrf.mxu0
  %v4928 = vadd.f32 0.0, %v4927
  %v4929 = vpop.f32.mrf.mxu0
  %4930 = vmatprep.mubr.bf16.mxu0 %v4769
  %4931 = vmatmul.mubr.bf16.gmra.mxu0 %v4768
  %v4932 = vpop.f32.mrf.mxu0
  %v4933 = vadd.f32 0.0, %v4932
  %v4934 = vpop.f32.mrf.mxu0
  %v4935 = vpop.f32.mrf.mxu0
  %v4936 = vadd.f32 0.0, %v4935
  %v4937 = vpop.f32.mrf.mxu0
  %4938 = vmatprep.mubr.bf16.mxu0 %v4771
  %4939 = vmatmul.mubr.bf16.gmra.mxu0 %v4770
  %v4940 = vpop.f32.mrf.mxu0
  %v4941 = vadd.f32 0.0, %v4940
  %v4942 = vpop.f32.mrf.mxu0
  %v4943 = vpop.f32.mrf.mxu0
  %v4944 = vadd.f32 0.0, %v4943
  %v4945 = vpop.f32.mrf.mxu0
  %4946 = vmatprep.mubr.bf16.mxu0 %v4773
  %4947 = vmatmul.mubr.bf16.gmra.mxu0 %v4772
  %v4948 = vpop.f32.mrf.mxu0
  %v4949 = vadd.f32 0.0, %v4948
  %v4950 = vpop.f32.mrf.mxu0
  %v4951 = vpop.f32.mrf.mxu0
  %v4952 = vadd.f32 0.0, %v4951
  %v4953 = vpop.f32.mrf.mxu0
  %4954 = vmatprep.mubr.bf16.mxu0 %v4775
  %4955 = vmatmul.mubr.bf16.gmra.mxu0 %v4774
  %v4956 = vpop.f32.mrf.mxu0
  %v4957 = vadd.f32 0.0, %v4956
  %v4958 = vpop.f32.mrf.mxu0
  %v4959 = vpop.f32.mrf.mxu0
  %v4960 = vadd.f32 0.0, %v4959
  %v4961 = vpop.f32.mrf.mxu0
  %4962 = vmatprep.mubr.bf16.mxu0 %v4777
  %4963 = vmatmul.mubr.bf16.gmra.mxu0 %v4776
  %v4964 = vpop.f32.mrf.mxu0
  %v4965 = vadd.f32 0.0, %v4964
  %v4966 = vpop.f32.mrf.mxu0
  %v4967 = vpop.f32.mrf.mxu0
  %v4968 = vadd.f32 0.0, %v4967
  %v4969 = vpop.f32.mrf.mxu0
  %4970 = vdwg.mxu0
  %v4971 = vadd.f32 %v4399, %v4845
  %v4972 = vadd.f32 %v4400, %v4848
  %v4973 = vadd.f32 %v4401, %v4853
  %v4974 = vadd.f32 %v4402, %v4856
  %v4975 = vadd.f32 %v4403, %v4861
  %v4976 = vadd.f32 %v4404, %v4864
  %v4977 = vadd.f32 %v4405, %v4869
  %v4978 = vadd.f32 %v4406, %v4872
  %v4979 = vadd.f32 %v4407, %v4877
  %v4980 = vadd.f32 %v4408, %v4880
  %v4981 = vadd.f32 %v4409, %v4885
  %v4982 = vadd.f32 %v4410, %v4888
  %v4983 = vadd.f32 %v4411, %v4893
  %v4984 = vadd.f32 %v4412, %v4896
  %v4985 = vadd.f32 %v4413, %v4901
  %v4986 = vadd.f32 %v4414, %v4904
  %v4987 = vadd.f32 %v4415, %v4909
  %v4988 = vadd.f32 %v4416, %v4912
  %v4989 = vadd.f32 %v4417, %v4917
  %v4990 = vadd.f32 %v4418, %v4920
  %v4991 = vadd.f32 %v4419, %v4925
  %v4992 = vadd.f32 %v4420, %v4928
  %v4993 = vadd.f32 %v4421, %v4933
  %v4994 = vadd.f32 %v4422, %v4936
  %v4995 = vadd.f32 %v4423, %v4941
  %v4996 = vadd.f32 %v4424, %v4944
  %v4997 = vadd.f32 %v4425, %v4949
  %v4998 = vadd.f32 %v4426, %v4952
  %v4999 = vadd.f32 %v4427, %v4957
  %v5000 = vadd.f32 %v4428, %v4960
  %v5001 = vadd.f32 %v4429, %v4965
  %v5002 = vadd.f32 %v4430, %v4968
  %v5003 = vld [vmem:[%s6] sm:$0xff]
  %v5004 = vld [vmem:[%s6 + $0x8] sm:$0xff]
  %v5005 = vld [vmem:[%s6 + $0x10] sm:$0xff]
  %v5006 = vld [vmem:[%s6 + $0x18] sm:$0xff]
  %v5007 = vld [vmem:[%s6 + $0x20] sm:$0xff]
  %v5008 = vld [vmem:[%s6 + $0x28] sm:$0xff]
  %v5009 = vld [vmem:[%s6 + $0x30] sm:$0xff]
  %v5010 = vld [vmem:[%s6 + $0x38] sm:$0xff]
  %v5011 = vld [vmem:[%s6 + $0x40] sm:$0xff]
  %v5012 = vld [vmem:[%s6 + $0x48] sm:$0xff]
  %v5013 = vld [vmem:[%s6 + $0x50] sm:$0xff]
  %v5014 = vld [vmem:[%s6 + $0x58] sm:$0xff]
  %v5015 = vld [vmem:[%s6 + $0x60] sm:$0xff]
  %v5016 = vld [vmem:[%s6 + $0x68] sm:$0xff]
  %v5017 = vld [vmem:[%s6 + $0x70] sm:$0xff]
  %v5018 = vld [vmem:[%s6 + $0x78] sm:$0xff]
  %v5019 = vld [vmem:[%s6 + $0x80] sm:$0xff]
  %v5020 = vld [vmem:[%s6 + $0x88] sm:$0xff]
  %v5021 = vld [vmem:[%s6 + $0x90] sm:$0xff]
  %v5022 = vld [vmem:[%s6 + $0x98] sm:$0xff]
  %v5023 = vld [vmem:[%s6 + $0xa0] sm:$0xff]
  %v5024 = vld [vmem:[%s6 + $0xa8] sm:$0xff]
  %v5025 = vld [vmem:[%s6 + $0xb0] sm:$0xff]
  %v5026 = vld [vmem:[%s6 + $0xb8] sm:$0xff]
  %v5027 = vld [vmem:[%s6 + $0xc0] sm:$0xff]
  %v5028 = vld [vmem:[%s6 + $0xc8] sm:$0xff]
  %v5029 = vld [vmem:[%s6 + $0xd0] sm:$0xff]
  %v5030 = vld [vmem:[%s6 + $0xd8] sm:$0xff]
  %v5031 = vld [vmem:[%s6 + $0xe0] sm:$0xff]
  %v5032 = vld [vmem:[%s6 + $0xe8] sm:$0xff]
  %v5033 = vld [vmem:[%s6 + $0xf0] sm:$0xff]
  %v5034 = vld [vmem:[%s6 + $0xf8] sm:$0xff]
  %5036 = vset.pattern.permute.xlu0 0
  %5037 = vperm.xlu0 %5036, %v5003
  %v5038 = vpop.permute.xlu0 %5037
  %5041 = vset.pattern.permute.xlu0 0
  %5042 = vperm.xlu0 %5041, %v5004
  %v5043 = vpop.permute.xlu0 %5042
  %5046 = vset.pattern.permute.xlu0 0
  %5047 = vperm.xlu0 %5046, %v5005
  %v5048 = vpop.permute.xlu0 %5047
  %5051 = vset.pattern.permute.xlu0 0
  %5052 = vperm.xlu0 %5051, %v5006
  %v5053 = vpop.permute.xlu0 %5052
  %5056 = vset.pattern.permute.xlu0 0
  %5057 = vperm.xlu0 %5056, %v5007
  %v5058 = vpop.permute.xlu0 %5057
  %5061 = vset.pattern.permute.xlu0 0
  %5062 = vperm.xlu0 %5061, %v5008
  %v5063 = vpop.permute.xlu0 %5062
  %5066 = vset.pattern.permute.xlu0 0
  %5067 = vperm.xlu0 %5066, %v5009
  %v5068 = vpop.permute.xlu0 %5067
  %5071 = vset.pattern.permute.xlu0 0
  %5072 = vperm.xlu0 %5071, %v5010
  %v5073 = vpop.permute.xlu0 %5072
  %5076 = vset.pattern.permute.xlu0 0
  %5077 = vperm.xlu0 %5076, %v5011
  %v5078 = vpop.permute.xlu0 %5077
  %5081 = vset.pattern.permute.xlu0 0
  %5082 = vperm.xlu0 %5081, %v5012
  %v5083 = vpop.permute.xlu0 %5082
  %5086 = vset.pattern.permute.xlu0 0
  %5087 = vperm.xlu0 %5086, %v5013
  %v5088 = vpop.permute.xlu0 %5087
  %5091 = vset.pattern.permute.xlu0 0
  %5092 = vperm.xlu0 %5091, %v5014
  %v5093 = vpop.permute.xlu0 %5092
  %5096 = vset.pattern.permute.xlu0 0
  %5097 = vperm.xlu0 %5096, %v5015
  %v5098 = vpop.permute.xlu0 %5097
  %5101 = vset.pattern.permute.xlu0 0
  %5102 = vperm.xlu0 %5101, %v5016
  %v5103 = vpop.permute.xlu0 %5102
  %5106 = vset.pattern.permute.xlu0 0
  %5107 = vperm.xlu0 %5106, %v5017
  %v5108 = vpop.permute.xlu0 %5107
  %5111 = vset.pattern.permute.xlu0 0
  %5112 = vperm.xlu0 %5111, %v5018
  %v5113 = vpop.permute.xlu0 %5112
  %5116 = vset.pattern.permute.xlu0 0
  %5117 = vperm.xlu0 %5116, %v5019
  %v5118 = vpop.permute.xlu0 %5117
  %5121 = vset.pattern.permute.xlu0 0
  %5122 = vperm.xlu0 %5121, %v5020
  %v5123 = vpop.permute.xlu0 %5122
  %5126 = vset.pattern.permute.xlu0 0
  %5127 = vperm.xlu0 %5126, %v5021
  %v5128 = vpop.permute.xlu0 %5127
  %5131 = vset.pattern.permute.xlu0 0
  %5132 = vperm.xlu0 %5131, %v5022
  %v5133 = vpop.permute.xlu0 %5132
  %5136 = vset.pattern.permute.xlu0 0
  %5137 = vperm.xlu0 %5136, %v5023
  %v5138 = vpop.permute.xlu0 %5137
  %5141 = vset.pattern.permute.xlu0 0
  %5142 = vperm.xlu0 %5141, %v5024
  %v5143 = vpop.permute.xlu0 %5142
  %5146 = vset.pattern.permute.xlu0 0
  %5147 = vperm.xlu0 %5146, %v5025
  %v5148 = vpop.permute.xlu0 %5147
  %5151 = vset.pattern.permute.xlu0 0
  %5152 = vperm.xlu0 %5151, %v5026
  %v5153 = vpop.permute.xlu0 %5152
  %5156 = vset.pattern.permute.xlu0 0
  %5157 = vperm.xlu0 %5156, %v5027
  %v5158 = vpop.permute.xlu0 %5157
  %5161 = vset.pattern.permute.xlu0 0
  %5162 = vperm.xlu0 %5161, %v5028
  %v5163 = vpop.permute.xlu0 %5162
  %5166 = vset.pattern.permute.xlu0 0
  %5167 = vperm.xlu0 %5166, %v5029
  %v5168 = vpop.permute.xlu0 %5167
  %5171 = vset.pattern.permute.xlu0 0
  %5172 = vperm.xlu0 %5171, %v5030
  %v5173 = vpop.permute.xlu0 %5172
  %5176 = vset.pattern.permute.xlu0 0
  %5177 = vperm.xlu0 %5176, %v5031
  %v5178 = vpop.permute.xlu0 %5177
  %5181 = vset.pattern.permute.xlu0 0
  %5182 = vperm.xlu0 %5181, %v5032
  %v5183 = vpop.permute.xlu0 %5182
  %5186 = vset.pattern.permute.xlu0 0
  %5187 = vperm.xlu0 %5186, %v5033
  %v5188 = vpop.permute.xlu0 %5187
  %5191 = vset.pattern.permute.xlu0 0
  %5192 = vperm.xlu0 %5191, %v5034
  %v5193 = vpop.permute.xlu0 %5192
  %v5195 = vadd.f32 %v4971, %v5038
  %v5196 = vadd.f32 %v4972, %v5043
  %v5197 = vadd.f32 %v4973, %v5048
  %v5198 = vadd.f32 %v4974, %v5053
  %v5199 = vadd.f32 %v4975, %v5058
  %v5200 = vadd.f32 %v4976, %v5063
  %v5201 = vadd.f32 %v4977, %v5068
  %v5202 = vadd.f32 %v4978, %v5073
  %v5203 = vadd.f32 %v4979, %v5078
  %v5204 = vadd.f32 %v4980, %v5083
  %v5205 = vadd.f32 %v4981, %v5088
  %v5206 = vadd.f32 %v4982, %v5093
  %v5207 = vadd.f32 %v4983, %v5098
  %v5208 = vadd.f32 %v4984, %v5103
  %v5209 = vadd.f32 %v4985, %v5108
  %v5210 = vadd.f32 %v4986, %v5113
  %v5211 = vadd.f32 %v4987, %v5118
  %v5212 = vadd.f32 %v4988, %v5123
  %v5213 = vadd.f32 %v4989, %v5128
  %v5214 = vadd.f32 %v4990, %v5133
  %v5215 = vadd.f32 %v4991, %v5138
  %v5216 = vadd.f32 %v4992, %v5143
  %v5217 = vadd.f32 %v4993, %v5148
  %v5218 = vadd.f32 %v4994, %v5153
  %v5219 = vadd.f32 %v4995, %v5158
  %v5220 = vadd.f32 %v4996, %v5163
  %v5221 = vadd.f32 %v4997, %v5168
  %v5222 = vadd.f32 %v4998, %v5173
  %v5223 = vadd.f32 %v4999, %v5178
  %v5224 = vadd.f32 %v5000, %v5183
  %v5225 = vadd.f32 %v5001, %v5188
  %v5226 = vadd.f32 %v5002, %v5193
  %vm5227 = vcmp.ge.f32.partialorder %v5195, 0.0
  %vm5228 = vcmp.ge.f32.partialorder %v5196, 0.0
  %vm5229 = vcmp.ge.f32.partialorder %v5197, 0.0
  %vm5230 = vcmp.ge.f32.partialorder %v5198, 0.0
  %vm5231 = vcmp.ge.f32.partialorder %v5199, 0.0
  %vm5232 = vcmp.ge.f32.partialorder %v5200, 0.0
  %vm5233 = vcmp.ge.f32.partialorder %v5201, 0.0
  %vm5234 = vcmp.ge.f32.partialorder %v5202, 0.0
  %vm5235 = vcmp.ge.f32.partialorder %v5203, 0.0
  %vm5236 = vcmp.ge.f32.partialorder %v5204, 0.0
  %vm5237 = vcmp.ge.f32.partialorder %v5205, 0.0
  %vm5238 = vcmp.ge.f32.partialorder %v5206, 0.0
  %vm5239 = vcmp.ge.f32.partialorder %v5207, 0.0
  %vm5240 = vcmp.ge.f32.partialorder %v5208, 0.0
  %vm5241 = vcmp.ge.f32.partialorder %v5209, 0.0
  %vm5242 = vcmp.ge.f32.partialorder %v5210, 0.0
  %vm5243 = vcmp.ge.f32.partialorder %v5211, 0.0
  %vm5244 = vcmp.ge.f32.partialorder %v5212, 0.0
  %vm5245 = vcmp.ge.f32.partialorder %v5213, 0.0
  %vm5246 = vcmp.ge.f32.partialorder %v5214, 0.0
  %vm5247 = vcmp.ge.f32.partialorder %v5215, 0.0
  %vm5248 = vcmp.ge.f32.partialorder %v5216, 0.0
  %vm5249 = vcmp.ge.f32.partialorder %v5217, 0.0
  %vm5250 = vcmp.ge.f32.partialorder %v5218, 0.0
  %vm5251 = vcmp.ge.f32.partialorder %v5219, 0.0
  %vm5252 = vcmp.ge.f32.partialorder %v5220, 0.0
  %vm5253 = vcmp.ge.f32.partialorder %v5221, 0.0
  %vm5254 = vcmp.ge.f32.partialorder %v5222, 0.0
  %vm5255 = vcmp.ge.f32.partialorder %v5223, 0.0
  %vm5256 = vcmp.ge.f32.partialorder %v5224, 0.0
  %vm5257 = vcmp.ge.f32.partialorder %v5225, 0.0
  %vm5258 = vcmp.ge.f32.partialorder %v5226, 0.0
  %v5259 = vmul.f32 %v5195, 0.01
  %v5260 = vmul.f32 %v5196, 0.01
  %v5261 = vmul.f32 %v5197, 0.01
  %v5262 = vmul.f32 %v5198, 0.01
  %v5263 = vmul.f32 %v5199, 0.01
  %v5264 = vmul.f32 %v5200, 0.01
  %v5265 = vmul.f32 %v5201, 0.01
  %v5266 = vmul.f32 %v5202, 0.01
  %v5267 = vmul.f32 %v5203, 0.01
  %v5268 = vmul.f32 %v5204, 0.01
  %v5269 = vmul.f32 %v5205, 0.01
  %v5270 = vmul.f32 %v5206, 0.01
  %v5271 = vmul.f32 %v5207, 0.01
  %v5272 = vmul.f32 %v5208, 0.01
  %v5273 = vmul.f32 %v5209, 0.01
  %v5274 = vmul.f32 %v5210, 0.01
  %v5275 = vmul.f32 %v5211, 0.01
  %v5276 = vmul.f32 %v5212, 0.01
  %v5277 = vmul.f32 %v5213, 0.01
  %v5278 = vmul.f32 %v5214, 0.01
  %v5279 = vmul.f32 %v5215, 0.01
  %v5280 = vmul.f32 %v5216, 0.01
  %v5281 = vmul.f32 %v5217, 0.01
  %v5282 = vmul.f32 %v5218, 0.01
  %v5283 = vmul.f32 %v5219, 0.01
  %v5284 = vmul.f32 %v5220, 0.01
  %v5285 = vmul.f32 %v5221, 0.01
  %v5286 = vmul.f32 %v5222, 0.01
  %v5287 = vmul.f32 %v5223, 0.01
  %v5288 = vmul.f32 %v5224, 0.01
  %v5289 = vmul.f32 %v5225, 0.01
  %v5290 = vmul.f32 %v5226, 0.01
  %v5291 = vsel %vm5227, %v5195, %v5259
  %v5292 = vsel %vm5228, %v5196, %v5260
  %v5293 = vsel %vm5229, %v5197, %v5261
  %v5294 = vsel %vm5230, %v5198, %v5262
  %v5295 = vsel %vm5231, %v5199, %v5263
  %v5296 = vsel %vm5232, %v5200, %v5264
  %v5297 = vsel %vm5233, %v5201, %v5265
  %v5298 = vsel %vm5234, %v5202, %v5266
  %v5299 = vsel %vm5235, %v5203, %v5267
  %v5300 = vsel %vm5236, %v5204, %v5268
  %v5301 = vsel %vm5237, %v5205, %v5269
  %v5302 = vsel %vm5238, %v5206, %v5270
  %v5303 = vsel %vm5239, %v5207, %v5271
  %v5304 = vsel %vm5240, %v5208, %v5272
  %v5305 = vsel %vm5241, %v5209, %v5273
  %v5306 = vsel %vm5242, %v5210, %v5274
  %v5307 = vsel %vm5243, %v5211, %v5275
  %v5308 = vsel %vm5244, %v5212, %v5276
  %v5309 = vsel %vm5245, %v5213, %v5277
  %v5310 = vsel %vm5246, %v5214, %v5278
  %v5311 = vsel %vm5247, %v5215, %v5279
  %v5312 = vsel %vm5248, %v5216, %v5280
  %v5313 = vsel %vm5249, %v5217, %v5281
  %v5314 = vsel %vm5250, %v5218, %v5282
  %v5315 = vsel %vm5251, %v5219, %v5283
  %v5316 = vsel %vm5252, %v5220, %v5284
  %v5317 = vsel %vm5253, %v5221, %v5285
  %v5318 = vsel %vm5254, %v5222, %v5286
  %v5319 = vsel %vm5255, %v5223, %v5287
  %v5320 = vsel %vm5256, %v5224, %v5288
  %v5321 = vsel %vm5257, %v5225, %v5289
  %v5322 = vsel %vm5258, %v5226, %v5290
  %v5323 = vpack.c.bf16 %v5292, %v5291
  %v5324 = vpack.c.bf16 %v5294, %v5293
  %v5325 = vpack.c.bf16 %v5296, %v5295
  %v5326 = vpack.c.bf16 %v5298, %v5297
  %v5327 = vpack.c.bf16 %v5300, %v5299
  %v5328 = vpack.c.bf16 %v5302, %v5301
  %v5329 = vpack.c.bf16 %v5304, %v5303
  %v5330 = vpack.c.bf16 %v5306, %v5305
  %v5331 = vpack.c.bf16 %v5308, %v5307
  %v5332 = vpack.c.bf16 %v5310, %v5309
  %v5333 = vpack.c.bf16 %v5312, %v5311
  %v5334 = vpack.c.bf16 %v5314, %v5313
  %v5335 = vpack.c.bf16 %v5316, %v5315
  %v5336 = vpack.c.bf16 %v5318, %v5317
  %v5337 = vpack.c.bf16 %v5320, %v5319
  %v5338 = vpack.c.bf16 %v5322, %v5321
  %v5339 = vld [vmem:[%s7] sm:$0xf]
  %vm5340 = vcmask 64512
  %v5342 = vsel %vm5340, %v5323, 0
  %v5345 = vsel %vm5340, %v5324, 0
  %v5348 = vsel %vm5340, %v5325, 0
  %v5351 = vsel %vm5340, %v5326, 0
  %v5354 = vsel %vm5340, %v5327, 0
  %v5357 = vsel %vm5340, %v5328, 0
  %v5360 = vsel %vm5340, %v5329, 0
  %v5363 = vsel %vm5340, %v5330, 0
  %v5366 = vsel %vm5340, %v5331, 0
  %v5369 = vsel %vm5340, %v5332, 0
  %v5372 = vsel %vm5340, %v5333, 0
  %v5375 = vsel %vm5340, %v5334, 0
  %v5378 = vsel %vm5340, %v5335, 0
  %v5381 = vsel %vm5340, %v5336, 0
  %v5384 = vsel %vm5340, %v5337, 0
  %v5387 = vsel %vm5340, %v5338, 0
  %vm5389 = vcmask 1043456
  %v5391 = vsel %vm5389, %v5339, 0
  %5393 = vmatprep.subr.bf16.mxu0 0
  %5394 = vmatpush1.bf16.msra.mxu0 0
  %5395 = vmatprep.subr.bf16.mxu0 0
  %5396 = vmatpush1.bf16.msra.mxu0 0
  %5397 = vmatprep.subr.bf16.mxu0 0
  %5398 = vmatpush1.bf16.msra.mxu0 0
  %5399 = vmatprep.subr.bf16.mxu0 0
  %5400 = vmatpush1.bf16.msra.mxu0 0
  %5401 = vmatprep.subr.bf16.mxu0 0
  %5402 = vmatpush1.bf16.msra.mxu0 0
  %5403 = vmatprep.subr.bf16.mxu0 0
  %5404 = vmatpush1.bf16.msra.mxu0 0
  %5405 = vmatprep.subr.bf16.mxu0 0
  %5406 = vmatpush1.bf16.msra.mxu0 0
  %5407 = vmatprep.subr.bf16.mxu0 0
  %5408 = vmatpush1.bf16.msra.mxu0 %v5391
  %5409 = vmatprep.subr.bf16.mxu0 0
  %5410 = vmatpush2.bf16.msra.mxu0 0
  %5411 = vmatprep.subr.bf16.mxu0 0
  %5412 = vmatpush2.bf16.msra.mxu0 0
  %5413 = vmatprep.subr.bf16.mxu0 0
  %5414 = vmatpush2.bf16.msra.mxu0 0
  %5415 = vmatprep.subr.bf16.mxu0 0
  %5416 = vmatpush2.bf16.msra.mxu0 0
  %5417 = vmatprep.subr.bf16.mxu0 0
  %5418 = vmatpush2.bf16.msra.mxu0 0
  %5419 = vmatprep.subr.bf16.mxu0 0
  %5420 = vmatpush2.bf16.msra.mxu0 0
  %5421 = vmatprep.subr.bf16.mxu0 0
  %5422 = vmatpush2.bf16.msra.mxu0 0
  %5423 = vmatprep.subr.bf16.mxu0 0
  %5424 = vmatpush2.bf16.msra.mxu0 0
  %5425 = vmatprep.mubr.bf16.mxu0 0
  %5426 = vmatmul.mubr.bf16.gmra.mxu0 %v5342
  %v5427 = vpop.f32.mrf.mxu0
  %v5428 = vadd.f32 0.0, %v5427
  %v5429 = vpop.f32.mrf.mxu0
  %v5430 = vpop.f32.mrf.mxu0
  %v5431 = vadd.f32 0.0, %v5430
  %v5432 = vpop.f32.mrf.mxu0
  %5433 = vmatprep.mubr.bf16.mxu0 0
  %5434 = vmatmul.mubr.bf16.gmra.mxu0 %v5345
  %v5435 = vpop.f32.mrf.mxu0
  %v5436 = vadd.f32 0.0, %v5435
  %v5437 = vpop.f32.mrf.mxu0
  %v5438 = vpop.f32.mrf.mxu0
  %v5439 = vadd.f32 0.0, %v5438
  %v5440 = vpop.f32.mrf.mxu0
  %5441 = vmatprep.mubr.bf16.mxu0 0
  %5442 = vmatmul.mubr.bf16.gmra.mxu0 %v5348
  %v5443 = vpop.f32.mrf.mxu0
  %v5444 = vadd.f32 0.0, %v5443
  %v5445 = vpop.f32.mrf.mxu0
  %v5446 = vpop.f32.mrf.mxu0
  %v5447 = vadd.f32 0.0, %v5446
  %v5448 = vpop.f32.mrf.mxu0
  %5449 = vmatprep.mubr.bf16.mxu0 0
  %5450 = vmatmul.mubr.bf16.gmra.mxu0 %v5351
  %v5451 = vpop.f32.mrf.mxu0
  %v5452 = vadd.f32 0.0, %v5451
  %v5453 = vpop.f32.mrf.mxu0
  %v5454 = vpop.f32.mrf.mxu0
  %v5455 = vadd.f32 0.0, %v5454
  %v5456 = vpop.f32.mrf.mxu0
  %5457 = vmatprep.mubr.bf16.mxu0 0
  %5458 = vmatmul.mubr.bf16.gmra.mxu0 %v5354
  %v5459 = vpop.f32.mrf.mxu0
  %v5460 = vadd.f32 0.0, %v5459
  %v5461 = vpop.f32.mrf.mxu0
  %v5462 = vpop.f32.mrf.mxu0
  %v5463 = vadd.f32 0.0, %v5462
  %v5464 = vpop.f32.mrf.mxu0
  %5465 = vmatprep.mubr.bf16.mxu0 0
  %5466 = vmatmul.mubr.bf16.gmra.mxu0 %v5357
  %v5467 = vpop.f32.mrf.mxu0
  %v5468 = vadd.f32 0.0, %v5467
  %v5469 = vpop.f32.mrf.mxu0
  %v5470 = vpop.f32.mrf.mxu0
  %v5471 = vadd.f32 0.0, %v5470
  %v5472 = vpop.f32.mrf.mxu0
  %5473 = vmatprep.mubr.bf16.mxu0 0
  %5474 = vmatmul.mubr.bf16.gmra.mxu0 %v5360
  %v5475 = vpop.f32.mrf.mxu0
  %v5476 = vadd.f32 0.0, %v5475
  %v5477 = vpop.f32.mrf.mxu0
  %v5478 = vpop.f32.mrf.mxu0
  %v5479 = vadd.f32 0.0, %v5478
  %v5480 = vpop.f32.mrf.mxu0
  %5481 = vmatprep.mubr.bf16.mxu0 0
  %5482 = vmatmul.mubr.bf16.gmra.mxu0 %v5363
  %v5483 = vpop.f32.mrf.mxu0
  %v5484 = vadd.f32 0.0, %v5483
  %v5485 = vpop.f32.mrf.mxu0
  %v5486 = vpop.f32.mrf.mxu0
  %v5487 = vadd.f32 0.0, %v5486
  %v5488 = vpop.f32.mrf.mxu0
  %5489 = vmatprep.mubr.bf16.mxu0 0
  %5490 = vmatmul.mubr.bf16.gmra.mxu0 %v5366
  %v5491 = vpop.f32.mrf.mxu0
  %v5492 = vadd.f32 0.0, %v5491
  %v5493 = vpop.f32.mrf.mxu0
  %v5494 = vpop.f32.mrf.mxu0
  %v5495 = vadd.f32 0.0, %v5494
  %v5496 = vpop.f32.mrf.mxu0
  %5497 = vmatprep.mubr.bf16.mxu0 0
  %5498 = vmatmul.mubr.bf16.gmra.mxu0 %v5369
  %v5499 = vpop.f32.mrf.mxu0
  %v5500 = vadd.f32 0.0, %v5499
  %v5501 = vpop.f32.mrf.mxu0
  %v5502 = vpop.f32.mrf.mxu0
  %v5503 = vadd.f32 0.0, %v5502
  %v5504 = vpop.f32.mrf.mxu0
  %5505 = vmatprep.mubr.bf16.mxu0 0
  %5506 = vmatmul.mubr.bf16.gmra.mxu0 %v5372
  %v5507 = vpop.f32.mrf.mxu0
  %v5508 = vadd.f32 0.0, %v5507
  %v5509 = vpop.f32.mrf.mxu0
  %v5510 = vpop.f32.mrf.mxu0
  %v5511 = vadd.f32 0.0, %v5510
  %v5512 = vpop.f32.mrf.mxu0
  %5513 = vmatprep.mubr.bf16.mxu0 0
  %5514 = vmatmul.mubr.bf16.gmra.mxu0 %v5375
  %v5515 = vpop.f32.mrf.mxu0
  %v5516 = vadd.f32 0.0, %v5515
  %v5517 = vpop.f32.mrf.mxu0
  %v5518 = vpop.f32.mrf.mxu0
  %v5519 = vadd.f32 0.0, %v5518
  %v5520 = vpop.f32.mrf.mxu0
  %5521 = vmatprep.mubr.bf16.mxu0 0
  %5522 = vmatmul.mubr.bf16.gmra.mxu0 %v5378
  %v5523 = vpop.f32.mrf.mxu0
  %v5524 = vadd.f32 0.0, %v5523
  %v5525 = vpop.f32.mrf.mxu0
  %v5526 = vpop.f32.mrf.mxu0
  %v5527 = vadd.f32 0.0, %v5526
  %v5528 = vpop.f32.mrf.mxu0
  %5529 = vmatprep.mubr.bf16.mxu0 0
  %5530 = vmatmul.mubr.bf16.gmra.mxu0 %v5381
  %v5531 = vpop.f32.mrf.mxu0
  %v5532 = vadd.f32 0.0, %v5531
  %v5533 = vpop.f32.mrf.mxu0
  %v5534 = vpop.f32.mrf.mxu0
  %v5535 = vadd.f32 0.0, %v5534
  %v5536 = vpop.f32.mrf.mxu0
  %5537 = vmatprep.mubr.bf16.mxu0 0
  %5538 = vmatmul.mubr.bf16.gmra.mxu0 %v5384
  %v5539 = vpop.f32.mrf.mxu0
  %v5540 = vadd.f32 0.0, %v5539
  %v5541 = vpop.f32.mrf.mxu0
  %v5542 = vpop.f32.mrf.mxu0
  %v5543 = vadd.f32 0.0, %v5542
  %v5544 = vpop.f32.mrf.mxu0
  %5545 = vmatprep.mubr.bf16.mxu0 0
  %5546 = vmatmul.mubr.bf16.gmra.mxu0 %v5387
  %v5547 = vpop.f32.mrf.mxu0
  %v5548 = vadd.f32 0.0, %v5547
  %v5549 = vpop.f32.mrf.mxu0
  %v5550 = vpop.f32.mrf.mxu0
  %v5551 = vadd.f32 0.0, %v5550
  %v5552 = vpop.f32.mrf.mxu0
  %5553 = vdwg.mxu0
  %v5554 = vpack.c.bf16 %v5431, %v5428
  %v5555 = vpack.c.bf16 %v5439, %v5436
  %v5556 = vpack.c.bf16 %v5447, %v5444
  %v5557 = vpack.c.bf16 %v5455, %v5452
  %v5558 = vpack.c.bf16 %v5463, %v5460
  %v5559 = vpack.c.bf16 %v5471, %v5468
  %v5560 = vpack.c.bf16 %v5479, %v5476
  %v5561 = vpack.c.bf16 %v5487, %v5484
  %v5562 = vpack.c.bf16 %v5495, %v5492
  %v5563 = vpack.c.bf16 %v5503, %v5500
  %v5564 = vpack.c.bf16 %v5511, %v5508
  %v5565 = vpack.c.bf16 %v5519, %v5516
  %v5566 = vpack.c.bf16 %v5527, %v5524
  %v5567 = vpack.c.bf16 %v5535, %v5532
  %v5568 = vpack.c.bf16 %v5543, %v5540
  %v5569 = vpack.c.bf16 %v5551, %v5548
  %v5570 = vld [vmem:[%s8] sm:$0xff]
  %v5571 = vld [vmem:[%s8 + $0x8] sm:$0xff]
  %v5572 = vld [vmem:[%s8 + $0x10] sm:$0xff]
  %v5573 = vld [vmem:[%s8 + $0x18] sm:$0xff]
  %v5574 = vld [vmem:[%s8 + $0x20] sm:$0xff]
  %v5575 = vld [vmem:[%s8 + $0x28] sm:$0xff]
  %v5576 = vld [vmem:[%s8 + $0x30] sm:$0xff]
  %v5577 = vld [vmem:[%s8 + $0x38] sm:$0xff]
  %v5578 = vld [vmem:[%s8 + $0x40] sm:$0xff]
  %v5579 = vld [vmem:[%s8 + $0x48] sm:$0xff]
  %v5580 = vld [vmem:[%s8 + $0x50] sm:$0xff]
  %v5581 = vld [vmem:[%s8 + $0x58] sm:$0xff]
  %v5582 = vld [vmem:[%s8 + $0x60] sm:$0xff]
  %v5583 = vld [vmem:[%s8 + $0x68] sm:$0xff]
  %v5584 = vld [vmem:[%s8 + $0x70] sm:$0xff]
  %v5585 = vld [vmem:[%s8 + $0x78] sm:$0xff]
  %s5586 = scalar_lea.vmem %s7, 4
  %v5587 = vld [vmem:[%s5586] sm:$0xf]
  %v5589 = vsel %vm5389, %v5587, 0
  %5591 = vmatprep.subr.bf16.mxu0 0
  %5592 = vmatpush1.bf16.msra.mxu0 0
  %5593 = vmatprep.subr.bf16.mxu0 0
  %5594 = vmatpush1.bf16.msra.mxu0 0
  %5595 = vmatprep.subr.bf16.mxu0 0
  %5596 = vmatpush1.bf16.msra.mxu0 0
  %5597 = vmatprep.subr.bf16.mxu0 0
  %5598 = vmatpush1.bf16.msra.mxu0 0
  %5599 = vmatprep.subr.bf16.mxu0 0
  %5600 = vmatpush1.bf16.msra.mxu0 0
  %5601 = vmatprep.subr.bf16.mxu0 0
  %5602 = vmatpush1.bf16.msra.mxu0 0
  %5603 = vmatprep.subr.bf16.mxu0 0
  %5604 = vmatpush1.bf16.msra.mxu0 0
  %5605 = vmatprep.subr.bf16.mxu0 0
  %5606 = vmatpush1.bf16.msra.mxu0 %v5589
  %5607 = vmatprep.subr.bf16.mxu0 0
  %5608 = vmatpush2.bf16.msra.mxu0 0
  %5609 = vmatprep.subr.bf16.mxu0 0
  %5610 = vmatpush2.bf16.msra.mxu0 0
  %5611 = vmatprep.subr.bf16.mxu0 0
  %5612 = vmatpush2.bf16.msra.mxu0 0
  %5613 = vmatprep.subr.bf16.mxu0 0
  %5614 = vmatpush2.bf16.msra.mxu0 0
  %5615 = vmatprep.subr.bf16.mxu0 0
  %5616 = vmatpush2.bf16.msra.mxu0 0
  %5617 = vmatprep.subr.bf16.mxu0 0
  %5618 = vmatpush2.bf16.msra.mxu0 0
  %5619 = vmatprep.subr.bf16.mxu0 0
  %5620 = vmatpush2.bf16.msra.mxu0 0
  %5621 = vmatprep.subr.bf16.mxu0 0
  %5622 = vmatpush2.bf16.msra.mxu0 0
  %5623 = vmatprep.mubr.bf16.mxu0 0
  %5624 = vmatmul.mubr.bf16.gmra.mxu0 %v5342
  %v5625 = vpop.f32.mrf.mxu0
  %v5626 = vadd.f32 0.0, %v5625
  %v5627 = vpop.f32.mrf.mxu0
  %v5628 = vpop.f32.mrf.mxu0
  %v5629 = vadd.f32 0.0, %v5628
  %v5630 = vpop.f32.mrf.mxu0
  %5631 = vmatprep.mubr.bf16.mxu0 0
  %5632 = vmatmul.mubr.bf16.gmra.mxu0 %v5345
  %v5633 = vpop.f32.mrf.mxu0
  %v5634 = vadd.f32 0.0, %v5633
  %v5635 = vpop.f32.mrf.mxu0
  %v5636 = vpop.f32.mrf.mxu0
  %v5637 = vadd.f32 0.0, %v5636
  %v5638 = vpop.f32.mrf.mxu0
  %5639 = vmatprep.mubr.bf16.mxu0 0
  %5640 = vmatmul.mubr.bf16.gmra.mxu0 %v5348
  %v5641 = vpop.f32.mrf.mxu0
  %v5642 = vadd.f32 0.0, %v5641
  %v5643 = vpop.f32.mrf.mxu0
  %v5644 = vpop.f32.mrf.mxu0
  %v5645 = vadd.f32 0.0, %v5644
  %v5646 = vpop.f32.mrf.mxu0
  %5647 = vmatprep.mubr.bf16.mxu0 0
  %5648 = vmatmul.mubr.bf16.gmra.mxu0 %v5351
  %v5649 = vpop.f32.mrf.mxu0
  %v5650 = vadd.f32 0.0, %v5649
  %v5651 = vpop.f32.mrf.mxu0
  %v5652 = vpop.f32.mrf.mxu0
  %v5653 = vadd.f32 0.0, %v5652
  %v5654 = vpop.f32.mrf.mxu0
  %5655 = vmatprep.mubr.bf16.mxu0 0
  %5656 = vmatmul.mubr.bf16.gmra.mxu0 %v5354
  %v5657 = vpop.f32.mrf.mxu0
  %v5658 = vadd.f32 0.0, %v5657
  %v5659 = vpop.f32.mrf.mxu0
  %v5660 = vpop.f32.mrf.mxu0
  %v5661 = vadd.f32 0.0, %v5660
  %v5662 = vpop.f32.mrf.mxu0
  %5663 = vmatprep.mubr.bf16.mxu0 0
  %5664 = vmatmul.mubr.bf16.gmra.mxu0 %v5357
  %v5665 = vpop.f32.mrf.mxu0
  %v5666 = vadd.f32 0.0, %v5665
  %v5667 = vpop.f32.mrf.mxu0
  %v5668 = vpop.f32.mrf.mxu0
  %v5669 = vadd.f32 0.0, %v5668
  %v5670 = vpop.f32.mrf.mxu0
  %5671 = vmatprep.mubr.bf16.mxu0 0
  %5672 = vmatmul.mubr.bf16.gmra.mxu0 %v5360
  %v5673 = vpop.f32.mrf.mxu0
  %v5674 = vadd.f32 0.0, %v5673
  %v5675 = vpop.f32.mrf.mxu0
  %v5676 = vpop.f32.mrf.mxu0
  %v5677 = vadd.f32 0.0, %v5676
  %v5678 = vpop.f32.mrf.mxu0
  %5679 = vmatprep.mubr.bf16.mxu0 0
  %5680 = vmatmul.mubr.bf16.gmra.mxu0 %v5363
  %v5681 = vpop.f32.mrf.mxu0
  %v5682 = vadd.f32 0.0, %v5681
  %v5683 = vpop.f32.mrf.mxu0
  %v5684 = vpop.f32.mrf.mxu0
  %v5685 = vadd.f32 0.0, %v5684
  %v5686 = vpop.f32.mrf.mxu0
  %5687 = vmatprep.mubr.bf16.mxu0 0
  %5688 = vmatmul.mubr.bf16.gmra.mxu0 %v5366
  %v5689 = vpop.f32.mrf.mxu0
  %v5690 = vadd.f32 0.0, %v5689
  %v5691 = vpop.f32.mrf.mxu0
  %v5692 = vpop.f32.mrf.mxu0
  %v5693 = vadd.f32 0.0, %v5692
  %v5694 = vpop.f32.mrf.mxu0
  %5695 = vmatprep.mubr.bf16.mxu0 0
  %5696 = vmatmul.mubr.bf16.gmra.mxu0 %v5369
  %v5697 = vpop.f32.mrf.mxu0
  %v5698 = vadd.f32 0.0, %v5697
  %v5699 = vpop.f32.mrf.mxu0
  %v5700 = vpop.f32.mrf.mxu0
  %v5701 = vadd.f32 0.0, %v5700
  %v5702 = vpop.f32.mrf.mxu0
  %5703 = vmatprep.mubr.bf16.mxu0 0
  %5704 = vmatmul.mubr.bf16.gmra.mxu0 %v5372
  %v5705 = vpop.f32.mrf.mxu0
  %v5706 = vadd.f32 0.0, %v5705
  %v5707 = vpop.f32.mrf.mxu0
  %v5708 = vpop.f32.mrf.mxu0
  %v5709 = vadd.f32 0.0, %v5708
  %v5710 = vpop.f32.mrf.mxu0
  %5711 = vmatprep.mubr.bf16.mxu0 0
  %5712 = vmatmul.mubr.bf16.gmra.mxu0 %v5375
  %v5713 = vpop.f32.mrf.mxu0
  %v5714 = vadd.f32 0.0, %v5713
  %v5715 = vpop.f32.mrf.mxu0
  %v5716 = vpop.f32.mrf.mxu0
  %v5717 = vadd.f32 0.0, %v5716
  %v5718 = vpop.f32.mrf.mxu0
  %5719 = vmatprep.mubr.bf16.mxu0 0
  %5720 = vmatmul.mubr.bf16.gmra.mxu0 %v5378
  %v5721 = vpop.f32.mrf.mxu0
  %v5722 = vadd.f32 0.0, %v5721
  %v5723 = vpop.f32.mrf.mxu0
  %v5724 = vpop.f32.mrf.mxu0
  %v5725 = vadd.f32 0.0, %v5724
  %v5726 = vpop.f32.mrf.mxu0
  %5727 = vmatprep.mubr.bf16.mxu0 0
  %5728 = vmatmul.mubr.bf16.gmra.mxu0 %v5381
  %v5729 = vpop.f32.mrf.mxu0
  %v5730 = vadd.f32 0.0, %v5729
  %v5731 = vpop.f32.mrf.mxu0
  %v5732 = vpop.f32.mrf.mxu0
  %v5733 = vadd.f32 0.0, %v5732
  %v5734 = vpop.f32.mrf.mxu0
  %5735 = vmatprep.mubr.bf16.mxu0 0
  %5736 = vmatmul.mubr.bf16.gmra.mxu0 %v5384
  %v5737 = vpop.f32.mrf.mxu0
  %v5738 = vadd.f32 0.0, %v5737
  %v5739 = vpop.f32.mrf.mxu0
  %v5740 = vpop.f32.mrf.mxu0
  %v5741 = vadd.f32 0.0, %v5740
  %v5742 = vpop.f32.mrf.mxu0
  %5743 = vmatprep.mubr.bf16.mxu0 0
  %5744 = vmatmul.mubr.bf16.gmra.mxu0 %v5387
  %v5745 = vpop.f32.mrf.mxu0
  %v5746 = vadd.f32 0.0, %v5745
  %v5747 = vpop.f32.mrf.mxu0
  %v5748 = vpop.f32.mrf.mxu0
  %v5749 = vadd.f32 0.0, %v5748
  %v5750 = vpop.f32.mrf.mxu0
  %5751 = vdwg.mxu0
  %v5752 = vpack.c.bf16 %v5629, %v5626
  %v5753 = vpack.c.bf16 %v5637, %v5634
  %v5754 = vpack.c.bf16 %v5645, %v5642
  %v5755 = vpack.c.bf16 %v5653, %v5650
  %v5756 = vpack.c.bf16 %v5661, %v5658
  %v5757 = vpack.c.bf16 %v5669, %v5666
  %v5758 = vpack.c.bf16 %v5677, %v5674
  %v5759 = vpack.c.bf16 %v5685, %v5682
  %v5760 = vpack.c.bf16 %v5693, %v5690
  %v5761 = vpack.c.bf16 %v5701, %v5698
  %v5762 = vpack.c.bf16 %v5709, %v5706
  %v5763 = vpack.c.bf16 %v5717, %v5714
  %v5764 = vpack.c.bf16 %v5725, %v5722
  %v5765 = vpack.c.bf16 %v5733, %v5730
  %v5766 = vpack.c.bf16 %v5741, %v5738
  %v5767 = vpack.c.bf16 %v5749, %v5746
  %s5768 = scalar_lea.vmem %s8, 128
  %v5769 = vld [vmem:[%s5768] sm:$0xff]
  %v5770 = vld [vmem:[%s5768 + $0x8] sm:$0xff]
  %v5771 = vld [vmem:[%s5768 + $0x10] sm:$0xff]
  %v5772 = vld [vmem:[%s5768 + $0x18] sm:$0xff]
  %v5773 = vld [vmem:[%s5768 + $0x20] sm:$0xff]
  %v5774 = vld [vmem:[%s5768 + $0x28] sm:$0xff]
  %v5775 = vld [vmem:[%s5768 + $0x30] sm:$0xff]
  %v5776 = vld [vmem:[%s5768 + $0x38] sm:$0xff]
  %v5777 = vld [vmem:[%s5768 + $0x40] sm:$0xff]
  %v5778 = vld [vmem:[%s5768 + $0x48] sm:$0xff]
  %v5779 = vld [vmem:[%s5768 + $0x50] sm:$0xff]
  %v5780 = vld [vmem:[%s5768 + $0x58] sm:$0xff]
  %v5781 = vld [vmem:[%s5768 + $0x60] sm:$0xff]
  %v5782 = vld [vmem:[%s5768 + $0x68] sm:$0xff]
  %v5783 = vld [vmem:[%s5768 + $0x70] sm:$0xff]
  %v5784 = vld [vmem:[%s5768 + $0x78] sm:$0xff]
  %v5801 = vunpack.c.l.b16 %v5769
  %v5802 = vunpack.c.h.b16 %v5769
  %v5803 = vunpack.c.l.b16 %v5770
  %v5804 = vunpack.c.h.b16 %v5770
  %v5805 = vunpack.c.l.b16 %v5771
  %v5806 = vunpack.c.h.b16 %v5771
  %v5807 = vunpack.c.l.b16 %v5772
  %v5808 = vunpack.c.h.b16 %v5772
  %v5809 = vunpack.c.l.b16 %v5773
  %v5810 = vunpack.c.h.b16 %v5773
  %v5811 = vunpack.c.l.b16 %v5774
  %v5812 = vunpack.c.h.b16 %v5774
  %v5813 = vunpack.c.l.b16 %v5775
  %v5814 = vunpack.c.h.b16 %v5775
  %v5815 = vunpack.c.l.b16 %v5776
  %v5816 = vunpack.c.h.b16 %v5776
  %v5817 = vunpack.c.l.b16 %v5777
  %v5818 = vunpack.c.h.b16 %v5777
  %v5819 = vunpack.c.l.b16 %v5778
  %v5820 = vunpack.c.h.b16 %v5778
  %v5821 = vunpack.c.l.b16 %v5779
  %v5822 = vunpack.c.h.b16 %v5779
  %v5823 = vunpack.c.l.b16 %v5780
  %v5824 = vunpack.c.h.b16 %v5780
  %v5825 = vunpack.c.l.b16 %v5781
  %v5826 = vunpack.c.h.b16 %v5781
  %v5827 = vunpack.c.l.b16 %v5782
  %v5828 = vunpack.c.h.b16 %v5782
  %v5829 = vunpack.c.l.b16 %v5783
  %v5830 = vunpack.c.h.b16 %v5783
  %v5831 = vunpack.c.l.b16 %v5784
  %v5832 = vunpack.c.h.b16 %v5784
  %v5833 = vpack.c.b16 %v5803, %v5801
  %v5834 = vpack.c.b16 %v5804, %v5802
  %v5835 = vpack.c.b16 %v5807, %v5805
  %v5836 = vpack.c.b16 %v5808, %v5806
  %v5837 = vpack.c.b16 %v5811, %v5809
  %v5838 = vpack.c.b16 %v5812, %v5810
  %v5839 = vpack.c.b16 %v5815, %v5813
  %v5840 = vpack.c.b16 %v5816, %v5814
  %v5841 = vpack.c.b16 %v5819, %v5817
  %v5842 = vpack.c.b16 %v5820, %v5818
  %v5843 = vpack.c.b16 %v5823, %v5821
  %v5844 = vpack.c.b16 %v5824, %v5822
  %v5845 = vpack.c.b16 %v5827, %v5825
  %v5846 = vpack.c.b16 %v5828, %v5826
  %v5847 = vpack.c.b16 %v5831, %v5829
  %v5848 = vpack.c.b16 %v5832, %v5830
  %5865 = vmatprep.subr.bf16.mxu0 0
  %5866 = vmatpush1.bf16.msra.mxu0 %v5759
  %5867 = vmatprep.subr.bf16.mxu0 0
  %5868 = vmatpush1.bf16.msra.mxu0 %v5758
  %5869 = vmatprep.subr.bf16.mxu0 0
  %5870 = vmatpush1.bf16.msra.mxu0 %v5757
  %5871 = vmatprep.subr.bf16.mxu0 0
  %5872 = vmatpush1.bf16.msra.mxu0 %v5756
  %5873 = vmatprep.subr.bf16.mxu0 0
  %5874 = vmatpush1.bf16.msra.mxu0 %v5755
  %5875 = vmatprep.subr.bf16.mxu0 0
  %5876 = vmatpush1.bf16.msra.mxu0 %v5754
  %5877 = vmatprep.subr.bf16.mxu0 0
  %5878 = vmatpush1.bf16.msra.mxu0 %v5753
  %5879 = vmatprep.subr.bf16.mxu0 0
  %5880 = vmatpush1.bf16.msra.mxu0 %v5752
  %5881 = vmatprep.subr.bf16.mxu0 0
  %5882 = vmatpush2.bf16.msra.mxu0 %v5767
  %5883 = vmatprep.subr.bf16.mxu0 0
  %5884 = vmatpush2.bf16.msra.mxu0 %v5766
  %5885 = vmatprep.subr.bf16.mxu0 0
  %5886 = vmatpush2.bf16.msra.mxu0 %v5765
  %5887 = vmatprep.subr.bf16.mxu0 0
  %5888 = vmatpush2.bf16.msra.mxu0 %v5764
  %5889 = vmatprep.subr.bf16.mxu0 0
  %5890 = vmatpush2.bf16.msra.mxu0 %v5763
  %5891 = vmatprep.subr.bf16.mxu0 0
  %5892 = vmatpush2.bf16.msra.mxu0 %v5762
  %5893 = vmatprep.subr.bf16.mxu0 0
  %5894 = vmatpush2.bf16.msra.mxu0 %v5761
  %5895 = vmatprep.subr.bf16.mxu0 0
  %5896 = vmatpush2.bf16.msra.mxu0 %v5760
  %5897 = vmatprep.mubr.bf16.mxu0 %v5834
  %5898 = vmatmul.mubr.bf16.gmra.mxu0 %v5833
  %v5899 = vpop.f32.mrf.mxu0
  %v5900 = vadd.f32 0.0, %v5899
  %v5901 = vpop.f32.mrf.mxu0
  %v5902 = vpop.f32.mrf.mxu0
  %v5903 = vadd.f32 0.0, %v5902
  %v5904 = vpop.f32.mrf.mxu0
  %5905 = vmatprep.mubr.bf16.mxu0 %v5836
  %5906 = vmatmul.mubr.bf16.gmra.mxu0 %v5835
  %v5907 = vpop.f32.mrf.mxu0
  %v5908 = vadd.f32 0.0, %v5907
  %v5909 = vpop.f32.mrf.mxu0
  %v5910 = vpop.f32.mrf.mxu0
  %v5911 = vadd.f32 0.0, %v5910
  %v5912 = vpop.f32.mrf.mxu0
  %5913 = vmatprep.mubr.bf16.mxu0 %v5838
  %5914 = vmatmul.mubr.bf16.gmra.mxu0 %v5837
  %v5915 = vpop.f32.mrf.mxu0
  %v5916 = vadd.f32 0.0, %v5915
  %v5917 = vpop.f32.mrf.mxu0
  %v5918 = vpop.f32.mrf.mxu0
  %v5919 = vadd.f32 0.0, %v5918
  %v5920 = vpop.f32.mrf.mxu0
  %5921 = vmatprep.mubr.bf16.mxu0 %v5840
  %5922 = vmatmul.mubr.bf16.gmra.mxu0 %v5839
  %v5923 = vpop.f32.mrf.mxu0
  %v5924 = vadd.f32 0.0, %v5923
  %v5925 = vpop.f32.mrf.mxu0
  %v5926 = vpop.f32.mrf.mxu0
  %v5927 = vadd.f32 0.0, %v5926
  %v5928 = vpop.f32.mrf.mxu0
  %5929 = vmatprep.mubr.bf16.mxu0 %v5842
  %5930 = vmatmul.mubr.bf16.gmra.mxu0 %v5841
  %v5931 = vpop.f32.mrf.mxu0
  %v5932 = vadd.f32 0.0, %v5931
  %v5933 = vpop.f32.mrf.mxu0
  %v5934 = vpop.f32.mrf.mxu0
  %v5935 = vadd.f32 0.0, %v5934
  %v5936 = vpop.f32.mrf.mxu0
  %5937 = vmatprep.mubr.bf16.mxu0 %v5844
  %5938 = vmatmul.mubr.bf16.gmra.mxu0 %v5843
  %v5939 = vpop.f32.mrf.mxu0
  %v5940 = vadd.f32 0.0, %v5939
  %v5941 = vpop.f32.mrf.mxu0
  %v5942 = vpop.f32.mrf.mxu0
  %v5943 = vadd.f32 0.0, %v5942
  %v5944 = vpop.f32.mrf.mxu0
  %5945 = vmatprep.mubr.bf16.mxu0 %v5846
  %5946 = vmatmul.mubr.bf16.gmra.mxu0 %v5845
  %v5947 = vpop.f32.mrf.mxu0
  %v5948 = vadd.f32 0.0, %v5947
  %v5949 = vpop.f32.mrf.mxu0
  %v5950 = vpop.f32.mrf.mxu0
  %v5951 = vadd.f32 0.0, %v5950
  %v5952 = vpop.f32.mrf.mxu0
  %5953 = vmatprep.mubr.bf16.mxu0 %v5848
  %5954 = vmatmul.mubr.bf16.gmra.mxu0 %v5847
  %v5955 = vpop.f32.mrf.mxu0
  %v5956 = vadd.f32 0.0, %v5955
  %v5957 = vpop.f32.mrf.mxu0
  %v5958 = vpop.f32.mrf.mxu0
  %v5959 = vadd.f32 0.0, %v5958
  %v5960 = vpop.f32.mrf.mxu0
  %5961 = vdwg.mxu0
  %v5978 = vunpack.c.l.b16 %v5570
  %v5979 = vunpack.c.h.b16 %v5570
  %v5980 = vunpack.c.l.b16 %v5571
  %v5981 = vunpack.c.h.b16 %v5571
  %v5982 = vunpack.c.l.b16 %v5572
  %v5983 = vunpack.c.h.b16 %v5572
  %v5984 = vunpack.c.l.b16 %v5573
  %v5985 = vunpack.c.h.b16 %v5573
  %v5986 = vunpack.c.l.b16 %v5574
  %v5987 = vunpack.c.h.b16 %v5574
  %v5988 = vunpack.c.l.b16 %v5575
  %v5989 = vunpack.c.h.b16 %v5575
  %v5990 = vunpack.c.l.b16 %v5576
  %v5991 = vunpack.c.h.b16 %v5576
  %v5992 = vunpack.c.l.b16 %v5577
  %v5993 = vunpack.c.h.b16 %v5577
  %v5994 = vunpack.c.l.b16 %v5578
  %v5995 = vunpack.c.h.b16 %v5578
  %v5996 = vunpack.c.l.b16 %v5579
  %v5997 = vunpack.c.h.b16 %v5579
  %v5998 = vunpack.c.l.b16 %v5580
  %v5999 = vunpack.c.h.b16 %v5580
  %v6000 = vunpack.c.l.b16 %v5581
  %v6001 = vunpack.c.h.b16 %v5581
  %v6002 = vunpack.c.l.b16 %v5582
  %v6003 = vunpack.c.h.b16 %v5582
  %v6004 = vunpack.c.l.b16 %v5583
  %v6005 = vunpack.c.h.b16 %v5583
  %v6006 = vunpack.c.l.b16 %v5584
  %v6007 = vunpack.c.h.b16 %v5584
  %v6008 = vunpack.c.l.b16 %v5585
  %v6009 = vunpack.c.h.b16 %v5585
  %v6010 = vpack.c.b16 %v5980, %v5978
  %v6011 = vpack.c.b16 %v5981, %v5979
  %v6012 = vpack.c.b16 %v5984, %v5982
  %v6013 = vpack.c.b16 %v5985, %v5983
  %v6014 = vpack.c.b16 %v5988, %v5986
  %v6015 = vpack.c.b16 %v5989, %v5987
  %v6016 = vpack.c.b16 %v5992, %v5990
  %v6017 = vpack.c.b16 %v5993, %v5991
  %v6018 = vpack.c.b16 %v5996, %v5994
  %v6019 = vpack.c.b16 %v5997, %v5995
  %v6020 = vpack.c.b16 %v6000, %v5998
  %v6021 = vpack.c.b16 %v6001, %v5999
  %v6022 = vpack.c.b16 %v6004, %v6002
  %v6023 = vpack.c.b16 %v6005, %v6003
  %v6024 = vpack.c.b16 %v6008, %v6006
  %v6025 = vpack.c.b16 %v6009, %v6007
  %6042 = vmatprep.subr.bf16.mxu0 0
  %6043 = vmatpush1.bf16.msra.mxu0 %v5561
  %6044 = vmatprep.subr.bf16.mxu0 0
  %6045 = vmatpush1.bf16.msra.mxu0 %v5560
  %6046 = vmatprep.subr.bf16.mxu0 0
  %6047 = vmatpush1.bf16.msra.mxu0 %v5559
  %6048 = vmatprep.subr.bf16.mxu0 0
  %6049 = vmatpush1.bf16.msra.mxu0 %v5558
  %6050 = vmatprep.subr.bf16.mxu0 0
  %6051 = vmatpush1.bf16.msra.mxu0 %v5557
  %6052 = vmatprep.subr.bf16.mxu0 0
  %6053 = vmatpush1.bf16.msra.mxu0 %v5556
  %6054 = vmatprep.subr.bf16.mxu0 0
  %6055 = vmatpush1.bf16.msra.mxu0 %v5555
  %6056 = vmatprep.subr.bf16.mxu0 0
  %6057 = vmatpush1.bf16.msra.mxu0 %v5554
  %6058 = vmatprep.subr.bf16.mxu0 0
  %6059 = vmatpush2.bf16.msra.mxu0 %v5569
  %6060 = vmatprep.subr.bf16.mxu0 0
  %6061 = vmatpush2.bf16.msra.mxu0 %v5568
  %6062 = vmatprep.subr.bf16.mxu0 0
  %6063 = vmatpush2.bf16.msra.mxu0 %v5567
  %6064 = vmatprep.subr.bf16.mxu0 0
  %6065 = vmatpush2.bf16.msra.mxu0 %v5566
  %6066 = vmatprep.subr.bf16.mxu0 0
  %6067 = vmatpush2.bf16.msra.mxu0 %v5565
  %6068 = vmatprep.subr.bf16.mxu0 0
  %6069 = vmatpush2.bf16.msra.mxu0 %v5564
  %6070 = vmatprep.subr.bf16.mxu0 0
  %6071 = vmatpush2.bf16.msra.mxu0 %v5563
  %6072 = vmatprep.subr.bf16.mxu0 0
  %6073 = vmatpush2.bf16.msra.mxu0 %v5562
  %6074 = vmatprep.mubr.bf16.mxu0 %v6011
  %6075 = vmatmul.mubr.bf16.gmra.mxu0 %v6010
  %v6076 = vpop.f32.mrf.mxu0
  %v6077 = vadd.f32 %v5900, %v6076
  %v6078 = vpop.f32.mrf.mxu0
  %v6079 = vpop.f32.mrf.mxu0
  %v6080 = vadd.f32 %v5903, %v6079
  %v6081 = vpop.f32.mrf.mxu0
  %6082 = vmatprep.mubr.bf16.mxu0 %v6013
  %6083 = vmatmul.mubr.bf16.gmra.mxu0 %v6012
  %v6084 = vpop.f32.mrf.mxu0
  %v6085 = vadd.f32 %v5908, %v6084
  %v6086 = vpop.f32.mrf.mxu0
  %v6087 = vpop.f32.mrf.mxu0
  %v6088 = vadd.f32 %v5911, %v6087
  %v6089 = vpop.f32.mrf.mxu0
  %6090 = vmatprep.mubr.bf16.mxu0 %v6015
  %6091 = vmatmul.mubr.bf16.gmra.mxu0 %v6014
  %v6092 = vpop.f32.mrf.mxu0
  %v6093 = vadd.f32 %v5916, %v6092
  %v6094 = vpop.f32.mrf.mxu0
  %v6095 = vpop.f32.mrf.mxu0
  %v6096 = vadd.f32 %v5919, %v6095
  %v6097 = vpop.f32.mrf.mxu0
  %6098 = vmatprep.mubr.bf16.mxu0 %v6017
  %6099 = vmatmul.mubr.bf16.gmra.mxu0 %v6016
  %v6100 = vpop.f32.mrf.mxu0
  %v6101 = vadd.f32 %v5924, %v6100
  %v6102 = vpop.f32.mrf.mxu0
  %v6103 = vpop.f32.mrf.mxu0
  %v6104 = vadd.f32 %v5927, %v6103
  %v6105 = vpop.f32.mrf.mxu0
  %6106 = vmatprep.mubr.bf16.mxu0 %v6019
  %6107 = vmatmul.mubr.bf16.gmra.mxu0 %v6018
  %v6108 = vpop.f32.mrf.mxu0
  %v6109 = vadd.f32 %v5932, %v6108
  %v6110 = vpop.f32.mrf.mxu0
  %v6111 = vpop.f32.mrf.mxu0
  %v6112 = vadd.f32 %v5935, %v6111
  %v6113 = vpop.f32.mrf.mxu0
  %6114 = vmatprep.mubr.bf16.mxu0 %v6021
  %6115 = vmatmul.mubr.bf16.gmra.mxu0 %v6020
  %v6116 = vpop.f32.mrf.mxu0
  %v6117 = vadd.f32 %v5940, %v6116
  %v6118 = vpop.f32.mrf.mxu0
  %v6119 = vpop.f32.mrf.mxu0
  %v6120 = vadd.f32 %v5943, %v6119
  %v6121 = vpop.f32.mrf.mxu0
  %6122 = vmatprep.mubr.bf16.mxu0 %v6023
  %6123 = vmatmul.mubr.bf16.gmra.mxu0 %v6022
  %v6124 = vpop.f32.mrf.mxu0
  %v6125 = vadd.f32 %v5948, %v6124
  %v6126 = vpop.f32.mrf.mxu0
  %v6127 = vpop.f32.mrf.mxu0
  %v6128 = vadd.f32 %v5951, %v6127
  %v6129 = vpop.f32.mrf.mxu0
  %6130 = vmatprep.mubr.bf16.mxu0 %v6025
  %6131 = vmatmul.mubr.bf16.gmra.mxu0 %v6024
  %v6132 = vpop.f32.mrf.mxu0
  %v6133 = vadd.f32 %v5956, %v6132
  %v6134 = vpop.f32.mrf.mxu0
  %v6135 = vpop.f32.mrf.mxu0
  %v6136 = vadd.f32 %v5959, %v6135
  %v6137 = vpop.f32.mrf.mxu0
  %6138 = vdwg.mxu0
  %s6139 = scalar_lea.vmem %s7, 8
  %v6140 = vld [vmem:[%s6139] sm:$0xf]
  %v6142 = vsel %vm5389, %v6140, 0
  %6144 = vmatprep.subr.bf16.mxu0 0
  %6145 = vmatpush1.bf16.msra.mxu0 0
  %6146 = vmatprep.subr.bf16.mxu0 0
  %6147 = vmatpush1.bf16.msra.mxu0 0
  %6148 = vmatprep.subr.bf16.mxu0 0
  %6149 = vmatpush1.bf16.msra.mxu0 0
  %6150 = vmatprep.subr.bf16.mxu0 0
  %6151 = vmatpush1.bf16.msra.mxu0 0
  %6152 = vmatprep.subr.bf16.mxu0 0
  %6153 = vmatpush1.bf16.msra.mxu0 0
  %6154 = vmatprep.subr.bf16.mxu0 0
  %6155 = vmatpush1.bf16.msra.mxu0 0
  %6156 = vmatprep.subr.bf16.mxu0 0
  %6157 = vmatpush1.bf16.msra.mxu0 0
  %6158 = vmatprep.subr.bf16.mxu0 0
  %6159 = vmatpush1.bf16.msra.mxu0 %v6142
  %6160 = vmatprep.subr.bf16.mxu0 0
  %6161 = vmatpush2.bf16.msra.mxu0 0
  %6162 = vmatprep.subr.bf16.mxu0 0
  %6163 = vmatpush2.bf16.msra.mxu0 0
  %6164 = vmatprep.subr.bf16.mxu0 0
  %6165 = vmatpush2.bf16.msra.mxu0 0
  %6166 = vmatprep.subr.bf16.mxu0 0
  %6167 = vmatpush2.bf16.msra.mxu0 0
  %6168 = vmatprep.subr.bf16.mxu0 0
  %6169 = vmatpush2.bf16.msra.mxu0 0
  %6170 = vmatprep.subr.bf16.mxu0 0
  %6171 = vmatpush2.bf16.msra.mxu0 0
  %6172 = vmatprep.subr.bf16.mxu0 0
  %6173 = vmatpush2.bf16.msra.mxu0 0
  %6174 = vmatprep.subr.bf16.mxu0 0
  %6175 = vmatpush2.bf16.msra.mxu0 0
  %6176 = vmatprep.mubr.bf16.mxu0 0
  %6177 = vmatmul.mubr.bf16.gmra.mxu0 %v5342
  %v6178 = vpop.f32.mrf.mxu0
  %v6179 = vadd.f32 0.0, %v6178
  %v6180 = vpop.f32.mrf.mxu0
  %v6181 = vpop.f32.mrf.mxu0
  %v6182 = vadd.f32 0.0, %v6181
  %v6183 = vpop.f32.mrf.mxu0
  %6184 = vmatprep.mubr.bf16.mxu0 0
  %6185 = vmatmul.mubr.bf16.gmra.mxu0 %v5345
  %v6186 = vpop.f32.mrf.mxu0
  %v6187 = vadd.f32 0.0, %v6186
  %v6188 = vpop.f32.mrf.mxu0
  %v6189 = vpop.f32.mrf.mxu0
  %v6190 = vadd.f32 0.0, %v6189
  %v6191 = vpop.f32.mrf.mxu0
  %6192 = vmatprep.mubr.bf16.mxu0 0
  %6193 = vmatmul.mubr.bf16.gmra.mxu0 %v5348
  %v6194 = vpop.f32.mrf.mxu0
  %v6195 = vadd.f32 0.0, %v6194
  %v6196 = vpop.f32.mrf.mxu0
  %v6197 = vpop.f32.mrf.mxu0
  %v6198 = vadd.f32 0.0, %v6197
  %v6199 = vpop.f32.mrf.mxu0
  %6200 = vmatprep.mubr.bf16.mxu0 0
  %6201 = vmatmul.mubr.bf16.gmra.mxu0 %v5351
  %v6202 = vpop.f32.mrf.mxu0
  %v6203 = vadd.f32 0.0, %v6202
  %v6204 = vpop.f32.mrf.mxu0
  %v6205 = vpop.f32.mrf.mxu0
  %v6206 = vadd.f32 0.0, %v6205
  %v6207 = vpop.f32.mrf.mxu0
  %6208 = vmatprep.mubr.bf16.mxu0 0
  %6209 = vmatmul.mubr.bf16.gmra.mxu0 %v5354
  %v6210 = vpop.f32.mrf.mxu0
  %v6211 = vadd.f32 0.0, %v6210
  %v6212 = vpop.f32.mrf.mxu0
  %v6213 = vpop.f32.mrf.mxu0
  %v6214 = vadd.f32 0.0, %v6213
  %v6215 = vpop.f32.mrf.mxu0
  %6216 = vmatprep.mubr.bf16.mxu0 0
  %6217 = vmatmul.mubr.bf16.gmra.mxu0 %v5357
  %v6218 = vpop.f32.mrf.mxu0
  %v6219 = vadd.f32 0.0, %v6218
  %v6220 = vpop.f32.mrf.mxu0
  %v6221 = vpop.f32.mrf.mxu0
  %v6222 = vadd.f32 0.0, %v6221
  %v6223 = vpop.f32.mrf.mxu0
  %6224 = vmatprep.mubr.bf16.mxu0 0
  %6225 = vmatmul.mubr.bf16.gmra.mxu0 %v5360
  %v6226 = vpop.f32.mrf.mxu0
  %v6227 = vadd.f32 0.0, %v6226
  %v6228 = vpop.f32.mrf.mxu0
  %v6229 = vpop.f32.mrf.mxu0
  %v6230 = vadd.f32 0.0, %v6229
  %v6231 = vpop.f32.mrf.mxu0
  %6232 = vmatprep.mubr.bf16.mxu0 0
  %6233 = vmatmul.mubr.bf16.gmra.mxu0 %v5363
  %v6234 = vpop.f32.mrf.mxu0
  %v6235 = vadd.f32 0.0, %v6234
  %v6236 = vpop.f32.mrf.mxu0
  %v6237 = vpop.f32.mrf.mxu0
  %v6238 = vadd.f32 0.0, %v6237
  %v6239 = vpop.f32.mrf.mxu0
  %6240 = vmatprep.mubr.bf16.mxu0 0
  %6241 = vmatmul.mubr.bf16.gmra.mxu0 %v5366
  %v6242 = vpop.f32.mrf.mxu0
  %v6243 = vadd.f32 0.0, %v6242
  %v6244 = vpop.f32.mrf.mxu0
  %v6245 = vpop.f32.mrf.mxu0
  %v6246 = vadd.f32 0.0, %v6245
  %v6247 = vpop.f32.mrf.mxu0
  %6248 = vmatprep.mubr.bf16.mxu0 0
  %6249 = vmatmul.mubr.bf16.gmra.mxu0 %v5369
  %v6250 = vpop.f32.mrf.mxu0
  %v6251 = vadd.f32 0.0, %v6250
  %v6252 = vpop.f32.mrf.mxu0
  %v6253 = vpop.f32.mrf.mxu0
  %v6254 = vadd.f32 0.0, %v6253
  %v6255 = vpop.f32.mrf.mxu0
  %6256 = vmatprep.mubr.bf16.mxu0 0
  %6257 = vmatmul.mubr.bf16.gmra.mxu0 %v5372
  %v6258 = vpop.f32.mrf.mxu0
  %v6259 = vadd.f32 0.0, %v6258
  %v6260 = vpop.f32.mrf.mxu0
  %v6261 = vpop.f32.mrf.mxu0
  %v6262 = vadd.f32 0.0, %v6261
  %v6263 = vpop.f32.mrf.mxu0
  %6264 = vmatprep.mubr.bf16.mxu0 0
  %6265 = vmatmul.mubr.bf16.gmra.mxu0 %v5375
  %v6266 = vpop.f32.mrf.mxu0
  %v6267 = vadd.f32 0.0, %v6266
  %v6268 = vpop.f32.mrf.mxu0
  %v6269 = vpop.f32.mrf.mxu0
  %v6270 = vadd.f32 0.0, %v6269
  %v6271 = vpop.f32.mrf.mxu0
  %6272 = vmatprep.mubr.bf16.mxu0 0
  %6273 = vmatmul.mubr.bf16.gmra.mxu0 %v5378
  %v6274 = vpop.f32.mrf.mxu0
  %v6275 = vadd.f32 0.0, %v6274
  %v6276 = vpop.f32.mrf.mxu0
  %v6277 = vpop.f32.mrf.mxu0
  %v6278 = vadd.f32 0.0, %v6277
  %v6279 = vpop.f32.mrf.mxu0
  %6280 = vmatprep.mubr.bf16.mxu0 0
  %6281 = vmatmul.mubr.bf16.gmra.mxu0 %v5381
  %v6282 = vpop.f32.mrf.mxu0
  %v6283 = vadd.f32 0.0, %v6282
  %v6284 = vpop.f32.mrf.mxu0
  %v6285 = vpop.f32.mrf.mxu0
  %v6286 = vadd.f32 0.0, %v6285
  %v6287 = vpop.f32.mrf.mxu0
  %6288 = vmatprep.mubr.bf16.mxu0 0
  %6289 = vmatmul.mubr.bf16.gmra.mxu0 %v5384
  %v6290 = vpop.f32.mrf.mxu0
  %v6291 = vadd.f32 0.0, %v6290
  %v6292 = vpop.f32.mrf.mxu0
  %v6293 = vpop.f32.mrf.mxu0
  %v6294 = vadd.f32 0.0, %v6293
  %v6295 = vpop.f32.mrf.mxu0
  %6296 = vmatprep.mubr.bf16.mxu0 0
  %6297 = vmatmul.mubr.bf16.gmra.mxu0 %v5387
  %v6298 = vpop.f32.mrf.mxu0
  %v6299 = vadd.f32 0.0, %v6298
  %v6300 = vpop.f32.mrf.mxu0
  %v6301 = vpop.f32.mrf.mxu0
  %v6302 = vadd.f32 0.0, %v6301
  %v6303 = vpop.f32.mrf.mxu0
  %6304 = vdwg.mxu0
  %v6305 = vpack.c.bf16 %v6182, %v6179
  %v6306 = vpack.c.bf16 %v6190, %v6187
  %v6307 = vpack.c.bf16 %v6198, %v6195
  %v6308 = vpack.c.bf16 %v6206, %v6203
  %v6309 = vpack.c.bf16 %v6214, %v6211
  %v6310 = vpack.c.bf16 %v6222, %v6219
  %v6311 = vpack.c.bf16 %v6230, %v6227
  %v6312 = vpack.c.bf16 %v6238, %v6235
  %v6313 = vpack.c.bf16 %v6246, %v6243
  %v6314 = vpack.c.bf16 %v6254, %v6251
  %v6315 = vpack.c.bf16 %v6262, %v6259
  %v6316 = vpack.c.bf16 %v6270, %v6267
  %v6317 = vpack.c.bf16 %v6278, %v6275
  %v6318 = vpack.c.bf16 %v6286, %v6283
  %v6319 = vpack.c.bf16 %v6294, %v6291
  %v6320 = vpack.c.bf16 %v6302, %v6299
  %s6321 = scalar_lea.vmem %s8, 256
  %v6322 = vld [vmem:[%s6321] sm:$0xff]
  %v6323 = vld [vmem:[%s6321 + $0x8] sm:$0xff]
  %v6324 = vld [vmem:[%s6321 + $0x10] sm:$0xff]
  %v6325 = vld [vmem:[%s6321 + $0x18] sm:$0xff]
  %v6326 = vld [vmem:[%s6321 + $0x20] sm:$0xff]
  %v6327 = vld [vmem:[%s6321 + $0x28] sm:$0xff]
  %v6328 = vld [vmem:[%s6321 + $0x30] sm:$0xff]
  %v6329 = vld [vmem:[%s6321 + $0x38] sm:$0xff]
  %v6330 = vld [vmem:[%s6321 + $0x40] sm:$0xff]
  %v6331 = vld [vmem:[%s6321 + $0x48] sm:$0xff]
  %v6332 = vld [vmem:[%s6321 + $0x50] sm:$0xff]
  %v6333 = vld [vmem:[%s6321 + $0x58] sm:$0xff]
  %v6334 = vld [vmem:[%s6321 + $0x60] sm:$0xff]
  %v6335 = vld [vmem:[%s6321 + $0x68] sm:$0xff]
  %v6336 = vld [vmem:[%s6321 + $0x70] sm:$0xff]
  %v6337 = vld [vmem:[%s6321 + $0x78] sm:$0xff]
  %v6354 = vunpack.c.l.b16 %v6322
  %v6355 = vunpack.c.h.b16 %v6322
  %v6356 = vunpack.c.l.b16 %v6323
  %v6357 = vunpack.c.h.b16 %v6323
  %v6358 = vunpack.c.l.b16 %v6324
  %v6359 = vunpack.c.h.b16 %v6324
  %v6360 = vunpack.c.l.b16 %v6325
  %v6361 = vunpack.c.h.b16 %v6325
  %v6362 = vunpack.c.l.b16 %v6326
  %v6363 = vunpack.c.h.b16 %v6326
  %v6364 = vunpack.c.l.b16 %v6327
  %v6365 = vunpack.c.h.b16 %v6327
  %v6366 = vunpack.c.l.b16 %v6328
  %v6367 = vunpack.c.h.b16 %v6328
  %v6368 = vunpack.c.l.b16 %v6329
  %v6369 = vunpack.c.h.b16 %v6329
  %v6370 = vunpack.c.l.b16 %v6330
  %v6371 = vunpack.c.h.b16 %v6330
  %v6372 = vunpack.c.l.b16 %v6331
  %v6373 = vunpack.c.h.b16 %v6331
  %v6374 = vunpack.c.l.b16 %v6332
  %v6375 = vunpack.c.h.b16 %v6332
  %v6376 = vunpack.c.l.b16 %v6333
  %v6377 = vunpack.c.h.b16 %v6333
  %v6378 = vunpack.c.l.b16 %v6334
  %v6379 = vunpack.c.h.b16 %v6334
  %v6380 = vunpack.c.l.b16 %v6335
  %v6381 = vunpack.c.h.b16 %v6335
  %v6382 = vunpack.c.l.b16 %v6336
  %v6383 = vunpack.c.h.b16 %v6336
  %v6384 = vunpack.c.l.b16 %v6337
  %v6385 = vunpack.c.h.b16 %v6337
  %v6386 = vpack.c.b16 %v6356, %v6354
  %v6387 = vpack.c.b16 %v6357, %v6355
  %v6388 = vpack.c.b16 %v6360, %v6358
  %v6389 = vpack.c.b16 %v6361, %v6359
  %v6390 = vpack.c.b16 %v6364, %v6362
  %v6391 = vpack.c.b16 %v6365, %v6363
  %v6392 = vpack.c.b16 %v6368, %v6366
  %v6393 = vpack.c.b16 %v6369, %v6367
  %v6394 = vpack.c.b16 %v6372, %v6370
  %v6395 = vpack.c.b16 %v6373, %v6371
  %v6396 = vpack.c.b16 %v6376, %v6374
  %v6397 = vpack.c.b16 %v6377, %v6375
  %v6398 = vpack.c.b16 %v6380, %v6378
  %v6399 = vpack.c.b16 %v6381, %v6379
  %v6400 = vpack.c.b16 %v6384, %v6382
  %v6401 = vpack.c.b16 %v6385, %v6383
  %6418 = vmatprep.subr.bf16.mxu0 0
  %6419 = vmatpush1.bf16.msra.mxu0 %v6312
  %6420 = vmatprep.subr.bf16.mxu0 0
  %6421 = vmatpush1.bf16.msra.mxu0 %v6311
  %6422 = vmatprep.subr.bf16.mxu0 0
  %6423 = vmatpush1.bf16.msra.mxu0 %v6310
  %6424 = vmatprep.subr.bf16.mxu0 0
  %6425 = vmatpush1.bf16.msra.mxu0 %v6309
  %6426 = vmatprep.subr.bf16.mxu0 0
  %6427 = vmatpush1.bf16.msra.mxu0 %v6308
  %6428 = vmatprep.subr.bf16.mxu0 0
  %6429 = vmatpush1.bf16.msra.mxu0 %v6307
  %6430 = vmatprep.subr.bf16.mxu0 0
  %6431 = vmatpush1.bf16.msra.mxu0 %v6306
  %6432 = vmatprep.subr.bf16.mxu0 0
  %6433 = vmatpush1.bf16.msra.mxu0 %v6305
  %6434 = vmatprep.subr.bf16.mxu0 0
  %6435 = vmatpush2.bf16.msra.mxu0 %v6320
  %6436 = vmatprep.subr.bf16.mxu0 0
  %6437 = vmatpush2.bf16.msra.mxu0 %v6319
  %6438 = vmatprep.subr.bf16.mxu0 0
  %6439 = vmatpush2.bf16.msra.mxu0 %v6318
  %6440 = vmatprep.subr.bf16.mxu0 0
  %6441 = vmatpush2.bf16.msra.mxu0 %v6317
  %6442 = vmatprep.subr.bf16.mxu0 0
  %6443 = vmatpush2.bf16.msra.mxu0 %v6316
  %6444 = vmatprep.subr.bf16.mxu0 0
  %6445 = vmatpush2.bf16.msra.mxu0 %v6315
  %6446 = vmatprep.subr.bf16.mxu0 0
  %6447 = vmatpush2.bf16.msra.mxu0 %v6314
  %6448 = vmatprep.subr.bf16.mxu0 0
  %6449 = vmatpush2.bf16.msra.mxu0 %v6313
  %6450 = vmatprep.mubr.bf16.mxu0 %v6387
  %6451 = vmatmul.mubr.bf16.gmra.mxu0 %v6386
  %v6452 = vpop.f32.mrf.mxu0
  %v6453 = vadd.f32 0.0, %v6452
  %v6454 = vpop.f32.mrf.mxu0
  %v6455 = vpop.f32.mrf.mxu0
  %v6456 = vadd.f32 0.0, %v6455
  %v6457 = vpop.f32.mrf.mxu0
  %6458 = vmatprep.mubr.bf16.mxu0 %v6389
  %6459 = vmatmul.mubr.bf16.gmra.mxu0 %v6388
  %v6460 = vpop.f32.mrf.mxu0
  %v6461 = vadd.f32 0.0, %v6460
  %v6462 = vpop.f32.mrf.mxu0
  %v6463 = vpop.f32.mrf.mxu0
  %v6464 = vadd.f32 0.0, %v6463
  %v6465 = vpop.f32.mrf.mxu0
  %6466 = vmatprep.mubr.bf16.mxu0 %v6391
  %6467 = vmatmul.mubr.bf16.gmra.mxu0 %v6390
  %v6468 = vpop.f32.mrf.mxu0
  %v6469 = vadd.f32 0.0, %v6468
  %v6470 = vpop.f32.mrf.mxu0
  %v6471 = vpop.f32.mrf.mxu0
  %v6472 = vadd.f32 0.0, %v6471
  %v6473 = vpop.f32.mrf.mxu0
  %6474 = vmatprep.mubr.bf16.mxu0 %v6393
  %6475 = vmatmul.mubr.bf16.gmra.mxu0 %v6392
  %v6476 = vpop.f32.mrf.mxu0
  %v6477 = vadd.f32 0.0, %v6476
  %v6478 = vpop.f32.mrf.mxu0
  %v6479 = vpop.f32.mrf.mxu0
  %v6480 = vadd.f32 0.0, %v6479
  %v6481 = vpop.f32.mrf.mxu0
  %6482 = vmatprep.mubr.bf16.mxu0 %v6395
  %6483 = vmatmul.mubr.bf16.gmra.mxu0 %v6394
  %v6484 = vpop.f32.mrf.mxu0
  %v6485 = vadd.f32 0.0, %v6484
  %v6486 = vpop.f32.mrf.mxu0
  %v6487 = vpop.f32.mrf.mxu0
  %v6488 = vadd.f32 0.0, %v6487
  %v6489 = vpop.f32.mrf.mxu0
  %6490 = vmatprep.mubr.bf16.mxu0 %v6397
  %6491 = vmatmul.mubr.bf16.gmra.mxu0 %v6396
  %v6492 = vpop.f32.mrf.mxu0
  %v6493 = vadd.f32 0.0, %v6492
  %v6494 = vpop.f32.mrf.mxu0
  %v6495 = vpop.f32.mrf.mxu0
  %v6496 = vadd.f32 0.0, %v6495
  %v6497 = vpop.f32.mrf.mxu0
  %6498 = vmatprep.mubr.bf16.mxu0 %v6399
  %6499 = vmatmul.mubr.bf16.gmra.mxu0 %v6398
  %v6500 = vpop.f32.mrf.mxu0
  %v6501 = vadd.f32 0.0, %v6500
  %v6502 = vpop.f32.mrf.mxu0
  %v6503 = vpop.f32.mrf.mxu0
  %v6504 = vadd.f32 0.0, %v6503
  %v6505 = vpop.f32.mrf.mxu0
  %6506 = vmatprep.mubr.bf16.mxu0 %v6401
  %6507 = vmatmul.mubr.bf16.gmra.mxu0 %v6400
  %v6508 = vpop.f32.mrf.mxu0
  %v6509 = vadd.f32 0.0, %v6508
  %v6510 = vpop.f32.mrf.mxu0
  %v6511 = vpop.f32.mrf.mxu0
  %v6512 = vadd.f32 0.0, %v6511
  %v6513 = vpop.f32.mrf.mxu0
  %6514 = vdwg.mxu0
  %v6515 = vadd.f32 %v6077, %v6453
  %v6516 = vadd.f32 %v6080, %v6456
  %v6517 = vadd.f32 %v6085, %v6461
  %v6518 = vadd.f32 %v6088, %v6464
  %v6519 = vadd.f32 %v6093, %v6469
  %v6520 = vadd.f32 %v6096, %v6472
  %v6521 = vadd.f32 %v6101, %v6477
  %v6522 = vadd.f32 %v6104, %v6480
  %v6523 = vadd.f32 %v6109, %v6485
  %v6524 = vadd.f32 %v6112, %v6488
  %v6525 = vadd.f32 %v6117, %v6493
  %v6526 = vadd.f32 %v6120, %v6496
  %v6527 = vadd.f32 %v6125, %v6501
  %v6528 = vadd.f32 %v6128, %v6504
  %v6529 = vadd.f32 %v6133, %v6509
  %v6530 = vadd.f32 %v6136, %v6512
  %s6531 = scalar_lea.vmem %s7, 12
  %v6532 = vld [vmem:[%s6531] sm:$0xf]
  %v6534 = vsel %vm5389, %v6532, 0
  %6536 = vmatprep.subr.bf16.mxu0 0
  %6537 = vmatpush1.bf16.msra.mxu0 0
  %6538 = vmatprep.subr.bf16.mxu0 0
  %6539 = vmatpush1.bf16.msra.mxu0 0
  %6540 = vmatprep.subr.bf16.mxu0 0
  %6541 = vmatpush1.bf16.msra.mxu0 0
  %6542 = vmatprep.subr.bf16.mxu0 0
  %6543 = vmatpush1.bf16.msra.mxu0 0
  %6544 = vmatprep.subr.bf16.mxu0 0
  %6545 = vmatpush1.bf16.msra.mxu0 0
  %6546 = vmatprep.subr.bf16.mxu0 0
  %6547 = vmatpush1.bf16.msra.mxu0 0
  %6548 = vmatprep.subr.bf16.mxu0 0
  %6549 = vmatpush1.bf16.msra.mxu0 0
  %6550 = vmatprep.subr.bf16.mxu0 0
  %6551 = vmatpush1.bf16.msra.mxu0 %v6534
  %6552 = vmatprep.subr.bf16.mxu0 0
  %6553 = vmatpush2.bf16.msra.mxu0 0
  %6554 = vmatprep.subr.bf16.mxu0 0
  %6555 = vmatpush2.bf16.msra.mxu0 0
  %6556 = vmatprep.subr.bf16.mxu0 0
  %6557 = vmatpush2.bf16.msra.mxu0 0
  %6558 = vmatprep.subr.bf16.mxu0 0
  %6559 = vmatpush2.bf16.msra.mxu0 0
  %6560 = vmatprep.subr.bf16.mxu0 0
  %6561 = vmatpush2.bf16.msra.mxu0 0
  %6562 = vmatprep.subr.bf16.mxu0 0
  %6563 = vmatpush2.bf16.msra.mxu0 0
  %6564 = vmatprep.subr.bf16.mxu0 0
  %6565 = vmatpush2.bf16.msra.mxu0 0
  %6566 = vmatprep.subr.bf16.mxu0 0
  %6567 = vmatpush2.bf16.msra.mxu0 0
  %6568 = vmatprep.mubr.bf16.mxu0 0
  %6569 = vmatmul.mubr.bf16.gmra.mxu0 %v5342
  %v6570 = vpop.f32.mrf.mxu0
  %v6571 = vadd.f32 0.0, %v6570
  %v6572 = vpop.f32.mrf.mxu0
  %v6573 = vpop.f32.mrf.mxu0
  %v6574 = vadd.f32 0.0, %v6573
  %v6575 = vpop.f32.mrf.mxu0
  %6576 = vmatprep.mubr.bf16.mxu0 0
  %6577 = vmatmul.mubr.bf16.gmra.mxu0 %v5345
  %v6578 = vpop.f32.mrf.mxu0
  %v6579 = vadd.f32 0.0, %v6578
  %v6580 = vpop.f32.mrf.mxu0
  %v6581 = vpop.f32.mrf.mxu0
  %v6582 = vadd.f32 0.0, %v6581
  %v6583 = vpop.f32.mrf.mxu0
  %6584 = vmatprep.mubr.bf16.mxu0 0
  %6585 = vmatmul.mubr.bf16.gmra.mxu0 %v5348
  %v6586 = vpop.f32.mrf.mxu0
  %v6587 = vadd.f32 0.0, %v6586
  %v6588 = vpop.f32.mrf.mxu0
  %v6589 = vpop.f32.mrf.mxu0
  %v6590 = vadd.f32 0.0, %v6589
  %v6591 = vpop.f32.mrf.mxu0
  %6592 = vmatprep.mubr.bf16.mxu0 0
  %6593 = vmatmul.mubr.bf16.gmra.mxu0 %v5351
  %v6594 = vpop.f32.mrf.mxu0
  %v6595 = vadd.f32 0.0, %v6594
  %v6596 = vpop.f32.mrf.mxu0
  %v6597 = vpop.f32.mrf.mxu0
  %v6598 = vadd.f32 0.0, %v6597
  %v6599 = vpop.f32.mrf.mxu0
  %6600 = vmatprep.mubr.bf16.mxu0 0
  %6601 = vmatmul.mubr.bf16.gmra.mxu0 %v5354
  %v6602 = vpop.f32.mrf.mxu0
  %v6603 = vadd.f32 0.0, %v6602
  %v6604 = vpop.f32.mrf.mxu0
  %v6605 = vpop.f32.mrf.mxu0
  %v6606 = vadd.f32 0.0, %v6605
  %v6607 = vpop.f32.mrf.mxu0
  %6608 = vmatprep.mubr.bf16.mxu0 0
  %6609 = vmatmul.mubr.bf16.gmra.mxu0 %v5357
  %v6610 = vpop.f32.mrf.mxu0
  %v6611 = vadd.f32 0.0, %v6610
  %v6612 = vpop.f32.mrf.mxu0
  %v6613 = vpop.f32.mrf.mxu0
  %v6614 = vadd.f32 0.0, %v6613
  %v6615 = vpop.f32.mrf.mxu0
  %6616 = vmatprep.mubr.bf16.mxu0 0
  %6617 = vmatmul.mubr.bf16.gmra.mxu0 %v5360
  %v6618 = vpop.f32.mrf.mxu0
  %v6619 = vadd.f32 0.0, %v6618
  %v6620 = vpop.f32.mrf.mxu0
  %v6621 = vpop.f32.mrf.mxu0
  %v6622 = vadd.f32 0.0, %v6621
  %v6623 = vpop.f32.mrf.mxu0
  %6624 = vmatprep.mubr.bf16.mxu0 0
  %6625 = vmatmul.mubr.bf16.gmra.mxu0 %v5363
  %v6626 = vpop.f32.mrf.mxu0
  %v6627 = vadd.f32 0.0, %v6626
  %v6628 = vpop.f32.mrf.mxu0
  %v6629 = vpop.f32.mrf.mxu0
  %v6630 = vadd.f32 0.0, %v6629
  %v6631 = vpop.f32.mrf.mxu0
  %6632 = vmatprep.mubr.bf16.mxu0 0
  %6633 = vmatmul.mubr.bf16.gmra.mxu0 %v5366
  %v6634 = vpop.f32.mrf.mxu0
  %v6635 = vadd.f32 0.0, %v6634
  %v6636 = vpop.f32.mrf.mxu0
  %v6637 = vpop.f32.mrf.mxu0
  %v6638 = vadd.f32 0.0, %v6637
  %v6639 = vpop.f32.mrf.mxu0
  %6640 = vmatprep.mubr.bf16.mxu0 0
  %6641 = vmatmul.mubr.bf16.gmra.mxu0 %v5369
  %v6642 = vpop.f32.mrf.mxu0
  %v6643 = vadd.f32 0.0, %v6642
  %v6644 = vpop.f32.mrf.mxu0
  %v6645 = vpop.f32.mrf.mxu0
  %v6646 = vadd.f32 0.0, %v6645
  %v6647 = vpop.f32.mrf.mxu0
  %6648 = vmatprep.mubr.bf16.mxu0 0
  %6649 = vmatmul.mubr.bf16.gmra.mxu0 %v5372
  %v6650 = vpop.f32.mrf.mxu0
  %v6651 = vadd.f32 0.0, %v6650
  %v6652 = vpop.f32.mrf.mxu0
  %v6653 = vpop.f32.mrf.mxu0
  %v6654 = vadd.f32 0.0, %v6653
  %v6655 = vpop.f32.mrf.mxu0
  %6656 = vmatprep.mubr.bf16.mxu0 0
  %6657 = vmatmul.mubr.bf16.gmra.mxu0 %v5375
  %v6658 = vpop.f32.mrf.mxu0
  %v6659 = vadd.f32 0.0, %v6658
  %v6660 = vpop.f32.mrf.mxu0
  %v6661 = vpop.f32.mrf.mxu0
  %v6662 = vadd.f32 0.0, %v6661
  %v6663 = vpop.f32.mrf.mxu0
  %6664 = vmatprep.mubr.bf16.mxu0 0
  %6665 = vmatmul.mubr.bf16.gmra.mxu0 %v5378
  %v6666 = vpop.f32.mrf.mxu0
  %v6667 = vadd.f32 0.0, %v6666
  %v6668 = vpop.f32.mrf.mxu0
  %v6669 = vpop.f32.mrf.mxu0
  %v6670 = vadd.f32 0.0, %v6669
  %v6671 = vpop.f32.mrf.mxu0
  %6672 = vmatprep.mubr.bf16.mxu0 0
  %6673 = vmatmul.mubr.bf16.gmra.mxu0 %v5381
  %v6674 = vpop.f32.mrf.mxu0
  %v6675 = vadd.f32 0.0, %v6674
  %v6676 = vpop.f32.mrf.mxu0
  %v6677 = vpop.f32.mrf.mxu0
  %v6678 = vadd.f32 0.0, %v6677
  %v6679 = vpop.f32.mrf.mxu0
  %6680 = vmatprep.mubr.bf16.mxu0 0
  %6681 = vmatmul.mubr.bf16.gmra.mxu0 %v5384
  %v6682 = vpop.f32.mrf.mxu0
  %v6683 = vadd.f32 0.0, %v6682
  %v6684 = vpop.f32.mrf.mxu0
  %v6685 = vpop.f32.mrf.mxu0
  %v6686 = vadd.f32 0.0, %v6685
  %v6687 = vpop.f32.mrf.mxu0
  %6688 = vmatprep.mubr.bf16.mxu0 0
  %6689 = vmatmul.mubr.bf16.gmra.mxu0 %v5387
  %v6690 = vpop.f32.mrf.mxu0
  %v6691 = vadd.f32 0.0, %v6690
  %v6692 = vpop.f32.mrf.mxu0
  %v6693 = vpop.f32.mrf.mxu0
  %v6694 = vadd.f32 0.0, %v6693
  %v6695 = vpop.f32.mrf.mxu0
  %6696 = vdwg.mxu0
  %v6697 = vpack.c.bf16 %v6574, %v6571
  %v6698 = vpack.c.bf16 %v6582, %v6579
  %v6699 = vpack.c.bf16 %v6590, %v6587
  %v6700 = vpack.c.bf16 %v6598, %v6595
  %v6701 = vpack.c.bf16 %v6606, %v6603
  %v6702 = vpack.c.bf16 %v6614, %v6611
  %v6703 = vpack.c.bf16 %v6622, %v6619
  %v6704 = vpack.c.bf16 %v6630, %v6627
  %v6705 = vpack.c.bf16 %v6638, %v6635
  %v6706 = vpack.c.bf16 %v6646, %v6643
  %v6707 = vpack.c.bf16 %v6654, %v6651
  %v6708 = vpack.c.bf16 %v6662, %v6659
  %v6709 = vpack.c.bf16 %v6670, %v6667
  %v6710 = vpack.c.bf16 %v6678, %v6675
  %v6711 = vpack.c.bf16 %v6686, %v6683
  %v6712 = vpack.c.bf16 %v6694, %v6691
  %s6713 = scalar_lea.vmem %s8, 384
  %v6714 = vld [vmem:[%s6713] sm:$0xff]
  %v6715 = vld [vmem:[%s6713 + $0x8] sm:$0xff]
  %v6716 = vld [vmem:[%s6713 + $0x10] sm:$0xff]
  %v6717 = vld [vmem:[%s6713 + $0x18] sm:$0xff]
  %v6718 = vld [vmem:[%s6713 + $0x20] sm:$0xff]
  %v6719 = vld [vmem:[%s6713 + $0x28] sm:$0xff]
  %v6720 = vld [vmem:[%s6713 + $0x30] sm:$0xff]
  %v6721 = vld [vmem:[%s6713 + $0x38] sm:$0xff]
  %v6722 = vld [vmem:[%s6713 + $0x40] sm:$0xff]
  %v6723 = vld [vmem:[%s6713 + $0x48] sm:$0xff]
  %v6724 = vld [vmem:[%s6713 + $0x50] sm:$0xff]
  %v6725 = vld [vmem:[%s6713 + $0x58] sm:$0xff]
  %v6726 = vld [vmem:[%s6713 + $0x60] sm:$0xff]
  %v6727 = vld [vmem:[%s6713 + $0x68] sm:$0xff]
  %v6728 = vld [vmem:[%s6713 + $0x70] sm:$0xff]
  %v6729 = vld [vmem:[%s6713 + $0x78] sm:$0xff]
  %v6746 = vunpack.c.l.b16 %v6714
  %v6747 = vunpack.c.h.b16 %v6714
  %v6748 = vunpack.c.l.b16 %v6715
  %v6749 = vunpack.c.h.b16 %v6715
  %v6750 = vunpack.c.l.b16 %v6716
  %v6751 = vunpack.c.h.b16 %v6716
  %v6752 = vunpack.c.l.b16 %v6717
  %v6753 = vunpack.c.h.b16 %v6717
  %v6754 = vunpack.c.l.b16 %v6718
  %v6755 = vunpack.c.h.b16 %v6718
  %v6756 = vunpack.c.l.b16 %v6719
  %v6757 = vunpack.c.h.b16 %v6719
  %v6758 = vunpack.c.l.b16 %v6720
  %v6759 = vunpack.c.h.b16 %v6720
  %v6760 = vunpack.c.l.b16 %v6721
  %v6761 = vunpack.c.h.b16 %v6721
  %v6762 = vunpack.c.l.b16 %v6722
  %v6763 = vunpack.c.h.b16 %v6722
  %v6764 = vunpack.c.l.b16 %v6723
  %v6765 = vunpack.c.h.b16 %v6723
  %v6766 = vunpack.c.l.b16 %v6724
  %v6767 = vunpack.c.h.b16 %v6724
  %v6768 = vunpack.c.l.b16 %v6725
  %v6769 = vunpack.c.h.b16 %v6725
  %v6770 = vunpack.c.l.b16 %v6726
  %v6771 = vunpack.c.h.b16 %v6726
  %v6772 = vunpack.c.l.b16 %v6727
  %v6773 = vunpack.c.h.b16 %v6727
  %v6774 = vunpack.c.l.b16 %v6728
  %v6775 = vunpack.c.h.b16 %v6728
  %v6776 = vunpack.c.l.b16 %v6729
  %v6777 = vunpack.c.h.b16 %v6729
  %v6778 = vpack.c.b16 %v6748, %v6746
  %v6779 = vpack.c.b16 %v6749, %v6747
  %v6780 = vpack.c.b16 %v6752, %v6750
  %v6781 = vpack.c.b16 %v6753, %v6751
  %v6782 = vpack.c.b16 %v6756, %v6754
  %v6783 = vpack.c.b16 %v6757, %v6755
  %v6784 = vpack.c.b16 %v6760, %v6758
  %v6785 = vpack.c.b16 %v6761, %v6759
  %v6786 = vpack.c.b16 %v6764, %v6762
  %v6787 = vpack.c.b16 %v6765, %v6763
  %v6788 = vpack.c.b16 %v6768, %v6766
  %v6789 = vpack.c.b16 %v6769, %v6767
  %v6790 = vpack.c.b16 %v6772, %v6770
  %v6791 = vpack.c.b16 %v6773, %v6771
  %v6792 = vpack.c.b16 %v6776, %v6774
  %v6793 = vpack.c.b16 %v6777, %v6775
  %6810 = vmatprep.subr.bf16.mxu0 0
  %6811 = vmatpush1.bf16.msra.mxu0 %v6704
  %6812 = vmatprep.subr.bf16.mxu0 0
  %6813 = vmatpush1.bf16.msra.mxu0 %v6703
  %6814 = vmatprep.subr.bf16.mxu0 0
  %6815 = vmatpush1.bf16.msra.mxu0 %v6702
  %6816 = vmatprep.subr.bf16.mxu0 0
  %6817 = vmatpush1.bf16.msra.mxu0 %v6701
  %6818 = vmatprep.subr.bf16.mxu0 0
  %6819 = vmatpush1.bf16.msra.mxu0 %v6700
  %6820 = vmatprep.subr.bf16.mxu0 0
  %6821 = vmatpush1.bf16.msra.mxu0 %v6699
  %6822 = vmatprep.subr.bf16.mxu0 0
  %6823 = vmatpush1.bf16.msra.mxu0 %v6698
  %6824 = vmatprep.subr.bf16.mxu0 0
  %6825 = vmatpush1.bf16.msra.mxu0 %v6697
  %6826 = vmatprep.subr.bf16.mxu0 0
  %6827 = vmatpush2.bf16.msra.mxu0 %v6712
  %6828 = vmatprep.subr.bf16.mxu0 0
  %6829 = vmatpush2.bf16.msra.mxu0 %v6711
  %6830 = vmatprep.subr.bf16.mxu0 0
  %6831 = vmatpush2.bf16.msra.mxu0 %v6710
  %6832 = vmatprep.subr.bf16.mxu0 0
  %6833 = vmatpush2.bf16.msra.mxu0 %v6709
  %6834 = vmatprep.subr.bf16.mxu0 0
  %6835 = vmatpush2.bf16.msra.mxu0 %v6708
  %6836 = vmatprep.subr.bf16.mxu0 0
  %6837 = vmatpush2.bf16.msra.mxu0 %v6707
  %6838 = vmatprep.subr.bf16.mxu0 0
  %6839 = vmatpush2.bf16.msra.mxu0 %v6706
  %6840 = vmatprep.subr.bf16.mxu0 0
  %6841 = vmatpush2.bf16.msra.mxu0 %v6705
  %6842 = vmatprep.mubr.bf16.mxu0 %v6779
  %6843 = vmatmul.mubr.bf16.gmra.mxu0 %v6778
  %v6844 = vpop.f32.mrf.mxu0
  %v6845 = vadd.f32 0.0, %v6844
  %v6846 = vpop.f32.mrf.mxu0
  %v6847 = vpop.f32.mrf.mxu0
  %v6848 = vadd.f32 0.0, %v6847
  %v6849 = vpop.f32.mrf.mxu0
  %6850 = vmatprep.mubr.bf16.mxu0 %v6781
  %6851 = vmatmul.mubr.bf16.gmra.mxu0 %v6780
  %v6852 = vpop.f32.mrf.mxu0
  %v6853 = vadd.f32 0.0, %v6852
  %v6854 = vpop.f32.mrf.mxu0
  %v6855 = vpop.f32.mrf.mxu0
  %v6856 = vadd.f32 0.0, %v6855
  %v6857 = vpop.f32.mrf.mxu0
  %6858 = vmatprep.mubr.bf16.mxu0 %v6783
  %6859 = vmatmul.mubr.bf16.gmra.mxu0 %v6782
  %v6860 = vpop.f32.mrf.mxu0
  %v6861 = vadd.f32 0.0, %v6860
  %v6862 = vpop.f32.mrf.mxu0
  %v6863 = vpop.f32.mrf.mxu0
  %v6864 = vadd.f32 0.0, %v6863
  %v6865 = vpop.f32.mrf.mxu0
  %6866 = vmatprep.mubr.bf16.mxu0 %v6785
  %6867 = vmatmul.mubr.bf16.gmra.mxu0 %v6784
  %v6868 = vpop.f32.mrf.mxu0
  %v6869 = vadd.f32 0.0, %v6868
  %v6870 = vpop.f32.mrf.mxu0
  %v6871 = vpop.f32.mrf.mxu0
  %v6872 = vadd.f32 0.0, %v6871
  %v6873 = vpop.f32.mrf.mxu0
  %6874 = vmatprep.mubr.bf16.mxu0 %v6787
  %6875 = vmatmul.mubr.bf16.gmra.mxu0 %v6786
  %v6876 = vpop.f32.mrf.mxu0
  %v6877 = vadd.f32 0.0, %v6876
  %v6878 = vpop.f32.mrf.mxu0
  %v6879 = vpop.f32.mrf.mxu0
  %v6880 = vadd.f32 0.0, %v6879
  %v6881 = vpop.f32.mrf.mxu0
  %6882 = vmatprep.mubr.bf16.mxu0 %v6789
  %6883 = vmatmul.mubr.bf16.gmra.mxu0 %v6788
  %v6884 = vpop.f32.mrf.mxu0
  %v6885 = vadd.f32 0.0, %v6884
  %v6886 = vpop.f32.mrf.mxu0
  %v6887 = vpop.f32.mrf.mxu0
  %v6888 = vadd.f32 0.0, %v6887
  %v6889 = vpop.f32.mrf.mxu0
  %6890 = vmatprep.mubr.bf16.mxu0 %v6791
  %6891 = vmatmul.mubr.bf16.gmra.mxu0 %v6790
  %v6892 = vpop.f32.mrf.mxu0
  %v6893 = vadd.f32 0.0, %v6892
  %v6894 = vpop.f32.mrf.mxu0
  %v6895 = vpop.f32.mrf.mxu0
  %v6896 = vadd.f32 0.0, %v6895
  %v6897 = vpop.f32.mrf.mxu0
  %6898 = vmatprep.mubr.bf16.mxu0 %v6793
  %6899 = vmatmul.mubr.bf16.gmra.mxu0 %v6792
  %v6900 = vpop.f32.mrf.mxu0
  %v6901 = vadd.f32 0.0, %v6900
  %v6902 = vpop.f32.mrf.mxu0
  %v6903 = vpop.f32.mrf.mxu0
  %v6904 = vadd.f32 0.0, %v6903
  %v6905 = vpop.f32.mrf.mxu0
  %6906 = vdwg.mxu0
  %v6907 = vadd.f32 %v6515, %v6845
  %v6908 = vadd.f32 %v6516, %v6848
  %v6909 = vadd.f32 %v6517, %v6853
  %v6910 = vadd.f32 %v6518, %v6856
  %v6911 = vadd.f32 %v6519, %v6861
  %v6912 = vadd.f32 %v6520, %v6864
  %v6913 = vadd.f32 %v6521, %v6869
  %v6914 = vadd.f32 %v6522, %v6872
  %v6915 = vadd.f32 %v6523, %v6877
  %v6916 = vadd.f32 %v6524, %v6880
  %v6917 = vadd.f32 %v6525, %v6885
  %v6918 = vadd.f32 %v6526, %v6888
  %v6919 = vadd.f32 %v6527, %v6893
  %v6920 = vadd.f32 %v6528, %v6896
  %v6921 = vadd.f32 %v6529, %v6901
  %v6922 = vadd.f32 %v6530, %v6904
  %v6923 = vld [vmem:[%s9] sm:$0xff]
  %v6924 = vld [vmem:[%s9 + $0x8] sm:$0xff]
  %v6925 = vld [vmem:[%s9 + $0x10] sm:$0xff]
  %v6926 = vld [vmem:[%s9 + $0x18] sm:$0xff]
  %v6927 = vld [vmem:[%s9 + $0x20] sm:$0xff]
  %v6928 = vld [vmem:[%s9 + $0x28] sm:$0xff]
  %v6929 = vld [vmem:[%s9 + $0x30] sm:$0xff]
  %v6930 = vld [vmem:[%s9 + $0x38] sm:$0xff]
  %v6931 = vld [vmem:[%s9 + $0x40] sm:$0xff]
  %v6932 = vld [vmem:[%s9 + $0x48] sm:$0xff]
  %v6933 = vld [vmem:[%s9 + $0x50] sm:$0xff]
  %v6934 = vld [vmem:[%s9 + $0x58] sm:$0xff]
  %v6935 = vld [vmem:[%s9 + $0x60] sm:$0xff]
  %v6936 = vld [vmem:[%s9 + $0x68] sm:$0xff]
  %v6937 = vld [vmem:[%s9 + $0x70] sm:$0xff]
  %v6938 = vld [vmem:[%s9 + $0x78] sm:$0xff]
  %6940 = vset.pattern.permute.xlu0 0
  %6941 = vperm.xlu0 %6940, %v6923
  %v6942 = vpop.permute.xlu0 %6941
  %6945 = vset.pattern.permute.xlu0 0
  %6946 = vperm.xlu0 %6945, %v6924
  %v6947 = vpop.permute.xlu0 %6946
  %6950 = vset.pattern.permute.xlu0 0
  %6951 = vperm.xlu0 %6950, %v6925
  %v6952 = vpop.permute.xlu0 %6951
  %6955 = vset.pattern.permute.xlu0 0
  %6956 = vperm.xlu0 %6955, %v6926
  %v6957 = vpop.permute.xlu0 %6956
  %6960 = vset.pattern.permute.xlu0 0
  %6961 = vperm.xlu0 %6960, %v6927
  %v6962 = vpop.permute.xlu0 %6961
  %6965 = vset.pattern.permute.xlu0 0
  %6966 = vperm.xlu0 %6965, %v6928
  %v6967 = vpop.permute.xlu0 %6966
  %6970 = vset.pattern.permute.xlu0 0
  %6971 = vperm.xlu0 %6970, %v6929
  %v6972 = vpop.permute.xlu0 %6971
  %6975 = vset.pattern.permute.xlu0 0
  %6976 = vperm.xlu0 %6975, %v6930
  %v6977 = vpop.permute.xlu0 %6976
  %6980 = vset.pattern.permute.xlu0 0
  %6981 = vperm.xlu0 %6980, %v6931
  %v6982 = vpop.permute.xlu0 %6981
  %6985 = vset.pattern.permute.xlu0 0
  %6986 = vperm.xlu0 %6985, %v6932
  %v6987 = vpop.permute.xlu0 %6986
  %6990 = vset.pattern.permute.xlu0 0
  %6991 = vperm.xlu0 %6990, %v6933
  %v6992 = vpop.permute.xlu0 %6991
  %6995 = vset.pattern.permute.xlu0 0
  %6996 = vperm.xlu0 %6995, %v6934
  %v6997 = vpop.permute.xlu0 %6996
  %7000 = vset.pattern.permute.xlu0 0
  %7001 = vperm.xlu0 %7000, %v6935
  %v7002 = vpop.permute.xlu0 %7001
  %7005 = vset.pattern.permute.xlu0 0
  %7006 = vperm.xlu0 %7005, %v6936
  %v7007 = vpop.permute.xlu0 %7006
  %7010 = vset.pattern.permute.xlu0 0
  %7011 = vperm.xlu0 %7010, %v6937
  %v7012 = vpop.permute.xlu0 %7011
  %7015 = vset.pattern.permute.xlu0 0
  %7016 = vperm.xlu0 %7015, %v6938
  %v7017 = vpop.permute.xlu0 %7016
  %v7019 = vadd.f32 %v6907, %v6942
  %v7020 = vadd.f32 %v6908, %v6947
  %v7021 = vadd.f32 %v6909, %v6952
  %v7022 = vadd.f32 %v6910, %v6957
  %v7023 = vadd.f32 %v6911, %v6962
  %v7024 = vadd.f32 %v6912, %v6967
  %v7025 = vadd.f32 %v6913, %v6972
  %v7026 = vadd.f32 %v6914, %v6977
  %v7027 = vadd.f32 %v6915, %v6982
  %v7028 = vadd.f32 %v6916, %v6987
  %v7029 = vadd.f32 %v6917, %v6992
  %v7030 = vadd.f32 %v6918, %v6997
  %v7031 = vadd.f32 %v6919, %v7002
  %v7032 = vadd.f32 %v6920, %v7007
  %v7033 = vadd.f32 %v6921, %v7012
  %v7034 = vadd.f32 %v6922, %v7017
  %vm7035 = vcmp.ge.f32.partialorder %v7019, 0.0
  %vm7036 = vcmp.ge.f32.partialorder %v7020, 0.0
  %vm7037 = vcmp.ge.f32.partialorder %v7021, 0.0
  %vm7038 = vcmp.ge.f32.partialorder %v7022, 0.0
  %vm7039 = vcmp.ge.f32.partialorder %v7023, 0.0
  %vm7040 = vcmp.ge.f32.partialorder %v7024, 0.0
  %vm7041 = vcmp.ge.f32.partialorder %v7025, 0.0
  %vm7042 = vcmp.ge.f32.partialorder %v7026, 0.0
  %vm7043 = vcmp.ge.f32.partialorder %v7027, 0.0
  %vm7044 = vcmp.ge.f32.partialorder %v7028, 0.0
  %vm7045 = vcmp.ge.f32.partialorder %v7029, 0.0
  %vm7046 = vcmp.ge.f32.partialorder %v7030, 0.0
  %vm7047 = vcmp.ge.f32.partialorder %v7031, 0.0
  %vm7048 = vcmp.ge.f32.partialorder %v7032, 0.0
  %vm7049 = vcmp.ge.f32.partialorder %v7033, 0.0
  %vm7050 = vcmp.ge.f32.partialorder %v7034, 0.0
  %v7051 = vmul.f32 %v7019, 0.01
  %v7052 = vmul.f32 %v7020, 0.01
  %v7053 = vmul.f32 %v7021, 0.01
  %v7054 = vmul.f32 %v7022, 0.01
  %v7055 = vmul.f32 %v7023, 0.01
  %v7056 = vmul.f32 %v7024, 0.01
  %v7057 = vmul.f32 %v7025, 0.01
  %v7058 = vmul.f32 %v7026, 0.01
  %v7059 = vmul.f32 %v7027, 0.01
  %v7060 = vmul.f32 %v7028, 0.01
  %v7061 = vmul.f32 %v7029, 0.01
  %v7062 = vmul.f32 %v7030, 0.01
  %v7063 = vmul.f32 %v7031, 0.01
  %v7064 = vmul.f32 %v7032, 0.01
  %v7065 = vmul.f32 %v7033, 0.01
  %v7066 = vmul.f32 %v7034, 0.01
  %v7067 = vsel %vm7035, %v7019, %v7051
  %v7068 = vsel %vm7036, %v7020, %v7052
  %v7069 = vsel %vm7037, %v7021, %v7053
  %v7070 = vsel %vm7038, %v7022, %v7054
  %v7071 = vsel %vm7039, %v7023, %v7055
  %v7072 = vsel %vm7040, %v7024, %v7056
  %v7073 = vsel %vm7041, %v7025, %v7057
  %v7074 = vsel %vm7042, %v7026, %v7058
  %v7075 = vsel %vm7043, %v7027, %v7059
  %v7076 = vsel %vm7044, %v7028, %v7060
  %v7077 = vsel %vm7045, %v7029, %v7061
  %v7078 = vsel %vm7046, %v7030, %v7062
  %v7079 = vsel %vm7047, %v7031, %v7063
  %v7080 = vsel %vm7048, %v7032, %v7064
  %v7081 = vsel %vm7049, %v7033, %v7065
  %v7082 = vsel %vm7050, %v7034, %v7066
  %vm7083 = vcmask 31744
  %7084 = vst.msk [vmem:[%s10] sm:$0xff] %vm7083, %v7067
  %7085 = vst.msk [vmem:[%s10 + $0x8] sm:$0xff] %vm7083, %v7068
  %7086 = vst.msk [vmem:[%s10 + $0x10] sm:$0xff] %vm7083, %v7069
  %7087 = vst.msk [vmem:[%s10 + $0x18] sm:$0xff] %vm7083, %v7070
  %7088 = vst.msk [vmem:[%s10 + $0x20] sm:$0xff] %vm7083, %v7071
  %7089 = vst.msk [vmem:[%s10 + $0x28] sm:$0xff] %vm7083, %v7072
  %7090 = vst.msk [vmem:[%s10 + $0x30] sm:$0xff] %vm7083, %v7073
  %7091 = vst.msk [vmem:[%s10 + $0x38] sm:$0xff] %vm7083, %v7074
  %7092 = vst.msk [vmem:[%s10 + $0x40] sm:$0xff] %vm7083, %v7075
  %7093 = vst.msk [vmem:[%s10 + $0x48] sm:$0xff] %vm7083, %v7076
  %7094 = vst.msk [vmem:[%s10 + $0x50] sm:$0xff] %vm7083, %v7077
  %7095 = vst.msk [vmem:[%s10 + $0x58] sm:$0xff] %vm7083, %v7078
  %7096 = vst.msk [vmem:[%s10 + $0x60] sm:$0xff] %vm7083, %v7079
  %7097 = vst.msk [vmem:[%s10 + $0x68] sm:$0xff] %vm7083, %v7080
  %7098 = vst.msk [vmem:[%s10 + $0x70] sm:$0xff] %vm7083, %v7081
  %7099 = vst.msk [vmem:[%s10 + $0x78] sm:$0xff] %vm7083, %v7082
  // Predicated region
  $region42: #{discriminator_deep_forward.1} parent=0 // pred_check
    _
  $region43: #{discriminator_deep_forward.1} parent=0 // pred_check_branch
    %7101 = sbr.rel (0) target = $region45
  $region44: #{discriminator_deep_forward.1} parent=0 // pred_region
    _
  $region45: #{discriminator_deep_forward.1} parent=0 // pred_fallthru
    _
  // Predicated region
  $region46: #{discriminator_deep_forward.1} parent=0 // pred_check
    _
  $region47: #{discriminator_deep_forward.1} parent=0 // pred_check_branch
    %7103 = sbr.rel (0) target = $region49
  $region48: #{discriminator_deep_forward.1} parent=0 // pred_region
    _
  $region49: #{discriminator_deep_forward.1} parent=0 // pred_fallthru
    _

</llo_original>
